<compile_context>
chip_gen: v7x
topology: tpu7x:2x2x1
jax: 0.10.0
libtpu: 0.0.40
codegen_flags: <defaults>
</compile_context>

<pallas_src>
import functools

import jax
import jax.numpy as jnp
from jax.experimental import pallas as pl
from jax.experimental.pallas import tpu as pltpu

TOP_K = 50
MIN_TOKENS_TO_KEEP = 5

BATCH = 2
VOCAB = 512          # multiple of 128 (lane-dense packing)
SEQ_IDS = 8          # number of previously generated ids fed to the penalty
LANES = 128


# ---------------- fused Pallas kernel ----------------
def _penalty_sample_kernel(x_ref, ids_ref, params_ref, probs_ref, token_ref, *,
                           top_k, min_keep, vocab, seq, chunks, lanes):
    B, C, L = x_ref.shape
    K = top_k
    NEG_INF = jnp.float32(-jnp.inf)

    x = x_ref[...]                        # [B, C, L] f32 packed logits
    ids = ids_ref[...]                    # [B, 1, S] int32
    params = params_ref[...]              # [B, 1, 4] f32: top_p, 1/temp, pen, 1/pen

    top_p = params[:, :, 0:1]             # [B, 1, 1]
    inv_t = params[:, :, 1:2]
    pen = params[:, :, 2:3]
    inv_pen = params[:, :, 3:4]

    # Global vocab index of every element of the packed view.
    c_iota = jax.lax.broadcasted_iota(jnp.int32, (B, C, L), 1)
    l_iota = jax.lax.broadcasted_iota(jnp.int32, (B, C, L), 2)
    gidx_f = (c_iota * L + l_iota).astype(jnp.float32)        # exact: vocab < 2^24

    # --- repetition penalty: gather -> penalize -> scatter == masked update ---
    ids_f = ids.astype(jnp.float32)
    member = gidx_f == ids_f[:, :, 0:1]
    for s in range(1, seq):                                   # S is small & static
        member = member | (gidx_f == ids_f[:, :, s:s + 1])
    scale = jnp.where(x < 0.0, pen, inv_pen)                  # multiply-only penalty
    x = jnp.where(member, x * scale, x)

    # --- top-k: K unrolled arg-max passes + running softmax-numerator prefix ---
    k_iota = jax.lax.broadcasted_iota(jnp.int32, (B, 1, L), 2)
    vals = jnp.full((B, 1, L), NEG_INF, jnp.float32)          # top-k values (desc)
    toks = jnp.zeros((B, 1, L), jnp.float32)                  # top-k indices (f32)
    prefix = jnp.zeros((B, 1, L), jnp.float32)                # cumsum of exp((v-v0)/T)
    run = jnp.zeros((B, 1, 1), jnp.float32)
    v0 = jnp.zeros((B, 1, 1), jnp.float32)
    big = jnp.float32(vocab)

    xc = x
    for k in range(K):                                        # fully unrolled
        # per-batch max: 4-sublane reduce then lane reduce (single-vreg XLU ops).
        m = jnp.max(jnp.max(xc, axis=1, keepdims=True), axis=2, keepdims=True)
        # lowest vocab index achieving the max (matches topk tie-breaking).
        cand = jnp.where(xc == m, gidx_f, big)
        idx = jnp.min(jnp.min(cand, axis=1, keepdims=True), axis=2, keepdims=True)
        if k == 0:
            v0 = m
        sel = k_iota == k
        vals = jnp.where(sel, m, vals)
        toks = jnp.where(sel, idx, toks)
        # running numerator of softmax(vals / temperature) and its prefix sums;
        # EUP/VPU side-work, off the serial arg-max critical path.
        run = run + jnp.exp((m - v0) * inv_t)
        prefix = jnp.where(sel, run, prefix)
        # knock the winner out for the next pass.
        xc = jnp.where(gidx_f == idx, NEG_INF, xc)

    # --- temperature, nucleus (top-p) filter, final softmax -------------------
    logits_k = vals * inv_t                                   # padding stays -inf
    total = run                                               # softmax denominator sum
    # cum < top_p  <=>  prefix < top_p * total   (total > 0, no [B,K] divide)
    keep = (prefix < top_p * total) | (k_iota < min_keep)
    valid = k_iota < K
    filtered = jnp.where(valid, jnp.where(keep, logits_k, jnp.float32(-1000.0)),
                         NEG_INF)
    mx = jnp.max(filtered, axis=2, keepdims=True)
    e = jnp.exp(filtered - mx)                                # padding -> exactly 0
    probs_ref[...] = e / jnp.sum(e, axis=2, keepdims=True)
    token_ref[...] = toks.astype(jnp.int32)


def penalty_sample_head(m_logits, input_ids, top_p, temperature, penalty, *,
                        top_k=TOP_K, min_tokens_to_keep=MIN_TOKENS_TO_KEEP):
    B, V = m_logits.shape
    S = input_ids.shape[1]
    assert V % LANES == 0, "vocab must be a multiple of 128 (lane-dense packing)"
    assert top_k <= LANES, "top_k is carried in a single 128-lane vreg"
    assert V < (1 << 24), "f32 index carrier is exact only for vocab < 2^24"
    C = V // LANES

    # Lane-dense packed view: each batch row becomes one (C x 128) tile (free view).
    x3 = m_logits.astype(jnp.float32).reshape(B, C, LANES)
    ids3 = input_ids.astype(jnp.int32).reshape(B, 1, S)

    def as_col(v):
        return jnp.broadcast_to(jnp.asarray(v, jnp.float32).reshape(-1, 1), (B, 1))

    top_p_c = as_col(top_p)
    temp_c = as_col(temperature)
    pen_c = as_col(penalty)
    # Single packed scalar stream: [top_p, 1/temp, pen, 1/pen] (exact reciprocals).
    params3 = jnp.stack([top_p_c, 1.0 / temp_c, pen_c, 1.0 / pen_c], axis=-1)

    kern = functools.partial(_penalty_sample_kernel, top_k=top_k,
                             min_keep=min_tokens_to_keep, vocab=V, seq=S,
                             chunks=C, lanes=LANES)
    vmem = pl.BlockSpec(memory_space=pltpu.MemorySpace.VMEM)
    # TODO(synk): at production sizes add a batch grid (dimension_semantics=
    # ("parallel",)) to use v7x's second TensorCore and block the vocab axis to
    # stay under the scoped VMEM limit; at B=2, V=512 one invocation is optimal.
    probs_pad, token_pad = pl.pallas_call(
        kern,
        out_shape=(jax.ShapeDtypeStruct((B, 1, LANES), jnp.float32),
                   jax.ShapeDtypeStruct((B, 1, LANES), jnp.int32)),
        in_specs=[vmem, vmem, vmem],
        out_specs=(vmem, vmem),
    )(x3, ids3, params3)
    return probs_pad[:, 0, :top_k], token_pad[:, 0, :top_k]


# ---------------- pure-JAX reference (mirrors the PyTorch module) ----------------
def reference(m_logits, input_ids, top_p, temperature, penalty,
              top_k=TOP_K, min_keep=MIN_TOKENS_TO_KEEP):
    gathered = jnp.take_along_axis(m_logits, input_ids, axis=1)
    pen = penalty.reshape(-1, 1)
    penalized = jnp.where(gathered < 0, gathered * pen, gathered / pen)
    scat = jax.vmap(lambda row, idx, val: row.at[idx].set(val))(
        m_logits, input_ids, penalized)
    vals, token = jax.lax.top_k(scat, top_k)
    vals = vals / temperature.reshape(-1, 1)
    probs = jax.nn.softmax(vals, axis=1)
    cum = jnp.cumsum(probs, axis=1)
    keep = (cum < top_p.reshape(-1, 1)) | (jnp.arange(top_k)[None, :] < min_keep)
    filtered = jnp.where(keep, vals, jnp.float32(-1000.0))
    return jax.nn.softmax(filtered, axis=1), token


if __name__ == "__main__":
    key = jax.random.PRNGKey(0)
    k_logits, k_ids = jax.random.split(key, 2)

    m_logits = jax.random.normal(k_logits, (BATCH, VOCAB), jnp.float32) * 3.0
    input_ids = jax.random.randint(k_ids, (BATCH, SEQ_IDS), 0, VOCAB, jnp.int32)
    top_p = jnp.array([[0.8], [0.95]], jnp.float32)
    temperature = jnp.array([[0.7], [1.2]], jnp.float32)
    penalty = jnp.array([[1.1], [1.3]], jnp.float32)

    fwd = jax.jit(penalty_sample_head)
    probs, token = fwd(m_logits, input_ids, top_p, temperature, penalty)
    jax.block_until_ready((probs, token))

    probs_ref, token_ref = reference(m_logits, input_ids, top_p, temperature, penalty)

    assert probs.shape == (BATCH, TOP_K) and token.shape == (BATCH, TOP_K)
    assert bool(jnp.all(token == token_ref)), "token mismatch vs reference"
    assert bool(jnp.allclose(probs, probs_ref, atol=1e-5, rtol=1e-5)), "probs mismatch vs reference"
    assert bool(jnp.allclose(jnp.sum(probs, axis=1), 1.0, atol=1e-5))
    print("KERNEL_OK")
</pallas_src>

<mosaic_0001>
module attributes {stable_mosaic.version = 11 : i64} {
  func.func @_penalty_sample_kernel(%arg0: memref<2x4x128xf32, #tpu.memory_space<vmem>>, %arg1: memref<2x1x8xi32, #tpu.memory_space<vmem>>, %arg2: memref<2x1x4xf32, #tpu.memory_space<vmem>>, %arg3: memref<2x1x128xf32, #tpu.memory_space<vmem>>, %arg4: memref<2x1x128xi32, #tpu.memory_space<vmem>>) attributes {dimension_semantics = [], scalar_prefetch = 0 : i64, scratch_operands = 0 : i64, tpu.core_type = #tpu.core_type<tc>} {
    %c0 = arith.constant 0 : index
    %c0_0 = arith.constant 0 : index
    %c0_1 = arith.constant 0 : index
    %0 = vector.load %arg0[%c0, %c0_0, %c0_1] : memref<2x4x128xf32, #tpu.memory_space<vmem>>, vector<2x4x128xf32>
    %c0_2 = arith.constant 0 : index
    %c0_3 = arith.constant 0 : index
    %c0_4 = arith.constant 0 : index
    %1 = vector.load %arg1[%c0_2, %c0_3, %c0_4] : memref<2x1x8xi32, #tpu.memory_space<vmem>>, vector<2x1x8xi32>
    %c0_5 = arith.constant 0 : index
    %c0_6 = arith.constant 0 : index
    %c0_7 = arith.constant 0 : index
    %2 = vector.load %arg2[%c0_5, %c0_6, %c0_7] : memref<2x1x4xf32, #tpu.memory_space<vmem>>, vector<2x1x4xf32>
    %3 = vector.extract_strided_slice %2 {offsets = [0, 0, 0], sizes = [2, 1, 1], strides = [1, 1, 1]} : vector<2x1x4xf32> to vector<2x1x1xf32>
    %4 = vector.extract_strided_slice %2 {offsets = [0, 0, 1], sizes = [2, 1, 1], strides = [1, 1, 1]} : vector<2x1x4xf32> to vector<2x1x1xf32>
    %5 = vector.extract_strided_slice %2 {offsets = [0, 0, 2], sizes = [2, 1, 1], strides = [1, 1, 1]} : vector<2x1x4xf32> to vector<2x1x1xf32>
    %6 = vector.extract_strided_slice %2 {offsets = [0, 0, 3], sizes = [2, 1, 1], strides = [1, 1, 1]} : vector<2x1x4xf32> to vector<2x1x1xf32>
    %7 = tpu.iota {dimensions = array<i32: 1>} : vector<2x4x128xi32>
    %8 = tpu.iota {dimensions = array<i32: 2>} : vector<2x4x128xi32>
    %c128_i32 = arith.constant 128 : i32
    %9 = vector.broadcast %c128_i32 : i32 to vector<2x4x128xi32>
    %10 = arith.muli %7, %9 : vector<2x4x128xi32>
    %11 = arith.addi %10, %8 : vector<2x4x128xi32>
    %12 = arith.sitofp %11 : vector<2x4x128xi32> to vector<2x4x128xf32>
    %13 = arith.sitofp %1 : vector<2x1x8xi32> to vector<2x1x8xf32>
    %14 = vector.extract_strided_slice %13 {offsets = [0, 0, 0], sizes = [2, 1, 1], strides = [1, 1, 1]} : vector<2x1x8xf32> to vector<2x1x1xf32>
    %15 = vector.broadcast %14 : vector<2x1x1xf32> to vector<2x4x128xf32>
    %16 = arith.cmpf oeq, %12, %15 : vector<2x4x128xf32>
    %17 = vector.extract_strided_slice %13 {offsets = [0, 0, 1], sizes = [2, 1, 1], strides = [1, 1, 1]} : vector<2x1x8xf32> to vector<2x1x1xf32>
    %18 = vector.broadcast %17 : vector<2x1x1xf32> to vector<2x4x128xf32>
    %19 = arith.cmpf oeq, %12, %18 : vector<2x4x128xf32>
    %20 = arith.ori %16, %19 : vector<2x4x128xi1>
    %21 = vector.extract_strided_slice %13 {offsets = [0, 0, 2], sizes = [2, 1, 1], strides = [1, 1, 1]} : vector<2x1x8xf32> to vector<2x1x1xf32>
    %22 = vector.broadcast %21 : vector<2x1x1xf32> to vector<2x4x128xf32>
    %23 = arith.cmpf oeq, %12, %22 : vector<2x4x128xf32>
    %24 = arith.ori %20, %23 : vector<2x4x128xi1>
    %25 = vector.extract_strided_slice %13 {offsets = [0, 0, 3], sizes = [2, 1, 1], strides = [1, 1, 1]} : vector<2x1x8xf32> to vector<2x1x1xf32>
    %26 = vector.broadcast %25 : vector<2x1x1xf32> to vector<2x4x128xf32>
    %27 = arith.cmpf oeq, %12, %26 : vector<2x4x128xf32>
    %28 = arith.ori %24, %27 : vector<2x4x128xi1>
    %29 = vector.extract_strided_slice %13 {offsets = [0, 0, 4], sizes = [2, 1, 1], strides = [1, 1, 1]} : vector<2x1x8xf32> to vector<2x1x1xf32>
    %30 = vector.broadcast %29 : vector<2x1x1xf32> to vector<2x4x128xf32>
    %31 = arith.cmpf oeq, %12, %30 : vector<2x4x128xf32>
    %32 = arith.ori %28, %31 : vector<2x4x128xi1>
    %33 = vector.extract_strided_slice %13 {offsets = [0, 0, 5], sizes = [2, 1, 1], strides = [1, 1, 1]} : vector<2x1x8xf32> to vector<2x1x1xf32>
    %34 = vector.broadcast %33 : vector<2x1x1xf32> to vector<2x4x128xf32>
    %35 = arith.cmpf oeq, %12, %34 : vector<2x4x128xf32>
    %36 = arith.ori %32, %35 : vector<2x4x128xi1>
    %37 = vector.extract_strided_slice %13 {offsets = [0, 0, 6], sizes = [2, 1, 1], strides = [1, 1, 1]} : vector<2x1x8xf32> to vector<2x1x1xf32>
    %38 = vector.broadcast %37 : vector<2x1x1xf32> to vector<2x4x128xf32>
    %39 = arith.cmpf oeq, %12, %38 : vector<2x4x128xf32>
    %40 = arith.ori %36, %39 : vector<2x4x128xi1>
    %41 = vector.extract_strided_slice %13 {offsets = [0, 0, 7], sizes = [2, 1, 1], strides = [1, 1, 1]} : vector<2x1x8xf32> to vector<2x1x1xf32>
    %42 = vector.broadcast %41 : vector<2x1x1xf32> to vector<2x4x128xf32>
    %43 = arith.cmpf oeq, %12, %42 : vector<2x4x128xf32>
    %44 = arith.ori %40, %43 : vector<2x4x128xi1>
    %cst = arith.constant 0.000000e+00 : f32
    %45 = vector.broadcast %cst : f32 to vector<2x4x128xf32>
    %46 = arith.cmpf olt, %0, %45 : vector<2x4x128xf32>
    %47 = vector.shape_cast %5 : vector<2x1x1xf32> to vector<2x1x1xf32>
    %48 = vector.broadcast %47 : vector<2x1x1xf32> to vector<2x4x128xf32>
    %49 = vector.shape_cast %6 : vector<2x1x1xf32> to vector<2x1x1xf32>
    %50 = vector.broadcast %49 : vector<2x1x1xf32> to vector<2x4x128xf32>
    %51 = arith.select %46, %48, %50 : vector<2x4x128xi1>, vector<2x4x128xf32>
    %52 = arith.mulf %0, %51 : vector<2x4x128xf32>
    %53 = arith.select %44, %52, %0 : vector<2x4x128xi1>, vector<2x4x128xf32>
    %54 = tpu.iota {dimensions = array<i32: 2>} : vector<2x1x128xi32>
    %cst_8 = arith.constant 0xFF800000 : f32
    %55 = vector.broadcast %cst_8 : f32 to vector<2x1x128xf32>
    %cst_9 = arith.constant 0.000000e+00 : f32
    %56 = vector.broadcast %cst_9 : f32 to vector<2x1x128xf32>
    %cst_10 = arith.constant 0.000000e+00 : f32
    %57 = vector.broadcast %cst_10 : f32 to vector<2x1x128xf32>
    %cst_11 = arith.constant 0.000000e+00 : f32
    %58 = vector.broadcast %cst_11 : f32 to vector<2x1x1xf32>
    %cst_12 = arith.constant dense<0xFF800000> : vector<2x128xf32>
    %59 = vector.multi_reduction <maximumf>, %53, %cst_12 [1] : vector<2x4x128xf32> to vector<2x128xf32>
    %60 = vector.shape_cast %59 : vector<2x128xf32> to vector<2x1x128xf32>
    %cst_13 = arith.constant dense<0xFF800000> : vector<2x1xf32>
    %61 = vector.multi_reduction <maximumf>, %60, %cst_13 [2] : vector<2x1x128xf32> to vector<2x1xf32>
    %62 = vector.shape_cast %61 : vector<2x1xf32> to vector<2x1x1xf32>
    %63 = vector.broadcast %62 : vector<2x1x1xf32> to vector<2x4x128xf32>
    %64 = arith.cmpf oeq, %53, %63 : vector<2x4x128xf32>
    %cst_14 = arith.constant 5.120000e+02 : f32
    %65 = vector.broadcast %cst_14 : f32 to vector<2x4x128xf32>
    %66 = arith.select %64, %12, %65 : vector<2x4x128xi1>, vector<2x4x128xf32>
    %cst_15 = arith.constant dense<0x7F800000> : vector<2x128xf32>
    %67 = vector.multi_reduction <minimumf>, %66, %cst_15 [1] : vector<2x4x128xf32> to vector<2x128xf32>
    %68 = vector.shape_cast %67 : vector<2x128xf32> to vector<2x1x128xf32>
    %cst_16 = arith.constant dense<0x7F800000> : vector<2x1xf32>
    %69 = vector.multi_reduction <minimumf>, %68, %cst_16 [2] : vector<2x1x128xf32> to vector<2x1xf32>
    %70 = vector.shape_cast %69 : vector<2x1xf32> to vector<2x1x1xf32>
    %c0_i32 = arith.constant 0 : i32
    %71 = vector.broadcast %c0_i32 : i32 to vector<2x1x128xi32>
    %72 = arith.cmpi eq, %54, %71 : vector<2x1x128xi32>
    %73 = vector.shape_cast %62 : vector<2x1x1xf32> to vector<2x1x1xf32>
    %74 = vector.broadcast %73 : vector<2x1x1xf32> to vector<2x1x128xf32>
    %75 = arith.select %72, %74, %55 : vector<2x1x128xi1>, vector<2x1x128xf32>
    %76 = vector.shape_cast %70 : vector<2x1x1xf32> to vector<2x1x1xf32>
    %77 = vector.broadcast %76 : vector<2x1x1xf32> to vector<2x1x128xf32>
    %78 = arith.select %72, %77, %56 : vector<2x1x128xi1>, vector<2x1x128xf32>
    %79 = arith.subf %62, %62 : vector<2x1x1xf32>
    %80 = arith.mulf %79, %4 : vector<2x1x1xf32>
    %81 = math.exp %80 : vector<2x1x1xf32>
    %82 = arith.addf %58, %81 : vector<2x1x1xf32>
    %83 = vector.shape_cast %82 : vector<2x1x1xf32> to vector<2x1x1xf32>
    %84 = vector.broadcast %83 : vector<2x1x1xf32> to vector<2x1x128xf32>
    %85 = arith.select %72, %84, %57 : vector<2x1x128xi1>, vector<2x1x128xf32>
    %86 = vector.broadcast %70 : vector<2x1x1xf32> to vector<2x4x128xf32>
    %87 = arith.cmpf oeq, %12, %86 : vector<2x4x128xf32>
    %cst_17 = arith.constant 0xFF800000 : f32
    %88 = vector.broadcast %cst_17 : f32 to vector<2x4x128xf32>
    %89 = arith.select %87, %88, %53 : vector<2x4x128xi1>, vector<2x4x128xf32>
    %cst_18 = arith.constant dense<0xFF800000> : vector<2x128xf32>
    %90 = vector.multi_reduction <maximumf>, %89, %cst_18 [1] : vector<2x4x128xf32> to vector<2x128xf32>
    %91 = vector.shape_cast %90 : vector<2x128xf32> to vector<2x1x128xf32>
    %cst_19 = arith.constant dense<0xFF800000> : vector<2x1xf32>
    %92 = vector.multi_reduction <maximumf>, %91, %cst_19 [2] : vector<2x1x128xf32> to vector<2x1xf32>
    %93 = vector.shape_cast %92 : vector<2x1xf32> to vector<2x1x1xf32>
    %94 = vector.broadcast %93 : vector<2x1x1xf32> to vector<2x4x128xf32>
    %95 = arith.cmpf oeq, %89, %94 : vector<2x4x128xf32>
    %cst_20 = arith.constant 5.120000e+02 : f32
    %96 = vector.broadcast %cst_20 : f32 to vector<2x4x128xf32>
    %97 = arith.select %95, %12, %96 : vector<2x4x128xi1>, vector<2x4x128xf32>
    %cst_21 = arith.constant dense<0x7F800000> : vector<2x128xf32>
    %98 = vector.multi_reduction <minimumf>, %97, %cst_21 [1] : vector<2x4x128xf32> to vector<2x128xf32>
    %99 = vector.shape_cast %98 : vector<2x128xf32> to vector<2x1x128xf32>
    %cst_22 = arith.constant dense<0x7F800000> : vector<2x1xf32>
    %100 = vector.multi_reduction <minimumf>, %99, %cst_22 [2] : vector<2x1x128xf32> to vector<2x1xf32>
    %101 = vector.shape_cast %100 : vector<2x1xf32> to vector<2x1x1xf32>
    %c1_i32 = arith.constant 1 : i32
    %102 = vector.broadcast %c1_i32 : i32 to vector<2x1x128xi32>
    %103 = arith.cmpi eq, %54, %102 : vector<2x1x128xi32>
    %104 = vector.shape_cast %93 : vector<2x1x1xf32> to vector<2x1x1xf32>
    %105 = vector.broadcast %104 : vector<2x1x1xf32> to vector<2x1x128xf32>
    %106 = arith.select %103, %105, %75 : vector<2x1x128xi1>, vector<2x1x128xf32>
    %107 = vector.shape_cast %101 : vector<2x1x1xf32> to vector<2x1x1xf32>
    %108 = vector.broadcast %107 : vector<2x1x1xf32> to vector<2x1x128xf32>
    %109 = arith.select %103, %108, %78 : vector<2x1x128xi1>, vector<2x1x128xf32>
    %110 = arith.subf %93, %62 : vector<2x1x1xf32>
    %111 = arith.mulf %110, %4 : vector<2x1x1xf32>
    %112 = math.exp %111 : vector<2x1x1xf32>
    %113 = arith.addf %82, %112 : vector<2x1x1xf32>
    %114 = vector.shape_cast %113 : vector<2x1x1xf32> to vector<2x1x1xf32>
    %115 = vector.broadcast %114 : vector<2x1x1xf32> to vector<2x1x128xf32>
    %116 = arith.select %103, %115, %85 : vector<2x1x128xi1>, vector<2x1x128xf32>
    %117 = vector.broadcast %101 : vector<2x1x1xf32> to vector<2x4x128xf32>
    %118 = arith.cmpf oeq, %12, %117 : vector<2x4x128xf32>
    %cst_23 = arith.constant 0xFF800000 : f32
    %119 = vector.broadcast %cst_23 : f32 to vector<2x4x128xf32>
    %120 = arith.select %118, %119, %89 : vector<2x4x128xi1>, vector<2x4x128xf32>
    %cst_24 = arith.constant dense<0xFF800000> : vector<2x128xf32>
    %121 = vector.multi_reduction <maximumf>, %120, %cst_24 [1] : vector<2x4x128xf32> to vector<2x128xf32>
    %122 = vector.shape_cast %121 : vector<2x128xf32> to vector<2x1x128xf32>
    %cst_25 = arith.constant dense<0xFF800000> : vector<2x1xf32>
    %123 = vector.multi_reduction <maximumf>, %122, %cst_25 [2] : vector<2x1x128xf32> to vector<2x1xf32>
    %124 = vector.shape_cast %123 : vector<2x1xf32> to vector<2x1x1xf32>
    %125 = vector.broadcast %124 : vector<2x1x1xf32> to vector<2x4x128xf32>
    %126 = arith.cmpf oeq, %120, %125 : vector<2x4x128xf32>
    %cst_26 = arith.constant 5.120000e+02 : f32
    %127 = vector.broadcast %cst_26 : f32 to vector<2x4x128xf32>
    %128 = arith.select %126, %12, %127 : vector<2x4x128xi1>, vector<2x4x128xf32>
    %cst_27 = arith.constant dense<0x7F800000> : vector<2x128xf32>
    %129 = vector.multi_reduction <minimumf>, %128, %cst_27 [1] : vector<2x4x128xf32> to vector<2x128xf32>
    %130 = vector.shape_cast %129 : vector<2x128xf32> to vector<2x1x128xf32>
    %cst_28 = arith.constant dense<0x7F800000> : vector<2x1xf32>
    %131 = vector.multi_reduction <minimumf>, %130, %cst_28 [2] : vector<2x1x128xf32> to vector<2x1xf32>
    %132 = vector.shape_cast %131 : vector<2x1xf32> to vector<2x1x1xf32>
    %c2_i32 = arith.constant 2 : i32
    %133 = vector.broadcast %c2_i32 : i32 to vector<2x1x128xi32>
    %134 = arith.cmpi eq, %54, %133 : vector<2x1x128xi32>
    %135 = vector.shape_cast %124 : vector<2x1x1xf32> to vector<2x1x1xf32>
    %136 = vector.broadcast %135 : vector<2x1x1xf32> to vector<2x1x128xf32>
    %137 = arith.select %134, %136, %106 : vector<2x1x128xi1>, vector<2x1x128xf32>
    %138 = vector.shape_cast %132 : vector<2x1x1xf32> to vector<2x1x1xf32>
    %139 = vector.broadcast %138 : vector<2x1x1xf32> to vector<2x1x128xf32>
    %140 = arith.select %134, %139, %109 : vector<2x1x128xi1>, vector<2x1x128xf32>
    %141 = arith.subf %124, %62 : vector<2x1x1xf32>
    %142 = arith.mulf %141, %4 : vector<2x1x1xf32>
    %143 = math.exp %142 : vector<2x1x1xf32>
    %144 = arith.addf %113, %143 : vector<2x1x1xf32>
    %145 = vector.shape_cast %144 : vector<2x1x1xf32> to vector<2x1x1xf32>
    %146 = vector.broadcast %145 : vector<2x1x1xf32> to vector<2x1x128xf32>
    %147 = arith.select %134, %146, %116 : vector<2x1x128xi1>, vector<2x1x128xf32>
    %148 = vector.broadcast %132 : vector<2x1x1xf32> to vector<2x4x128xf32>
    %149 = arith.cmpf oeq, %12, %148 : vector<2x4x128xf32>
    %cst_29 = arith.constant 0xFF800000 : f32
    %150 = vector.broadcast %cst_29 : f32 to vector<2x4x128xf32>
    %151 = arith.select %149, %150, %120 : vector<2x4x128xi1>, vector<2x4x128xf32>
    %cst_30 = arith.constant dense<0xFF800000> : vector<2x128xf32>
    %152 = vector.multi_reduction <maximumf>, %151, %cst_30 [1] : vector<2x4x128xf32> to vector<2x128xf32>
    %153 = vector.shape_cast %152 : vector<2x128xf32> to vector<2x1x128xf32>
    %cst_31 = arith.constant dense<0xFF800000> : vector<2x1xf32>
    %154 = vector.multi_reduction <maximumf>, %153, %cst_31 [2] : vector<2x1x128xf32> to vector<2x1xf32>
    %155 = vector.shape_cast %154 : vector<2x1xf32> to vector<2x1x1xf32>
    %156 = vector.broadcast %155 : vector<2x1x1xf32> to vector<2x4x128xf32>
    %157 = arith.cmpf oeq, %151, %156 : vector<2x4x128xf32>
    %cst_32 = arith.constant 5.120000e+02 : f32
    %158 = vector.broadcast %cst_32 : f32 to vector<2x4x128xf32>
    %159 = arith.select %157, %12, %158 : vector<2x4x128xi1>, vector<2x4x128xf32>
    %cst_33 = arith.constant dense<0x7F800000> : vector<2x128xf32>
    %160 = vector.multi_reduction <minimumf>, %159, %cst_33 [1] : vector<2x4x128xf32> to vector<2x128xf32>
    %161 = vector.shape_cast %160 : vector<2x128xf32> to vector<2x1x128xf32>
    %cst_34 = arith.constant dense<0x7F800000> : vector<2x1xf32>
    %162 = vector.multi_reduction <minimumf>, %161, %cst_34 [2] : vector<2x1x128xf32> to vector<2x1xf32>
    %163 = vector.shape_cast %162 : vector<2x1xf32> to vector<2x1x1xf32>
    %c3_i32 = arith.constant 3 : i32
    %164 = vector.broadcast %c3_i32 : i32 to vector<2x1x128xi32>
    %165 = arith.cmpi eq, %54, %164 : vector<2x1x128xi32>
    %166 = vector.shape_cast %155 : vector<2x1x1xf32> to vector<2x1x1xf32>
    %167 = vector.broadcast %166 : vector<2x1x1xf32> to vector<2x1x128xf32>
    %168 = arith.select %165, %167, %137 : vector<2x1x128xi1>, vector<2x1x128xf32>
    %169 = vector.shape_cast %163 : vector<2x1x1xf32> to vector<2x1x1xf32>
    %170 = vector.broadcast %169 : vector<2x1x1xf32> to vector<2x1x128xf32>
    %171 = arith.select %165, %170, %140 : vector<2x1x128xi1>, vector<2x1x128xf32>
    %172 = arith.subf %155, %62 : vector<2x1x1xf32>
    %173 = arith.mulf %172, %4 : vector<2x1x1xf32>
    %174 = math.exp %173 : vector<2x1x1xf32>
    %175 = arith.addf %144, %174 : vector<2x1x1xf32>
    %176 = vector.shape_cast %175 : vector<2x1x1xf32> to vector<2x1x1xf32>
    %177 = vector.broadcast %176 : vector<2x1x1xf32> to vector<2x1x128xf32>
    %178 = arith.select %165, %177, %147 : vector<2x1x128xi1>, vector<2x1x128xf32>
    %179 = vector.broadcast %163 : vector<2x1x1xf32> to vector<2x4x128xf32>
    %180 = arith.cmpf oeq, %12, %179 : vector<2x4x128xf32>
    %cst_35 = arith.constant 0xFF800000 : f32
    %181 = vector.broadcast %cst_35 : f32 to vector<2x4x128xf32>
    %182 = arith.select %180, %181, %151 : vector<2x4x128xi1>, vector<2x4x128xf32>
    %cst_36 = arith.constant dense<0xFF800000> : vector<2x128xf32>
    %183 = vector.multi_reduction <maximumf>, %182, %cst_36 [1] : vector<2x4x128xf32> to vector<2x128xf32>
    %184 = vector.shape_cast %183 : vector<2x128xf32> to vector<2x1x128xf32>
    %cst_37 = arith.constant dense<0xFF800000> : vector<2x1xf32>
    %185 = vector.multi_reduction <maximumf>, %184, %cst_37 [2] : vector<2x1x128xf32> to vector<2x1xf32>
    %186 = vector.shape_cast %185 : vector<2x1xf32> to vector<2x1x1xf32>
    %187 = vector.broadcast %186 : vector<2x1x1xf32> to vector<2x4x128xf32>
    %188 = arith.cmpf oeq, %182, %187 : vector<2x4x128xf32>
    %cst_38 = arith.constant 5.120000e+02 : f32
    %189 = vector.broadcast %cst_38 : f32 to vector<2x4x128xf32>
    %190 = arith.select %188, %12, %189 : vector<2x4x128xi1>, vector<2x4x128xf32>
    %cst_39 = arith.constant dense<0x7F800000> : vector<2x128xf32>
    %191 = vector.multi_reduction <minimumf>, %190, %cst_39 [1] : vector<2x4x128xf32> to vector<2x128xf32>
    %192 = vector.shape_cast %191 : vector<2x128xf32> to vector<2x1x128xf32>
    %cst_40 = arith.constant dense<0x7F800000> : vector<2x1xf32>
    %193 = vector.multi_reduction <minimumf>, %192, %cst_40 [2] : vector<2x1x128xf32> to vector<2x1xf32>
    %194 = vector.shape_cast %193 : vector<2x1xf32> to vector<2x1x1xf32>
    %c4_i32 = arith.constant 4 : i32
    %195 = vector.broadcast %c4_i32 : i32 to vector<2x1x128xi32>
    %196 = arith.cmpi eq, %54, %195 : vector<2x1x128xi32>
    %197 = vector.shape_cast %186 : vector<2x1x1xf32> to vector<2x1x1xf32>
    %198 = vector.broadcast %197 : vector<2x1x1xf32> to vector<2x1x128xf32>
    %199 = arith.select %196, %198, %168 : vector<2x1x128xi1>, vector<2x1x128xf32>
    %200 = vector.shape_cast %194 : vector<2x1x1xf32> to vector<2x1x1xf32>
    %201 = vector.broadcast %200 : vector<2x1x1xf32> to vector<2x1x128xf32>
    %202 = arith.select %196, %201, %171 : vector<2x1x128xi1>, vector<2x1x128xf32>
    %203 = arith.subf %186, %62 : vector<2x1x1xf32>
    %204 = arith.mulf %203, %4 : vector<2x1x1xf32>
    %205 = math.exp %204 : vector<2x1x1xf32>
    %206 = arith.addf %175, %205 : vector<2x1x1xf32>
    %207 = vector.shape_cast %206 : vector<2x1x1xf32> to vector<2x1x1xf32>
    %208 = vector.broadcast %207 : vector<2x1x1xf32> to vector<2x1x128xf32>
    %209 = arith.select %196, %208, %178 : vector<2x1x128xi1>, vector<2x1x128xf32>
    %210 = vector.broadcast %194 : vector<2x1x1xf32> to vector<2x4x128xf32>
    %211 = arith.cmpf oeq, %12, %210 : vector<2x4x128xf32>
    %cst_41 = arith.constant 0xFF800000 : f32
    %212 = vector.broadcast %cst_41 : f32 to vector<2x4x128xf32>
    %213 = arith.select %211, %212, %182 : vector<2x4x128xi1>, vector<2x4x128xf32>
    %cst_42 = arith.constant dense<0xFF800000> : vector<2x128xf32>
    %214 = vector.multi_reduction <maximumf>, %213, %cst_42 [1] : vector<2x4x128xf32> to vector<2x128xf32>
    %215 = vector.shape_cast %214 : vector<2x128xf32> to vector<2x1x128xf32>
    %cst_43 = arith.constant dense<0xFF800000> : vector<2x1xf32>
    %216 = vector.multi_reduction <maximumf>, %215, %cst_43 [2] : vector<2x1x128xf32> to vector<2x1xf32>
    %217 = vector.shape_cast %216 : vector<2x1xf32> to vector<2x1x1xf32>
    %218 = vector.broadcast %217 : vector<2x1x1xf32> to vector<2x4x128xf32>
    %219 = arith.cmpf oeq, %213, %218 : vector<2x4x128xf32>
    %cst_44 = arith.constant 5.120000e+02 : f32
    %220 = vector.broadcast %cst_44 : f32 to vector<2x4x128xf32>
    %221 = arith.select %219, %12, %220 : vector<2x4x128xi1>, vector<2x4x128xf32>
    %cst_45 = arith.constant dense<0x7F800000> : vector<2x128xf32>
    %222 = vector.multi_reduction <minimumf>, %221, %cst_45 [1] : vector<2x4x128xf32> to vector<2x128xf32>
    %223 = vector.shape_cast %222 : vector<2x128xf32> to vector<2x1x128xf32>
    %cst_46 = arith.constant dense<0x7F800000> : vector<2x1xf32>
    %224 = vector.multi_reduction <minimumf>, %223, %cst_46 [2] : vector<2x1x128xf32> to vector<2x1xf32>
    %225 = vector.shape_cast %224 : vector<2x1xf32> to vector<2x1x1xf32>
    %c5_i32 = arith.constant 5 : i32
    %226 = vector.broadcast %c5_i32 : i32 to vector<2x1x128xi32>
    %227 = arith.cmpi eq, %54, %226 : vector<2x1x128xi32>
    %228 = vector.shape_cast %217 : vector<2x1x1xf32> to vector<2x1x1xf32>
    %229 = vector.broadcast %228 : vector<2x1x1xf32> to vector<2x1x128xf32>
    %230 = arith.select %227, %229, %199 : vector<2x1x128xi1>, vector<2x1x128xf32>
    %231 = vector.shape_cast %225 : vector<2x1x1xf32> to vector<2x1x1xf32>
    %232 = vector.broadcast %231 : vector<2x1x1xf32> to vector<2x1x128xf32>
    %233 = arith.select %227, %232, %202 : vector<2x1x128xi1>, vector<2x1x128xf32>
    %234 = arith.subf %217, %62 : vector<2x1x1xf32>
    %235 = arith.mulf %234, %4 : vector<2x1x1xf32>
    %236 = math.exp %235 : vector<2x1x1xf32>
    %237 = arith.addf %206, %236 : vector<2x1x1xf32>
    %238 = vector.shape_cast %237 : vector<2x1x1xf32> to vector<2x1x1xf32>
    %239 = vector.broadcast %238 : vector<2x1x1xf32> to vector<2x1x128xf32>
    %240 = arith.select %227, %239, %209 : vector<2x1x128xi1>, vector<2x1x128xf32>
    %241 = vector.broadcast %225 : vector<2x1x1xf32> to vector<2x4x128xf32>
    %242 = arith.cmpf oeq, %12, %241 : vector<2x4x128xf32>
    %cst_47 = arith.constant 0xFF800000 : f32
    %243 = vector.broadcast %cst_47 : f32 to vector<2x4x128xf32>
    %244 = arith.select %242, %243, %213 : vector<2x4x128xi1>, vector<2x4x128xf32>
    %cst_48 = arith.constant dense<0xFF800000> : vector<2x128xf32>
    %245 = vector.multi_reduction <maximumf>, %244, %cst_48 [1] : vector<2x4x128xf32> to vector<2x128xf32>
    %246 = vector.shape_cast %245 : vector<2x128xf32> to vector<2x1x128xf32>
    %cst_49 = arith.constant dense<0xFF800000> : vector<2x1xf32>
    %247 = vector.multi_reduction <maximumf>, %246, %cst_49 [2] : vector<2x1x128xf32> to vector<2x1xf32>
    %248 = vector.shape_cast %247 : vector<2x1xf32> to vector<2x1x1xf32>
    %249 = vector.broadcast %248 : vector<2x1x1xf32> to vector<2x4x128xf32>
    %250 = arith.cmpf oeq, %244, %249 : vector<2x4x128xf32>
    %cst_50 = arith.constant 5.120000e+02 : f32
    %251 = vector.broadcast %cst_50 : f32 to vector<2x4x128xf32>
    %252 = arith.select %250, %12, %251 : vector<2x4x128xi1>, vector<2x4x128xf32>
    %cst_51 = arith.constant dense<0x7F800000> : vector<2x128xf32>
    %253 = vector.multi_reduction <minimumf>, %252, %cst_51 [1] : vector<2x4x128xf32> to vector<2x128xf32>
    %254 = vector.shape_cast %253 : vector<2x128xf32> to vector<2x1x128xf32>
    %cst_52 = arith.constant dense<0x7F800000> : vector<2x1xf32>
    %255 = vector.multi_reduction <minimumf>, %254, %cst_52 [2] : vector<2x1x128xf32> to vector<2x1xf32>
    %256 = vector.shape_cast %255 : vector<2x1xf32> to vector<2x1x1xf32>
    %c6_i32 = arith.constant 6 : i32
    %257 = vector.broadcast %c6_i32 : i32 to vector<2x1x128xi32>
    %258 = arith.cmpi eq, %54, %257 : vector<2x1x128xi32>
    %259 = vector.shape_cast %248 : vector<2x1x1xf32> to vector<2x1x1xf32>
    %260 = vector.broadcast %259 : vector<2x1x1xf32> to vector<2x1x128xf32>
    %261 = arith.select %258, %260, %230 : vector<2x1x128xi1>, vector<2x1x128xf32>
    %262 = vector.shape_cast %256 : vector<2x1x1xf32> to vector<2x1x1xf32>
    %263 = vector.broadcast %262 : vector<2x1x1xf32> to vector<2x1x128xf32>
    %264 = arith.select %258, %263, %233 : vector<2x1x128xi1>, vector<2x1x128xf32>
    %265 = arith.subf %248, %62 : vector<2x1x1xf32>
    %266 = arith.mulf %265, %4 : vector<2x1x1xf32>
    %267 = math.exp %266 : vector<2x1x1xf32>
    %268 = arith.addf %237, %267 : vector<2x1x1xf32>
    %269 = vector.shape_cast %268 : vector<2x1x1xf32> to vector<2x1x1xf32>
    %270 = vector.broadcast %269 : vector<2x1x1xf32> to vector<2x1x128xf32>
    %271 = arith.select %258, %270, %240 : vector<2x1x128xi1>, vector<2x1x128xf32>
    %272 = vector.broadcast %256 : vector<2x1x1xf32> to vector<2x4x128xf32>
    %273 = arith.cmpf oeq, %12, %272 : vector<2x4x128xf32>
    %cst_53 = arith.constant 0xFF800000 : f32
    %274 = vector.broadcast %cst_53 : f32 to vector<2x4x128xf32>
    %275 = arith.select %273, %274, %244 : vector<2x4x128xi1>, vector<2x4x128xf32>
    %cst_54 = arith.constant dense<0xFF800000> : vector<2x128xf32>
    %276 = vector.multi_reduction <maximumf>, %275, %cst_54 [1] : vector<2x4x128xf32> to vector<2x128xf32>
    %277 = vector.shape_cast %276 : vector<2x128xf32> to vector<2x1x128xf32>
    %cst_55 = arith.constant dense<0xFF800000> : vector<2x1xf32>
    %278 = vector.multi_reduction <maximumf>, %277, %cst_55 [2] : vector<2x1x128xf32> to vector<2x1xf32>
    %279 = vector.shape_cast %278 : vector<2x1xf32> to vector<2x1x1xf32>
    %280 = vector.broadcast %279 : vector<2x1x1xf32> to vector<2x4x128xf32>
    %281 = arith.cmpf oeq, %275, %280 : vector<2x4x128xf32>
    %cst_56 = arith.constant 5.120000e+02 : f32
    %282 = vector.broadcast %cst_56 : f32 to vector<2x4x128xf32>
    %283 = arith.select %281, %12, %282 : vector<2x4x128xi1>, vector<2x4x128xf32>
    %cst_57 = arith.constant dense<0x7F800000> : vector<2x128xf32>
    %284 = vector.multi_reduction <minimumf>, %283, %cst_57 [1] : vector<2x4x128xf32> to vector<2x128xf32>
    %285 = vector.shape_cast %284 : vector<2x128xf32> to vector<2x1x128xf32>
    %cst_58 = arith.constant dense<0x7F800000> : vector<2x1xf32>
    %286 = vector.multi_reduction <minimumf>, %285, %cst_58 [2] : vector<2x1x128xf32> to vector<2x1xf32>
    %287 = vector.shape_cast %286 : vector<2x1xf32> to vector<2x1x1xf32>
    %c7_i32 = arith.constant 7 : i32
    %288 = vector.broadcast %c7_i32 : i32 to vector<2x1x128xi32>
    %289 = arith.cmpi eq, %54, %288 : vector<2x1x128xi32>
    %290 = vector.shape_cast %279 : vector<2x1x1xf32> to vector<2x1x1xf32>
    %291 = vector.broadcast %290 : vector<2x1x1xf32> to vector<2x1x128xf32>
    %292 = arith.select %289, %291, %261 : vector<2x1x128xi1>, vector<2x1x128xf32>
    %293 = vector.shape_cast %287 : vector<2x1x1xf32> to vector<2x1x1xf32>
    %294 = vector.broadcast %293 : vector<2x1x1xf32> to vector<2x1x128xf32>
    %295 = arith.select %289, %294, %264 : vector<2x1x128xi1>, vector<2x1x128xf32>
    %296 = arith.subf %279, %62 : vector<2x1x1xf32>
    %297 = arith.mulf %296, %4 : vector<2x1x1xf32>
    %298 = math.exp %297 : vector<2x1x1xf32>
    %299 = arith.addf %268, %298 : vector<2x1x1xf32>
    %300 = vector.shape_cast %299 : vector<2x1x1xf32> to vector<2x1x1xf32>
    %301 = vector.broadcast %300 : vector<2x1x1xf32> to vector<2x1x128xf32>
    %302 = arith.select %289, %301, %271 : vector<2x1x128xi1>, vector<2x1x128xf32>
    %303 = vector.broadcast %287 : vector<2x1x1xf32> to vector<2x4x128xf32>
    %304 = arith.cmpf oeq, %12, %303 : vector<2x4x128xf32>
    %cst_59 = arith.constant 0xFF800000 : f32
    %305 = vector.broadcast %cst_59 : f32 to vector<2x4x128xf32>
    %306 = arith.select %304, %305, %275 : vector<2x4x128xi1>, vector<2x4x128xf32>
    %cst_60 = arith.constant dense<0xFF800000> : vector<2x128xf32>
    %307 = vector.multi_reduction <maximumf>, %306, %cst_60 [1] : vector<2x4x128xf32> to vector<2x128xf32>
    %308 = vector.shape_cast %307 : vector<2x128xf32> to vector<2x1x128xf32>
    %cst_61 = arith.constant dense<0xFF800000> : vector<2x1xf32>
    %309 = vector.multi_reduction <maximumf>, %308, %cst_61 [2] : vector<2x1x128xf32> to vector<2x1xf32>
    %310 = vector.shape_cast %309 : vector<2x1xf32> to vector<2x1x1xf32>
    %311 = vector.broadcast %310 : vector<2x1x1xf32> to vector<2x4x128xf32>
    %312 = arith.cmpf oeq, %306, %311 : vector<2x4x128xf32>
    %cst_62 = arith.constant 5.120000e+02 : f32
    %313 = vector.broadcast %cst_62 : f32 to vector<2x4x128xf32>
    %314 = arith.select %312, %12, %313 : vector<2x4x128xi1>, vector<2x4x128xf32>
    %cst_63 = arith.constant dense<0x7F800000> : vector<2x128xf32>
    %315 = vector.multi_reduction <minimumf>, %314, %cst_63 [1] : vector<2x4x128xf32> to vector<2x128xf32>
    %316 = vector.shape_cast %315 : vector<2x128xf32> to vector<2x1x128xf32>
    %cst_64 = arith.constant dense<0x7F800000> : vector<2x1xf32>
    %317 = vector.multi_reduction <minimumf>, %316, %cst_64 [2] : vector<2x1x128xf32> to vector<2x1xf32>
    %318 = vector.shape_cast %317 : vector<2x1xf32> to vector<2x1x1xf32>
    %c8_i32 = arith.constant 8 : i32
    %319 = vector.broadcast %c8_i32 : i32 to vector<2x1x128xi32>
    %320 = arith.cmpi eq, %54, %319 : vector<2x1x128xi32>
    %321 = vector.shape_cast %310 : vector<2x1x1xf32> to vector<2x1x1xf32>
    %322 = vector.broadcast %321 : vector<2x1x1xf32> to vector<2x1x128xf32>
    %323 = arith.select %320, %322, %292 : vector<2x1x128xi1>, vector<2x1x128xf32>
    %324 = vector.shape_cast %318 : vector<2x1x1xf32> to vector<2x1x1xf32>
    %325 = vector.broadcast %324 : vector<2x1x1xf32> to vector<2x1x128xf32>
    %326 = arith.select %320, %325, %295 : vector<2x1x128xi1>, vector<2x1x128xf32>
    %327 = arith.subf %310, %62 : vector<2x1x1xf32>
    %328 = arith.mulf %327, %4 : vector<2x1x1xf32>
    %329 = math.exp %328 : vector<2x1x1xf32>
    %330 = arith.addf %299, %329 : vector<2x1x1xf32>
    %331 = vector.shape_cast %330 : vector<2x1x1xf32> to vector<2x1x1xf32>
    %332 = vector.broadcast %331 : vector<2x1x1xf32> to vector<2x1x128xf32>
    %333 = arith.select %320, %332, %302 : vector<2x1x128xi1>, vector<2x1x128xf32>
    %334 = vector.broadcast %318 : vector<2x1x1xf32> to vector<2x4x128xf32>
    %335 = arith.cmpf oeq, %12, %334 : vector<2x4x128xf32>
    %cst_65 = arith.constant 0xFF800000 : f32
    %336 = vector.broadcast %cst_65 : f32 to vector<2x4x128xf32>
    %337 = arith.select %335, %336, %306 : vector<2x4x128xi1>, vector<2x4x128xf32>
    %cst_66 = arith.constant dense<0xFF800000> : vector<2x128xf32>
    %338 = vector.multi_reduction <maximumf>, %337, %cst_66 [1] : vector<2x4x128xf32> to vector<2x128xf32>
    %339 = vector.shape_cast %338 : vector<2x128xf32> to vector<2x1x128xf32>
    %cst_67 = arith.constant dense<0xFF800000> : vector<2x1xf32>
    %340 = vector.multi_reduction <maximumf>, %339, %cst_67 [2] : vector<2x1x128xf32> to vector<2x1xf32>
    %341 = vector.shape_cast %340 : vector<2x1xf32> to vector<2x1x1xf32>
    %342 = vector.broadcast %341 : vector<2x1x1xf32> to vector<2x4x128xf32>
    %343 = arith.cmpf oeq, %337, %342 : vector<2x4x128xf32>
    %cst_68 = arith.constant 5.120000e+02 : f32
    %344 = vector.broadcast %cst_68 : f32 to vector<2x4x128xf32>
    %345 = arith.select %343, %12, %344 : vector<2x4x128xi1>, vector<2x4x128xf32>
    %cst_69 = arith.constant dense<0x7F800000> : vector<2x128xf32>
    %346 = vector.multi_reduction <minimumf>, %345, %cst_69 [1] : vector<2x4x128xf32> to vector<2x128xf32>
    %347 = vector.shape_cast %346 : vector<2x128xf32> to vector<2x1x128xf32>
    %cst_70 = arith.constant dense<0x7F800000> : vector<2x1xf32>
    %348 = vector.multi_reduction <minimumf>, %347, %cst_70 [2] : vector<2x1x128xf32> to vector<2x1xf32>
    %349 = vector.shape_cast %348 : vector<2x1xf32> to vector<2x1x1xf32>
    %c9_i32 = arith.constant 9 : i32
    %350 = vector.broadcast %c9_i32 : i32 to vector<2x1x128xi32>
    %351 = arith.cmpi eq, %54, %350 : vector<2x1x128xi32>
    %352 = vector.shape_cast %341 : vector<2x1x1xf32> to vector<2x1x1xf32>
    %353 = vector.broadcast %352 : vector<2x1x1xf32> to vector<2x1x128xf32>
    %354 = arith.select %351, %353, %323 : vector<2x1x128xi1>, vector<2x1x128xf32>
    %355 = vector.shape_cast %349 : vector<2x1x1xf32> to vector<2x1x1xf32>
    %356 = vector.broadcast %355 : vector<2x1x1xf32> to vector<2x1x128xf32>
    %357 = arith.select %351, %356, %326 : vector<2x1x128xi1>, vector<2x1x128xf32>
    %358 = arith.subf %341, %62 : vector<2x1x1xf32>
    %359 = arith.mulf %358, %4 : vector<2x1x1xf32>
    %360 = math.exp %359 : vector<2x1x1xf32>
    %361 = arith.addf %330, %360 : vector<2x1x1xf32>
    %362 = vector.shape_cast %361 : vector<2x1x1xf32> to vector<2x1x1xf32>
    %363 = vector.broadcast %362 : vector<2x1x1xf32> to vector<2x1x128xf32>
    %364 = arith.select %351, %363, %333 : vector<2x1x128xi1>, vector<2x1x128xf32>
    %365 = vector.broadcast %349 : vector<2x1x1xf32> to vector<2x4x128xf32>
    %366 = arith.cmpf oeq, %12, %365 : vector<2x4x128xf32>
    %cst_71 = arith.constant 0xFF800000 : f32
    %367 = vector.broadcast %cst_71 : f32 to vector<2x4x128xf32>
    %368 = arith.select %366, %367, %337 : vector<2x4x128xi1>, vector<2x4x128xf32>
    %cst_72 = arith.constant dense<0xFF800000> : vector<2x128xf32>
    %369 = vector.multi_reduction <maximumf>, %368, %cst_72 [1] : vector<2x4x128xf32> to vector<2x128xf32>
    %370 = vector.shape_cast %369 : vector<2x128xf32> to vector<2x1x128xf32>
    %cst_73 = arith.constant dense<0xFF800000> : vector<2x1xf32>
    %371 = vector.multi_reduction <maximumf>, %370, %cst_73 [2] : vector<2x1x128xf32> to vector<2x1xf32>
    %372 = vector.shape_cast %371 : vector<2x1xf32> to vector<2x1x1xf32>
    %373 = vector.broadcast %372 : vector<2x1x1xf32> to vector<2x4x128xf32>
    %374 = arith.cmpf oeq, %368, %373 : vector<2x4x128xf32>
    %cst_74 = arith.constant 5.120000e+02 : f32
    %375 = vector.broadcast %cst_74 : f32 to vector<2x4x128xf32>
    %376 = arith.select %374, %12, %375 : vector<2x4x128xi1>, vector<2x4x128xf32>
    %cst_75 = arith.constant dense<0x7F800000> : vector<2x128xf32>
    %377 = vector.multi_reduction <minimumf>, %376, %cst_75 [1] : vector<2x4x128xf32> to vector<2x128xf32>
    %378 = vector.shape_cast %377 : vector<2x128xf32> to vector<2x1x128xf32>
    %cst_76 = arith.constant dense<0x7F800000> : vector<2x1xf32>
    %379 = vector.multi_reduction <minimumf>, %378, %cst_76 [2] : vector<2x1x128xf32> to vector<2x1xf32>
    %380 = vector.shape_cast %379 : vector<2x1xf32> to vector<2x1x1xf32>
    %c10_i32 = arith.constant 10 : i32
    %381 = vector.broadcast %c10_i32 : i32 to vector<2x1x128xi32>
    %382 = arith.cmpi eq, %54, %381 : vector<2x1x128xi32>
    %383 = vector.shape_cast %372 : vector<2x1x1xf32> to vector<2x1x1xf32>
    %384 = vector.broadcast %383 : vector<2x1x1xf32> to vector<2x1x128xf32>
    %385 = arith.select %382, %384, %354 : vector<2x1x128xi1>, vector<2x1x128xf32>
    %386 = vector.shape_cast %380 : vector<2x1x1xf32> to vector<2x1x1xf32>
    %387 = vector.broadcast %386 : vector<2x1x1xf32> to vector<2x1x128xf32>
    %388 = arith.select %382, %387, %357 : vector<2x1x128xi1>, vector<2x1x128xf32>
    %389 = arith.subf %372, %62 : vector<2x1x1xf32>
    %390 = arith.mulf %389, %4 : vector<2x1x1xf32>
    %391 = math.exp %390 : vector<2x1x1xf32>
    %392 = arith.addf %361, %391 : vector<2x1x1xf32>
    %393 = vector.shape_cast %392 : vector<2x1x1xf32> to vector<2x1x1xf32>
    %394 = vector.broadcast %393 : vector<2x1x1xf32> to vector<2x1x128xf32>
    %395 = arith.select %382, %394, %364 : vector<2x1x128xi1>, vector<2x1x128xf32>
    %396 = vector.broadcast %380 : vector<2x1x1xf32> to vector<2x4x128xf32>
    %397 = arith.cmpf oeq, %12, %396 : vector<2x4x128xf32>
    %cst_77 = arith.constant 0xFF800000 : f32
    %398 = vector.broadcast %cst_77 : f32 to vector<2x4x128xf32>
    %399 = arith.select %397, %398, %368 : vector<2x4x128xi1>, vector<2x4x128xf32>
    %cst_78 = arith.constant dense<0xFF800000> : vector<2x128xf32>
    %400 = vector.multi_reduction <maximumf>, %399, %cst_78 [1] : vector<2x4x128xf32> to vector<2x128xf32>
    %401 = vector.shape_cast %400 : vector<2x128xf32> to vector<2x1x128xf32>
    %cst_79 = arith.constant dense<0xFF800000> : vector<2x1xf32>
    %402 = vector.multi_reduction <maximumf>, %401, %cst_79 [2] : vector<2x1x128xf32> to vector<2x1xf32>
    %403 = vector.shape_cast %402 : vector<2x1xf32> to vector<2x1x1xf32>
    %404 = vector.broadcast %403 : vector<2x1x1xf32> to vector<2x4x128xf32>
    %405 = arith.cmpf oeq, %399, %404 : vector<2x4x128xf32>
    %cst_80 = arith.constant 5.120000e+02 : f32
    %406 = vector.broadcast %cst_80 : f32 to vector<2x4x128xf32>
    %407 = arith.select %405, %12, %406 : vector<2x4x128xi1>, vector<2x4x128xf32>
    %cst_81 = arith.constant dense<0x7F800000> : vector<2x128xf32>
    %408 = vector.multi_reduction <minimumf>, %407, %cst_81 [1] : vector<2x4x128xf32> to vector<2x128xf32>
    %409 = vector.shape_cast %408 : vector<2x128xf32> to vector<2x1x128xf32>
    %cst_82 = arith.constant dense<0x7F800000> : vector<2x1xf32>
    %410 = vector.multi_reduction <minimumf>, %409, %cst_82 [2] : vector<2x1x128xf32> to vector<2x1xf32>
    %411 = vector.shape_cast %410 : vector<2x1xf32> to vector<2x1x1xf32>
    %c11_i32 = arith.constant 11 : i32
    %412 = vector.broadcast %c11_i32 : i32 to vector<2x1x128xi32>
    %413 = arith.cmpi eq, %54, %412 : vector<2x1x128xi32>
    %414 = vector.shape_cast %403 : vector<2x1x1xf32> to vector<2x1x1xf32>
    %415 = vector.broadcast %414 : vector<2x1x1xf32> to vector<2x1x128xf32>
    %416 = arith.select %413, %415, %385 : vector<2x1x128xi1>, vector<2x1x128xf32>
    %417 = vector.shape_cast %411 : vector<2x1x1xf32> to vector<2x1x1xf32>
    %418 = vector.broadcast %417 : vector<2x1x1xf32> to vector<2x1x128xf32>
    %419 = arith.select %413, %418, %388 : vector<2x1x128xi1>, vector<2x1x128xf32>
    %420 = arith.subf %403, %62 : vector<2x1x1xf32>
    %421 = arith.mulf %420, %4 : vector<2x1x1xf32>
    %422 = math.exp %421 : vector<2x1x1xf32>
    %423 = arith.addf %392, %422 : vector<2x1x1xf32>
    %424 = vector.shape_cast %423 : vector<2x1x1xf32> to vector<2x1x1xf32>
    %425 = vector.broadcast %424 : vector<2x1x1xf32> to vector<2x1x128xf32>
    %426 = arith.select %413, %425, %395 : vector<2x1x128xi1>, vector<2x1x128xf32>
    %427 = vector.broadcast %411 : vector<2x1x1xf32> to vector<2x4x128xf32>
    %428 = arith.cmpf oeq, %12, %427 : vector<2x4x128xf32>
    %cst_83 = arith.constant 0xFF800000 : f32
    %429 = vector.broadcast %cst_83 : f32 to vector<2x4x128xf32>
    %430 = arith.select %428, %429, %399 : vector<2x4x128xi1>, vector<2x4x128xf32>
    %cst_84 = arith.constant dense<0xFF800000> : vector<2x128xf32>
    %431 = vector.multi_reduction <maximumf>, %430, %cst_84 [1] : vector<2x4x128xf32> to vector<2x128xf32>
    %432 = vector.shape_cast %431 : vector<2x128xf32> to vector<2x1x128xf32>
    %cst_85 = arith.constant dense<0xFF800000> : vector<2x1xf32>
    %433 = vector.multi_reduction <maximumf>, %432, %cst_85 [2] : vector<2x1x128xf32> to vector<2x1xf32>
    %434 = vector.shape_cast %433 : vector<2x1xf32> to vector<2x1x1xf32>
    %435 = vector.broadcast %434 : vector<2x1x1xf32> to vector<2x4x128xf32>
    %436 = arith.cmpf oeq, %430, %435 : vector<2x4x128xf32>
    %cst_86 = arith.constant 5.120000e+02 : f32
    %437 = vector.broadcast %cst_86 : f32 to vector<2x4x128xf32>
    %438 = arith.select %436, %12, %437 : vector<2x4x128xi1>, vector<2x4x128xf32>
    %cst_87 = arith.constant dense<0x7F800000> : vector<2x128xf32>
    %439 = vector.multi_reduction <minimumf>, %438, %cst_87 [1] : vector<2x4x128xf32> to vector<2x128xf32>
    %440 = vector.shape_cast %439 : vector<2x128xf32> to vector<2x1x128xf32>
    %cst_88 = arith.constant dense<0x7F800000> : vector<2x1xf32>
    %441 = vector.multi_reduction <minimumf>, %440, %cst_88 [2] : vector<2x1x128xf32> to vector<2x1xf32>
    %442 = vector.shape_cast %441 : vector<2x1xf32> to vector<2x1x1xf32>
    %c12_i32 = arith.constant 12 : i32
    %443 = vector.broadcast %c12_i32 : i32 to vector<2x1x128xi32>
    %444 = arith.cmpi eq, %54, %443 : vector<2x1x128xi32>
    %445 = vector.shape_cast %434 : vector<2x1x1xf32> to vector<2x1x1xf32>
    %446 = vector.broadcast %445 : vector<2x1x1xf32> to vector<2x1x128xf32>
    %447 = arith.select %444, %446, %416 : vector<2x1x128xi1>, vector<2x1x128xf32>
    %448 = vector.shape_cast %442 : vector<2x1x1xf32> to vector<2x1x1xf32>
    %449 = vector.broadcast %448 : vector<2x1x1xf32> to vector<2x1x128xf32>
    %450 = arith.select %444, %449, %419 : vector<2x1x128xi1>, vector<2x1x128xf32>
    %451 = arith.subf %434, %62 : vector<2x1x1xf32>
    %452 = arith.mulf %451, %4 : vector<2x1x1xf32>
    %453 = math.exp %452 : vector<2x1x1xf32>
    %454 = arith.addf %423, %453 : vector<2x1x1xf32>
    %455 = vector.shape_cast %454 : vector<2x1x1xf32> to vector<2x1x1xf32>
    %456 = vector.broadcast %455 : vector<2x1x1xf32> to vector<2x1x128xf32>
    %457 = arith.select %444, %456, %426 : vector<2x1x128xi1>, vector<2x1x128xf32>
    %458 = vector.broadcast %442 : vector<2x1x1xf32> to vector<2x4x128xf32>
    %459 = arith.cmpf oeq, %12, %458 : vector<2x4x128xf32>
    %cst_89 = arith.constant 0xFF800000 : f32
    %460 = vector.broadcast %cst_89 : f32 to vector<2x4x128xf32>
    %461 = arith.select %459, %460, %430 : vector<2x4x128xi1>, vector<2x4x128xf32>
    %cst_90 = arith.constant dense<0xFF800000> : vector<2x128xf32>
    %462 = vector.multi_reduction <maximumf>, %461, %cst_90 [1] : vector<2x4x128xf32> to vector<2x128xf32>
    %463 = vector.shape_cast %462 : vector<2x128xf32> to vector<2x1x128xf32>
    %cst_91 = arith.constant dense<0xFF800000> : vector<2x1xf32>
    %464 = vector.multi_reduction <maximumf>, %463, %cst_91 [2] : vector<2x1x128xf32> to vector<2x1xf32>
    %465 = vector.shape_cast %464 : vector<2x1xf32> to vector<2x1x1xf32>
    %466 = vector.broadcast %465 : vector<2x1x1xf32> to vector<2x4x128xf32>
    %467 = arith.cmpf oeq, %461, %466 : vector<2x4x128xf32>
    %cst_92 = arith.constant 5.120000e+02 : f32
    %468 = vector.broadcast %cst_92 : f32 to vector<2x4x128xf32>
    %469 = arith.select %467, %12, %468 : vector<2x4x128xi1>, vector<2x4x128xf32>
    %cst_93 = arith.constant dense<0x7F800000> : vector<2x128xf32>
    %470 = vector.multi_reduction <minimumf>, %469, %cst_93 [1] : vector<2x4x128xf32> to vector<2x128xf32>
    %471 = vector.shape_cast %470 : vector<2x128xf32> to vector<2x1x128xf32>
    %cst_94 = arith.constant dense<0x7F800000> : vector<2x1xf32>
    %472 = vector.multi_reduction <minimumf>, %471, %cst_94 [2] : vector<2x1x128xf32> to vector<2x1xf32>
    %473 = vector.shape_cast %472 : vector<2x1xf32> to vector<2x1x1xf32>
    %c13_i32 = arith.constant 13 : i32
    %474 = vector.broadcast %c13_i32 : i32 to vector<2x1x128xi32>
    %475 = arith.cmpi eq, %54, %474 : vector<2x1x128xi32>
    %476 = vector.shape_cast %465 : vector<2x1x1xf32> to vector<2x1x1xf32>
    %477 = vector.broadcast %476 : vector<2x1x1xf32> to vector<2x1x128xf32>
    %478 = arith.select %475, %477, %447 : vector<2x1x128xi1>, vector<2x1x128xf32>
    %479 = vector.shape_cast %473 : vector<2x1x1xf32> to vector<2x1x1xf32>
    %480 = vector.broadcast %479 : vector<2x1x1xf32> to vector<2x1x128xf32>
    %481 = arith.select %475, %480, %450 : vector<2x1x128xi1>, vector<2x1x128xf32>
    %482 = arith.subf %465, %62 : vector<2x1x1xf32>
    %483 = arith.mulf %482, %4 : vector<2x1x1xf32>
    %484 = math.exp %483 : vector<2x1x1xf32>
    %485 = arith.addf %454, %484 : vector<2x1x1xf32>
    %486 = vector.shape_cast %485 : vector<2x1x1xf32> to vector<2x1x1xf32>
    %487 = vector.broadcast %486 : vector<2x1x1xf32> to vector<2x1x128xf32>
    %488 = arith.select %475, %487, %457 : vector<2x1x128xi1>, vector<2x1x128xf32>
    %489 = vector.broadcast %473 : vector<2x1x1xf32> to vector<2x4x128xf32>
    %490 = arith.cmpf oeq, %12, %489 : vector<2x4x128xf32>
    %cst_95 = arith.constant 0xFF800000 : f32
    %491 = vector.broadcast %cst_95 : f32 to vector<2x4x128xf32>
    %492 = arith.select %490, %491, %461 : vector<2x4x128xi1>, vector<2x4x128xf32>
    %cst_96 = arith.constant dense<0xFF800000> : vector<2x128xf32>
    %493 = vector.multi_reduction <maximumf>, %492, %cst_96 [1] : vector<2x4x128xf32> to vector<2x128xf32>
    %494 = vector.shape_cast %493 : vector<2x128xf32> to vector<2x1x128xf32>
    %cst_97 = arith.constant dense<0xFF800000> : vector<2x1xf32>
    %495 = vector.multi_reduction <maximumf>, %494, %cst_97 [2] : vector<2x1x128xf32> to vector<2x1xf32>
    %496 = vector.shape_cast %495 : vector<2x1xf32> to vector<2x1x1xf32>
    %497 = vector.broadcast %496 : vector<2x1x1xf32> to vector<2x4x128xf32>
    %498 = arith.cmpf oeq, %492, %497 : vector<2x4x128xf32>
    %cst_98 = arith.constant 5.120000e+02 : f32
    %499 = vector.broadcast %cst_98 : f32 to vector<2x4x128xf32>
    %500 = arith.select %498, %12, %499 : vector<2x4x128xi1>, vector<2x4x128xf32>
    %cst_99 = arith.constant dense<0x7F800000> : vector<2x128xf32>
    %501 = vector.multi_reduction <minimumf>, %500, %cst_99 [1] : vector<2x4x128xf32> to vector<2x128xf32>
    %502 = vector.shape_cast %501 : vector<2x128xf32> to vector<2x1x128xf32>
    %cst_100 = arith.constant dense<0x7F800000> : vector<2x1xf32>
    %503 = vector.multi_reduction <minimumf>, %502, %cst_100 [2] : vector<2x1x128xf32> to vector<2x1xf32>
    %504 = vector.shape_cast %503 : vector<2x1xf32> to vector<2x1x1xf32>
    %c14_i32 = arith.constant 14 : i32
    %505 = vector.broadcast %c14_i32 : i32 to vector<2x1x128xi32>
    %506 = arith.cmpi eq, %54, %505 : vector<2x1x128xi32>
    %507 = vector.shape_cast %496 : vector<2x1x1xf32> to vector<2x1x1xf32>
    %508 = vector.broadcast %507 : vector<2x1x1xf32> to vector<2x1x128xf32>
    %509 = arith.select %506, %508, %478 : vector<2x1x128xi1>, vector<2x1x128xf32>
    %510 = vector.shape_cast %504 : vector<2x1x1xf32> to vector<2x1x1xf32>
    %511 = vector.broadcast %510 : vector<2x1x1xf32> to vector<2x1x128xf32>
    %512 = arith.select %506, %511, %481 : vector<2x1x128xi1>, vector<2x1x128xf32>
    %513 = arith.subf %496, %62 : vector<2x1x1xf32>
    %514 = arith.mulf %513, %4 : vector<2x1x1xf32>
    %515 = math.exp %514 : vector<2x1x1xf32>
    %516 = arith.addf %485, %515 : vector<2x1x1xf32>
    %517 = vector.shape_cast %516 : vector<2x1x1xf32> to vector<2x1x1xf32>
    %518 = vector.broadcast %517 : vector<2x1x1xf32> to vector<2x1x128xf32>
    %519 = arith.select %506, %518, %488 : vector<2x1x128xi1>, vector<2x1x128xf32>
    %520 = vector.broadcast %504 : vector<2x1x1xf32> to vector<2x4x128xf32>
    %521 = arith.cmpf oeq, %12, %520 : vector<2x4x128xf32>
    %cst_101 = arith.constant 0xFF800000 : f32
    %522 = vector.broadcast %cst_101 : f32 to vector<2x4x128xf32>
    %523 = arith.select %521, %522, %492 : vector<2x4x128xi1>, vector<2x4x128xf32>
    %cst_102 = arith.constant dense<0xFF800000> : vector<2x128xf32>
    %524 = vector.multi_reduction <maximumf>, %523, %cst_102 [1] : vector<2x4x128xf32> to vector<2x128xf32>
    %525 = vector.shape_cast %524 : vector<2x128xf32> to vector<2x1x128xf32>
    %cst_103 = arith.constant dense<0xFF800000> : vector<2x1xf32>
    %526 = vector.multi_reduction <maximumf>, %525, %cst_103 [2] : vector<2x1x128xf32> to vector<2x1xf32>
    %527 = vector.shape_cast %526 : vector<2x1xf32> to vector<2x1x1xf32>
    %528 = vector.broadcast %527 : vector<2x1x1xf32> to vector<2x4x128xf32>
    %529 = arith.cmpf oeq, %523, %528 : vector<2x4x128xf32>
    %cst_104 = arith.constant 5.120000e+02 : f32
    %530 = vector.broadcast %cst_104 : f32 to vector<2x4x128xf32>
    %531 = arith.select %529, %12, %530 : vector<2x4x128xi1>, vector<2x4x128xf32>
    %cst_105 = arith.constant dense<0x7F800000> : vector<2x128xf32>
    %532 = vector.multi_reduction <minimumf>, %531, %cst_105 [1] : vector<2x4x128xf32> to vector<2x128xf32>
    %533 = vector.shape_cast %532 : vector<2x128xf32> to vector<2x1x128xf32>
    %cst_106 = arith.constant dense<0x7F800000> : vector<2x1xf32>
    %534 = vector.multi_reduction <minimumf>, %533, %cst_106 [2] : vector<2x1x128xf32> to vector<2x1xf32>
    %535 = vector.shape_cast %534 : vector<2x1xf32> to vector<2x1x1xf32>
    %c15_i32 = arith.constant 15 : i32
    %536 = vector.broadcast %c15_i32 : i32 to vector<2x1x128xi32>
    %537 = arith.cmpi eq, %54, %536 : vector<2x1x128xi32>
    %538 = vector.shape_cast %527 : vector<2x1x1xf32> to vector<2x1x1xf32>
    %539 = vector.broadcast %538 : vector<2x1x1xf32> to vector<2x1x128xf32>
    %540 = arith.select %537, %539, %509 : vector<2x1x128xi1>, vector<2x1x128xf32>
    %541 = vector.shape_cast %535 : vector<2x1x1xf32> to vector<2x1x1xf32>
    %542 = vector.broadcast %541 : vector<2x1x1xf32> to vector<2x1x128xf32>
    %543 = arith.select %537, %542, %512 : vector<2x1x128xi1>, vector<2x1x128xf32>
    %544 = arith.subf %527, %62 : vector<2x1x1xf32>
    %545 = arith.mulf %544, %4 : vector<2x1x1xf32>
    %546 = math.exp %545 : vector<2x1x1xf32>
    %547 = arith.addf %516, %546 : vector<2x1x1xf32>
    %548 = vector.shape_cast %547 : vector<2x1x1xf32> to vector<2x1x1xf32>
    %549 = vector.broadcast %548 : vector<2x1x1xf32> to vector<2x1x128xf32>
    %550 = arith.select %537, %549, %519 : vector<2x1x128xi1>, vector<2x1x128xf32>
    %551 = vector.broadcast %535 : vector<2x1x1xf32> to vector<2x4x128xf32>
    %552 = arith.cmpf oeq, %12, %551 : vector<2x4x128xf32>
    %cst_107 = arith.constant 0xFF800000 : f32
    %553 = vector.broadcast %cst_107 : f32 to vector<2x4x128xf32>
    %554 = arith.select %552, %553, %523 : vector<2x4x128xi1>, vector<2x4x128xf32>
    %cst_108 = arith.constant dense<0xFF800000> : vector<2x128xf32>
    %555 = vector.multi_reduction <maximumf>, %554, %cst_108 [1] : vector<2x4x128xf32> to vector<2x128xf32>
    %556 = vector.shape_cast %555 : vector<2x128xf32> to vector<2x1x128xf32>
    %cst_109 = arith.constant dense<0xFF800000> : vector<2x1xf32>
    %557 = vector.multi_reduction <maximumf>, %556, %cst_109 [2] : vector<2x1x128xf32> to vector<2x1xf32>
    %558 = vector.shape_cast %557 : vector<2x1xf32> to vector<2x1x1xf32>
    %559 = vector.broadcast %558 : vector<2x1x1xf32> to vector<2x4x128xf32>
    %560 = arith.cmpf oeq, %554, %559 : vector<2x4x128xf32>
    %cst_110 = arith.constant 5.120000e+02 : f32
    %561 = vector.broadcast %cst_110 : f32 to vector<2x4x128xf32>
    %562 = arith.select %560, %12, %561 : vector<2x4x128xi1>, vector<2x4x128xf32>
    %cst_111 = arith.constant dense<0x7F800000> : vector<2x128xf32>
    %563 = vector.multi_reduction <minimumf>, %562, %cst_111 [1] : vector<2x4x128xf32> to vector<2x128xf32>
    %564 = vector.shape_cast %563 : vector<2x128xf32> to vector<2x1x128xf32>
    %cst_112 = arith.constant dense<0x7F800000> : vector<2x1xf32>
    %565 = vector.multi_reduction <minimumf>, %564, %cst_112 [2] : vector<2x1x128xf32> to vector<2x1xf32>
    %566 = vector.shape_cast %565 : vector<2x1xf32> to vector<2x1x1xf32>
    %c16_i32 = arith.constant 16 : i32
    %567 = vector.broadcast %c16_i32 : i32 to vector<2x1x128xi32>
    %568 = arith.cmpi eq, %54, %567 : vector<2x1x128xi32>
    %569 = vector.shape_cast %558 : vector<2x1x1xf32> to vector<2x1x1xf32>
    %570 = vector.broadcast %569 : vector<2x1x1xf32> to vector<2x1x128xf32>
    %571 = arith.select %568, %570, %540 : vector<2x1x128xi1>, vector<2x1x128xf32>
    %572 = vector.shape_cast %566 : vector<2x1x1xf32> to vector<2x1x1xf32>
    %573 = vector.broadcast %572 : vector<2x1x1xf32> to vector<2x1x128xf32>
    %574 = arith.select %568, %573, %543 : vector<2x1x128xi1>, vector<2x1x128xf32>
    %575 = arith.subf %558, %62 : vector<2x1x1xf32>
    %576 = arith.mulf %575, %4 : vector<2x1x1xf32>
    %577 = math.exp %576 : vector<2x1x1xf32>
    %578 = arith.addf %547, %577 : vector<2x1x1xf32>
    %579 = vector.shape_cast %578 : vector<2x1x1xf32> to vector<2x1x1xf32>
    %580 = vector.broadcast %579 : vector<2x1x1xf32> to vector<2x1x128xf32>
    %581 = arith.select %568, %580, %550 : vector<2x1x128xi1>, vector<2x1x128xf32>
    %582 = vector.broadcast %566 : vector<2x1x1xf32> to vector<2x4x128xf32>
    %583 = arith.cmpf oeq, %12, %582 : vector<2x4x128xf32>
    %cst_113 = arith.constant 0xFF800000 : f32
    %584 = vector.broadcast %cst_113 : f32 to vector<2x4x128xf32>
    %585 = arith.select %583, %584, %554 : vector<2x4x128xi1>, vector<2x4x128xf32>
    %cst_114 = arith.constant dense<0xFF800000> : vector<2x128xf32>
    %586 = vector.multi_reduction <maximumf>, %585, %cst_114 [1] : vector<2x4x128xf32> to vector<2x128xf32>
    %587 = vector.shape_cast %586 : vector<2x128xf32> to vector<2x1x128xf32>
    %cst_115 = arith.constant dense<0xFF800000> : vector<2x1xf32>
    %588 = vector.multi_reduction <maximumf>, %587, %cst_115 [2] : vector<2x1x128xf32> to vector<2x1xf32>
    %589 = vector.shape_cast %588 : vector<2x1xf32> to vector<2x1x1xf32>
    %590 = vector.broadcast %589 : vector<2x1x1xf32> to vector<2x4x128xf32>
    %591 = arith.cmpf oeq, %585, %590 : vector<2x4x128xf32>
    %cst_116 = arith.constant 5.120000e+02 : f32
    %592 = vector.broadcast %cst_116 : f32 to vector<2x4x128xf32>
    %593 = arith.select %591, %12, %592 : vector<2x4x128xi1>, vector<2x4x128xf32>
    %cst_117 = arith.constant dense<0x7F800000> : vector<2x128xf32>
    %594 = vector.multi_reduction <minimumf>, %593, %cst_117 [1] : vector<2x4x128xf32> to vector<2x128xf32>
    %595 = vector.shape_cast %594 : vector<2x128xf32> to vector<2x1x128xf32>
    %cst_118 = arith.constant dense<0x7F800000> : vector<2x1xf32>
    %596 = vector.multi_reduction <minimumf>, %595, %cst_118 [2] : vector<2x1x128xf32> to vector<2x1xf32>
    %597 = vector.shape_cast %596 : vector<2x1xf32> to vector<2x1x1xf32>
    %c17_i32 = arith.constant 17 : i32
    %598 = vector.broadcast %c17_i32 : i32 to vector<2x1x128xi32>
    %599 = arith.cmpi eq, %54, %598 : vector<2x1x128xi32>
    %600 = vector.shape_cast %589 : vector<2x1x1xf32> to vector<2x1x1xf32>
    %601 = vector.broadcast %600 : vector<2x1x1xf32> to vector<2x1x128xf32>
    %602 = arith.select %599, %601, %571 : vector<2x1x128xi1>, vector<2x1x128xf32>
    %603 = vector.shape_cast %597 : vector<2x1x1xf32> to vector<2x1x1xf32>
    %604 = vector.broadcast %603 : vector<2x1x1xf32> to vector<2x1x128xf32>
    %605 = arith.select %599, %604, %574 : vector<2x1x128xi1>, vector<2x1x128xf32>
    %606 = arith.subf %589, %62 : vector<2x1x1xf32>
    %607 = arith.mulf %606, %4 : vector<2x1x1xf32>
    %608 = math.exp %607 : vector<2x1x1xf32>
    %609 = arith.addf %578, %608 : vector<2x1x1xf32>
    %610 = vector.shape_cast %609 : vector<2x1x1xf32> to vector<2x1x1xf32>
    %611 = vector.broadcast %610 : vector<2x1x1xf32> to vector<2x1x128xf32>
    %612 = arith.select %599, %611, %581 : vector<2x1x128xi1>, vector<2x1x128xf32>
    %613 = vector.broadcast %597 : vector<2x1x1xf32> to vector<2x4x128xf32>
    %614 = arith.cmpf oeq, %12, %613 : vector<2x4x128xf32>
    %cst_119 = arith.constant 0xFF800000 : f32
    %615 = vector.broadcast %cst_119 : f32 to vector<2x4x128xf32>
    %616 = arith.select %614, %615, %585 : vector<2x4x128xi1>, vector<2x4x128xf32>
    %cst_120 = arith.constant dense<0xFF800000> : vector<2x128xf32>
    %617 = vector.multi_reduction <maximumf>, %616, %cst_120 [1] : vector<2x4x128xf32> to vector<2x128xf32>
    %618 = vector.shape_cast %617 : vector<2x128xf32> to vector<2x1x128xf32>
    %cst_121 = arith.constant dense<0xFF800000> : vector<2x1xf32>
    %619 = vector.multi_reduction <maximumf>, %618, %cst_121 [2] : vector<2x1x128xf32> to vector<2x1xf32>
    %620 = vector.shape_cast %619 : vector<2x1xf32> to vector<2x1x1xf32>
    %621 = vector.broadcast %620 : vector<2x1x1xf32> to vector<2x4x128xf32>
    %622 = arith.cmpf oeq, %616, %621 : vector<2x4x128xf32>
    %cst_122 = arith.constant 5.120000e+02 : f32
    %623 = vector.broadcast %cst_122 : f32 to vector<2x4x128xf32>
    %624 = arith.select %622, %12, %623 : vector<2x4x128xi1>, vector<2x4x128xf32>
    %cst_123 = arith.constant dense<0x7F800000> : vector<2x128xf32>
    %625 = vector.multi_reduction <minimumf>, %624, %cst_123 [1] : vector<2x4x128xf32> to vector<2x128xf32>
    %626 = vector.shape_cast %625 : vector<2x128xf32> to vector<2x1x128xf32>
    %cst_124 = arith.constant dense<0x7F800000> : vector<2x1xf32>
    %627 = vector.multi_reduction <minimumf>, %626, %cst_124 [2] : vector<2x1x128xf32> to vector<2x1xf32>
    %628 = vector.shape_cast %627 : vector<2x1xf32> to vector<2x1x1xf32>
    %c18_i32 = arith.constant 18 : i32
    %629 = vector.broadcast %c18_i32 : i32 to vector<2x1x128xi32>
    %630 = arith.cmpi eq, %54, %629 : vector<2x1x128xi32>
    %631 = vector.shape_cast %620 : vector<2x1x1xf32> to vector<2x1x1xf32>
    %632 = vector.broadcast %631 : vector<2x1x1xf32> to vector<2x1x128xf32>
    %633 = arith.select %630, %632, %602 : vector<2x1x128xi1>, vector<2x1x128xf32>
    %634 = vector.shape_cast %628 : vector<2x1x1xf32> to vector<2x1x1xf32>
    %635 = vector.broadcast %634 : vector<2x1x1xf32> to vector<2x1x128xf32>
    %636 = arith.select %630, %635, %605 : vector<2x1x128xi1>, vector<2x1x128xf32>
    %637 = arith.subf %620, %62 : vector<2x1x1xf32>
    %638 = arith.mulf %637, %4 : vector<2x1x1xf32>
    %639 = math.exp %638 : vector<2x1x1xf32>
    %640 = arith.addf %609, %639 : vector<2x1x1xf32>
    %641 = vector.shape_cast %640 : vector<2x1x1xf32> to vector<2x1x1xf32>
    %642 = vector.broadcast %641 : vector<2x1x1xf32> to vector<2x1x128xf32>
    %643 = arith.select %630, %642, %612 : vector<2x1x128xi1>, vector<2x1x128xf32>
    %644 = vector.broadcast %628 : vector<2x1x1xf32> to vector<2x4x128xf32>
    %645 = arith.cmpf oeq, %12, %644 : vector<2x4x128xf32>
    %cst_125 = arith.constant 0xFF800000 : f32
    %646 = vector.broadcast %cst_125 : f32 to vector<2x4x128xf32>
    %647 = arith.select %645, %646, %616 : vector<2x4x128xi1>, vector<2x4x128xf32>
    %cst_126 = arith.constant dense<0xFF800000> : vector<2x128xf32>
    %648 = vector.multi_reduction <maximumf>, %647, %cst_126 [1] : vector<2x4x128xf32> to vector<2x128xf32>
    %649 = vector.shape_cast %648 : vector<2x128xf32> to vector<2x1x128xf32>
    %cst_127 = arith.constant dense<0xFF800000> : vector<2x1xf32>
    %650 = vector.multi_reduction <maximumf>, %649, %cst_127 [2] : vector<2x1x128xf32> to vector<2x1xf32>
    %651 = vector.shape_cast %650 : vector<2x1xf32> to vector<2x1x1xf32>
    %652 = vector.broadcast %651 : vector<2x1x1xf32> to vector<2x4x128xf32>
    %653 = arith.cmpf oeq, %647, %652 : vector<2x4x128xf32>
    %cst_128 = arith.constant 5.120000e+02 : f32
    %654 = vector.broadcast %cst_128 : f32 to vector<2x4x128xf32>
    %655 = arith.select %653, %12, %654 : vector<2x4x128xi1>, vector<2x4x128xf32>
    %cst_129 = arith.constant dense<0x7F800000> : vector<2x128xf32>
    %656 = vector.multi_reduction <minimumf>, %655, %cst_129 [1] : vector<2x4x128xf32> to vector<2x128xf32>
    %657 = vector.shape_cast %656 : vector<2x128xf32> to vector<2x1x128xf32>
    %cst_130 = arith.constant dense<0x7F800000> : vector<2x1xf32>
    %658 = vector.multi_reduction <minimumf>, %657, %cst_130 [2] : vector<2x1x128xf32> to vector<2x1xf32>
    %659 = vector.shape_cast %658 : vector<2x1xf32> to vector<2x1x1xf32>
    %c19_i32 = arith.constant 19 : i32
    %660 = vector.broadcast %c19_i32 : i32 to vector<2x1x128xi32>
    %661 = arith.cmpi eq, %54, %660 : vector<2x1x128xi32>
    %662 = vector.shape_cast %651 : vector<2x1x1xf32> to vector<2x1x1xf32>
    %663 = vector.broadcast %662 : vector<2x1x1xf32> to vector<2x1x128xf32>
    %664 = arith.select %661, %663, %633 : vector<2x1x128xi1>, vector<2x1x128xf32>
    %665 = vector.shape_cast %659 : vector<2x1x1xf32> to vector<2x1x1xf32>
    %666 = vector.broadcast %665 : vector<2x1x1xf32> to vector<2x1x128xf32>
    %667 = arith.select %661, %666, %636 : vector<2x1x128xi1>, vector<2x1x128xf32>
    %668 = arith.subf %651, %62 : vector<2x1x1xf32>
    %669 = arith.mulf %668, %4 : vector<2x1x1xf32>
    %670 = math.exp %669 : vector<2x1x1xf32>
    %671 = arith.addf %640, %670 : vector<2x1x1xf32>
    %672 = vector.shape_cast %671 : vector<2x1x1xf32> to vector<2x1x1xf32>
    %673 = vector.broadcast %672 : vector<2x1x1xf32> to vector<2x1x128xf32>
    %674 = arith.select %661, %673, %643 : vector<2x1x128xi1>, vector<2x1x128xf32>
    %675 = vector.broadcast %659 : vector<2x1x1xf32> to vector<2x4x128xf32>
    %676 = arith.cmpf oeq, %12, %675 : vector<2x4x128xf32>
    %cst_131 = arith.constant 0xFF800000 : f32
    %677 = vector.broadcast %cst_131 : f32 to vector<2x4x128xf32>
    %678 = arith.select %676, %677, %647 : vector<2x4x128xi1>, vector<2x4x128xf32>
    %cst_132 = arith.constant dense<0xFF800000> : vector<2x128xf32>
    %679 = vector.multi_reduction <maximumf>, %678, %cst_132 [1] : vector<2x4x128xf32> to vector<2x128xf32>
    %680 = vector.shape_cast %679 : vector<2x128xf32> to vector<2x1x128xf32>
    %cst_133 = arith.constant dense<0xFF800000> : vector<2x1xf32>
    %681 = vector.multi_reduction <maximumf>, %680, %cst_133 [2] : vector<2x1x128xf32> to vector<2x1xf32>
    %682 = vector.shape_cast %681 : vector<2x1xf32> to vector<2x1x1xf32>
    %683 = vector.broadcast %682 : vector<2x1x1xf32> to vector<2x4x128xf32>
    %684 = arith.cmpf oeq, %678, %683 : vector<2x4x128xf32>
    %cst_134 = arith.constant 5.120000e+02 : f32
    %685 = vector.broadcast %cst_134 : f32 to vector<2x4x128xf32>
    %686 = arith.select %684, %12, %685 : vector<2x4x128xi1>, vector<2x4x128xf32>
    %cst_135 = arith.constant dense<0x7F800000> : vector<2x128xf32>
    %687 = vector.multi_reduction <minimumf>, %686, %cst_135 [1] : vector<2x4x128xf32> to vector<2x128xf32>
    %688 = vector.shape_cast %687 : vector<2x128xf32> to vector<2x1x128xf32>
    %cst_136 = arith.constant dense<0x7F800000> : vector<2x1xf32>
    %689 = vector.multi_reduction <minimumf>, %688, %cst_136 [2] : vector<2x1x128xf32> to vector<2x1xf32>
    %690 = vector.shape_cast %689 : vector<2x1xf32> to vector<2x1x1xf32>
    %c20_i32 = arith.constant 20 : i32
    %691 = vector.broadcast %c20_i32 : i32 to vector<2x1x128xi32>
    %692 = arith.cmpi eq, %54, %691 : vector<2x1x128xi32>
    %693 = vector.shape_cast %682 : vector<2x1x1xf32> to vector<2x1x1xf32>
    %694 = vector.broadcast %693 : vector<2x1x1xf32> to vector<2x1x128xf32>
    %695 = arith.select %692, %694, %664 : vector<2x1x128xi1>, vector<2x1x128xf32>
    %696 = vector.shape_cast %690 : vector<2x1x1xf32> to vector<2x1x1xf32>
    %697 = vector.broadcast %696 : vector<2x1x1xf32> to vector<2x1x128xf32>
    %698 = arith.select %692, %697, %667 : vector<2x1x128xi1>, vector<2x1x128xf32>
    %699 = arith.subf %682, %62 : vector<2x1x1xf32>
    %700 = arith.mulf %699, %4 : vector<2x1x1xf32>
    %701 = math.exp %700 : vector<2x1x1xf32>
    %702 = arith.addf %671, %701 : vector<2x1x1xf32>
    %703 = vector.shape_cast %702 : vector<2x1x1xf32> to vector<2x1x1xf32>
    %704 = vector.broadcast %703 : vector<2x1x1xf32> to vector<2x1x128xf32>
    %705 = arith.select %692, %704, %674 : vector<2x1x128xi1>, vector<2x1x128xf32>
    %706 = vector.broadcast %690 : vector<2x1x1xf32> to vector<2x4x128xf32>
    %707 = arith.cmpf oeq, %12, %706 : vector<2x4x128xf32>
    %cst_137 = arith.constant 0xFF800000 : f32
    %708 = vector.broadcast %cst_137 : f32 to vector<2x4x128xf32>
    %709 = arith.select %707, %708, %678 : vector<2x4x128xi1>, vector<2x4x128xf32>
    %cst_138 = arith.constant dense<0xFF800000> : vector<2x128xf32>
    %710 = vector.multi_reduction <maximumf>, %709, %cst_138 [1] : vector<2x4x128xf32> to vector<2x128xf32>
    %711 = vector.shape_cast %710 : vector<2x128xf32> to vector<2x1x128xf32>
    %cst_139 = arith.constant dense<0xFF800000> : vector<2x1xf32>
    %712 = vector.multi_reduction <maximumf>, %711, %cst_139 [2] : vector<2x1x128xf32> to vector<2x1xf32>
    %713 = vector.shape_cast %712 : vector<2x1xf32> to vector<2x1x1xf32>
    %714 = vector.broadcast %713 : vector<2x1x1xf32> to vector<2x4x128xf32>
    %715 = arith.cmpf oeq, %709, %714 : vector<2x4x128xf32>
    %cst_140 = arith.constant 5.120000e+02 : f32
    %716 = vector.broadcast %cst_140 : f32 to vector<2x4x128xf32>
    %717 = arith.select %715, %12, %716 : vector<2x4x128xi1>, vector<2x4x128xf32>
    %cst_141 = arith.constant dense<0x7F800000> : vector<2x128xf32>
    %718 = vector.multi_reduction <minimumf>, %717, %cst_141 [1] : vector<2x4x128xf32> to vector<2x128xf32>
    %719 = vector.shape_cast %718 : vector<2x128xf32> to vector<2x1x128xf32>
    %cst_142 = arith.constant dense<0x7F800000> : vector<2x1xf32>
    %720 = vector.multi_reduction <minimumf>, %719, %cst_142 [2] : vector<2x1x128xf32> to vector<2x1xf32>
    %721 = vector.shape_cast %720 : vector<2x1xf32> to vector<2x1x1xf32>
    %c21_i32 = arith.constant 21 : i32
    %722 = vector.broadcast %c21_i32 : i32 to vector<2x1x128xi32>
    %723 = arith.cmpi eq, %54, %722 : vector<2x1x128xi32>
    %724 = vector.shape_cast %713 : vector<2x1x1xf32> to vector<2x1x1xf32>
    %725 = vector.broadcast %724 : vector<2x1x1xf32> to vector<2x1x128xf32>
    %726 = arith.select %723, %725, %695 : vector<2x1x128xi1>, vector<2x1x128xf32>
    %727 = vector.shape_cast %721 : vector<2x1x1xf32> to vector<2x1x1xf32>
    %728 = vector.broadcast %727 : vector<2x1x1xf32> to vector<2x1x128xf32>
    %729 = arith.select %723, %728, %698 : vector<2x1x128xi1>, vector<2x1x128xf32>
    %730 = arith.subf %713, %62 : vector<2x1x1xf32>
    %731 = arith.mulf %730, %4 : vector<2x1x1xf32>
    %732 = math.exp %731 : vector<2x1x1xf32>
    %733 = arith.addf %702, %732 : vector<2x1x1xf32>
    %734 = vector.shape_cast %733 : vector<2x1x1xf32> to vector<2x1x1xf32>
    %735 = vector.broadcast %734 : vector<2x1x1xf32> to vector<2x1x128xf32>
    %736 = arith.select %723, %735, %705 : vector<2x1x128xi1>, vector<2x1x128xf32>
    %737 = vector.broadcast %721 : vector<2x1x1xf32> to vector<2x4x128xf32>
    %738 = arith.cmpf oeq, %12, %737 : vector<2x4x128xf32>
    %cst_143 = arith.constant 0xFF800000 : f32
    %739 = vector.broadcast %cst_143 : f32 to vector<2x4x128xf32>
    %740 = arith.select %738, %739, %709 : vector<2x4x128xi1>, vector<2x4x128xf32>
    %cst_144 = arith.constant dense<0xFF800000> : vector<2x128xf32>
    %741 = vector.multi_reduction <maximumf>, %740, %cst_144 [1] : vector<2x4x128xf32> to vector<2x128xf32>
    %742 = vector.shape_cast %741 : vector<2x128xf32> to vector<2x1x128xf32>
    %cst_145 = arith.constant dense<0xFF800000> : vector<2x1xf32>
    %743 = vector.multi_reduction <maximumf>, %742, %cst_145 [2] : vector<2x1x128xf32> to vector<2x1xf32>
    %744 = vector.shape_cast %743 : vector<2x1xf32> to vector<2x1x1xf32>
    %745 = vector.broadcast %744 : vector<2x1x1xf32> to vector<2x4x128xf32>
    %746 = arith.cmpf oeq, %740, %745 : vector<2x4x128xf32>
    %cst_146 = arith.constant 5.120000e+02 : f32
    %747 = vector.broadcast %cst_146 : f32 to vector<2x4x128xf32>
    %748 = arith.select %746, %12, %747 : vector<2x4x128xi1>, vector<2x4x128xf32>
    %cst_147 = arith.constant dense<0x7F800000> : vector<2x128xf32>
    %749 = vector.multi_reduction <minimumf>, %748, %cst_147 [1] : vector<2x4x128xf32> to vector<2x128xf32>
    %750 = vector.shape_cast %749 : vector<2x128xf32> to vector<2x1x128xf32>
    %cst_148 = arith.constant dense<0x7F800000> : vector<2x1xf32>
    %751 = vector.multi_reduction <minimumf>, %750, %cst_148 [2] : vector<2x1x128xf32> to vector<2x1xf32>
    %752 = vector.shape_cast %751 : vector<2x1xf32> to vector<2x1x1xf32>
    %c22_i32 = arith.constant 22 : i32
    %753 = vector.broadcast %c22_i32 : i32 to vector<2x1x128xi32>
    %754 = arith.cmpi eq, %54, %753 : vector<2x1x128xi32>
    %755 = vector.shape_cast %744 : vector<2x1x1xf32> to vector<2x1x1xf32>
    %756 = vector.broadcast %755 : vector<2x1x1xf32> to vector<2x1x128xf32>
    %757 = arith.select %754, %756, %726 : vector<2x1x128xi1>, vector<2x1x128xf32>
    %758 = vector.shape_cast %752 : vector<2x1x1xf32> to vector<2x1x1xf32>
    %759 = vector.broadcast %758 : vector<2x1x1xf32> to vector<2x1x128xf32>
    %760 = arith.select %754, %759, %729 : vector<2x1x128xi1>, vector<2x1x128xf32>
    %761 = arith.subf %744, %62 : vector<2x1x1xf32>
    %762 = arith.mulf %761, %4 : vector<2x1x1xf32>
    %763 = math.exp %762 : vector<2x1x1xf32>
    %764 = arith.addf %733, %763 : vector<2x1x1xf32>
    %765 = vector.shape_cast %764 : vector<2x1x1xf32> to vector<2x1x1xf32>
    %766 = vector.broadcast %765 : vector<2x1x1xf32> to vector<2x1x128xf32>
    %767 = arith.select %754, %766, %736 : vector<2x1x128xi1>, vector<2x1x128xf32>
    %768 = vector.broadcast %752 : vector<2x1x1xf32> to vector<2x4x128xf32>
    %769 = arith.cmpf oeq, %12, %768 : vector<2x4x128xf32>
    %cst_149 = arith.constant 0xFF800000 : f32
    %770 = vector.broadcast %cst_149 : f32 to vector<2x4x128xf32>
    %771 = arith.select %769, %770, %740 : vector<2x4x128xi1>, vector<2x4x128xf32>
    %cst_150 = arith.constant dense<0xFF800000> : vector<2x128xf32>
    %772 = vector.multi_reduction <maximumf>, %771, %cst_150 [1] : vector<2x4x128xf32> to vector<2x128xf32>
    %773 = vector.shape_cast %772 : vector<2x128xf32> to vector<2x1x128xf32>
    %cst_151 = arith.constant dense<0xFF800000> : vector<2x1xf32>
    %774 = vector.multi_reduction <maximumf>, %773, %cst_151 [2] : vector<2x1x128xf32> to vector<2x1xf32>
    %775 = vector.shape_cast %774 : vector<2x1xf32> to vector<2x1x1xf32>
    %776 = vector.broadcast %775 : vector<2x1x1xf32> to vector<2x4x128xf32>
    %777 = arith.cmpf oeq, %771, %776 : vector<2x4x128xf32>
    %cst_152 = arith.constant 5.120000e+02 : f32
    %778 = vector.broadcast %cst_152 : f32 to vector<2x4x128xf32>
    %779 = arith.select %777, %12, %778 : vector<2x4x128xi1>, vector<2x4x128xf32>
    %cst_153 = arith.constant dense<0x7F800000> : vector<2x128xf32>
    %780 = vector.multi_reduction <minimumf>, %779, %cst_153 [1] : vector<2x4x128xf32> to vector<2x128xf32>
    %781 = vector.shape_cast %780 : vector<2x128xf32> to vector<2x1x128xf32>
    %cst_154 = arith.constant dense<0x7F800000> : vector<2x1xf32>
    %782 = vector.multi_reduction <minimumf>, %781, %cst_154 [2] : vector<2x1x128xf32> to vector<2x1xf32>
    %783 = vector.shape_cast %782 : vector<2x1xf32> to vector<2x1x1xf32>
    %c23_i32 = arith.constant 23 : i32
    %784 = vector.broadcast %c23_i32 : i32 to vector<2x1x128xi32>
    %785 = arith.cmpi eq, %54, %784 : vector<2x1x128xi32>
    %786 = vector.shape_cast %775 : vector<2x1x1xf32> to vector<2x1x1xf32>
    %787 = vector.broadcast %786 : vector<2x1x1xf32> to vector<2x1x128xf32>
    %788 = arith.select %785, %787, %757 : vector<2x1x128xi1>, vector<2x1x128xf32>
    %789 = vector.shape_cast %783 : vector<2x1x1xf32> to vector<2x1x1xf32>
    %790 = vector.broadcast %789 : vector<2x1x1xf32> to vector<2x1x128xf32>
    %791 = arith.select %785, %790, %760 : vector<2x1x128xi1>, vector<2x1x128xf32>
    %792 = arith.subf %775, %62 : vector<2x1x1xf32>
    %793 = arith.mulf %792, %4 : vector<2x1x1xf32>
    %794 = math.exp %793 : vector<2x1x1xf32>
    %795 = arith.addf %764, %794 : vector<2x1x1xf32>
    %796 = vector.shape_cast %795 : vector<2x1x1xf32> to vector<2x1x1xf32>
    %797 = vector.broadcast %796 : vector<2x1x1xf32> to vector<2x1x128xf32>
    %798 = arith.select %785, %797, %767 : vector<2x1x128xi1>, vector<2x1x128xf32>
    %799 = vector.broadcast %783 : vector<2x1x1xf32> to vector<2x4x128xf32>
    %800 = arith.cmpf oeq, %12, %799 : vector<2x4x128xf32>
    %cst_155 = arith.constant 0xFF800000 : f32
    %801 = vector.broadcast %cst_155 : f32 to vector<2x4x128xf32>
    %802 = arith.select %800, %801, %771 : vector<2x4x128xi1>, vector<2x4x128xf32>
    %cst_156 = arith.constant dense<0xFF800000> : vector<2x128xf32>
    %803 = vector.multi_reduction <maximumf>, %802, %cst_156 [1] : vector<2x4x128xf32> to vector<2x128xf32>
    %804 = vector.shape_cast %803 : vector<2x128xf32> to vector<2x1x128xf32>
    %cst_157 = arith.constant dense<0xFF800000> : vector<2x1xf32>
    %805 = vector.multi_reduction <maximumf>, %804, %cst_157 [2] : vector<2x1x128xf32> to vector<2x1xf32>
    %806 = vector.shape_cast %805 : vector<2x1xf32> to vector<2x1x1xf32>
    %807 = vector.broadcast %806 : vector<2x1x1xf32> to vector<2x4x128xf32>
    %808 = arith.cmpf oeq, %802, %807 : vector<2x4x128xf32>
    %cst_158 = arith.constant 5.120000e+02 : f32
    %809 = vector.broadcast %cst_158 : f32 to vector<2x4x128xf32>
    %810 = arith.select %808, %12, %809 : vector<2x4x128xi1>, vector<2x4x128xf32>
    %cst_159 = arith.constant dense<0x7F800000> : vector<2x128xf32>
    %811 = vector.multi_reduction <minimumf>, %810, %cst_159 [1] : vector<2x4x128xf32> to vector<2x128xf32>
    %812 = vector.shape_cast %811 : vector<2x128xf32> to vector<2x1x128xf32>
    %cst_160 = arith.constant dense<0x7F800000> : vector<2x1xf32>
    %813 = vector.multi_reduction <minimumf>, %812, %cst_160 [2] : vector<2x1x128xf32> to vector<2x1xf32>
    %814 = vector.shape_cast %813 : vector<2x1xf32> to vector<2x1x1xf32>
    %c24_i32 = arith.constant 24 : i32
    %815 = vector.broadcast %c24_i32 : i32 to vector<2x1x128xi32>
    %816 = arith.cmpi eq, %54, %815 : vector<2x1x128xi32>
    %817 = vector.shape_cast %806 : vector<2x1x1xf32> to vector<2x1x1xf32>
    %818 = vector.broadcast %817 : vector<2x1x1xf32> to vector<2x1x128xf32>
    %819 = arith.select %816, %818, %788 : vector<2x1x128xi1>, vector<2x1x128xf32>
    %820 = vector.shape_cast %814 : vector<2x1x1xf32> to vector<2x1x1xf32>
    %821 = vector.broadcast %820 : vector<2x1x1xf32> to vector<2x1x128xf32>
    %822 = arith.select %816, %821, %791 : vector<2x1x128xi1>, vector<2x1x128xf32>
    %823 = arith.subf %806, %62 : vector<2x1x1xf32>
    %824 = arith.mulf %823, %4 : vector<2x1x1xf32>
    %825 = math.exp %824 : vector<2x1x1xf32>
    %826 = arith.addf %795, %825 : vector<2x1x1xf32>
    %827 = vector.shape_cast %826 : vector<2x1x1xf32> to vector<2x1x1xf32>
    %828 = vector.broadcast %827 : vector<2x1x1xf32> to vector<2x1x128xf32>
    %829 = arith.select %816, %828, %798 : vector<2x1x128xi1>, vector<2x1x128xf32>
    %830 = vector.broadcast %814 : vector<2x1x1xf32> to vector<2x4x128xf32>
    %831 = arith.cmpf oeq, %12, %830 : vector<2x4x128xf32>
    %cst_161 = arith.constant 0xFF800000 : f32
    %832 = vector.broadcast %cst_161 : f32 to vector<2x4x128xf32>
    %833 = arith.select %831, %832, %802 : vector<2x4x128xi1>, vector<2x4x128xf32>
    %cst_162 = arith.constant dense<0xFF800000> : vector<2x128xf32>
    %834 = vector.multi_reduction <maximumf>, %833, %cst_162 [1] : vector<2x4x128xf32> to vector<2x128xf32>
    %835 = vector.shape_cast %834 : vector<2x128xf32> to vector<2x1x128xf32>
    %cst_163 = arith.constant dense<0xFF800000> : vector<2x1xf32>
    %836 = vector.multi_reduction <maximumf>, %835, %cst_163 [2] : vector<2x1x128xf32> to vector<2x1xf32>
    %837 = vector.shape_cast %836 : vector<2x1xf32> to vector<2x1x1xf32>
    %838 = vector.broadcast %837 : vector<2x1x1xf32> to vector<2x4x128xf32>
    %839 = arith.cmpf oeq, %833, %838 : vector<2x4x128xf32>
    %cst_164 = arith.constant 5.120000e+02 : f32
    %840 = vector.broadcast %cst_164 : f32 to vector<2x4x128xf32>
    %841 = arith.select %839, %12, %840 : vector<2x4x128xi1>, vector<2x4x128xf32>
    %cst_165 = arith.constant dense<0x7F800000> : vector<2x128xf32>
    %842 = vector.multi_reduction <minimumf>, %841, %cst_165 [1] : vector<2x4x128xf32> to vector<2x128xf32>
    %843 = vector.shape_cast %842 : vector<2x128xf32> to vector<2x1x128xf32>
    %cst_166 = arith.constant dense<0x7F800000> : vector<2x1xf32>
    %844 = vector.multi_reduction <minimumf>, %843, %cst_166 [2] : vector<2x1x128xf32> to vector<2x1xf32>
    %845 = vector.shape_cast %844 : vector<2x1xf32> to vector<2x1x1xf32>
    %c25_i32 = arith.constant 25 : i32
    %846 = vector.broadcast %c25_i32 : i32 to vector<2x1x128xi32>
    %847 = arith.cmpi eq, %54, %846 : vector<2x1x128xi32>
    %848 = vector.shape_cast %837 : vector<2x1x1xf32> to vector<2x1x1xf32>
    %849 = vector.broadcast %848 : vector<2x1x1xf32> to vector<2x1x128xf32>
    %850 = arith.select %847, %849, %819 : vector<2x1x128xi1>, vector<2x1x128xf32>
    %851 = vector.shape_cast %845 : vector<2x1x1xf32> to vector<2x1x1xf32>
    %852 = vector.broadcast %851 : vector<2x1x1xf32> to vector<2x1x128xf32>
    %853 = arith.select %847, %852, %822 : vector<2x1x128xi1>, vector<2x1x128xf32>
    %854 = arith.subf %837, %62 : vector<2x1x1xf32>
    %855 = arith.mulf %854, %4 : vector<2x1x1xf32>
    %856 = math.exp %855 : vector<2x1x1xf32>
    %857 = arith.addf %826, %856 : vector<2x1x1xf32>
    %858 = vector.shape_cast %857 : vector<2x1x1xf32> to vector<2x1x1xf32>
    %859 = vector.broadcast %858 : vector<2x1x1xf32> to vector<2x1x128xf32>
    %860 = arith.select %847, %859, %829 : vector<2x1x128xi1>, vector<2x1x128xf32>
    %861 = vector.broadcast %845 : vector<2x1x1xf32> to vector<2x4x128xf32>
    %862 = arith.cmpf oeq, %12, %861 : vector<2x4x128xf32>
    %cst_167 = arith.constant 0xFF800000 : f32
    %863 = vector.broadcast %cst_167 : f32 to vector<2x4x128xf32>
    %864 = arith.select %862, %863, %833 : vector<2x4x128xi1>, vector<2x4x128xf32>
    %cst_168 = arith.constant dense<0xFF800000> : vector<2x128xf32>
    %865 = vector.multi_reduction <maximumf>, %864, %cst_168 [1] : vector<2x4x128xf32> to vector<2x128xf32>
    %866 = vector.shape_cast %865 : vector<2x128xf32> to vector<2x1x128xf32>
    %cst_169 = arith.constant dense<0xFF800000> : vector<2x1xf32>
    %867 = vector.multi_reduction <maximumf>, %866, %cst_169 [2] : vector<2x1x128xf32> to vector<2x1xf32>
    %868 = vector.shape_cast %867 : vector<2x1xf32> to vector<2x1x1xf32>
    %869 = vector.broadcast %868 : vector<2x1x1xf32> to vector<2x4x128xf32>
    %870 = arith.cmpf oeq, %864, %869 : vector<2x4x128xf32>
    %cst_170 = arith.constant 5.120000e+02 : f32
    %871 = vector.broadcast %cst_170 : f32 to vector<2x4x128xf32>
    %872 = arith.select %870, %12, %871 : vector<2x4x128xi1>, vector<2x4x128xf32>
    %cst_171 = arith.constant dense<0x7F800000> : vector<2x128xf32>
    %873 = vector.multi_reduction <minimumf>, %872, %cst_171 [1] : vector<2x4x128xf32> to vector<2x128xf32>
    %874 = vector.shape_cast %873 : vector<2x128xf32> to vector<2x1x128xf32>
    %cst_172 = arith.constant dense<0x7F800000> : vector<2x1xf32>
    %875 = vector.multi_reduction <minimumf>, %874, %cst_172 [2] : vector<2x1x128xf32> to vector<2x1xf32>
    %876 = vector.shape_cast %875 : vector<2x1xf32> to vector<2x1x1xf32>
    %c26_i32 = arith.constant 26 : i32
    %877 = vector.broadcast %c26_i32 : i32 to vector<2x1x128xi32>
    %878 = arith.cmpi eq, %54, %877 : vector<2x1x128xi32>
    %879 = vector.shape_cast %868 : vector<2x1x1xf32> to vector<2x1x1xf32>
    %880 = vector.broadcast %879 : vector<2x1x1xf32> to vector<2x1x128xf32>
    %881 = arith.select %878, %880, %850 : vector<2x1x128xi1>, vector<2x1x128xf32>
    %882 = vector.shape_cast %876 : vector<2x1x1xf32> to vector<2x1x1xf32>
    %883 = vector.broadcast %882 : vector<2x1x1xf32> to vector<2x1x128xf32>
    %884 = arith.select %878, %883, %853 : vector<2x1x128xi1>, vector<2x1x128xf32>
    %885 = arith.subf %868, %62 : vector<2x1x1xf32>
    %886 = arith.mulf %885, %4 : vector<2x1x1xf32>
    %887 = math.exp %886 : vector<2x1x1xf32>
    %888 = arith.addf %857, %887 : vector<2x1x1xf32>
    %889 = vector.shape_cast %888 : vector<2x1x1xf32> to vector<2x1x1xf32>
    %890 = vector.broadcast %889 : vector<2x1x1xf32> to vector<2x1x128xf32>
    %891 = arith.select %878, %890, %860 : vector<2x1x128xi1>, vector<2x1x128xf32>
    %892 = vector.broadcast %876 : vector<2x1x1xf32> to vector<2x4x128xf32>
    %893 = arith.cmpf oeq, %12, %892 : vector<2x4x128xf32>
    %cst_173 = arith.constant 0xFF800000 : f32
    %894 = vector.broadcast %cst_173 : f32 to vector<2x4x128xf32>
    %895 = arith.select %893, %894, %864 : vector<2x4x128xi1>, vector<2x4x128xf32>
    %cst_174 = arith.constant dense<0xFF800000> : vector<2x128xf32>
    %896 = vector.multi_reduction <maximumf>, %895, %cst_174 [1] : vector<2x4x128xf32> to vector<2x128xf32>
    %897 = vector.shape_cast %896 : vector<2x128xf32> to vector<2x1x128xf32>
    %cst_175 = arith.constant dense<0xFF800000> : vector<2x1xf32>
    %898 = vector.multi_reduction <maximumf>, %897, %cst_175 [2] : vector<2x1x128xf32> to vector<2x1xf32>
    %899 = vector.shape_cast %898 : vector<2x1xf32> to vector<2x1x1xf32>
    %900 = vector.broadcast %899 : vector<2x1x1xf32> to vector<2x4x128xf32>
    %901 = arith.cmpf oeq, %895, %900 : vector<2x4x128xf32>
    %cst_176 = arith.constant 5.120000e+02 : f32
    %902 = vector.broadcast %cst_176 : f32 to vector<2x4x128xf32>
    %903 = arith.select %901, %12, %902 : vector<2x4x128xi1>, vector<2x4x128xf32>
    %cst_177 = arith.constant dense<0x7F800000> : vector<2x128xf32>
    %904 = vector.multi_reduction <minimumf>, %903, %cst_177 [1] : vector<2x4x128xf32> to vector<2x128xf32>
    %905 = vector.shape_cast %904 : vector<2x128xf32> to vector<2x1x128xf32>
    %cst_178 = arith.constant dense<0x7F800000> : vector<2x1xf32>
    %906 = vector.multi_reduction <minimumf>, %905, %cst_178 [2] : vector<2x1x128xf32> to vector<2x1xf32>
    %907 = vector.shape_cast %906 : vector<2x1xf32> to vector<2x1x1xf32>
    %c27_i32 = arith.constant 27 : i32
    %908 = vector.broadcast %c27_i32 : i32 to vector<2x1x128xi32>
    %909 = arith.cmpi eq, %54, %908 : vector<2x1x128xi32>
    %910 = vector.shape_cast %899 : vector<2x1x1xf32> to vector<2x1x1xf32>
    %911 = vector.broadcast %910 : vector<2x1x1xf32> to vector<2x1x128xf32>
    %912 = arith.select %909, %911, %881 : vector<2x1x128xi1>, vector<2x1x128xf32>
    %913 = vector.shape_cast %907 : vector<2x1x1xf32> to vector<2x1x1xf32>
    %914 = vector.broadcast %913 : vector<2x1x1xf32> to vector<2x1x128xf32>
    %915 = arith.select %909, %914, %884 : vector<2x1x128xi1>, vector<2x1x128xf32>
    %916 = arith.subf %899, %62 : vector<2x1x1xf32>
    %917 = arith.mulf %916, %4 : vector<2x1x1xf32>
    %918 = math.exp %917 : vector<2x1x1xf32>
    %919 = arith.addf %888, %918 : vector<2x1x1xf32>
    %920 = vector.shape_cast %919 : vector<2x1x1xf32> to vector<2x1x1xf32>
    %921 = vector.broadcast %920 : vector<2x1x1xf32> to vector<2x1x128xf32>
    %922 = arith.select %909, %921, %891 : vector<2x1x128xi1>, vector<2x1x128xf32>
    %923 = vector.broadcast %907 : vector<2x1x1xf32> to vector<2x4x128xf32>
    %924 = arith.cmpf oeq, %12, %923 : vector<2x4x128xf32>
    %cst_179 = arith.constant 0xFF800000 : f32
    %925 = vector.broadcast %cst_179 : f32 to vector<2x4x128xf32>
    %926 = arith.select %924, %925, %895 : vector<2x4x128xi1>, vector<2x4x128xf32>
    %cst_180 = arith.constant dense<0xFF800000> : vector<2x128xf32>
    %927 = vector.multi_reduction <maximumf>, %926, %cst_180 [1] : vector<2x4x128xf32> to vector<2x128xf32>
    %928 = vector.shape_cast %927 : vector<2x128xf32> to vector<2x1x128xf32>
    %cst_181 = arith.constant dense<0xFF800000> : vector<2x1xf32>
    %929 = vector.multi_reduction <maximumf>, %928, %cst_181 [2] : vector<2x1x128xf32> to vector<2x1xf32>
    %930 = vector.shape_cast %929 : vector<2x1xf32> to vector<2x1x1xf32>
    %931 = vector.broadcast %930 : vector<2x1x1xf32> to vector<2x4x128xf32>
    %932 = arith.cmpf oeq, %926, %931 : vector<2x4x128xf32>
    %cst_182 = arith.constant 5.120000e+02 : f32
    %933 = vector.broadcast %cst_182 : f32 to vector<2x4x128xf32>
    %934 = arith.select %932, %12, %933 : vector<2x4x128xi1>, vector<2x4x128xf32>
    %cst_183 = arith.constant dense<0x7F800000> : vector<2x128xf32>
    %935 = vector.multi_reduction <minimumf>, %934, %cst_183 [1] : vector<2x4x128xf32> to vector<2x128xf32>
    %936 = vector.shape_cast %935 : vector<2x128xf32> to vector<2x1x128xf32>
    %cst_184 = arith.constant dense<0x7F800000> : vector<2x1xf32>
    %937 = vector.multi_reduction <minimumf>, %936, %cst_184 [2] : vector<2x1x128xf32> to vector<2x1xf32>
    %938 = vector.shape_cast %937 : vector<2x1xf32> to vector<2x1x1xf32>
    %c28_i32 = arith.constant 28 : i32
    %939 = vector.broadcast %c28_i32 : i32 to vector<2x1x128xi32>
    %940 = arith.cmpi eq, %54, %939 : vector<2x1x128xi32>
    %941 = vector.shape_cast %930 : vector<2x1x1xf32> to vector<2x1x1xf32>
    %942 = vector.broadcast %941 : vector<2x1x1xf32> to vector<2x1x128xf32>
    %943 = arith.select %940, %942, %912 : vector<2x1x128xi1>, vector<2x1x128xf32>
    %944 = vector.shape_cast %938 : vector<2x1x1xf32> to vector<2x1x1xf32>
    %945 = vector.broadcast %944 : vector<2x1x1xf32> to vector<2x1x128xf32>
    %946 = arith.select %940, %945, %915 : vector<2x1x128xi1>, vector<2x1x128xf32>
    %947 = arith.subf %930, %62 : vector<2x1x1xf32>
    %948 = arith.mulf %947, %4 : vector<2x1x1xf32>
    %949 = math.exp %948 : vector<2x1x1xf32>
    %950 = arith.addf %919, %949 : vector<2x1x1xf32>
    %951 = vector.shape_cast %950 : vector<2x1x1xf32> to vector<2x1x1xf32>
    %952 = vector.broadcast %951 : vector<2x1x1xf32> to vector<2x1x128xf32>
    %953 = arith.select %940, %952, %922 : vector<2x1x128xi1>, vector<2x1x128xf32>
    %954 = vector.broadcast %938 : vector<2x1x1xf32> to vector<2x4x128xf32>
    %955 = arith.cmpf oeq, %12, %954 : vector<2x4x128xf32>
    %cst_185 = arith.constant 0xFF800000 : f32
    %956 = vector.broadcast %cst_185 : f32 to vector<2x4x128xf32>
    %957 = arith.select %955, %956, %926 : vector<2x4x128xi1>, vector<2x4x128xf32>
    %cst_186 = arith.constant dense<0xFF800000> : vector<2x128xf32>
    %958 = vector.multi_reduction <maximumf>, %957, %cst_186 [1] : vector<2x4x128xf32> to vector<2x128xf32>
    %959 = vector.shape_cast %958 : vector<2x128xf32> to vector<2x1x128xf32>
    %cst_187 = arith.constant dense<0xFF800000> : vector<2x1xf32>
    %960 = vector.multi_reduction <maximumf>, %959, %cst_187 [2] : vector<2x1x128xf32> to vector<2x1xf32>
    %961 = vector.shape_cast %960 : vector<2x1xf32> to vector<2x1x1xf32>
    %962 = vector.broadcast %961 : vector<2x1x1xf32> to vector<2x4x128xf32>
    %963 = arith.cmpf oeq, %957, %962 : vector<2x4x128xf32>
    %cst_188 = arith.constant 5.120000e+02 : f32
    %964 = vector.broadcast %cst_188 : f32 to vector<2x4x128xf32>
    %965 = arith.select %963, %12, %964 : vector<2x4x128xi1>, vector<2x4x128xf32>
    %cst_189 = arith.constant dense<0x7F800000> : vector<2x128xf32>
    %966 = vector.multi_reduction <minimumf>, %965, %cst_189 [1] : vector<2x4x128xf32> to vector<2x128xf32>
    %967 = vector.shape_cast %966 : vector<2x128xf32> to vector<2x1x128xf32>
    %cst_190 = arith.constant dense<0x7F800000> : vector<2x1xf32>
    %968 = vector.multi_reduction <minimumf>, %967, %cst_190 [2] : vector<2x1x128xf32> to vector<2x1xf32>
    %969 = vector.shape_cast %968 : vector<2x1xf32> to vector<2x1x1xf32>
    %c29_i32 = arith.constant 29 : i32
    %970 = vector.broadcast %c29_i32 : i32 to vector<2x1x128xi32>
    %971 = arith.cmpi eq, %54, %970 : vector<2x1x128xi32>
    %972 = vector.shape_cast %961 : vector<2x1x1xf32> to vector<2x1x1xf32>
    %973 = vector.broadcast %972 : vector<2x1x1xf32> to vector<2x1x128xf32>
    %974 = arith.select %971, %973, %943 : vector<2x1x128xi1>, vector<2x1x128xf32>
    %975 = vector.shape_cast %969 : vector<2x1x1xf32> to vector<2x1x1xf32>
    %976 = vector.broadcast %975 : vector<2x1x1xf32> to vector<2x1x128xf32>
    %977 = arith.select %971, %976, %946 : vector<2x1x128xi1>, vector<2x1x128xf32>
    %978 = arith.subf %961, %62 : vector<2x1x1xf32>
    %979 = arith.mulf %978, %4 : vector<2x1x1xf32>
    %980 = math.exp %979 : vector<2x1x1xf32>
    %981 = arith.addf %950, %980 : vector<2x1x1xf32>
    %982 = vector.shape_cast %981 : vector<2x1x1xf32> to vector<2x1x1xf32>
    %983 = vector.broadcast %982 : vector<2x1x1xf32> to vector<2x1x128xf32>
    %984 = arith.select %971, %983, %953 : vector<2x1x128xi1>, vector<2x1x128xf32>
    %985 = vector.broadcast %969 : vector<2x1x1xf32> to vector<2x4x128xf32>
    %986 = arith.cmpf oeq, %12, %985 : vector<2x4x128xf32>
    %cst_191 = arith.constant 0xFF800000 : f32
    %987 = vector.broadcast %cst_191 : f32 to vector<2x4x128xf32>
    %988 = arith.select %986, %987, %957 : vector<2x4x128xi1>, vector<2x4x128xf32>
    %cst_192 = arith.constant dense<0xFF800000> : vector<2x128xf32>
    %989 = vector.multi_reduction <maximumf>, %988, %cst_192 [1] : vector<2x4x128xf32> to vector<2x128xf32>
    %990 = vector.shape_cast %989 : vector<2x128xf32> to vector<2x1x128xf32>
    %cst_193 = arith.constant dense<0xFF800000> : vector<2x1xf32>
    %991 = vector.multi_reduction <maximumf>, %990, %cst_193 [2] : vector<2x1x128xf32> to vector<2x1xf32>
    %992 = vector.shape_cast %991 : vector<2x1xf32> to vector<2x1x1xf32>
    %993 = vector.broadcast %992 : vector<2x1x1xf32> to vector<2x4x128xf32>
    %994 = arith.cmpf oeq, %988, %993 : vector<2x4x128xf32>
    %cst_194 = arith.constant 5.120000e+02 : f32
    %995 = vector.broadcast %cst_194 : f32 to vector<2x4x128xf32>
    %996 = arith.select %994, %12, %995 : vector<2x4x128xi1>, vector<2x4x128xf32>
    %cst_195 = arith.constant dense<0x7F800000> : vector<2x128xf32>
    %997 = vector.multi_reduction <minimumf>, %996, %cst_195 [1] : vector<2x4x128xf32> to vector<2x128xf32>
    %998 = vector.shape_cast %997 : vector<2x128xf32> to vector<2x1x128xf32>
    %cst_196 = arith.constant dense<0x7F800000> : vector<2x1xf32>
    %999 = vector.multi_reduction <minimumf>, %998, %cst_196 [2] : vector<2x1x128xf32> to vector<2x1xf32>
    %1000 = vector.shape_cast %999 : vector<2x1xf32> to vector<2x1x1xf32>
    %c30_i32 = arith.constant 30 : i32
    %1001 = vector.broadcast %c30_i32 : i32 to vector<2x1x128xi32>
    %1002 = arith.cmpi eq, %54, %1001 : vector<2x1x128xi32>
    %1003 = vector.shape_cast %992 : vector<2x1x1xf32> to vector<2x1x1xf32>
    %1004 = vector.broadcast %1003 : vector<2x1x1xf32> to vector<2x1x128xf32>
    %1005 = arith.select %1002, %1004, %974 : vector<2x1x128xi1>, vector<2x1x128xf32>
    %1006 = vector.shape_cast %1000 : vector<2x1x1xf32> to vector<2x1x1xf32>
    %1007 = vector.broadcast %1006 : vector<2x1x1xf32> to vector<2x1x128xf32>
    %1008 = arith.select %1002, %1007, %977 : vector<2x1x128xi1>, vector<2x1x128xf32>
    %1009 = arith.subf %992, %62 : vector<2x1x1xf32>
    %1010 = arith.mulf %1009, %4 : vector<2x1x1xf32>
    %1011 = math.exp %1010 : vector<2x1x1xf32>
    %1012 = arith.addf %981, %1011 : vector<2x1x1xf32>
    %1013 = vector.shape_cast %1012 : vector<2x1x1xf32> to vector<2x1x1xf32>
    %1014 = vector.broadcast %1013 : vector<2x1x1xf32> to vector<2x1x128xf32>
    %1015 = arith.select %1002, %1014, %984 : vector<2x1x128xi1>, vector<2x1x128xf32>
    %1016 = vector.broadcast %1000 : vector<2x1x1xf32> to vector<2x4x128xf32>
    %1017 = arith.cmpf oeq, %12, %1016 : vector<2x4x128xf32>
    %cst_197 = arith.constant 0xFF800000 : f32
    %1018 = vector.broadcast %cst_197 : f32 to vector<2x4x128xf32>
    %1019 = arith.select %1017, %1018, %988 : vector<2x4x128xi1>, vector<2x4x128xf32>
    %cst_198 = arith.constant dense<0xFF800000> : vector<2x128xf32>
    %1020 = vector.multi_reduction <maximumf>, %1019, %cst_198 [1] : vector<2x4x128xf32> to vector<2x128xf32>
    %1021 = vector.shape_cast %1020 : vector<2x128xf32> to vector<2x1x128xf32>
    %cst_199 = arith.constant dense<0xFF800000> : vector<2x1xf32>
    %1022 = vector.multi_reduction <maximumf>, %1021, %cst_199 [2] : vector<2x1x128xf32> to vector<2x1xf32>
    %1023 = vector.shape_cast %1022 : vector<2x1xf32> to vector<2x1x1xf32>
    %1024 = vector.broadcast %1023 : vector<2x1x1xf32> to vector<2x4x128xf32>
    %1025 = arith.cmpf oeq, %1019, %1024 : vector<2x4x128xf32>
    %cst_200 = arith.constant 5.120000e+02 : f32
    %1026 = vector.broadcast %cst_200 : f32 to vector<2x4x128xf32>
    %1027 = arith.select %1025, %12, %1026 : vector<2x4x128xi1>, vector<2x4x128xf32>
    %cst_201 = arith.constant dense<0x7F800000> : vector<2x128xf32>
    %1028 = vector.multi_reduction <minimumf>, %1027, %cst_201 [1] : vector<2x4x128xf32> to vector<2x128xf32>
    %1029 = vector.shape_cast %1028 : vector<2x128xf32> to vector<2x1x128xf32>
    %cst_202 = arith.constant dense<0x7F800000> : vector<2x1xf32>
    %1030 = vector.multi_reduction <minimumf>, %1029, %cst_202 [2] : vector<2x1x128xf32> to vector<2x1xf32>
    %1031 = vector.shape_cast %1030 : vector<2x1xf32> to vector<2x1x1xf32>
    %c31_i32 = arith.constant 31 : i32
    %1032 = vector.broadcast %c31_i32 : i32 to vector<2x1x128xi32>
    %1033 = arith.cmpi eq, %54, %1032 : vector<2x1x128xi32>
    %1034 = vector.shape_cast %1023 : vector<2x1x1xf32> to vector<2x1x1xf32>
    %1035 = vector.broadcast %1034 : vector<2x1x1xf32> to vector<2x1x128xf32>
    %1036 = arith.select %1033, %1035, %1005 : vector<2x1x128xi1>, vector<2x1x128xf32>
    %1037 = vector.shape_cast %1031 : vector<2x1x1xf32> to vector<2x1x1xf32>
    %1038 = vector.broadcast %1037 : vector<2x1x1xf32> to vector<2x1x128xf32>
    %1039 = arith.select %1033, %1038, %1008 : vector<2x1x128xi1>, vector<2x1x128xf32>
    %1040 = arith.subf %1023, %62 : vector<2x1x1xf32>
    %1041 = arith.mulf %1040, %4 : vector<2x1x1xf32>
    %1042 = math.exp %1041 : vector<2x1x1xf32>
    %1043 = arith.addf %1012, %1042 : vector<2x1x1xf32>
    %1044 = vector.shape_cast %1043 : vector<2x1x1xf32> to vector<2x1x1xf32>
    %1045 = vector.broadcast %1044 : vector<2x1x1xf32> to vector<2x1x128xf32>
    %1046 = arith.select %1033, %1045, %1015 : vector<2x1x128xi1>, vector<2x1x128xf32>
    %1047 = vector.broadcast %1031 : vector<2x1x1xf32> to vector<2x4x128xf32>
    %1048 = arith.cmpf oeq, %12, %1047 : vector<2x4x128xf32>
    %cst_203 = arith.constant 0xFF800000 : f32
    %1049 = vector.broadcast %cst_203 : f32 to vector<2x4x128xf32>
    %1050 = arith.select %1048, %1049, %1019 : vector<2x4x128xi1>, vector<2x4x128xf32>
    %cst_204 = arith.constant dense<0xFF800000> : vector<2x128xf32>
    %1051 = vector.multi_reduction <maximumf>, %1050, %cst_204 [1] : vector<2x4x128xf32> to vector<2x128xf32>
    %1052 = vector.shape_cast %1051 : vector<2x128xf32> to vector<2x1x128xf32>
    %cst_205 = arith.constant dense<0xFF800000> : vector<2x1xf32>
    %1053 = vector.multi_reduction <maximumf>, %1052, %cst_205 [2] : vector<2x1x128xf32> to vector<2x1xf32>
    %1054 = vector.shape_cast %1053 : vector<2x1xf32> to vector<2x1x1xf32>
    %1055 = vector.broadcast %1054 : vector<2x1x1xf32> to vector<2x4x128xf32>
    %1056 = arith.cmpf oeq, %1050, %1055 : vector<2x4x128xf32>
    %cst_206 = arith.constant 5.120000e+02 : f32
    %1057 = vector.broadcast %cst_206 : f32 to vector<2x4x128xf32>
    %1058 = arith.select %1056, %12, %1057 : vector<2x4x128xi1>, vector<2x4x128xf32>
    %cst_207 = arith.constant dense<0x7F800000> : vector<2x128xf32>
    %1059 = vector.multi_reduction <minimumf>, %1058, %cst_207 [1] : vector<2x4x128xf32> to vector<2x128xf32>
    %1060 = vector.shape_cast %1059 : vector<2x128xf32> to vector<2x1x128xf32>
    %cst_208 = arith.constant dense<0x7F800000> : vector<2x1xf32>
    %1061 = vector.multi_reduction <minimumf>, %1060, %cst_208 [2] : vector<2x1x128xf32> to vector<2x1xf32>
    %1062 = vector.shape_cast %1061 : vector<2x1xf32> to vector<2x1x1xf32>
    %c32_i32 = arith.constant 32 : i32
    %1063 = vector.broadcast %c32_i32 : i32 to vector<2x1x128xi32>
    %1064 = arith.cmpi eq, %54, %1063 : vector<2x1x128xi32>
    %1065 = vector.shape_cast %1054 : vector<2x1x1xf32> to vector<2x1x1xf32>
    %1066 = vector.broadcast %1065 : vector<2x1x1xf32> to vector<2x1x128xf32>
    %1067 = arith.select %1064, %1066, %1036 : vector<2x1x128xi1>, vector<2x1x128xf32>
    %1068 = vector.shape_cast %1062 : vector<2x1x1xf32> to vector<2x1x1xf32>
    %1069 = vector.broadcast %1068 : vector<2x1x1xf32> to vector<2x1x128xf32>
    %1070 = arith.select %1064, %1069, %1039 : vector<2x1x128xi1>, vector<2x1x128xf32>
    %1071 = arith.subf %1054, %62 : vector<2x1x1xf32>
    %1072 = arith.mulf %1071, %4 : vector<2x1x1xf32>
    %1073 = math.exp %1072 : vector<2x1x1xf32>
    %1074 = arith.addf %1043, %1073 : vector<2x1x1xf32>
    %1075 = vector.shape_cast %1074 : vector<2x1x1xf32> to vector<2x1x1xf32>
    %1076 = vector.broadcast %1075 : vector<2x1x1xf32> to vector<2x1x128xf32>
    %1077 = arith.select %1064, %1076, %1046 : vector<2x1x128xi1>, vector<2x1x128xf32>
    %1078 = vector.broadcast %1062 : vector<2x1x1xf32> to vector<2x4x128xf32>
    %1079 = arith.cmpf oeq, %12, %1078 : vector<2x4x128xf32>
    %cst_209 = arith.constant 0xFF800000 : f32
    %1080 = vector.broadcast %cst_209 : f32 to vector<2x4x128xf32>
    %1081 = arith.select %1079, %1080, %1050 : vector<2x4x128xi1>, vector<2x4x128xf32>
    %cst_210 = arith.constant dense<0xFF800000> : vector<2x128xf32>
    %1082 = vector.multi_reduction <maximumf>, %1081, %cst_210 [1] : vector<2x4x128xf32> to vector<2x128xf32>
    %1083 = vector.shape_cast %1082 : vector<2x128xf32> to vector<2x1x128xf32>
    %cst_211 = arith.constant dense<0xFF800000> : vector<2x1xf32>
    %1084 = vector.multi_reduction <maximumf>, %1083, %cst_211 [2] : vector<2x1x128xf32> to vector<2x1xf32>
    %1085 = vector.shape_cast %1084 : vector<2x1xf32> to vector<2x1x1xf32>
    %1086 = vector.broadcast %1085 : vector<2x1x1xf32> to vector<2x4x128xf32>
    %1087 = arith.cmpf oeq, %1081, %1086 : vector<2x4x128xf32>
    %cst_212 = arith.constant 5.120000e+02 : f32
    %1088 = vector.broadcast %cst_212 : f32 to vector<2x4x128xf32>
    %1089 = arith.select %1087, %12, %1088 : vector<2x4x128xi1>, vector<2x4x128xf32>
    %cst_213 = arith.constant dense<0x7F800000> : vector<2x128xf32>
    %1090 = vector.multi_reduction <minimumf>, %1089, %cst_213 [1] : vector<2x4x128xf32> to vector<2x128xf32>
    %1091 = vector.shape_cast %1090 : vector<2x128xf32> to vector<2x1x128xf32>
    %cst_214 = arith.constant dense<0x7F800000> : vector<2x1xf32>
    %1092 = vector.multi_reduction <minimumf>, %1091, %cst_214 [2] : vector<2x1x128xf32> to vector<2x1xf32>
    %1093 = vector.shape_cast %1092 : vector<2x1xf32> to vector<2x1x1xf32>
    %c33_i32 = arith.constant 33 : i32
    %1094 = vector.broadcast %c33_i32 : i32 to vector<2x1x128xi32>
    %1095 = arith.cmpi eq, %54, %1094 : vector<2x1x128xi32>
    %1096 = vector.shape_cast %1085 : vector<2x1x1xf32> to vector<2x1x1xf32>
    %1097 = vector.broadcast %1096 : vector<2x1x1xf32> to vector<2x1x128xf32>
    %1098 = arith.select %1095, %1097, %1067 : vector<2x1x128xi1>, vector<2x1x128xf32>
    %1099 = vector.shape_cast %1093 : vector<2x1x1xf32> to vector<2x1x1xf32>
    %1100 = vector.broadcast %1099 : vector<2x1x1xf32> to vector<2x1x128xf32>
    %1101 = arith.select %1095, %1100, %1070 : vector<2x1x128xi1>, vector<2x1x128xf32>
    %1102 = arith.subf %1085, %62 : vector<2x1x1xf32>
    %1103 = arith.mulf %1102, %4 : vector<2x1x1xf32>
    %1104 = math.exp %1103 : vector<2x1x1xf32>
    %1105 = arith.addf %1074, %1104 : vector<2x1x1xf32>
    %1106 = vector.shape_cast %1105 : vector<2x1x1xf32> to vector<2x1x1xf32>
    %1107 = vector.broadcast %1106 : vector<2x1x1xf32> to vector<2x1x128xf32>
    %1108 = arith.select %1095, %1107, %1077 : vector<2x1x128xi1>, vector<2x1x128xf32>
    %1109 = vector.broadcast %1093 : vector<2x1x1xf32> to vector<2x4x128xf32>
    %1110 = arith.cmpf oeq, %12, %1109 : vector<2x4x128xf32>
    %cst_215 = arith.constant 0xFF800000 : f32
    %1111 = vector.broadcast %cst_215 : f32 to vector<2x4x128xf32>
    %1112 = arith.select %1110, %1111, %1081 : vector<2x4x128xi1>, vector<2x4x128xf32>
    %cst_216 = arith.constant dense<0xFF800000> : vector<2x128xf32>
    %1113 = vector.multi_reduction <maximumf>, %1112, %cst_216 [1] : vector<2x4x128xf32> to vector<2x128xf32>
    %1114 = vector.shape_cast %1113 : vector<2x128xf32> to vector<2x1x128xf32>
    %cst_217 = arith.constant dense<0xFF800000> : vector<2x1xf32>
    %1115 = vector.multi_reduction <maximumf>, %1114, %cst_217 [2] : vector<2x1x128xf32> to vector<2x1xf32>
    %1116 = vector.shape_cast %1115 : vector<2x1xf32> to vector<2x1x1xf32>
    %1117 = vector.broadcast %1116 : vector<2x1x1xf32> to vector<2x4x128xf32>
    %1118 = arith.cmpf oeq, %1112, %1117 : vector<2x4x128xf32>
    %cst_218 = arith.constant 5.120000e+02 : f32
    %1119 = vector.broadcast %cst_218 : f32 to vector<2x4x128xf32>
    %1120 = arith.select %1118, %12, %1119 : vector<2x4x128xi1>, vector<2x4x128xf32>
    %cst_219 = arith.constant dense<0x7F800000> : vector<2x128xf32>
    %1121 = vector.multi_reduction <minimumf>, %1120, %cst_219 [1] : vector<2x4x128xf32> to vector<2x128xf32>
    %1122 = vector.shape_cast %1121 : vector<2x128xf32> to vector<2x1x128xf32>
    %cst_220 = arith.constant dense<0x7F800000> : vector<2x1xf32>
    %1123 = vector.multi_reduction <minimumf>, %1122, %cst_220 [2] : vector<2x1x128xf32> to vector<2x1xf32>
    %1124 = vector.shape_cast %1123 : vector<2x1xf32> to vector<2x1x1xf32>
    %c34_i32 = arith.constant 34 : i32
    %1125 = vector.broadcast %c34_i32 : i32 to vector<2x1x128xi32>
    %1126 = arith.cmpi eq, %54, %1125 : vector<2x1x128xi32>
    %1127 = vector.shape_cast %1116 : vector<2x1x1xf32> to vector<2x1x1xf32>
    %1128 = vector.broadcast %1127 : vector<2x1x1xf32> to vector<2x1x128xf32>
    %1129 = arith.select %1126, %1128, %1098 : vector<2x1x128xi1>, vector<2x1x128xf32>
    %1130 = vector.shape_cast %1124 : vector<2x1x1xf32> to vector<2x1x1xf32>
    %1131 = vector.broadcast %1130 : vector<2x1x1xf32> to vector<2x1x128xf32>
    %1132 = arith.select %1126, %1131, %1101 : vector<2x1x128xi1>, vector<2x1x128xf32>
    %1133 = arith.subf %1116, %62 : vector<2x1x1xf32>
    %1134 = arith.mulf %1133, %4 : vector<2x1x1xf32>
    %1135 = math.exp %1134 : vector<2x1x1xf32>
    %1136 = arith.addf %1105, %1135 : vector<2x1x1xf32>
    %1137 = vector.shape_cast %1136 : vector<2x1x1xf32> to vector<2x1x1xf32>
    %1138 = vector.broadcast %1137 : vector<2x1x1xf32> to vector<2x1x128xf32>
    %1139 = arith.select %1126, %1138, %1108 : vector<2x1x128xi1>, vector<2x1x128xf32>
    %1140 = vector.broadcast %1124 : vector<2x1x1xf32> to vector<2x4x128xf32>
    %1141 = arith.cmpf oeq, %12, %1140 : vector<2x4x128xf32>
    %cst_221 = arith.constant 0xFF800000 : f32
    %1142 = vector.broadcast %cst_221 : f32 to vector<2x4x128xf32>
    %1143 = arith.select %1141, %1142, %1112 : vector<2x4x128xi1>, vector<2x4x128xf32>
    %cst_222 = arith.constant dense<0xFF800000> : vector<2x128xf32>
    %1144 = vector.multi_reduction <maximumf>, %1143, %cst_222 [1] : vector<2x4x128xf32> to vector<2x128xf32>
    %1145 = vector.shape_cast %1144 : vector<2x128xf32> to vector<2x1x128xf32>
    %cst_223 = arith.constant dense<0xFF800000> : vector<2x1xf32>
    %1146 = vector.multi_reduction <maximumf>, %1145, %cst_223 [2] : vector<2x1x128xf32> to vector<2x1xf32>
    %1147 = vector.shape_cast %1146 : vector<2x1xf32> to vector<2x1x1xf32>
    %1148 = vector.broadcast %1147 : vector<2x1x1xf32> to vector<2x4x128xf32>
    %1149 = arith.cmpf oeq, %1143, %1148 : vector<2x4x128xf32>
    %cst_224 = arith.constant 5.120000e+02 : f32
    %1150 = vector.broadcast %cst_224 : f32 to vector<2x4x128xf32>
    %1151 = arith.select %1149, %12, %1150 : vector<2x4x128xi1>, vector<2x4x128xf32>
    %cst_225 = arith.constant dense<0x7F800000> : vector<2x128xf32>
    %1152 = vector.multi_reduction <minimumf>, %1151, %cst_225 [1] : vector<2x4x128xf32> to vector<2x128xf32>
    %1153 = vector.shape_cast %1152 : vector<2x128xf32> to vector<2x1x128xf32>
    %cst_226 = arith.constant dense<0x7F800000> : vector<2x1xf32>
    %1154 = vector.multi_reduction <minimumf>, %1153, %cst_226 [2] : vector<2x1x128xf32> to vector<2x1xf32>
    %1155 = vector.shape_cast %1154 : vector<2x1xf32> to vector<2x1x1xf32>
    %c35_i32 = arith.constant 35 : i32
    %1156 = vector.broadcast %c35_i32 : i32 to vector<2x1x128xi32>
    %1157 = arith.cmpi eq, %54, %1156 : vector<2x1x128xi32>
    %1158 = vector.shape_cast %1147 : vector<2x1x1xf32> to vector<2x1x1xf32>
    %1159 = vector.broadcast %1158 : vector<2x1x1xf32> to vector<2x1x128xf32>
    %1160 = arith.select %1157, %1159, %1129 : vector<2x1x128xi1>, vector<2x1x128xf32>
    %1161 = vector.shape_cast %1155 : vector<2x1x1xf32> to vector<2x1x1xf32>
    %1162 = vector.broadcast %1161 : vector<2x1x1xf32> to vector<2x1x128xf32>
    %1163 = arith.select %1157, %1162, %1132 : vector<2x1x128xi1>, vector<2x1x128xf32>
    %1164 = arith.subf %1147, %62 : vector<2x1x1xf32>
    %1165 = arith.mulf %1164, %4 : vector<2x1x1xf32>
    %1166 = math.exp %1165 : vector<2x1x1xf32>
    %1167 = arith.addf %1136, %1166 : vector<2x1x1xf32>
    %1168 = vector.shape_cast %1167 : vector<2x1x1xf32> to vector<2x1x1xf32>
    %1169 = vector.broadcast %1168 : vector<2x1x1xf32> to vector<2x1x128xf32>
    %1170 = arith.select %1157, %1169, %1139 : vector<2x1x128xi1>, vector<2x1x128xf32>
    %1171 = vector.broadcast %1155 : vector<2x1x1xf32> to vector<2x4x128xf32>
    %1172 = arith.cmpf oeq, %12, %1171 : vector<2x4x128xf32>
    %cst_227 = arith.constant 0xFF800000 : f32
    %1173 = vector.broadcast %cst_227 : f32 to vector<2x4x128xf32>
    %1174 = arith.select %1172, %1173, %1143 : vector<2x4x128xi1>, vector<2x4x128xf32>
    %cst_228 = arith.constant dense<0xFF800000> : vector<2x128xf32>
    %1175 = vector.multi_reduction <maximumf>, %1174, %cst_228 [1] : vector<2x4x128xf32> to vector<2x128xf32>
    %1176 = vector.shape_cast %1175 : vector<2x128xf32> to vector<2x1x128xf32>
    %cst_229 = arith.constant dense<0xFF800000> : vector<2x1xf32>
    %1177 = vector.multi_reduction <maximumf>, %1176, %cst_229 [2] : vector<2x1x128xf32> to vector<2x1xf32>
    %1178 = vector.shape_cast %1177 : vector<2x1xf32> to vector<2x1x1xf32>
    %1179 = vector.broadcast %1178 : vector<2x1x1xf32> to vector<2x4x128xf32>
    %1180 = arith.cmpf oeq, %1174, %1179 : vector<2x4x128xf32>
    %cst_230 = arith.constant 5.120000e+02 : f32
    %1181 = vector.broadcast %cst_230 : f32 to vector<2x4x128xf32>
    %1182 = arith.select %1180, %12, %1181 : vector<2x4x128xi1>, vector<2x4x128xf32>
    %cst_231 = arith.constant dense<0x7F800000> : vector<2x128xf32>
    %1183 = vector.multi_reduction <minimumf>, %1182, %cst_231 [1] : vector<2x4x128xf32> to vector<2x128xf32>
    %1184 = vector.shape_cast %1183 : vector<2x128xf32> to vector<2x1x128xf32>
    %cst_232 = arith.constant dense<0x7F800000> : vector<2x1xf32>
    %1185 = vector.multi_reduction <minimumf>, %1184, %cst_232 [2] : vector<2x1x128xf32> to vector<2x1xf32>
    %1186 = vector.shape_cast %1185 : vector<2x1xf32> to vector<2x1x1xf32>
    %c36_i32 = arith.constant 36 : i32
    %1187 = vector.broadcast %c36_i32 : i32 to vector<2x1x128xi32>
    %1188 = arith.cmpi eq, %54, %1187 : vector<2x1x128xi32>
    %1189 = vector.shape_cast %1178 : vector<2x1x1xf32> to vector<2x1x1xf32>
    %1190 = vector.broadcast %1189 : vector<2x1x1xf32> to vector<2x1x128xf32>
    %1191 = arith.select %1188, %1190, %1160 : vector<2x1x128xi1>, vector<2x1x128xf32>
    %1192 = vector.shape_cast %1186 : vector<2x1x1xf32> to vector<2x1x1xf32>
    %1193 = vector.broadcast %1192 : vector<2x1x1xf32> to vector<2x1x128xf32>
    %1194 = arith.select %1188, %1193, %1163 : vector<2x1x128xi1>, vector<2x1x128xf32>
    %1195 = arith.subf %1178, %62 : vector<2x1x1xf32>
    %1196 = arith.mulf %1195, %4 : vector<2x1x1xf32>
    %1197 = math.exp %1196 : vector<2x1x1xf32>
    %1198 = arith.addf %1167, %1197 : vector<2x1x1xf32>
    %1199 = vector.shape_cast %1198 : vector<2x1x1xf32> to vector<2x1x1xf32>
    %1200 = vector.broadcast %1199 : vector<2x1x1xf32> to vector<2x1x128xf32>
    %1201 = arith.select %1188, %1200, %1170 : vector<2x1x128xi1>, vector<2x1x128xf32>
    %1202 = vector.broadcast %1186 : vector<2x1x1xf32> to vector<2x4x128xf32>
    %1203 = arith.cmpf oeq, %12, %1202 : vector<2x4x128xf32>
    %cst_233 = arith.constant 0xFF800000 : f32
    %1204 = vector.broadcast %cst_233 : f32 to vector<2x4x128xf32>
    %1205 = arith.select %1203, %1204, %1174 : vector<2x4x128xi1>, vector<2x4x128xf32>
    %cst_234 = arith.constant dense<0xFF800000> : vector<2x128xf32>
    %1206 = vector.multi_reduction <maximumf>, %1205, %cst_234 [1] : vector<2x4x128xf32> to vector<2x128xf32>
    %1207 = vector.shape_cast %1206 : vector<2x128xf32> to vector<2x1x128xf32>
    %cst_235 = arith.constant dense<0xFF800000> : vector<2x1xf32>
    %1208 = vector.multi_reduction <maximumf>, %1207, %cst_235 [2] : vector<2x1x128xf32> to vector<2x1xf32>
    %1209 = vector.shape_cast %1208 : vector<2x1xf32> to vector<2x1x1xf32>
    %1210 = vector.broadcast %1209 : vector<2x1x1xf32> to vector<2x4x128xf32>
    %1211 = arith.cmpf oeq, %1205, %1210 : vector<2x4x128xf32>
    %cst_236 = arith.constant 5.120000e+02 : f32
    %1212 = vector.broadcast %cst_236 : f32 to vector<2x4x128xf32>
    %1213 = arith.select %1211, %12, %1212 : vector<2x4x128xi1>, vector<2x4x128xf32>
    %cst_237 = arith.constant dense<0x7F800000> : vector<2x128xf32>
    %1214 = vector.multi_reduction <minimumf>, %1213, %cst_237 [1] : vector<2x4x128xf32> to vector<2x128xf32>
    %1215 = vector.shape_cast %1214 : vector<2x128xf32> to vector<2x1x128xf32>
    %cst_238 = arith.constant dense<0x7F800000> : vector<2x1xf32>
    %1216 = vector.multi_reduction <minimumf>, %1215, %cst_238 [2] : vector<2x1x128xf32> to vector<2x1xf32>
    %1217 = vector.shape_cast %1216 : vector<2x1xf32> to vector<2x1x1xf32>
    %c37_i32 = arith.constant 37 : i32
    %1218 = vector.broadcast %c37_i32 : i32 to vector<2x1x128xi32>
    %1219 = arith.cmpi eq, %54, %1218 : vector<2x1x128xi32>
    %1220 = vector.shape_cast %1209 : vector<2x1x1xf32> to vector<2x1x1xf32>
    %1221 = vector.broadcast %1220 : vector<2x1x1xf32> to vector<2x1x128xf32>
    %1222 = arith.select %1219, %1221, %1191 : vector<2x1x128xi1>, vector<2x1x128xf32>
    %1223 = vector.shape_cast %1217 : vector<2x1x1xf32> to vector<2x1x1xf32>
    %1224 = vector.broadcast %1223 : vector<2x1x1xf32> to vector<2x1x128xf32>
    %1225 = arith.select %1219, %1224, %1194 : vector<2x1x128xi1>, vector<2x1x128xf32>
    %1226 = arith.subf %1209, %62 : vector<2x1x1xf32>
    %1227 = arith.mulf %1226, %4 : vector<2x1x1xf32>
    %1228 = math.exp %1227 : vector<2x1x1xf32>
    %1229 = arith.addf %1198, %1228 : vector<2x1x1xf32>
    %1230 = vector.shape_cast %1229 : vector<2x1x1xf32> to vector<2x1x1xf32>
    %1231 = vector.broadcast %1230 : vector<2x1x1xf32> to vector<2x1x128xf32>
    %1232 = arith.select %1219, %1231, %1201 : vector<2x1x128xi1>, vector<2x1x128xf32>
    %1233 = vector.broadcast %1217 : vector<2x1x1xf32> to vector<2x4x128xf32>
    %1234 = arith.cmpf oeq, %12, %1233 : vector<2x4x128xf32>
    %cst_239 = arith.constant 0xFF800000 : f32
    %1235 = vector.broadcast %cst_239 : f32 to vector<2x4x128xf32>
    %1236 = arith.select %1234, %1235, %1205 : vector<2x4x128xi1>, vector<2x4x128xf32>
    %cst_240 = arith.constant dense<0xFF800000> : vector<2x128xf32>
    %1237 = vector.multi_reduction <maximumf>, %1236, %cst_240 [1] : vector<2x4x128xf32> to vector<2x128xf32>
    %1238 = vector.shape_cast %1237 : vector<2x128xf32> to vector<2x1x128xf32>
    %cst_241 = arith.constant dense<0xFF800000> : vector<2x1xf32>
    %1239 = vector.multi_reduction <maximumf>, %1238, %cst_241 [2] : vector<2x1x128xf32> to vector<2x1xf32>
    %1240 = vector.shape_cast %1239 : vector<2x1xf32> to vector<2x1x1xf32>
    %1241 = vector.broadcast %1240 : vector<2x1x1xf32> to vector<2x4x128xf32>
    %1242 = arith.cmpf oeq, %1236, %1241 : vector<2x4x128xf32>
    %cst_242 = arith.constant 5.120000e+02 : f32
    %1243 = vector.broadcast %cst_242 : f32 to vector<2x4x128xf32>
    %1244 = arith.select %1242, %12, %1243 : vector<2x4x128xi1>, vector<2x4x128xf32>
    %cst_243 = arith.constant dense<0x7F800000> : vector<2x128xf32>
    %1245 = vector.multi_reduction <minimumf>, %1244, %cst_243 [1] : vector<2x4x128xf32> to vector<2x128xf32>
    %1246 = vector.shape_cast %1245 : vector<2x128xf32> to vector<2x1x128xf32>
    %cst_244 = arith.constant dense<0x7F800000> : vector<2x1xf32>
    %1247 = vector.multi_reduction <minimumf>, %1246, %cst_244 [2] : vector<2x1x128xf32> to vector<2x1xf32>
    %1248 = vector.shape_cast %1247 : vector<2x1xf32> to vector<2x1x1xf32>
    %c38_i32 = arith.constant 38 : i32
    %1249 = vector.broadcast %c38_i32 : i32 to vector<2x1x128xi32>
    %1250 = arith.cmpi eq, %54, %1249 : vector<2x1x128xi32>
    %1251 = vector.shape_cast %1240 : vector<2x1x1xf32> to vector<2x1x1xf32>
    %1252 = vector.broadcast %1251 : vector<2x1x1xf32> to vector<2x1x128xf32>
    %1253 = arith.select %1250, %1252, %1222 : vector<2x1x128xi1>, vector<2x1x128xf32>
    %1254 = vector.shape_cast %1248 : vector<2x1x1xf32> to vector<2x1x1xf32>
    %1255 = vector.broadcast %1254 : vector<2x1x1xf32> to vector<2x1x128xf32>
    %1256 = arith.select %1250, %1255, %1225 : vector<2x1x128xi1>, vector<2x1x128xf32>
    %1257 = arith.subf %1240, %62 : vector<2x1x1xf32>
    %1258 = arith.mulf %1257, %4 : vector<2x1x1xf32>
    %1259 = math.exp %1258 : vector<2x1x1xf32>
    %1260 = arith.addf %1229, %1259 : vector<2x1x1xf32>
    %1261 = vector.shape_cast %1260 : vector<2x1x1xf32> to vector<2x1x1xf32>
    %1262 = vector.broadcast %1261 : vector<2x1x1xf32> to vector<2x1x128xf32>
    %1263 = arith.select %1250, %1262, %1232 : vector<2x1x128xi1>, vector<2x1x128xf32>
    %1264 = vector.broadcast %1248 : vector<2x1x1xf32> to vector<2x4x128xf32>
    %1265 = arith.cmpf oeq, %12, %1264 : vector<2x4x128xf32>
    %cst_245 = arith.constant 0xFF800000 : f32
    %1266 = vector.broadcast %cst_245 : f32 to vector<2x4x128xf32>
    %1267 = arith.select %1265, %1266, %1236 : vector<2x4x128xi1>, vector<2x4x128xf32>
    %cst_246 = arith.constant dense<0xFF800000> : vector<2x128xf32>
    %1268 = vector.multi_reduction <maximumf>, %1267, %cst_246 [1] : vector<2x4x128xf32> to vector<2x128xf32>
    %1269 = vector.shape_cast %1268 : vector<2x128xf32> to vector<2x1x128xf32>
    %cst_247 = arith.constant dense<0xFF800000> : vector<2x1xf32>
    %1270 = vector.multi_reduction <maximumf>, %1269, %cst_247 [2] : vector<2x1x128xf32> to vector<2x1xf32>
    %1271 = vector.shape_cast %1270 : vector<2x1xf32> to vector<2x1x1xf32>
    %1272 = vector.broadcast %1271 : vector<2x1x1xf32> to vector<2x4x128xf32>
    %1273 = arith.cmpf oeq, %1267, %1272 : vector<2x4x128xf32>
    %cst_248 = arith.constant 5.120000e+02 : f32
    %1274 = vector.broadcast %cst_248 : f32 to vector<2x4x128xf32>
    %1275 = arith.select %1273, %12, %1274 : vector<2x4x128xi1>, vector<2x4x128xf32>
    %cst_249 = arith.constant dense<0x7F800000> : vector<2x128xf32>
    %1276 = vector.multi_reduction <minimumf>, %1275, %cst_249 [1] : vector<2x4x128xf32> to vector<2x128xf32>
    %1277 = vector.shape_cast %1276 : vector<2x128xf32> to vector<2x1x128xf32>
    %cst_250 = arith.constant dense<0x7F800000> : vector<2x1xf32>
    %1278 = vector.multi_reduction <minimumf>, %1277, %cst_250 [2] : vector<2x1x128xf32> to vector<2x1xf32>
    %1279 = vector.shape_cast %1278 : vector<2x1xf32> to vector<2x1x1xf32>
    %c39_i32 = arith.constant 39 : i32
    %1280 = vector.broadcast %c39_i32 : i32 to vector<2x1x128xi32>
    %1281 = arith.cmpi eq, %54, %1280 : vector<2x1x128xi32>
    %1282 = vector.shape_cast %1271 : vector<2x1x1xf32> to vector<2x1x1xf32>
    %1283 = vector.broadcast %1282 : vector<2x1x1xf32> to vector<2x1x128xf32>
    %1284 = arith.select %1281, %1283, %1253 : vector<2x1x128xi1>, vector<2x1x128xf32>
    %1285 = vector.shape_cast %1279 : vector<2x1x1xf32> to vector<2x1x1xf32>
    %1286 = vector.broadcast %1285 : vector<2x1x1xf32> to vector<2x1x128xf32>
    %1287 = arith.select %1281, %1286, %1256 : vector<2x1x128xi1>, vector<2x1x128xf32>
    %1288 = arith.subf %1271, %62 : vector<2x1x1xf32>
    %1289 = arith.mulf %1288, %4 : vector<2x1x1xf32>
    %1290 = math.exp %1289 : vector<2x1x1xf32>
    %1291 = arith.addf %1260, %1290 : vector<2x1x1xf32>
    %1292 = vector.shape_cast %1291 : vector<2x1x1xf32> to vector<2x1x1xf32>
    %1293 = vector.broadcast %1292 : vector<2x1x1xf32> to vector<2x1x128xf32>
    %1294 = arith.select %1281, %1293, %1263 : vector<2x1x128xi1>, vector<2x1x128xf32>
    %1295 = vector.broadcast %1279 : vector<2x1x1xf32> to vector<2x4x128xf32>
    %1296 = arith.cmpf oeq, %12, %1295 : vector<2x4x128xf32>
    %cst_251 = arith.constant 0xFF800000 : f32
    %1297 = vector.broadcast %cst_251 : f32 to vector<2x4x128xf32>
    %1298 = arith.select %1296, %1297, %1267 : vector<2x4x128xi1>, vector<2x4x128xf32>
    %cst_252 = arith.constant dense<0xFF800000> : vector<2x128xf32>
    %1299 = vector.multi_reduction <maximumf>, %1298, %cst_252 [1] : vector<2x4x128xf32> to vector<2x128xf32>
    %1300 = vector.shape_cast %1299 : vector<2x128xf32> to vector<2x1x128xf32>
    %cst_253 = arith.constant dense<0xFF800000> : vector<2x1xf32>
    %1301 = vector.multi_reduction <maximumf>, %1300, %cst_253 [2] : vector<2x1x128xf32> to vector<2x1xf32>
    %1302 = vector.shape_cast %1301 : vector<2x1xf32> to vector<2x1x1xf32>
    %1303 = vector.broadcast %1302 : vector<2x1x1xf32> to vector<2x4x128xf32>
    %1304 = arith.cmpf oeq, %1298, %1303 : vector<2x4x128xf32>
    %cst_254 = arith.constant 5.120000e+02 : f32
    %1305 = vector.broadcast %cst_254 : f32 to vector<2x4x128xf32>
    %1306 = arith.select %1304, %12, %1305 : vector<2x4x128xi1>, vector<2x4x128xf32>
    %cst_255 = arith.constant dense<0x7F800000> : vector<2x128xf32>
    %1307 = vector.multi_reduction <minimumf>, %1306, %cst_255 [1] : vector<2x4x128xf32> to vector<2x128xf32>
    %1308 = vector.shape_cast %1307 : vector<2x128xf32> to vector<2x1x128xf32>
    %cst_256 = arith.constant dense<0x7F800000> : vector<2x1xf32>
    %1309 = vector.multi_reduction <minimumf>, %1308, %cst_256 [2] : vector<2x1x128xf32> to vector<2x1xf32>
    %1310 = vector.shape_cast %1309 : vector<2x1xf32> to vector<2x1x1xf32>
    %c40_i32 = arith.constant 40 : i32
    %1311 = vector.broadcast %c40_i32 : i32 to vector<2x1x128xi32>
    %1312 = arith.cmpi eq, %54, %1311 : vector<2x1x128xi32>
    %1313 = vector.shape_cast %1302 : vector<2x1x1xf32> to vector<2x1x1xf32>
    %1314 = vector.broadcast %1313 : vector<2x1x1xf32> to vector<2x1x128xf32>
    %1315 = arith.select %1312, %1314, %1284 : vector<2x1x128xi1>, vector<2x1x128xf32>
    %1316 = vector.shape_cast %1310 : vector<2x1x1xf32> to vector<2x1x1xf32>
    %1317 = vector.broadcast %1316 : vector<2x1x1xf32> to vector<2x1x128xf32>
    %1318 = arith.select %1312, %1317, %1287 : vector<2x1x128xi1>, vector<2x1x128xf32>
    %1319 = arith.subf %1302, %62 : vector<2x1x1xf32>
    %1320 = arith.mulf %1319, %4 : vector<2x1x1xf32>
    %1321 = math.exp %1320 : vector<2x1x1xf32>
    %1322 = arith.addf %1291, %1321 : vector<2x1x1xf32>
    %1323 = vector.shape_cast %1322 : vector<2x1x1xf32> to vector<2x1x1xf32>
    %1324 = vector.broadcast %1323 : vector<2x1x1xf32> to vector<2x1x128xf32>
    %1325 = arith.select %1312, %1324, %1294 : vector<2x1x128xi1>, vector<2x1x128xf32>
    %1326 = vector.broadcast %1310 : vector<2x1x1xf32> to vector<2x4x128xf32>
    %1327 = arith.cmpf oeq, %12, %1326 : vector<2x4x128xf32>
    %cst_257 = arith.constant 0xFF800000 : f32
    %1328 = vector.broadcast %cst_257 : f32 to vector<2x4x128xf32>
    %1329 = arith.select %1327, %1328, %1298 : vector<2x4x128xi1>, vector<2x4x128xf32>
    %cst_258 = arith.constant dense<0xFF800000> : vector<2x128xf32>
    %1330 = vector.multi_reduction <maximumf>, %1329, %cst_258 [1] : vector<2x4x128xf32> to vector<2x128xf32>
    %1331 = vector.shape_cast %1330 : vector<2x128xf32> to vector<2x1x128xf32>
    %cst_259 = arith.constant dense<0xFF800000> : vector<2x1xf32>
    %1332 = vector.multi_reduction <maximumf>, %1331, %cst_259 [2] : vector<2x1x128xf32> to vector<2x1xf32>
    %1333 = vector.shape_cast %1332 : vector<2x1xf32> to vector<2x1x1xf32>
    %1334 = vector.broadcast %1333 : vector<2x1x1xf32> to vector<2x4x128xf32>
    %1335 = arith.cmpf oeq, %1329, %1334 : vector<2x4x128xf32>
    %cst_260 = arith.constant 5.120000e+02 : f32
    %1336 = vector.broadcast %cst_260 : f32 to vector<2x4x128xf32>
    %1337 = arith.select %1335, %12, %1336 : vector<2x4x128xi1>, vector<2x4x128xf32>
    %cst_261 = arith.constant dense<0x7F800000> : vector<2x128xf32>
    %1338 = vector.multi_reduction <minimumf>, %1337, %cst_261 [1] : vector<2x4x128xf32> to vector<2x128xf32>
    %1339 = vector.shape_cast %1338 : vector<2x128xf32> to vector<2x1x128xf32>
    %cst_262 = arith.constant dense<0x7F800000> : vector<2x1xf32>
    %1340 = vector.multi_reduction <minimumf>, %1339, %cst_262 [2] : vector<2x1x128xf32> to vector<2x1xf32>
    %1341 = vector.shape_cast %1340 : vector<2x1xf32> to vector<2x1x1xf32>
    %c41_i32 = arith.constant 41 : i32
    %1342 = vector.broadcast %c41_i32 : i32 to vector<2x1x128xi32>
    %1343 = arith.cmpi eq, %54, %1342 : vector<2x1x128xi32>
    %1344 = vector.shape_cast %1333 : vector<2x1x1xf32> to vector<2x1x1xf32>
    %1345 = vector.broadcast %1344 : vector<2x1x1xf32> to vector<2x1x128xf32>
    %1346 = arith.select %1343, %1345, %1315 : vector<2x1x128xi1>, vector<2x1x128xf32>
    %1347 = vector.shape_cast %1341 : vector<2x1x1xf32> to vector<2x1x1xf32>
    %1348 = vector.broadcast %1347 : vector<2x1x1xf32> to vector<2x1x128xf32>
    %1349 = arith.select %1343, %1348, %1318 : vector<2x1x128xi1>, vector<2x1x128xf32>
    %1350 = arith.subf %1333, %62 : vector<2x1x1xf32>
    %1351 = arith.mulf %1350, %4 : vector<2x1x1xf32>
    %1352 = math.exp %1351 : vector<2x1x1xf32>
    %1353 = arith.addf %1322, %1352 : vector<2x1x1xf32>
    %1354 = vector.shape_cast %1353 : vector<2x1x1xf32> to vector<2x1x1xf32>
    %1355 = vector.broadcast %1354 : vector<2x1x1xf32> to vector<2x1x128xf32>
    %1356 = arith.select %1343, %1355, %1325 : vector<2x1x128xi1>, vector<2x1x128xf32>
    %1357 = vector.broadcast %1341 : vector<2x1x1xf32> to vector<2x4x128xf32>
    %1358 = arith.cmpf oeq, %12, %1357 : vector<2x4x128xf32>
    %cst_263 = arith.constant 0xFF800000 : f32
    %1359 = vector.broadcast %cst_263 : f32 to vector<2x4x128xf32>
    %1360 = arith.select %1358, %1359, %1329 : vector<2x4x128xi1>, vector<2x4x128xf32>
    %cst_264 = arith.constant dense<0xFF800000> : vector<2x128xf32>
    %1361 = vector.multi_reduction <maximumf>, %1360, %cst_264 [1] : vector<2x4x128xf32> to vector<2x128xf32>
    %1362 = vector.shape_cast %1361 : vector<2x128xf32> to vector<2x1x128xf32>
    %cst_265 = arith.constant dense<0xFF800000> : vector<2x1xf32>
    %1363 = vector.multi_reduction <maximumf>, %1362, %cst_265 [2] : vector<2x1x128xf32> to vector<2x1xf32>
    %1364 = vector.shape_cast %1363 : vector<2x1xf32> to vector<2x1x1xf32>
    %1365 = vector.broadcast %1364 : vector<2x1x1xf32> to vector<2x4x128xf32>
    %1366 = arith.cmpf oeq, %1360, %1365 : vector<2x4x128xf32>
    %cst_266 = arith.constant 5.120000e+02 : f32
    %1367 = vector.broadcast %cst_266 : f32 to vector<2x4x128xf32>
    %1368 = arith.select %1366, %12, %1367 : vector<2x4x128xi1>, vector<2x4x128xf32>
    %cst_267 = arith.constant dense<0x7F800000> : vector<2x128xf32>
    %1369 = vector.multi_reduction <minimumf>, %1368, %cst_267 [1] : vector<2x4x128xf32> to vector<2x128xf32>
    %1370 = vector.shape_cast %1369 : vector<2x128xf32> to vector<2x1x128xf32>
    %cst_268 = arith.constant dense<0x7F800000> : vector<2x1xf32>
    %1371 = vector.multi_reduction <minimumf>, %1370, %cst_268 [2] : vector<2x1x128xf32> to vector<2x1xf32>
    %1372 = vector.shape_cast %1371 : vector<2x1xf32> to vector<2x1x1xf32>
    %c42_i32 = arith.constant 42 : i32
    %1373 = vector.broadcast %c42_i32 : i32 to vector<2x1x128xi32>
    %1374 = arith.cmpi eq, %54, %1373 : vector<2x1x128xi32>
    %1375 = vector.shape_cast %1364 : vector<2x1x1xf32> to vector<2x1x1xf32>
    %1376 = vector.broadcast %1375 : vector<2x1x1xf32> to vector<2x1x128xf32>
    %1377 = arith.select %1374, %1376, %1346 : vector<2x1x128xi1>, vector<2x1x128xf32>
    %1378 = vector.shape_cast %1372 : vector<2x1x1xf32> to vector<2x1x1xf32>
    %1379 = vector.broadcast %1378 : vector<2x1x1xf32> to vector<2x1x128xf32>
    %1380 = arith.select %1374, %1379, %1349 : vector<2x1x128xi1>, vector<2x1x128xf32>
    %1381 = arith.subf %1364, %62 : vector<2x1x1xf32>
    %1382 = arith.mulf %1381, %4 : vector<2x1x1xf32>
    %1383 = math.exp %1382 : vector<2x1x1xf32>
    %1384 = arith.addf %1353, %1383 : vector<2x1x1xf32>
    %1385 = vector.shape_cast %1384 : vector<2x1x1xf32> to vector<2x1x1xf32>
    %1386 = vector.broadcast %1385 : vector<2x1x1xf32> to vector<2x1x128xf32>
    %1387 = arith.select %1374, %1386, %1356 : vector<2x1x128xi1>, vector<2x1x128xf32>
    %1388 = vector.broadcast %1372 : vector<2x1x1xf32> to vector<2x4x128xf32>
    %1389 = arith.cmpf oeq, %12, %1388 : vector<2x4x128xf32>
    %cst_269 = arith.constant 0xFF800000 : f32
    %1390 = vector.broadcast %cst_269 : f32 to vector<2x4x128xf32>
    %1391 = arith.select %1389, %1390, %1360 : vector<2x4x128xi1>, vector<2x4x128xf32>
    %cst_270 = arith.constant dense<0xFF800000> : vector<2x128xf32>
    %1392 = vector.multi_reduction <maximumf>, %1391, %cst_270 [1] : vector<2x4x128xf32> to vector<2x128xf32>
    %1393 = vector.shape_cast %1392 : vector<2x128xf32> to vector<2x1x128xf32>
    %cst_271 = arith.constant dense<0xFF800000> : vector<2x1xf32>
    %1394 = vector.multi_reduction <maximumf>, %1393, %cst_271 [2] : vector<2x1x128xf32> to vector<2x1xf32>
    %1395 = vector.shape_cast %1394 : vector<2x1xf32> to vector<2x1x1xf32>
    %1396 = vector.broadcast %1395 : vector<2x1x1xf32> to vector<2x4x128xf32>
    %1397 = arith.cmpf oeq, %1391, %1396 : vector<2x4x128xf32>
    %cst_272 = arith.constant 5.120000e+02 : f32
    %1398 = vector.broadcast %cst_272 : f32 to vector<2x4x128xf32>
    %1399 = arith.select %1397, %12, %1398 : vector<2x4x128xi1>, vector<2x4x128xf32>
    %cst_273 = arith.constant dense<0x7F800000> : vector<2x128xf32>
    %1400 = vector.multi_reduction <minimumf>, %1399, %cst_273 [1] : vector<2x4x128xf32> to vector<2x128xf32>
    %1401 = vector.shape_cast %1400 : vector<2x128xf32> to vector<2x1x128xf32>
    %cst_274 = arith.constant dense<0x7F800000> : vector<2x1xf32>
    %1402 = vector.multi_reduction <minimumf>, %1401, %cst_274 [2] : vector<2x1x128xf32> to vector<2x1xf32>
    %1403 = vector.shape_cast %1402 : vector<2x1xf32> to vector<2x1x1xf32>
    %c43_i32 = arith.constant 43 : i32
    %1404 = vector.broadcast %c43_i32 : i32 to vector<2x1x128xi32>
    %1405 = arith.cmpi eq, %54, %1404 : vector<2x1x128xi32>
    %1406 = vector.shape_cast %1395 : vector<2x1x1xf32> to vector<2x1x1xf32>
    %1407 = vector.broadcast %1406 : vector<2x1x1xf32> to vector<2x1x128xf32>
    %1408 = arith.select %1405, %1407, %1377 : vector<2x1x128xi1>, vector<2x1x128xf32>
    %1409 = vector.shape_cast %1403 : vector<2x1x1xf32> to vector<2x1x1xf32>
    %1410 = vector.broadcast %1409 : vector<2x1x1xf32> to vector<2x1x128xf32>
    %1411 = arith.select %1405, %1410, %1380 : vector<2x1x128xi1>, vector<2x1x128xf32>
    %1412 = arith.subf %1395, %62 : vector<2x1x1xf32>
    %1413 = arith.mulf %1412, %4 : vector<2x1x1xf32>
    %1414 = math.exp %1413 : vector<2x1x1xf32>
    %1415 = arith.addf %1384, %1414 : vector<2x1x1xf32>
    %1416 = vector.shape_cast %1415 : vector<2x1x1xf32> to vector<2x1x1xf32>
    %1417 = vector.broadcast %1416 : vector<2x1x1xf32> to vector<2x1x128xf32>
    %1418 = arith.select %1405, %1417, %1387 : vector<2x1x128xi1>, vector<2x1x128xf32>
    %1419 = vector.broadcast %1403 : vector<2x1x1xf32> to vector<2x4x128xf32>
    %1420 = arith.cmpf oeq, %12, %1419 : vector<2x4x128xf32>
    %cst_275 = arith.constant 0xFF800000 : f32
    %1421 = vector.broadcast %cst_275 : f32 to vector<2x4x128xf32>
    %1422 = arith.select %1420, %1421, %1391 : vector<2x4x128xi1>, vector<2x4x128xf32>
    %cst_276 = arith.constant dense<0xFF800000> : vector<2x128xf32>
    %1423 = vector.multi_reduction <maximumf>, %1422, %cst_276 [1] : vector<2x4x128xf32> to vector<2x128xf32>
    %1424 = vector.shape_cast %1423 : vector<2x128xf32> to vector<2x1x128xf32>
    %cst_277 = arith.constant dense<0xFF800000> : vector<2x1xf32>
    %1425 = vector.multi_reduction <maximumf>, %1424, %cst_277 [2] : vector<2x1x128xf32> to vector<2x1xf32>
    %1426 = vector.shape_cast %1425 : vector<2x1xf32> to vector<2x1x1xf32>
    %1427 = vector.broadcast %1426 : vector<2x1x1xf32> to vector<2x4x128xf32>
    %1428 = arith.cmpf oeq, %1422, %1427 : vector<2x4x128xf32>
    %cst_278 = arith.constant 5.120000e+02 : f32
    %1429 = vector.broadcast %cst_278 : f32 to vector<2x4x128xf32>
    %1430 = arith.select %1428, %12, %1429 : vector<2x4x128xi1>, vector<2x4x128xf32>
    %cst_279 = arith.constant dense<0x7F800000> : vector<2x128xf32>
    %1431 = vector.multi_reduction <minimumf>, %1430, %cst_279 [1] : vector<2x4x128xf32> to vector<2x128xf32>
    %1432 = vector.shape_cast %1431 : vector<2x128xf32> to vector<2x1x128xf32>
    %cst_280 = arith.constant dense<0x7F800000> : vector<2x1xf32>
    %1433 = vector.multi_reduction <minimumf>, %1432, %cst_280 [2] : vector<2x1x128xf32> to vector<2x1xf32>
    %1434 = vector.shape_cast %1433 : vector<2x1xf32> to vector<2x1x1xf32>
    %c44_i32 = arith.constant 44 : i32
    %1435 = vector.broadcast %c44_i32 : i32 to vector<2x1x128xi32>
    %1436 = arith.cmpi eq, %54, %1435 : vector<2x1x128xi32>
    %1437 = vector.shape_cast %1426 : vector<2x1x1xf32> to vector<2x1x1xf32>
    %1438 = vector.broadcast %1437 : vector<2x1x1xf32> to vector<2x1x128xf32>
    %1439 = arith.select %1436, %1438, %1408 : vector<2x1x128xi1>, vector<2x1x128xf32>
    %1440 = vector.shape_cast %1434 : vector<2x1x1xf32> to vector<2x1x1xf32>
    %1441 = vector.broadcast %1440 : vector<2x1x1xf32> to vector<2x1x128xf32>
    %1442 = arith.select %1436, %1441, %1411 : vector<2x1x128xi1>, vector<2x1x128xf32>
    %1443 = arith.subf %1426, %62 : vector<2x1x1xf32>
    %1444 = arith.mulf %1443, %4 : vector<2x1x1xf32>
    %1445 = math.exp %1444 : vector<2x1x1xf32>
    %1446 = arith.addf %1415, %1445 : vector<2x1x1xf32>
    %1447 = vector.shape_cast %1446 : vector<2x1x1xf32> to vector<2x1x1xf32>
    %1448 = vector.broadcast %1447 : vector<2x1x1xf32> to vector<2x1x128xf32>
    %1449 = arith.select %1436, %1448, %1418 : vector<2x1x128xi1>, vector<2x1x128xf32>
    %1450 = vector.broadcast %1434 : vector<2x1x1xf32> to vector<2x4x128xf32>
    %1451 = arith.cmpf oeq, %12, %1450 : vector<2x4x128xf32>
    %cst_281 = arith.constant 0xFF800000 : f32
    %1452 = vector.broadcast %cst_281 : f32 to vector<2x4x128xf32>
    %1453 = arith.select %1451, %1452, %1422 : vector<2x4x128xi1>, vector<2x4x128xf32>
    %cst_282 = arith.constant dense<0xFF800000> : vector<2x128xf32>
    %1454 = vector.multi_reduction <maximumf>, %1453, %cst_282 [1] : vector<2x4x128xf32> to vector<2x128xf32>
    %1455 = vector.shape_cast %1454 : vector<2x128xf32> to vector<2x1x128xf32>
    %cst_283 = arith.constant dense<0xFF800000> : vector<2x1xf32>
    %1456 = vector.multi_reduction <maximumf>, %1455, %cst_283 [2] : vector<2x1x128xf32> to vector<2x1xf32>
    %1457 = vector.shape_cast %1456 : vector<2x1xf32> to vector<2x1x1xf32>
    %1458 = vector.broadcast %1457 : vector<2x1x1xf32> to vector<2x4x128xf32>
    %1459 = arith.cmpf oeq, %1453, %1458 : vector<2x4x128xf32>
    %cst_284 = arith.constant 5.120000e+02 : f32
    %1460 = vector.broadcast %cst_284 : f32 to vector<2x4x128xf32>
    %1461 = arith.select %1459, %12, %1460 : vector<2x4x128xi1>, vector<2x4x128xf32>
    %cst_285 = arith.constant dense<0x7F800000> : vector<2x128xf32>
    %1462 = vector.multi_reduction <minimumf>, %1461, %cst_285 [1] : vector<2x4x128xf32> to vector<2x128xf32>
    %1463 = vector.shape_cast %1462 : vector<2x128xf32> to vector<2x1x128xf32>
    %cst_286 = arith.constant dense<0x7F800000> : vector<2x1xf32>
    %1464 = vector.multi_reduction <minimumf>, %1463, %cst_286 [2] : vector<2x1x128xf32> to vector<2x1xf32>
    %1465 = vector.shape_cast %1464 : vector<2x1xf32> to vector<2x1x1xf32>
    %c45_i32 = arith.constant 45 : i32
    %1466 = vector.broadcast %c45_i32 : i32 to vector<2x1x128xi32>
    %1467 = arith.cmpi eq, %54, %1466 : vector<2x1x128xi32>
    %1468 = vector.shape_cast %1457 : vector<2x1x1xf32> to vector<2x1x1xf32>
    %1469 = vector.broadcast %1468 : vector<2x1x1xf32> to vector<2x1x128xf32>
    %1470 = arith.select %1467, %1469, %1439 : vector<2x1x128xi1>, vector<2x1x128xf32>
    %1471 = vector.shape_cast %1465 : vector<2x1x1xf32> to vector<2x1x1xf32>
    %1472 = vector.broadcast %1471 : vector<2x1x1xf32> to vector<2x1x128xf32>
    %1473 = arith.select %1467, %1472, %1442 : vector<2x1x128xi1>, vector<2x1x128xf32>
    %1474 = arith.subf %1457, %62 : vector<2x1x1xf32>
    %1475 = arith.mulf %1474, %4 : vector<2x1x1xf32>
    %1476 = math.exp %1475 : vector<2x1x1xf32>
    %1477 = arith.addf %1446, %1476 : vector<2x1x1xf32>
    %1478 = vector.shape_cast %1477 : vector<2x1x1xf32> to vector<2x1x1xf32>
    %1479 = vector.broadcast %1478 : vector<2x1x1xf32> to vector<2x1x128xf32>
    %1480 = arith.select %1467, %1479, %1449 : vector<2x1x128xi1>, vector<2x1x128xf32>
    %1481 = vector.broadcast %1465 : vector<2x1x1xf32> to vector<2x4x128xf32>
    %1482 = arith.cmpf oeq, %12, %1481 : vector<2x4x128xf32>
    %cst_287 = arith.constant 0xFF800000 : f32
    %1483 = vector.broadcast %cst_287 : f32 to vector<2x4x128xf32>
    %1484 = arith.select %1482, %1483, %1453 : vector<2x4x128xi1>, vector<2x4x128xf32>
    %cst_288 = arith.constant dense<0xFF800000> : vector<2x128xf32>
    %1485 = vector.multi_reduction <maximumf>, %1484, %cst_288 [1] : vector<2x4x128xf32> to vector<2x128xf32>
    %1486 = vector.shape_cast %1485 : vector<2x128xf32> to vector<2x1x128xf32>
    %cst_289 = arith.constant dense<0xFF800000> : vector<2x1xf32>
    %1487 = vector.multi_reduction <maximumf>, %1486, %cst_289 [2] : vector<2x1x128xf32> to vector<2x1xf32>
    %1488 = vector.shape_cast %1487 : vector<2x1xf32> to vector<2x1x1xf32>
    %1489 = vector.broadcast %1488 : vector<2x1x1xf32> to vector<2x4x128xf32>
    %1490 = arith.cmpf oeq, %1484, %1489 : vector<2x4x128xf32>
    %cst_290 = arith.constant 5.120000e+02 : f32
    %1491 = vector.broadcast %cst_290 : f32 to vector<2x4x128xf32>
    %1492 = arith.select %1490, %12, %1491 : vector<2x4x128xi1>, vector<2x4x128xf32>
    %cst_291 = arith.constant dense<0x7F800000> : vector<2x128xf32>
    %1493 = vector.multi_reduction <minimumf>, %1492, %cst_291 [1] : vector<2x4x128xf32> to vector<2x128xf32>
    %1494 = vector.shape_cast %1493 : vector<2x128xf32> to vector<2x1x128xf32>
    %cst_292 = arith.constant dense<0x7F800000> : vector<2x1xf32>
    %1495 = vector.multi_reduction <minimumf>, %1494, %cst_292 [2] : vector<2x1x128xf32> to vector<2x1xf32>
    %1496 = vector.shape_cast %1495 : vector<2x1xf32> to vector<2x1x1xf32>
    %c46_i32 = arith.constant 46 : i32
    %1497 = vector.broadcast %c46_i32 : i32 to vector<2x1x128xi32>
    %1498 = arith.cmpi eq, %54, %1497 : vector<2x1x128xi32>
    %1499 = vector.shape_cast %1488 : vector<2x1x1xf32> to vector<2x1x1xf32>
    %1500 = vector.broadcast %1499 : vector<2x1x1xf32> to vector<2x1x128xf32>
    %1501 = arith.select %1498, %1500, %1470 : vector<2x1x128xi1>, vector<2x1x128xf32>
    %1502 = vector.shape_cast %1496 : vector<2x1x1xf32> to vector<2x1x1xf32>
    %1503 = vector.broadcast %1502 : vector<2x1x1xf32> to vector<2x1x128xf32>
    %1504 = arith.select %1498, %1503, %1473 : vector<2x1x128xi1>, vector<2x1x128xf32>
    %1505 = arith.subf %1488, %62 : vector<2x1x1xf32>
    %1506 = arith.mulf %1505, %4 : vector<2x1x1xf32>
    %1507 = math.exp %1506 : vector<2x1x1xf32>
    %1508 = arith.addf %1477, %1507 : vector<2x1x1xf32>
    %1509 = vector.shape_cast %1508 : vector<2x1x1xf32> to vector<2x1x1xf32>
    %1510 = vector.broadcast %1509 : vector<2x1x1xf32> to vector<2x1x128xf32>
    %1511 = arith.select %1498, %1510, %1480 : vector<2x1x128xi1>, vector<2x1x128xf32>
    %1512 = vector.broadcast %1496 : vector<2x1x1xf32> to vector<2x4x128xf32>
    %1513 = arith.cmpf oeq, %12, %1512 : vector<2x4x128xf32>
    %cst_293 = arith.constant 0xFF800000 : f32
    %1514 = vector.broadcast %cst_293 : f32 to vector<2x4x128xf32>
    %1515 = arith.select %1513, %1514, %1484 : vector<2x4x128xi1>, vector<2x4x128xf32>
    %cst_294 = arith.constant dense<0xFF800000> : vector<2x128xf32>
    %1516 = vector.multi_reduction <maximumf>, %1515, %cst_294 [1] : vector<2x4x128xf32> to vector<2x128xf32>
    %1517 = vector.shape_cast %1516 : vector<2x128xf32> to vector<2x1x128xf32>
    %cst_295 = arith.constant dense<0xFF800000> : vector<2x1xf32>
    %1518 = vector.multi_reduction <maximumf>, %1517, %cst_295 [2] : vector<2x1x128xf32> to vector<2x1xf32>
    %1519 = vector.shape_cast %1518 : vector<2x1xf32> to vector<2x1x1xf32>
    %1520 = vector.broadcast %1519 : vector<2x1x1xf32> to vector<2x4x128xf32>
    %1521 = arith.cmpf oeq, %1515, %1520 : vector<2x4x128xf32>
    %cst_296 = arith.constant 5.120000e+02 : f32
    %1522 = vector.broadcast %cst_296 : f32 to vector<2x4x128xf32>
    %1523 = arith.select %1521, %12, %1522 : vector<2x4x128xi1>, vector<2x4x128xf32>
    %cst_297 = arith.constant dense<0x7F800000> : vector<2x128xf32>
    %1524 = vector.multi_reduction <minimumf>, %1523, %cst_297 [1] : vector<2x4x128xf32> to vector<2x128xf32>
    %1525 = vector.shape_cast %1524 : vector<2x128xf32> to vector<2x1x128xf32>
    %cst_298 = arith.constant dense<0x7F800000> : vector<2x1xf32>
    %1526 = vector.multi_reduction <minimumf>, %1525, %cst_298 [2] : vector<2x1x128xf32> to vector<2x1xf32>
    %1527 = vector.shape_cast %1526 : vector<2x1xf32> to vector<2x1x1xf32>
    %c47_i32 = arith.constant 47 : i32
    %1528 = vector.broadcast %c47_i32 : i32 to vector<2x1x128xi32>
    %1529 = arith.cmpi eq, %54, %1528 : vector<2x1x128xi32>
    %1530 = vector.shape_cast %1519 : vector<2x1x1xf32> to vector<2x1x1xf32>
    %1531 = vector.broadcast %1530 : vector<2x1x1xf32> to vector<2x1x128xf32>
    %1532 = arith.select %1529, %1531, %1501 : vector<2x1x128xi1>, vector<2x1x128xf32>
    %1533 = vector.shape_cast %1527 : vector<2x1x1xf32> to vector<2x1x1xf32>
    %1534 = vector.broadcast %1533 : vector<2x1x1xf32> to vector<2x1x128xf32>
    %1535 = arith.select %1529, %1534, %1504 : vector<2x1x128xi1>, vector<2x1x128xf32>
    %1536 = arith.subf %1519, %62 : vector<2x1x1xf32>
    %1537 = arith.mulf %1536, %4 : vector<2x1x1xf32>
    %1538 = math.exp %1537 : vector<2x1x1xf32>
    %1539 = arith.addf %1508, %1538 : vector<2x1x1xf32>
    %1540 = vector.shape_cast %1539 : vector<2x1x1xf32> to vector<2x1x1xf32>
    %1541 = vector.broadcast %1540 : vector<2x1x1xf32> to vector<2x1x128xf32>
    %1542 = arith.select %1529, %1541, %1511 : vector<2x1x128xi1>, vector<2x1x128xf32>
    %1543 = vector.broadcast %1527 : vector<2x1x1xf32> to vector<2x4x128xf32>
    %1544 = arith.cmpf oeq, %12, %1543 : vector<2x4x128xf32>
    %cst_299 = arith.constant 0xFF800000 : f32
    %1545 = vector.broadcast %cst_299 : f32 to vector<2x4x128xf32>
    %1546 = arith.select %1544, %1545, %1515 : vector<2x4x128xi1>, vector<2x4x128xf32>
    %cst_300 = arith.constant dense<0xFF800000> : vector<2x128xf32>
    %1547 = vector.multi_reduction <maximumf>, %1546, %cst_300 [1] : vector<2x4x128xf32> to vector<2x128xf32>
    %1548 = vector.shape_cast %1547 : vector<2x128xf32> to vector<2x1x128xf32>
    %cst_301 = arith.constant dense<0xFF800000> : vector<2x1xf32>
    %1549 = vector.multi_reduction <maximumf>, %1548, %cst_301 [2] : vector<2x1x128xf32> to vector<2x1xf32>
    %1550 = vector.shape_cast %1549 : vector<2x1xf32> to vector<2x1x1xf32>
    %1551 = vector.broadcast %1550 : vector<2x1x1xf32> to vector<2x4x128xf32>
    %1552 = arith.cmpf oeq, %1546, %1551 : vector<2x4x128xf32>
    %cst_302 = arith.constant 5.120000e+02 : f32
    %1553 = vector.broadcast %cst_302 : f32 to vector<2x4x128xf32>
    %1554 = arith.select %1552, %12, %1553 : vector<2x4x128xi1>, vector<2x4x128xf32>
    %cst_303 = arith.constant dense<0x7F800000> : vector<2x128xf32>
    %1555 = vector.multi_reduction <minimumf>, %1554, %cst_303 [1] : vector<2x4x128xf32> to vector<2x128xf32>
    %1556 = vector.shape_cast %1555 : vector<2x128xf32> to vector<2x1x128xf32>
    %cst_304 = arith.constant dense<0x7F800000> : vector<2x1xf32>
    %1557 = vector.multi_reduction <minimumf>, %1556, %cst_304 [2] : vector<2x1x128xf32> to vector<2x1xf32>
    %1558 = vector.shape_cast %1557 : vector<2x1xf32> to vector<2x1x1xf32>
    %c48_i32 = arith.constant 48 : i32
    %1559 = vector.broadcast %c48_i32 : i32 to vector<2x1x128xi32>
    %1560 = arith.cmpi eq, %54, %1559 : vector<2x1x128xi32>
    %1561 = vector.shape_cast %1550 : vector<2x1x1xf32> to vector<2x1x1xf32>
    %1562 = vector.broadcast %1561 : vector<2x1x1xf32> to vector<2x1x128xf32>
    %1563 = arith.select %1560, %1562, %1532 : vector<2x1x128xi1>, vector<2x1x128xf32>
    %1564 = vector.shape_cast %1558 : vector<2x1x1xf32> to vector<2x1x1xf32>
    %1565 = vector.broadcast %1564 : vector<2x1x1xf32> to vector<2x1x128xf32>
    %1566 = arith.select %1560, %1565, %1535 : vector<2x1x128xi1>, vector<2x1x128xf32>
    %1567 = arith.subf %1550, %62 : vector<2x1x1xf32>
    %1568 = arith.mulf %1567, %4 : vector<2x1x1xf32>
    %1569 = math.exp %1568 : vector<2x1x1xf32>
    %1570 = arith.addf %1539, %1569 : vector<2x1x1xf32>
    %1571 = vector.shape_cast %1570 : vector<2x1x1xf32> to vector<2x1x1xf32>
    %1572 = vector.broadcast %1571 : vector<2x1x1xf32> to vector<2x1x128xf32>
    %1573 = arith.select %1560, %1572, %1542 : vector<2x1x128xi1>, vector<2x1x128xf32>
    %1574 = vector.broadcast %1558 : vector<2x1x1xf32> to vector<2x4x128xf32>
    %1575 = arith.cmpf oeq, %12, %1574 : vector<2x4x128xf32>
    %cst_305 = arith.constant 0xFF800000 : f32
    %1576 = vector.broadcast %cst_305 : f32 to vector<2x4x128xf32>
    %1577 = arith.select %1575, %1576, %1546 : vector<2x4x128xi1>, vector<2x4x128xf32>
    %cst_306 = arith.constant dense<0xFF800000> : vector<2x128xf32>
    %1578 = vector.multi_reduction <maximumf>, %1577, %cst_306 [1] : vector<2x4x128xf32> to vector<2x128xf32>
    %1579 = vector.shape_cast %1578 : vector<2x128xf32> to vector<2x1x128xf32>
    %cst_307 = arith.constant dense<0xFF800000> : vector<2x1xf32>
    %1580 = vector.multi_reduction <maximumf>, %1579, %cst_307 [2] : vector<2x1x128xf32> to vector<2x1xf32>
    %1581 = vector.shape_cast %1580 : vector<2x1xf32> to vector<2x1x1xf32>
    %1582 = vector.broadcast %1581 : vector<2x1x1xf32> to vector<2x4x128xf32>
    %1583 = arith.cmpf oeq, %1577, %1582 : vector<2x4x128xf32>
    %cst_308 = arith.constant 5.120000e+02 : f32
    %1584 = vector.broadcast %cst_308 : f32 to vector<2x4x128xf32>
    %1585 = arith.select %1583, %12, %1584 : vector<2x4x128xi1>, vector<2x4x128xf32>
    %cst_309 = arith.constant dense<0x7F800000> : vector<2x128xf32>
    %1586 = vector.multi_reduction <minimumf>, %1585, %cst_309 [1] : vector<2x4x128xf32> to vector<2x128xf32>
    %1587 = vector.shape_cast %1586 : vector<2x128xf32> to vector<2x1x128xf32>
    %cst_310 = arith.constant dense<0x7F800000> : vector<2x1xf32>
    %1588 = vector.multi_reduction <minimumf>, %1587, %cst_310 [2] : vector<2x1x128xf32> to vector<2x1xf32>
    %1589 = vector.shape_cast %1588 : vector<2x1xf32> to vector<2x1x1xf32>
    %c49_i32 = arith.constant 49 : i32
    %1590 = vector.broadcast %c49_i32 : i32 to vector<2x1x128xi32>
    %1591 = arith.cmpi eq, %54, %1590 : vector<2x1x128xi32>
    %1592 = vector.shape_cast %1581 : vector<2x1x1xf32> to vector<2x1x1xf32>
    %1593 = vector.broadcast %1592 : vector<2x1x1xf32> to vector<2x1x128xf32>
    %1594 = arith.select %1591, %1593, %1563 : vector<2x1x128xi1>, vector<2x1x128xf32>
    %1595 = vector.shape_cast %1589 : vector<2x1x1xf32> to vector<2x1x1xf32>
    %1596 = vector.broadcast %1595 : vector<2x1x1xf32> to vector<2x1x128xf32>
    %1597 = arith.select %1591, %1596, %1566 : vector<2x1x128xi1>, vector<2x1x128xf32>
    %1598 = arith.subf %1581, %62 : vector<2x1x1xf32>
    %1599 = arith.mulf %1598, %4 : vector<2x1x1xf32>
    %1600 = math.exp %1599 : vector<2x1x1xf32>
    %1601 = arith.addf %1570, %1600 : vector<2x1x1xf32>
    %1602 = vector.shape_cast %1601 : vector<2x1x1xf32> to vector<2x1x1xf32>
    %1603 = vector.broadcast %1602 : vector<2x1x1xf32> to vector<2x1x128xf32>
    %1604 = arith.select %1591, %1603, %1573 : vector<2x1x128xi1>, vector<2x1x128xf32>
    %1605 = vector.broadcast %4 : vector<2x1x1xf32> to vector<2x1x128xf32>
    %1606 = arith.mulf %1594, %1605 : vector<2x1x128xf32>
    %1607 = arith.mulf %3, %1601 : vector<2x1x1xf32>
    %1608 = vector.broadcast %1607 : vector<2x1x1xf32> to vector<2x1x128xf32>
    %1609 = arith.cmpf olt, %1604, %1608 : vector<2x1x128xf32>
    %c5_i32_311 = arith.constant 5 : i32
    %1610 = vector.broadcast %c5_i32_311 : i32 to vector<2x1x128xi32>
    %1611 = arith.cmpi slt, %54, %1610 : vector<2x1x128xi32>
    %1612 = arith.ori %1609, %1611 : vector<2x1x128xi1>
    %c50_i32 = arith.constant 50 : i32
    %1613 = vector.broadcast %c50_i32 : i32 to vector<2x1x128xi32>
    %1614 = arith.cmpi slt, %54, %1613 : vector<2x1x128xi32>
    %cst_312 = arith.constant -1.000000e+03 : f32
    %1615 = vector.broadcast %cst_312 : f32 to vector<2x1x128xf32>
    %1616 = arith.select %1612, %1606, %1615 : vector<2x1x128xi1>, vector<2x1x128xf32>
    %cst_313 = arith.constant 0xFF800000 : f32
    %1617 = vector.broadcast %cst_313 : f32 to vector<2x1x128xf32>
    %1618 = arith.select %1614, %1616, %1617 : vector<2x1x128xi1>, vector<2x1x128xf32>
    %cst_314 = arith.constant dense<0xFF800000> : vector<2x1xf32>
    %1619 = vector.multi_reduction <maximumf>, %1618, %cst_314 [2] : vector<2x1x128xf32> to vector<2x1xf32>
    %1620 = vector.shape_cast %1619 : vector<2x1xf32> to vector<2x1x1xf32>
    %1621 = vector.broadcast %1620 : vector<2x1x1xf32> to vector<2x1x128xf32>
    %1622 = arith.subf %1618, %1621 : vector<2x1x128xf32>
    %1623 = math.exp %1622 : vector<2x1x128xf32>
    %cst_315 = arith.constant dense<0.000000e+00> : vector<2x1xf32>
    %1624 = vector.multi_reduction <add>, %1623, %cst_315 [2] : vector<2x1x128xf32> to vector<2x1xf32>
    %1625 = vector.shape_cast %1624 : vector<2x1xf32> to vector<2x1x1xf32>
    %1626 = vector.broadcast %1625 : vector<2x1x1xf32> to vector<2x1x128xf32>
    %1627 = arith.divf %1623, %1626 : vector<2x1x128xf32>
    %c0_316 = arith.constant 0 : index
    %c0_317 = arith.constant 0 : index
    %c0_318 = arith.constant 0 : index
    %1628 = vector.load %arg3[%c0_316, %c0_317, %c0_318] : memref<2x1x128xf32, #tpu.memory_space<vmem>>, vector<2x1x128xf32>
    tpu.vector_store %arg3[%c0_316, %c0_317, %c0_318], %1627 {strides = array<i32>} : memref<2x1x128xf32, #tpu.memory_space<vmem>>, vector<2x1x128xf32>,
    %1629 = arith.fptosi %1597 : vector<2x1x128xf32> to vector<2x1x128xi32>
    %c0_319 = arith.constant 0 : index
    %c0_320 = arith.constant 0 : index
    %c0_321 = arith.constant 0 : index
    %1630 = vector.load %arg4[%c0_319, %c0_320, %c0_321] : memref<2x1x128xi32, #tpu.memory_space<vmem>>, vector<2x1x128xi32>
    tpu.vector_store %arg4[%c0_319, %c0_320, %c0_321], %1629 {strides = array<i32>} : memref<2x1x128xi32, #tpu.memory_space<vmem>>, vector<2x1x128xi32>,
    return
  }
}

</mosaic_0001>

<llo_original>
// kernel: penalty_sample_head.1
$region0: #{penalty_sample_head.1}
  #allocation0 [shape = 'u32[]', space=smem, size = 0x4, offset = 0x4, fixed_abs, tag = 'smem constant byte address 0x4 - core index']
  #allocation1 [shape = 'u32[144,128]{1,0:T(1,128)}', space=vmem, size = 0x12000, scoped, tag = 'internal scratch']
  %s0 = inlined_call_operand.vmem [shape: f32[2,4,128], index: 0, kind: input, shape index: {}]
  %s1 = inlined_call_operand.vmem [shape: s32[2,1,8], index: 1, kind: input, shape index: {}]
  %s2 = inlined_call_operand.vmem [shape: f32[2,1,4], index: 2, kind: input, shape index: {}]
  %s3 = inlined_call_operand.hbm [shape: f32[2,1,128], index: 3, kind: output, shape index: {0}]
  %s4 = inlined_call_operand.hbm [shape: s32[2,1,128], index: 4, kind: output, shape index: {1}]
  %5 = xla_tuple %s3, %s4
  %s6 = sld [smem:[#allocation0]]
  $region30: #{penalty_sample_head.1} parent=0
    _
  %s8 = ssub.s32 1, %s6
  %s9 = scalar_select 0, %s8, %s6
  $region1: #{penalty_sample_head.1} parent=0
    #allocation2 [shape = 'u8[1024]{0}', space=vmem, size = 0x400, scoped, tag = 'output window, operand 0, single buffered']
    #allocation3 [shape = 's32[1]{0}', space=sflag, size = 0x4, scoped, tag = 'scoped memory for penalty_sample_head.1']
    #allocation4 [shape = 'u8[1024]{0}', space=vmem, size = 0x400, scoped, tag = 'output window, operand 1, single buffered']
    #allocation5 [shape = 's32[1]{0}', space=sflag, size = 0x4, scoped, tag = 'scoped memory for penalty_sample_head.1']
    %10 = vsyncpa [#allocation3], 0
    %11 = vsyncpa [#allocation5], 0
    // Predicated region
    $region2: #{penalty_sample_head.1} parent=1 // pred_check
      _
    $region3: #{penalty_sample_head.1} parent=1 // pred_check_branch
      %13 = sbr.rel (0) target = $region5
    $region4: #{penalty_sample_head.1} parent=1 // pred_region
      _
    $region5: #{penalty_sample_head.1} parent=1 // pred_fallthru
      _
    // Predicated region
    $region6: #{penalty_sample_head.1} parent=1 // pred_check
      _
    $region7: #{penalty_sample_head.1} parent=1 // pred_check_branch
      %15 = sbr.rel (0) target = $region9
    $region8: #{penalty_sample_head.1} parent=1 // pred_region
      _
    $region9: #{penalty_sample_head.1} parent=1 // pred_fallthru
      _
    // Predicated region
    $region10: #{penalty_sample_head.1} parent=1 // pred_check
      _
    $region11: #{penalty_sample_head.1} parent=1 // pred_check_branch
      %17 = sbr.rel (0) target = $region13
    $region12: #{penalty_sample_head.1} parent=1 // pred_region
      _
    $region13: #{penalty_sample_head.1} parent=1 // pred_fallthru
      _
    %v18 = vld [vmem:[%s0] sm:$0xf]
    %v19 = vld [vmem:[%s0 + $0x4] sm:$0xf]
    %v20 = vld [vmem:[%s1] sm:$0x1]
    %v21 = vld [vmem:[%s1 + $0x1] sm:$0x1]
    %v22 = vld [vmem:[%s2] sm:$0x1]
    %v23 = vld [vmem:[%s2 + $0x1] sm:$0x1]
    %v24 = vlaneseq
    %v25 = vshrl.u32 %v24, 7
    %v26 = vlaneseq
    %v27 = vand.u32 %v26, 127
    %v28 = vmul.u32 %v25, 128
    %v29 = vadd.s32 %v28, %v27
    %v30 = vcvt.s32.f32 %v29
    %v31 = vcvt.s32.f32 %v20
    %v32 = vcvt.s32.f32 %v21
    %v35 = vlaneseq
    %v36 = vshrl.u32 %v35, 7
    %v37 = vsub.s32 0, %v36
    %v38 = vrot.slane %v31, %v37
    %v39 = vlaneseq
    %v40 = vshrl.u32 %v39, 7
    %v41 = vsub.s32 0, %v40
    %v42 = vrot.slane %v32, %v41
    %43 = vset.pattern.permute.xlu0 0
    %44 = vperm.xlu0 %43, %v38
    %v45 = vpop.permute.xlu0 %44
    %47 = vset.pattern.permute.xlu0 0
    %48 = vperm.xlu0 %47, %v42
    %v49 = vpop.permute.xlu0 %48
    %vm51 = vcmp.eq.f32.partialorder %v30, %v45
    %vm52 = vcmp.eq.f32.partialorder %v30, %v49
    %53 = vset.pattern.permute.xlu0 1
    %54 = vperm.xlu0 %53, %v38
    %v55 = vpop.permute.xlu0 %54
    %57 = vset.pattern.permute.xlu0 1
    %58 = vperm.xlu0 %57, %v42
    %v59 = vpop.permute.xlu0 %58
    %vm61 = vcmp.eq.f32.partialorder %v30, %v55
    %vm62 = vcmp.eq.f32.partialorder %v30, %v59
    %vm63 = vmor %vm51, %vm61
    %vm64 = vmor %vm52, %vm62
    %65 = vset.pattern.permute.xlu0 2
    %66 = vperm.xlu0 %65, %v38
    %v67 = vpop.permute.xlu0 %66
    %69 = vset.pattern.permute.xlu0 2
    %70 = vperm.xlu0 %69, %v42
    %v71 = vpop.permute.xlu0 %70
    %vm73 = vcmp.eq.f32.partialorder %v30, %v67
    %vm74 = vcmp.eq.f32.partialorder %v30, %v71
    %vm75 = vmor %vm63, %vm73
    %vm76 = vmor %vm64, %vm74
    %77 = vset.pattern.permute.xlu0 3
    %78 = vperm.xlu0 %77, %v38
    %v79 = vpop.permute.xlu0 %78
    %81 = vset.pattern.permute.xlu0 3
    %82 = vperm.xlu0 %81, %v42
    %v83 = vpop.permute.xlu0 %82
    %vm85 = vcmp.eq.f32.partialorder %v30, %v79
    %vm86 = vcmp.eq.f32.partialorder %v30, %v83
    %vm87 = vmor %vm75, %vm85
    %vm88 = vmor %vm76, %vm86
    %89 = vset.pattern.permute.xlu0 4
    %90 = vperm.xlu0 %89, %v38
    %v91 = vpop.permute.xlu0 %90
    %93 = vset.pattern.permute.xlu0 4
    %94 = vperm.xlu0 %93, %v42
    %v95 = vpop.permute.xlu0 %94
    %vm97 = vcmp.eq.f32.partialorder %v30, %v91
    %vm98 = vcmp.eq.f32.partialorder %v30, %v95
    %vm99 = vmor %vm87, %vm97
    %vm100 = vmor %vm88, %vm98
    %101 = vset.pattern.permute.xlu0 5
    %102 = vperm.xlu0 %101, %v38
    %v103 = vpop.permute.xlu0 %102
    %105 = vset.pattern.permute.xlu0 5
    %106 = vperm.xlu0 %105, %v42
    %v107 = vpop.permute.xlu0 %106
    %vm109 = vcmp.eq.f32.partialorder %v30, %v103
    %vm110 = vcmp.eq.f32.partialorder %v30, %v107
    %vm111 = vmor %vm99, %vm109
    %vm112 = vmor %vm100, %vm110
    %113 = vset.pattern.permute.xlu0 6
    %114 = vperm.xlu0 %113, %v38
    %v115 = vpop.permute.xlu0 %114
    %117 = vset.pattern.permute.xlu0 6
    %118 = vperm.xlu0 %117, %v42
    %v119 = vpop.permute.xlu0 %118
    %vm121 = vcmp.eq.f32.partialorder %v30, %v115
    %vm122 = vcmp.eq.f32.partialorder %v30, %v119
    %vm123 = vmor %vm111, %vm121
    %vm124 = vmor %vm112, %vm122
    %125 = vset.pattern.permute.xlu0 7
    %126 = vperm.xlu0 %125, %v38
    %v127 = vpop.permute.xlu0 %126
    %129 = vset.pattern.permute.xlu0 7
    %130 = vperm.xlu0 %129, %v42
    %v131 = vpop.permute.xlu0 %130
    %vm133 = vcmp.eq.f32.partialorder %v30, %v127
    %vm134 = vcmp.eq.f32.partialorder %v30, %v131
    %vm135 = vmor %vm123, %vm133
    %vm136 = vmor %vm124, %vm134
    %vm137 = vcmp.lt.f32.partialorder %v18, 0.0
    %vm138 = vcmp.lt.f32.partialorder %v19, 0.0
    %v141 = vlaneseq
    %v142 = vshrl.u32 %v141, 7
    %v143 = vsub.s32 0, %v142
    %v144 = vrot.slane %v22, %v143
    %v145 = vlaneseq
    %v146 = vshrl.u32 %v145, 7
    %v147 = vsub.s32 0, %v146
    %v148 = vrot.slane %v23, %v147
    %149 = vset.pattern.permute.xlu0 2
    %150 = vperm.xlu0 %149, %v144
    %v151 = vpop.permute.xlu0 %150
    %153 = vset.pattern.permute.xlu0 2
    %154 = vperm.xlu0 %153, %v148
    %v155 = vpop.permute.xlu0 %154
    %157 = vset.pattern.permute.xlu0 3
    %158 = vperm.xlu0 %157, %v144
    %v159 = vpop.permute.xlu0 %158
    %161 = vset.pattern.permute.xlu0 3
    %162 = vperm.xlu0 %161, %v148
    %v163 = vpop.permute.xlu0 %162
    %v165 = vsel %vm137, %v151, %v159
    %v166 = vsel %vm138, %v155, %v163
    %v167 = vmul.f32 %v18, %v165
    %v168 = vmul.f32 %v19, %v166
    %v169 = vsel %vm135, %v167, %v18
    %v170 = vsel %vm136, %v168, %v19
    %vm171 = vcmask 1043456
    %v172 = vsel %vm171, %v169, -inf
    %v173 = vrot.slane %v172, 4
    %v174 = vmax.f32 %v172, %v173
    %v175 = vrot.slane %v174, 2
    %v176 = vmax.f32 %v174, %v175
    %v177 = vrot.slane %v176, 1
    %v178 = vmax.f32 %v176, %v177
    %v179 = vsel %vm171, %v170, -inf
    %v180 = vrot.slane %v179, 4
    %v181 = vmax.f32 %v179, %v180
    %v182 = vrot.slane %v181, 2
    %v183 = vmax.f32 %v181, %v182
    %v184 = vrot.slane %v183, 1
    %v185 = vmax.f32 %v183, %v184
    %186 = vmax.xlane.f32.xlu0 %v178
    %v187 = vpop.xlane.xlu0 %186
    %188 = vmax.xlane.f32.xlu0 %v185
    %v189 = vpop.xlane.xlu0 %188
    %vm190 = vcmp.eq.f32.partialorder %v169, %v187
    %vm191 = vcmp.eq.f32.partialorder %v170, %v189
    %v192 = vsel %vm190, %v30, 512.0
    %v193 = vsel %vm191, %v30, 512.0
    %v194 = vsel %vm171, %v192, inf
    %v195 = vrot.slane %v194, 4
    %v196 = vmin.f32 %v194, %v195
    %v197 = vrot.slane %v196, 2
    %v198 = vmin.f32 %v196, %v197
    %v199 = vrot.slane %v198, 1
    %v200 = vmin.f32 %v198, %v199
    %v201 = vsel %vm171, %v193, inf
    %v202 = vrot.slane %v201, 4
    %v203 = vmin.f32 %v201, %v202
    %v204 = vrot.slane %v203, 2
    %v205 = vmin.f32 %v203, %v204
    %v206 = vrot.slane %v205, 1
    %v207 = vmin.f32 %v205, %v206
    %208 = vmin.xlane.f32.xlu0 %v200
    %v209 = vpop.xlane.xlu0 %208
    %210 = vmin.xlane.f32.xlu0 %v207
    %v211 = vpop.xlane.xlu0 %210
    %vm212 = vcmp.eq.s32.totalorder %v27, 0
    %v213 = vsel %vm212, %v187, -inf
    %v214 = vsel %vm212, %v189, -inf
    %v215 = vsel %vm212, %v209, 0.0
    %v216 = vsel %vm212, %v211, 0.0
    %v217 = vsub.f32 %v187, %v187
    %v218 = vsub.f32 %v189, %v189
    %v219 = vmul.f32 %v217, %v22
    %v220 = vmul.f32 %v218, %v23
    %v221 = vmul.f32 %v219, 1.442695
    %v222 = vpow.pop %v221
    %v223 = vmul.f32 %v220, 1.442695
    %v224 = vpow.pop %v223
    %v225 = vadd.f32 %v222, 0.0
    %v226 = vadd.f32 %v224, 0.0
    %228 = vset.pattern.permute.xlu0 1
    %229 = vperm.xlu0 %228, %v225
    %v230 = vpop.permute.xlu0 %229
    %v232 = vlaneseq
    %v233 = vshrl.u32 %v232, 7
    %v234 = vsub.s32 0, %v233
    %v235 = vrot.slane %v230, %v234
    %237 = vset.pattern.permute.xlu0 1
    %238 = vperm.xlu0 %237, %v226
    %v239 = vpop.permute.xlu0 %238
    %v241 = vlaneseq
    %v242 = vshrl.u32 %v241, 7
    %v243 = vsub.s32 0, %v242
    %v244 = vrot.slane %v239, %v243
    %v245 = vsel %vm212, %v235, 0.0
    %v246 = vsel %vm212, %v244, 0.0
    %vm247 = vcmp.eq.f32.partialorder %v30, %v209
    %vm248 = vcmp.eq.f32.partialorder %v30, %v211
    %v249 = vsel %vm247, -inf, %v169
    %v250 = vsel %vm248, -inf, %v170
    %v251 = vsel %vm171, %v249, -inf
    %v252 = vrot.slane %v251, 4
    %v253 = vmax.f32 %v251, %v252
    %v254 = vrot.slane %v253, 2
    %v255 = vmax.f32 %v253, %v254
    %v256 = vrot.slane %v255, 1
    %v257 = vmax.f32 %v255, %v256
    %v258 = vsel %vm171, %v250, -inf
    %v259 = vrot.slane %v258, 4
    %v260 = vmax.f32 %v258, %v259
    %v261 = vrot.slane %v260, 2
    %v262 = vmax.f32 %v260, %v261
    %v263 = vrot.slane %v262, 1
    %v264 = vmax.f32 %v262, %v263
    %265 = vmax.xlane.f32.xlu0 %v257
    %v266 = vpop.xlane.xlu0 %265
    %267 = vmax.xlane.f32.xlu0 %v264
    %v268 = vpop.xlane.xlu0 %267
    %vm269 = vcmp.eq.f32.partialorder %v249, %v266
    %vm270 = vcmp.eq.f32.partialorder %v250, %v268
    %v271 = vsel %vm269, %v30, 512.0
    %v272 = vsel %vm270, %v30, 512.0
    %v273 = vsel %vm171, %v271, inf
    %v274 = vrot.slane %v273, 4
    %v275 = vmin.f32 %v273, %v274
    %v276 = vrot.slane %v275, 2
    %v277 = vmin.f32 %v275, %v276
    %v278 = vrot.slane %v277, 1
    %v279 = vmin.f32 %v277, %v278
    %v280 = vsel %vm171, %v272, inf
    %v281 = vrot.slane %v280, 4
    %v282 = vmin.f32 %v280, %v281
    %v283 = vrot.slane %v282, 2
    %v284 = vmin.f32 %v282, %v283
    %v285 = vrot.slane %v284, 1
    %v286 = vmin.f32 %v284, %v285
    %287 = vmin.xlane.f32.xlu0 %v279
    %v288 = vpop.xlane.xlu0 %287
    %289 = vmin.xlane.f32.xlu0 %v286
    %v290 = vpop.xlane.xlu0 %289
    %vm291 = vcmp.eq.s32.totalorder %v27, 1
    %v292 = vsel %vm291, %v266, %v213
    %v293 = vsel %vm291, %v268, %v214
    %v294 = vsel %vm291, %v288, %v215
    %v295 = vsel %vm291, %v290, %v216
    %v296 = vsub.f32 %v266, %v187
    %v297 = vsub.f32 %v268, %v189
    %v298 = vmul.f32 %v296, %v22
    %v299 = vmul.f32 %v297, %v23
    %v300 = vmul.f32 %v298, 1.442695
    %v301 = vpow.pop %v300
    %v302 = vmul.f32 %v299, 1.442695
    %v303 = vpow.pop %v302
    %v304 = vadd.f32 %v225, %v301
    %v305 = vadd.f32 %v226, %v303
    %307 = vset.pattern.permute.xlu0 1
    %308 = vperm.xlu0 %307, %v304
    %v309 = vpop.permute.xlu0 %308
    %v311 = vlaneseq
    %v312 = vshrl.u32 %v311, 7
    %v313 = vsub.s32 0, %v312
    %v314 = vrot.slane %v309, %v313
    %316 = vset.pattern.permute.xlu0 1
    %317 = vperm.xlu0 %316, %v305
    %v318 = vpop.permute.xlu0 %317
    %v320 = vlaneseq
    %v321 = vshrl.u32 %v320, 7
    %v322 = vsub.s32 0, %v321
    %v323 = vrot.slane %v318, %v322
    %v324 = vsel %vm291, %v314, %v245
    %v325 = vsel %vm291, %v323, %v246
    %vm326 = vcmp.eq.f32.partialorder %v30, %v288
    %vm327 = vcmp.eq.f32.partialorder %v30, %v290
    %v328 = vsel %vm326, -inf, %v249
    %v329 = vsel %vm327, -inf, %v250
    %v330 = vsel %vm171, %v328, -inf
    %v331 = vrot.slane %v330, 4
    %v332 = vmax.f32 %v330, %v331
    %v333 = vrot.slane %v332, 2
    %v334 = vmax.f32 %v332, %v333
    %v335 = vrot.slane %v334, 1
    %v336 = vmax.f32 %v334, %v335
    %v337 = vsel %vm171, %v329, -inf
    %v338 = vrot.slane %v337, 4
    %v339 = vmax.f32 %v337, %v338
    %v340 = vrot.slane %v339, 2
    %v341 = vmax.f32 %v339, %v340
    %v342 = vrot.slane %v341, 1
    %v343 = vmax.f32 %v341, %v342
    %344 = vmax.xlane.f32.xlu0 %v336
    %v345 = vpop.xlane.xlu0 %344
    %346 = vmax.xlane.f32.xlu0 %v343
    %v347 = vpop.xlane.xlu0 %346
    %vm348 = vcmp.eq.f32.partialorder %v328, %v345
    %vm349 = vcmp.eq.f32.partialorder %v329, %v347
    %v350 = vsel %vm348, %v30, 512.0
    %v351 = vsel %vm349, %v30, 512.0
    %v352 = vsel %vm171, %v350, inf
    %v353 = vrot.slane %v352, 4
    %v354 = vmin.f32 %v352, %v353
    %v355 = vrot.slane %v354, 2
    %v356 = vmin.f32 %v354, %v355
    %v357 = vrot.slane %v356, 1
    %v358 = vmin.f32 %v356, %v357
    %v359 = vsel %vm171, %v351, inf
    %v360 = vrot.slane %v359, 4
    %v361 = vmin.f32 %v359, %v360
    %v362 = vrot.slane %v361, 2
    %v363 = vmin.f32 %v361, %v362
    %v364 = vrot.slane %v363, 1
    %v365 = vmin.f32 %v363, %v364
    %366 = vmin.xlane.f32.xlu0 %v358
    %v367 = vpop.xlane.xlu0 %366
    %368 = vmin.xlane.f32.xlu0 %v365
    %v369 = vpop.xlane.xlu0 %368
    %vm370 = vcmp.eq.s32.totalorder %v27, 2
    %v371 = vsel %vm370, %v345, %v292
    %v372 = vsel %vm370, %v347, %v293
    %v373 = vsel %vm370, %v367, %v294
    %v374 = vsel %vm370, %v369, %v295
    %v375 = vsub.f32 %v345, %v187
    %v376 = vsub.f32 %v347, %v189
    %v377 = vmul.f32 %v375, %v22
    %v378 = vmul.f32 %v376, %v23
    %v379 = vmul.f32 %v377, 1.442695
    %v380 = vpow.pop %v379
    %v381 = vmul.f32 %v378, 1.442695
    %v382 = vpow.pop %v381
    %v383 = vadd.f32 %v304, %v380
    %v384 = vadd.f32 %v305, %v382
    %386 = vset.pattern.permute.xlu0 1
    %387 = vperm.xlu0 %386, %v383
    %v388 = vpop.permute.xlu0 %387
    %v390 = vlaneseq
    %v391 = vshrl.u32 %v390, 7
    %v392 = vsub.s32 0, %v391
    %v393 = vrot.slane %v388, %v392
    %395 = vset.pattern.permute.xlu0 1
    %396 = vperm.xlu0 %395, %v384
    %v397 = vpop.permute.xlu0 %396
    %v399 = vlaneseq
    %v400 = vshrl.u32 %v399, 7
    %v401 = vsub.s32 0, %v400
    %v402 = vrot.slane %v397, %v401
    %v403 = vsel %vm370, %v393, %v324
    %v404 = vsel %vm370, %v402, %v325
    %vm405 = vcmp.eq.f32.partialorder %v30, %v367
    %vm406 = vcmp.eq.f32.partialorder %v30, %v369
    %v407 = vsel %vm405, -inf, %v328
    %v408 = vsel %vm406, -inf, %v329
    %v409 = vsel %vm171, %v407, -inf
    %v410 = vrot.slane %v409, 4
    %v411 = vmax.f32 %v409, %v410
    %v412 = vrot.slane %v411, 2
    %v413 = vmax.f32 %v411, %v412
    %v414 = vrot.slane %v413, 1
    %v415 = vmax.f32 %v413, %v414
    %v416 = vsel %vm171, %v408, -inf
    %v417 = vrot.slane %v416, 4
    %v418 = vmax.f32 %v416, %v417
    %v419 = vrot.slane %v418, 2
    %v420 = vmax.f32 %v418, %v419
    %v421 = vrot.slane %v420, 1
    %v422 = vmax.f32 %v420, %v421
    %423 = vmax.xlane.f32.xlu0 %v415
    %v424 = vpop.xlane.xlu0 %423
    %425 = vmax.xlane.f32.xlu0 %v422
    %v426 = vpop.xlane.xlu0 %425
    %vm427 = vcmp.eq.f32.partialorder %v407, %v424
    %vm428 = vcmp.eq.f32.partialorder %v408, %v426
    %v429 = vsel %vm427, %v30, 512.0
    %v430 = vsel %vm428, %v30, 512.0
    %v431 = vsel %vm171, %v429, inf
    %v432 = vrot.slane %v431, 4
    %v433 = vmin.f32 %v431, %v432
    %v434 = vrot.slane %v433, 2
    %v435 = vmin.f32 %v433, %v434
    %v436 = vrot.slane %v435, 1
    %v437 = vmin.f32 %v435, %v436
    %v438 = vsel %vm171, %v430, inf
    %v439 = vrot.slane %v438, 4
    %v440 = vmin.f32 %v438, %v439
    %v441 = vrot.slane %v440, 2
    %v442 = vmin.f32 %v440, %v441
    %v443 = vrot.slane %v442, 1
    %v444 = vmin.f32 %v442, %v443
    %445 = vmin.xlane.f32.xlu0 %v437
    %v446 = vpop.xlane.xlu0 %445
    %447 = vmin.xlane.f32.xlu0 %v444
    %v448 = vpop.xlane.xlu0 %447
    %vm449 = vcmp.eq.s32.totalorder %v27, 3
    %v450 = vsel %vm449, %v424, %v371
    %v451 = vsel %vm449, %v426, %v372
    %v452 = vsel %vm449, %v446, %v373
    %v453 = vsel %vm449, %v448, %v374
    %v454 = vsub.f32 %v424, %v187
    %v455 = vsub.f32 %v426, %v189
    %v456 = vmul.f32 %v454, %v22
    %v457 = vmul.f32 %v455, %v23
    %v458 = vmul.f32 %v456, 1.442695
    %v459 = vpow.pop %v458
    %v460 = vmul.f32 %v457, 1.442695
    %v461 = vpow.pop %v460
    %v462 = vadd.f32 %v383, %v459
    %v463 = vadd.f32 %v384, %v461
    %465 = vset.pattern.permute.xlu0 1
    %466 = vperm.xlu0 %465, %v462
    %v467 = vpop.permute.xlu0 %466
    %v469 = vlaneseq
    %v470 = vshrl.u32 %v469, 7
    %v471 = vsub.s32 0, %v470
    %v472 = vrot.slane %v467, %v471
    %474 = vset.pattern.permute.xlu0 1
    %475 = vperm.xlu0 %474, %v463
    %v476 = vpop.permute.xlu0 %475
    %v478 = vlaneseq
    %v479 = vshrl.u32 %v478, 7
    %v480 = vsub.s32 0, %v479
    %v481 = vrot.slane %v476, %v480
    %v482 = vsel %vm449, %v472, %v403
    %v483 = vsel %vm449, %v481, %v404
    %vm484 = vcmp.eq.f32.partialorder %v30, %v446
    %vm485 = vcmp.eq.f32.partialorder %v30, %v448
    %v486 = vsel %vm484, -inf, %v407
    %v487 = vsel %vm485, -inf, %v408
    %v488 = vsel %vm171, %v486, -inf
    %v489 = vrot.slane %v488, 4
    %v490 = vmax.f32 %v488, %v489
    %v491 = vrot.slane %v490, 2
    %v492 = vmax.f32 %v490, %v491
    %v493 = vrot.slane %v492, 1
    %v494 = vmax.f32 %v492, %v493
    %v495 = vsel %vm171, %v487, -inf
    %v496 = vrot.slane %v495, 4
    %v497 = vmax.f32 %v495, %v496
    %v498 = vrot.slane %v497, 2
    %v499 = vmax.f32 %v497, %v498
    %v500 = vrot.slane %v499, 1
    %v501 = vmax.f32 %v499, %v500
    %502 = vmax.xlane.f32.xlu0 %v494
    %v503 = vpop.xlane.xlu0 %502
    %504 = vmax.xlane.f32.xlu0 %v501
    %v505 = vpop.xlane.xlu0 %504
    %vm506 = vcmp.eq.f32.partialorder %v486, %v503
    %vm507 = vcmp.eq.f32.partialorder %v487, %v505
    %v508 = vsel %vm506, %v30, 512.0
    %v509 = vsel %vm507, %v30, 512.0
    %v510 = vsel %vm171, %v508, inf
    %v511 = vrot.slane %v510, 4
    %v512 = vmin.f32 %v510, %v511
    %v513 = vrot.slane %v512, 2
    %v514 = vmin.f32 %v512, %v513
    %v515 = vrot.slane %v514, 1
    %v516 = vmin.f32 %v514, %v515
    %v517 = vsel %vm171, %v509, inf
    %v518 = vrot.slane %v517, 4
    %v519 = vmin.f32 %v517, %v518
    %v520 = vrot.slane %v519, 2
    %v521 = vmin.f32 %v519, %v520
    %v522 = vrot.slane %v521, 1
    %v523 = vmin.f32 %v521, %v522
    %524 = vmin.xlane.f32.xlu0 %v516
    %v525 = vpop.xlane.xlu0 %524
    %526 = vmin.xlane.f32.xlu0 %v523
    %v527 = vpop.xlane.xlu0 %526
    %vm528 = vcmp.eq.s32.totalorder %v27, 4
    %v529 = vsel %vm528, %v503, %v450
    %v530 = vsel %vm528, %v505, %v451
    %v531 = vsel %vm528, %v525, %v452
    %v532 = vsel %vm528, %v527, %v453
    %v533 = vsub.f32 %v503, %v187
    %v534 = vsub.f32 %v505, %v189
    %v535 = vmul.f32 %v533, %v22
    %v536 = vmul.f32 %v534, %v23
    %v537 = vmul.f32 %v535, 1.442695
    %v538 = vpow.pop %v537
    %v539 = vmul.f32 %v536, 1.442695
    %v540 = vpow.pop %v539
    %v541 = vadd.f32 %v462, %v538
    %v542 = vadd.f32 %v463, %v540
    %544 = vset.pattern.permute.xlu0 1
    %545 = vperm.xlu0 %544, %v541
    %v546 = vpop.permute.xlu0 %545
    %v548 = vlaneseq
    %v549 = vshrl.u32 %v548, 7
    %v550 = vsub.s32 0, %v549
    %v551 = vrot.slane %v546, %v550
    %553 = vset.pattern.permute.xlu0 1
    %554 = vperm.xlu0 %553, %v542
    %v555 = vpop.permute.xlu0 %554
    %v557 = vlaneseq
    %v558 = vshrl.u32 %v557, 7
    %v559 = vsub.s32 0, %v558
    %v560 = vrot.slane %v555, %v559
    %v561 = vsel %vm528, %v551, %v482
    %v562 = vsel %vm528, %v560, %v483
    %vm563 = vcmp.eq.f32.partialorder %v30, %v525
    %vm564 = vcmp.eq.f32.partialorder %v30, %v527
    %v565 = vsel %vm563, -inf, %v486
    %v566 = vsel %vm564, -inf, %v487
    %v567 = vsel %vm171, %v565, -inf
    %v568 = vrot.slane %v567, 4
    %v569 = vmax.f32 %v567, %v568
    %v570 = vrot.slane %v569, 2
    %v571 = vmax.f32 %v569, %v570
    %v572 = vrot.slane %v571, 1
    %v573 = vmax.f32 %v571, %v572
    %v574 = vsel %vm171, %v566, -inf
    %v575 = vrot.slane %v574, 4
    %v576 = vmax.f32 %v574, %v575
    %v577 = vrot.slane %v576, 2
    %v578 = vmax.f32 %v576, %v577
    %v579 = vrot.slane %v578, 1
    %v580 = vmax.f32 %v578, %v579
    %581 = vmax.xlane.f32.xlu0 %v573
    %v582 = vpop.xlane.xlu0 %581
    %583 = vmax.xlane.f32.xlu0 %v580
    %v584 = vpop.xlane.xlu0 %583
    %vm585 = vcmp.eq.f32.partialorder %v565, %v582
    %vm586 = vcmp.eq.f32.partialorder %v566, %v584
    %v587 = vsel %vm585, %v30, 512.0
    %v588 = vsel %vm586, %v30, 512.0
    %v589 = vsel %vm171, %v587, inf
    %v590 = vrot.slane %v589, 4
    %v591 = vmin.f32 %v589, %v590
    %v592 = vrot.slane %v591, 2
    %v593 = vmin.f32 %v591, %v592
    %v594 = vrot.slane %v593, 1
    %v595 = vmin.f32 %v593, %v594
    %v596 = vsel %vm171, %v588, inf
    %v597 = vrot.slane %v596, 4
    %v598 = vmin.f32 %v596, %v597
    %v599 = vrot.slane %v598, 2
    %v600 = vmin.f32 %v598, %v599
    %v601 = vrot.slane %v600, 1
    %v602 = vmin.f32 %v600, %v601
    %603 = vmin.xlane.f32.xlu0 %v595
    %v604 = vpop.xlane.xlu0 %603
    %605 = vmin.xlane.f32.xlu0 %v602
    %v606 = vpop.xlane.xlu0 %605
    %vm607 = vcmp.eq.s32.totalorder %v27, 5
    %v608 = vsel %vm607, %v582, %v529
    %v609 = vsel %vm607, %v584, %v530
    %v610 = vsel %vm607, %v604, %v531
    %v611 = vsel %vm607, %v606, %v532
    %v612 = vsub.f32 %v582, %v187
    %v613 = vsub.f32 %v584, %v189
    %v614 = vmul.f32 %v612, %v22
    %v615 = vmul.f32 %v613, %v23
    %v616 = vmul.f32 %v614, 1.442695
    %v617 = vpow.pop %v616
    %v618 = vmul.f32 %v615, 1.442695
    %v619 = vpow.pop %v618
    %v620 = vadd.f32 %v541, %v617
    %v621 = vadd.f32 %v542, %v619
    %623 = vset.pattern.permute.xlu0 1
    %624 = vperm.xlu0 %623, %v620
    %v625 = vpop.permute.xlu0 %624
    %v627 = vlaneseq
    %v628 = vshrl.u32 %v627, 7
    %v629 = vsub.s32 0, %v628
    %v630 = vrot.slane %v625, %v629
    %632 = vset.pattern.permute.xlu0 1
    %633 = vperm.xlu0 %632, %v621
    %v634 = vpop.permute.xlu0 %633
    %v636 = vlaneseq
    %v637 = vshrl.u32 %v636, 7
    %v638 = vsub.s32 0, %v637
    %v639 = vrot.slane %v634, %v638
    %v640 = vsel %vm607, %v630, %v561
    %v641 = vsel %vm607, %v639, %v562
    %vm642 = vcmp.eq.f32.partialorder %v30, %v604
    %vm643 = vcmp.eq.f32.partialorder %v30, %v606
    %v644 = vsel %vm642, -inf, %v565
    %v645 = vsel %vm643, -inf, %v566
    %v646 = vsel %vm171, %v644, -inf
    %v647 = vrot.slane %v646, 4
    %v648 = vmax.f32 %v646, %v647
    %v649 = vrot.slane %v648, 2
    %v650 = vmax.f32 %v648, %v649
    %v651 = vrot.slane %v650, 1
    %v652 = vmax.f32 %v650, %v651
    %v653 = vsel %vm171, %v645, -inf
    %v654 = vrot.slane %v653, 4
    %v655 = vmax.f32 %v653, %v654
    %v656 = vrot.slane %v655, 2
    %v657 = vmax.f32 %v655, %v656
    %v658 = vrot.slane %v657, 1
    %v659 = vmax.f32 %v657, %v658
    %660 = vmax.xlane.f32.xlu0 %v652
    %v661 = vpop.xlane.xlu0 %660
    %662 = vmax.xlane.f32.xlu0 %v659
    %v663 = vpop.xlane.xlu0 %662
    %vm664 = vcmp.eq.f32.partialorder %v644, %v661
    %vm665 = vcmp.eq.f32.partialorder %v645, %v663
    %v666 = vsel %vm664, %v30, 512.0
    %v667 = vsel %vm665, %v30, 512.0
    %v668 = vsel %vm171, %v666, inf
    %v669 = vrot.slane %v668, 4
    %v670 = vmin.f32 %v668, %v669
    %v671 = vrot.slane %v670, 2
    %v672 = vmin.f32 %v670, %v671
    %v673 = vrot.slane %v672, 1
    %v674 = vmin.f32 %v672, %v673
    %v675 = vsel %vm171, %v667, inf
    %v676 = vrot.slane %v675, 4
    %v677 = vmin.f32 %v675, %v676
    %v678 = vrot.slane %v677, 2
    %v679 = vmin.f32 %v677, %v678
    %v680 = vrot.slane %v679, 1
    %v681 = vmin.f32 %v679, %v680
    %682 = vmin.xlane.f32.xlu0 %v674
    %v683 = vpop.xlane.xlu0 %682
    %684 = vmin.xlane.f32.xlu0 %v681
    %v685 = vpop.xlane.xlu0 %684
    %vm686 = vcmp.eq.s32.totalorder %v27, 6
    %v687 = vsel %vm686, %v661, %v608
    %v688 = vsel %vm686, %v663, %v609
    %v689 = vsel %vm686, %v683, %v610
    %v690 = vsel %vm686, %v685, %v611
    %v691 = vsub.f32 %v661, %v187
    %v692 = vsub.f32 %v663, %v189
    %v693 = vmul.f32 %v691, %v22
    %v694 = vmul.f32 %v692, %v23
    %v695 = vmul.f32 %v693, 1.442695
    %v696 = vpow.pop %v695
    %v697 = vmul.f32 %v694, 1.442695
    %v698 = vpow.pop %v697
    %v699 = vadd.f32 %v620, %v696
    %v700 = vadd.f32 %v621, %v698
    %702 = vset.pattern.permute.xlu0 1
    %703 = vperm.xlu0 %702, %v699
    %v704 = vpop.permute.xlu0 %703
    %v706 = vlaneseq
    %v707 = vshrl.u32 %v706, 7
    %v708 = vsub.s32 0, %v707
    %v709 = vrot.slane %v704, %v708
    %711 = vset.pattern.permute.xlu0 1
    %712 = vperm.xlu0 %711, %v700
    %v713 = vpop.permute.xlu0 %712
    %v715 = vlaneseq
    %v716 = vshrl.u32 %v715, 7
    %v717 = vsub.s32 0, %v716
    %v718 = vrot.slane %v713, %v717
    %v719 = vsel %vm686, %v709, %v640
    %v720 = vsel %vm686, %v718, %v641
    %vm721 = vcmp.eq.f32.partialorder %v30, %v683
    %vm722 = vcmp.eq.f32.partialorder %v30, %v685
    %v723 = vsel %vm721, -inf, %v644
    %v724 = vsel %vm722, -inf, %v645
    %v725 = vsel %vm171, %v723, -inf
    %v726 = vrot.slane %v725, 4
    %v727 = vmax.f32 %v725, %v726
    %v728 = vrot.slane %v727, 2
    %v729 = vmax.f32 %v727, %v728
    %v730 = vrot.slane %v729, 1
    %v731 = vmax.f32 %v729, %v730
    %v732 = vsel %vm171, %v724, -inf
    %v733 = vrot.slane %v732, 4
    %v734 = vmax.f32 %v732, %v733
    %v735 = vrot.slane %v734, 2
    %v736 = vmax.f32 %v734, %v735
    %v737 = vrot.slane %v736, 1
    %v738 = vmax.f32 %v736, %v737
    %739 = vmax.xlane.f32.xlu0 %v731
    %v740 = vpop.xlane.xlu0 %739
    %741 = vmax.xlane.f32.xlu0 %v738
    %v742 = vpop.xlane.xlu0 %741
    %vm743 = vcmp.eq.f32.partialorder %v723, %v740
    %vm744 = vcmp.eq.f32.partialorder %v724, %v742
    %v745 = vsel %vm743, %v30, 512.0
    %v746 = vsel %vm744, %v30, 512.0
    %v747 = vsel %vm171, %v745, inf
    %v748 = vrot.slane %v747, 4
    %v749 = vmin.f32 %v747, %v748
    %v750 = vrot.slane %v749, 2
    %v751 = vmin.f32 %v749, %v750
    %v752 = vrot.slane %v751, 1
    %v753 = vmin.f32 %v751, %v752
    %v754 = vsel %vm171, %v746, inf
    %v755 = vrot.slane %v754, 4
    %v756 = vmin.f32 %v754, %v755
    %v757 = vrot.slane %v756, 2
    %v758 = vmin.f32 %v756, %v757
    %v759 = vrot.slane %v758, 1
    %v760 = vmin.f32 %v758, %v759
    %761 = vmin.xlane.f32.xlu0 %v753
    %v762 = vpop.xlane.xlu0 %761
    %763 = vmin.xlane.f32.xlu0 %v760
    %v764 = vpop.xlane.xlu0 %763
    %vm765 = vcmp.eq.s32.totalorder %v27, 7
    %v766 = vsel %vm765, %v740, %v687
    %v767 = vsel %vm765, %v742, %v688
    %v768 = vsel %vm765, %v762, %v689
    %v769 = vsel %vm765, %v764, %v690
    %v770 = vsub.f32 %v740, %v187
    %v771 = vsub.f32 %v742, %v189
    %v772 = vmul.f32 %v770, %v22
    %v773 = vmul.f32 %v771, %v23
    %v774 = vmul.f32 %v772, 1.442695
    %v775 = vpow.pop %v774
    %v776 = vmul.f32 %v773, 1.442695
    %v777 = vpow.pop %v776
    %v778 = vadd.f32 %v699, %v775
    %v779 = vadd.f32 %v700, %v777
    %781 = vset.pattern.permute.xlu0 1
    %782 = vperm.xlu0 %781, %v778
    %v783 = vpop.permute.xlu0 %782
    %v785 = vlaneseq
    %v786 = vshrl.u32 %v785, 7
    %v787 = vsub.s32 0, %v786
    %v788 = vrot.slane %v783, %v787
    %790 = vset.pattern.permute.xlu0 1
    %791 = vperm.xlu0 %790, %v779
    %v792 = vpop.permute.xlu0 %791
    %v794 = vlaneseq
    %v795 = vshrl.u32 %v794, 7
    %v796 = vsub.s32 0, %v795
    %v797 = vrot.slane %v792, %v796
    %v798 = vsel %vm765, %v788, %v719
    %v799 = vsel %vm765, %v797, %v720
    %vm800 = vcmp.eq.f32.partialorder %v30, %v762
    %vm801 = vcmp.eq.f32.partialorder %v30, %v764
    %v802 = vsel %vm800, -inf, %v723
    %v803 = vsel %vm801, -inf, %v724
    %v804 = vsel %vm171, %v802, -inf
    %v805 = vrot.slane %v804, 4
    %v806 = vmax.f32 %v804, %v805
    %v807 = vrot.slane %v806, 2
    %v808 = vmax.f32 %v806, %v807
    %v809 = vrot.slane %v808, 1
    %v810 = vmax.f32 %v808, %v809
    %v811 = vsel %vm171, %v803, -inf
    %v812 = vrot.slane %v811, 4
    %v813 = vmax.f32 %v811, %v812
    %v814 = vrot.slane %v813, 2
    %v815 = vmax.f32 %v813, %v814
    %v816 = vrot.slane %v815, 1
    %v817 = vmax.f32 %v815, %v816
    %818 = vmax.xlane.f32.xlu0 %v810
    %v819 = vpop.xlane.xlu0 %818
    %820 = vmax.xlane.f32.xlu0 %v817
    %v821 = vpop.xlane.xlu0 %820
    %vm822 = vcmp.eq.f32.partialorder %v802, %v819
    %vm823 = vcmp.eq.f32.partialorder %v803, %v821
    %v824 = vsel %vm822, %v30, 512.0
    %v825 = vsel %vm823, %v30, 512.0
    %v826 = vsel %vm171, %v824, inf
    %v827 = vrot.slane %v826, 4
    %v828 = vmin.f32 %v826, %v827
    %v829 = vrot.slane %v828, 2
    %v830 = vmin.f32 %v828, %v829
    %v831 = vrot.slane %v830, 1
    %v832 = vmin.f32 %v830, %v831
    %v833 = vsel %vm171, %v825, inf
    %v834 = vrot.slane %v833, 4
    %v835 = vmin.f32 %v833, %v834
    %v836 = vrot.slane %v835, 2
    %v837 = vmin.f32 %v835, %v836
    %v838 = vrot.slane %v837, 1
    %v839 = vmin.f32 %v837, %v838
    %840 = vmin.xlane.f32.xlu0 %v832
    %v841 = vpop.xlane.xlu0 %840
    %842 = vmin.xlane.f32.xlu0 %v839
    %v843 = vpop.xlane.xlu0 %842
    %vm844 = vcmp.eq.s32.totalorder %v27, 8
    %v845 = vsel %vm844, %v819, %v766
    %v846 = vsel %vm844, %v821, %v767
    %v847 = vsel %vm844, %v841, %v768
    %v848 = vsel %vm844, %v843, %v769
    %v849 = vsub.f32 %v819, %v187
    %v850 = vsub.f32 %v821, %v189
    %v851 = vmul.f32 %v849, %v22
    %v852 = vmul.f32 %v850, %v23
    %v853 = vmul.f32 %v851, 1.442695
    %v854 = vpow.pop %v853
    %v855 = vmul.f32 %v852, 1.442695
    %v856 = vpow.pop %v855
    %v857 = vadd.f32 %v778, %v854
    %v858 = vadd.f32 %v779, %v856
    %860 = vset.pattern.permute.xlu0 1
    %861 = vperm.xlu0 %860, %v857
    %v862 = vpop.permute.xlu0 %861
    %v864 = vlaneseq
    %v865 = vshrl.u32 %v864, 7
    %v866 = vsub.s32 0, %v865
    %v867 = vrot.slane %v862, %v866
    %869 = vset.pattern.permute.xlu0 1
    %870 = vperm.xlu0 %869, %v858
    %v871 = vpop.permute.xlu0 %870
    %v873 = vlaneseq
    %v874 = vshrl.u32 %v873, 7
    %v875 = vsub.s32 0, %v874
    %v876 = vrot.slane %v871, %v875
    %v877 = vsel %vm844, %v867, %v798
    %v878 = vsel %vm844, %v876, %v799
    %vm879 = vcmp.eq.f32.partialorder %v30, %v841
    %vm880 = vcmp.eq.f32.partialorder %v30, %v843
    %v881 = vsel %vm879, -inf, %v802
    %v882 = vsel %vm880, -inf, %v803
    %v883 = vsel %vm171, %v881, -inf
    %v884 = vrot.slane %v883, 4
    %v885 = vmax.f32 %v883, %v884
    %v886 = vrot.slane %v885, 2
    %v887 = vmax.f32 %v885, %v886
    %v888 = vrot.slane %v887, 1
    %v889 = vmax.f32 %v887, %v888
    %v890 = vsel %vm171, %v882, -inf
    %v891 = vrot.slane %v890, 4
    %v892 = vmax.f32 %v890, %v891
    %v893 = vrot.slane %v892, 2
    %v894 = vmax.f32 %v892, %v893
    %v895 = vrot.slane %v894, 1
    %v896 = vmax.f32 %v894, %v895
    %897 = vmax.xlane.f32.xlu0 %v889
    %v898 = vpop.xlane.xlu0 %897
    %899 = vmax.xlane.f32.xlu0 %v896
    %v900 = vpop.xlane.xlu0 %899
    %vm901 = vcmp.eq.f32.partialorder %v881, %v898
    %vm902 = vcmp.eq.f32.partialorder %v882, %v900
    %v903 = vsel %vm901, %v30, 512.0
    %v904 = vsel %vm902, %v30, 512.0
    %v905 = vsel %vm171, %v903, inf
    %v906 = vrot.slane %v905, 4
    %v907 = vmin.f32 %v905, %v906
    %v908 = vrot.slane %v907, 2
    %v909 = vmin.f32 %v907, %v908
    %v910 = vrot.slane %v909, 1
    %v911 = vmin.f32 %v909, %v910
    %v912 = vsel %vm171, %v904, inf
    %v913 = vrot.slane %v912, 4
    %v914 = vmin.f32 %v912, %v913
    %v915 = vrot.slane %v914, 2
    %v916 = vmin.f32 %v914, %v915
    %v917 = vrot.slane %v916, 1
    %v918 = vmin.f32 %v916, %v917
    %919 = vmin.xlane.f32.xlu0 %v911
    %v920 = vpop.xlane.xlu0 %919
    %921 = vmin.xlane.f32.xlu0 %v918
    %v922 = vpop.xlane.xlu0 %921
    %vm923 = vcmp.eq.s32.totalorder %v27, 9
    %v924 = vsel %vm923, %v898, %v845
    %v925 = vsel %vm923, %v900, %v846
    %v926 = vsel %vm923, %v920, %v847
    %v927 = vsel %vm923, %v922, %v848
    %v928 = vsub.f32 %v898, %v187
    %v929 = vsub.f32 %v900, %v189
    %v930 = vmul.f32 %v928, %v22
    %v931 = vmul.f32 %v929, %v23
    %v932 = vmul.f32 %v930, 1.442695
    %v933 = vpow.pop %v932
    %v934 = vmul.f32 %v931, 1.442695
    %v935 = vpow.pop %v934
    %v936 = vadd.f32 %v857, %v933
    %v937 = vadd.f32 %v858, %v935
    %939 = vset.pattern.permute.xlu0 1
    %940 = vperm.xlu0 %939, %v936
    %v941 = vpop.permute.xlu0 %940
    %v943 = vlaneseq
    %v944 = vshrl.u32 %v943, 7
    %v945 = vsub.s32 0, %v944
    %v946 = vrot.slane %v941, %v945
    %948 = vset.pattern.permute.xlu0 1
    %949 = vperm.xlu0 %948, %v937
    %v950 = vpop.permute.xlu0 %949
    %v952 = vlaneseq
    %v953 = vshrl.u32 %v952, 7
    %v954 = vsub.s32 0, %v953
    %v955 = vrot.slane %v950, %v954
    %v956 = vsel %vm923, %v946, %v877
    %v957 = vsel %vm923, %v955, %v878
    %vm958 = vcmp.eq.f32.partialorder %v30, %v920
    %vm959 = vcmp.eq.f32.partialorder %v30, %v922
    %v960 = vsel %vm958, -inf, %v881
    %v961 = vsel %vm959, -inf, %v882
    %v962 = vsel %vm171, %v960, -inf
    %v963 = vrot.slane %v962, 4
    %v964 = vmax.f32 %v962, %v963
    %v965 = vrot.slane %v964, 2
    %v966 = vmax.f32 %v964, %v965
    %v967 = vrot.slane %v966, 1
    %v968 = vmax.f32 %v966, %v967
    %v969 = vsel %vm171, %v961, -inf
    %v970 = vrot.slane %v969, 4
    %v971 = vmax.f32 %v969, %v970
    %v972 = vrot.slane %v971, 2
    %v973 = vmax.f32 %v971, %v972
    %v974 = vrot.slane %v973, 1
    %v975 = vmax.f32 %v973, %v974
    %976 = vmax.xlane.f32.xlu0 %v968
    %v977 = vpop.xlane.xlu0 %976
    %978 = vmax.xlane.f32.xlu0 %v975
    %v979 = vpop.xlane.xlu0 %978
    %vm980 = vcmp.eq.f32.partialorder %v960, %v977
    %vm981 = vcmp.eq.f32.partialorder %v961, %v979
    %v982 = vsel %vm980, %v30, 512.0
    %v983 = vsel %vm981, %v30, 512.0
    %v984 = vsel %vm171, %v982, inf
    %v985 = vrot.slane %v984, 4
    %v986 = vmin.f32 %v984, %v985
    %v987 = vrot.slane %v986, 2
    %v988 = vmin.f32 %v986, %v987
    %v989 = vrot.slane %v988, 1
    %v990 = vmin.f32 %v988, %v989
    %v991 = vsel %vm171, %v983, inf
    %v992 = vrot.slane %v991, 4
    %v993 = vmin.f32 %v991, %v992
    %v994 = vrot.slane %v993, 2
    %v995 = vmin.f32 %v993, %v994
    %v996 = vrot.slane %v995, 1
    %v997 = vmin.f32 %v995, %v996
    %998 = vmin.xlane.f32.xlu0 %v990
    %v999 = vpop.xlane.xlu0 %998
    %1000 = vmin.xlane.f32.xlu0 %v997
    %v1001 = vpop.xlane.xlu0 %1000
    %vm1002 = vcmp.eq.s32.totalorder %v27, 10
    %v1003 = vsel %vm1002, %v977, %v924
    %v1004 = vsel %vm1002, %v979, %v925
    %v1005 = vsel %vm1002, %v999, %v926
    %v1006 = vsel %vm1002, %v1001, %v927
    %v1007 = vsub.f32 %v977, %v187
    %v1008 = vsub.f32 %v979, %v189
    %v1009 = vmul.f32 %v1007, %v22
    %v1010 = vmul.f32 %v1008, %v23
    %v1011 = vmul.f32 %v1009, 1.442695
    %v1012 = vpow.pop %v1011
    %v1013 = vmul.f32 %v1010, 1.442695
    %v1014 = vpow.pop %v1013
    %v1015 = vadd.f32 %v936, %v1012
    %v1016 = vadd.f32 %v937, %v1014
    %1018 = vset.pattern.permute.xlu0 1
    %1019 = vperm.xlu0 %1018, %v1015
    %v1020 = vpop.permute.xlu0 %1019
    %v1022 = vlaneseq
    %v1023 = vshrl.u32 %v1022, 7
    %v1024 = vsub.s32 0, %v1023
    %v1025 = vrot.slane %v1020, %v1024
    %1027 = vset.pattern.permute.xlu0 1
    %1028 = vperm.xlu0 %1027, %v1016
    %v1029 = vpop.permute.xlu0 %1028
    %v1031 = vlaneseq
    %v1032 = vshrl.u32 %v1031, 7
    %v1033 = vsub.s32 0, %v1032
    %v1034 = vrot.slane %v1029, %v1033
    %v1035 = vsel %vm1002, %v1025, %v956
    %v1036 = vsel %vm1002, %v1034, %v957
    %vm1037 = vcmp.eq.f32.partialorder %v30, %v999
    %vm1038 = vcmp.eq.f32.partialorder %v30, %v1001
    %v1039 = vsel %vm1037, -inf, %v960
    %v1040 = vsel %vm1038, -inf, %v961
    %v1041 = vsel %vm171, %v1039, -inf
    %v1042 = vrot.slane %v1041, 4
    %v1043 = vmax.f32 %v1041, %v1042
    %v1044 = vrot.slane %v1043, 2
    %v1045 = vmax.f32 %v1043, %v1044
    %v1046 = vrot.slane %v1045, 1
    %v1047 = vmax.f32 %v1045, %v1046
    %v1048 = vsel %vm171, %v1040, -inf
    %v1049 = vrot.slane %v1048, 4
    %v1050 = vmax.f32 %v1048, %v1049
    %v1051 = vrot.slane %v1050, 2
    %v1052 = vmax.f32 %v1050, %v1051
    %v1053 = vrot.slane %v1052, 1
    %v1054 = vmax.f32 %v1052, %v1053
    %1055 = vmax.xlane.f32.xlu0 %v1047
    %v1056 = vpop.xlane.xlu0 %1055
    %1057 = vmax.xlane.f32.xlu0 %v1054
    %v1058 = vpop.xlane.xlu0 %1057
    %vm1059 = vcmp.eq.f32.partialorder %v1039, %v1056
    %vm1060 = vcmp.eq.f32.partialorder %v1040, %v1058
    %v1061 = vsel %vm1059, %v30, 512.0
    %v1062 = vsel %vm1060, %v30, 512.0
    %v1063 = vsel %vm171, %v1061, inf
    %v1064 = vrot.slane %v1063, 4
    %v1065 = vmin.f32 %v1063, %v1064
    %v1066 = vrot.slane %v1065, 2
    %v1067 = vmin.f32 %v1065, %v1066
    %v1068 = vrot.slane %v1067, 1
    %v1069 = vmin.f32 %v1067, %v1068
    %v1070 = vsel %vm171, %v1062, inf
    %v1071 = vrot.slane %v1070, 4
    %v1072 = vmin.f32 %v1070, %v1071
    %v1073 = vrot.slane %v1072, 2
    %v1074 = vmin.f32 %v1072, %v1073
    %v1075 = vrot.slane %v1074, 1
    %v1076 = vmin.f32 %v1074, %v1075
    %1077 = vmin.xlane.f32.xlu0 %v1069
    %v1078 = vpop.xlane.xlu0 %1077
    %1079 = vmin.xlane.f32.xlu0 %v1076
    %v1080 = vpop.xlane.xlu0 %1079
    %vm1081 = vcmp.eq.s32.totalorder %v27, 11
    %v1082 = vsel %vm1081, %v1056, %v1003
    %v1083 = vsel %vm1081, %v1058, %v1004
    %v1084 = vsel %vm1081, %v1078, %v1005
    %v1085 = vsel %vm1081, %v1080, %v1006
    %v1086 = vsub.f32 %v1056, %v187
    %v1087 = vsub.f32 %v1058, %v189
    %v1088 = vmul.f32 %v1086, %v22
    %v1089 = vmul.f32 %v1087, %v23
    %v1090 = vmul.f32 %v1088, 1.442695
    %v1091 = vpow.pop %v1090
    %v1092 = vmul.f32 %v1089, 1.442695
    %v1093 = vpow.pop %v1092
    %v1094 = vadd.f32 %v1015, %v1091
    %v1095 = vadd.f32 %v1016, %v1093
    %1097 = vset.pattern.permute.xlu0 1
    %1098 = vperm.xlu0 %1097, %v1094
    %v1099 = vpop.permute.xlu0 %1098
    %v1101 = vlaneseq
    %v1102 = vshrl.u32 %v1101, 7
    %v1103 = vsub.s32 0, %v1102
    %v1104 = vrot.slane %v1099, %v1103
    %1106 = vset.pattern.permute.xlu0 1
    %1107 = vperm.xlu0 %1106, %v1095
    %v1108 = vpop.permute.xlu0 %1107
    %v1110 = vlaneseq
    %v1111 = vshrl.u32 %v1110, 7
    %v1112 = vsub.s32 0, %v1111
    %v1113 = vrot.slane %v1108, %v1112
    %v1114 = vsel %vm1081, %v1104, %v1035
    %v1115 = vsel %vm1081, %v1113, %v1036
    %vm1116 = vcmp.eq.f32.partialorder %v30, %v1078
    %vm1117 = vcmp.eq.f32.partialorder %v30, %v1080
    %v1118 = vsel %vm1116, -inf, %v1039
    %v1119 = vsel %vm1117, -inf, %v1040
    %v1120 = vsel %vm171, %v1118, -inf
    %v1121 = vrot.slane %v1120, 4
    %v1122 = vmax.f32 %v1120, %v1121
    %v1123 = vrot.slane %v1122, 2
    %v1124 = vmax.f32 %v1122, %v1123
    %v1125 = vrot.slane %v1124, 1
    %v1126 = vmax.f32 %v1124, %v1125
    %v1127 = vsel %vm171, %v1119, -inf
    %v1128 = vrot.slane %v1127, 4
    %v1129 = vmax.f32 %v1127, %v1128
    %v1130 = vrot.slane %v1129, 2
    %v1131 = vmax.f32 %v1129, %v1130
    %v1132 = vrot.slane %v1131, 1
    %v1133 = vmax.f32 %v1131, %v1132
    %1134 = vmax.xlane.f32.xlu0 %v1126
    %v1135 = vpop.xlane.xlu0 %1134
    %1136 = vmax.xlane.f32.xlu0 %v1133
    %v1137 = vpop.xlane.xlu0 %1136
    %vm1138 = vcmp.eq.f32.partialorder %v1118, %v1135
    %vm1139 = vcmp.eq.f32.partialorder %v1119, %v1137
    %v1140 = vsel %vm1138, %v30, 512.0
    %v1141 = vsel %vm1139, %v30, 512.0
    %v1142 = vsel %vm171, %v1140, inf
    %v1143 = vrot.slane %v1142, 4
    %v1144 = vmin.f32 %v1142, %v1143
    %v1145 = vrot.slane %v1144, 2
    %v1146 = vmin.f32 %v1144, %v1145
    %v1147 = vrot.slane %v1146, 1
    %v1148 = vmin.f32 %v1146, %v1147
    %v1149 = vsel %vm171, %v1141, inf
    %v1150 = vrot.slane %v1149, 4
    %v1151 = vmin.f32 %v1149, %v1150
    %v1152 = vrot.slane %v1151, 2
    %v1153 = vmin.f32 %v1151, %v1152
    %v1154 = vrot.slane %v1153, 1
    %v1155 = vmin.f32 %v1153, %v1154
    %1156 = vmin.xlane.f32.xlu0 %v1148
    %v1157 = vpop.xlane.xlu0 %1156
    %1158 = vmin.xlane.f32.xlu0 %v1155
    %v1159 = vpop.xlane.xlu0 %1158
    %vm1160 = vcmp.eq.s32.totalorder %v27, 12
    %v1161 = vsel %vm1160, %v1135, %v1082
    %v1162 = vsel %vm1160, %v1137, %v1083
    %v1163 = vsel %vm1160, %v1157, %v1084
    %v1164 = vsel %vm1160, %v1159, %v1085
    %v1165 = vsub.f32 %v1135, %v187
    %v1166 = vsub.f32 %v1137, %v189
    %v1167 = vmul.f32 %v1165, %v22
    %v1168 = vmul.f32 %v1166, %v23
    %v1169 = vmul.f32 %v1167, 1.442695
    %v1170 = vpow.pop %v1169
    %v1171 = vmul.f32 %v1168, 1.442695
    %v1172 = vpow.pop %v1171
    %v1173 = vadd.f32 %v1094, %v1170
    %v1174 = vadd.f32 %v1095, %v1172
    %1176 = vset.pattern.permute.xlu0 1
    %1177 = vperm.xlu0 %1176, %v1173
    %v1178 = vpop.permute.xlu0 %1177
    %v1180 = vlaneseq
    %v1181 = vshrl.u32 %v1180, 7
    %v1182 = vsub.s32 0, %v1181
    %v1183 = vrot.slane %v1178, %v1182
    %1185 = vset.pattern.permute.xlu0 1
    %1186 = vperm.xlu0 %1185, %v1174
    %v1187 = vpop.permute.xlu0 %1186
    %v1189 = vlaneseq
    %v1190 = vshrl.u32 %v1189, 7
    %v1191 = vsub.s32 0, %v1190
    %v1192 = vrot.slane %v1187, %v1191
    %v1193 = vsel %vm1160, %v1183, %v1114
    %v1194 = vsel %vm1160, %v1192, %v1115
    %vm1195 = vcmp.eq.f32.partialorder %v30, %v1157
    %vm1196 = vcmp.eq.f32.partialorder %v30, %v1159
    %v1197 = vsel %vm1195, -inf, %v1118
    %v1198 = vsel %vm1196, -inf, %v1119
    %v1199 = vsel %vm171, %v1197, -inf
    %v1200 = vrot.slane %v1199, 4
    %v1201 = vmax.f32 %v1199, %v1200
    %v1202 = vrot.slane %v1201, 2
    %v1203 = vmax.f32 %v1201, %v1202
    %v1204 = vrot.slane %v1203, 1
    %v1205 = vmax.f32 %v1203, %v1204
    %v1206 = vsel %vm171, %v1198, -inf
    %v1207 = vrot.slane %v1206, 4
    %v1208 = vmax.f32 %v1206, %v1207
    %v1209 = vrot.slane %v1208, 2
    %v1210 = vmax.f32 %v1208, %v1209
    %v1211 = vrot.slane %v1210, 1
    %v1212 = vmax.f32 %v1210, %v1211
    %1213 = vmax.xlane.f32.xlu0 %v1205
    %v1214 = vpop.xlane.xlu0 %1213
    %1215 = vmax.xlane.f32.xlu0 %v1212
    %v1216 = vpop.xlane.xlu0 %1215
    %vm1217 = vcmp.eq.f32.partialorder %v1197, %v1214
    %vm1218 = vcmp.eq.f32.partialorder %v1198, %v1216
    %v1219 = vsel %vm1217, %v30, 512.0
    %v1220 = vsel %vm1218, %v30, 512.0
    %v1221 = vsel %vm171, %v1219, inf
    %v1222 = vrot.slane %v1221, 4
    %v1223 = vmin.f32 %v1221, %v1222
    %v1224 = vrot.slane %v1223, 2
    %v1225 = vmin.f32 %v1223, %v1224
    %v1226 = vrot.slane %v1225, 1
    %v1227 = vmin.f32 %v1225, %v1226
    %v1228 = vsel %vm171, %v1220, inf
    %v1229 = vrot.slane %v1228, 4
    %v1230 = vmin.f32 %v1228, %v1229
    %v1231 = vrot.slane %v1230, 2
    %v1232 = vmin.f32 %v1230, %v1231
    %v1233 = vrot.slane %v1232, 1
    %v1234 = vmin.f32 %v1232, %v1233
    %1235 = vmin.xlane.f32.xlu0 %v1227
    %v1236 = vpop.xlane.xlu0 %1235
    %1237 = vmin.xlane.f32.xlu0 %v1234
    %v1238 = vpop.xlane.xlu0 %1237
    %vm1239 = vcmp.eq.s32.totalorder %v27, 13
    %v1240 = vsel %vm1239, %v1214, %v1161
    %v1241 = vsel %vm1239, %v1216, %v1162
    %v1242 = vsel %vm1239, %v1236, %v1163
    %v1243 = vsel %vm1239, %v1238, %v1164
    %v1244 = vsub.f32 %v1214, %v187
    %v1245 = vsub.f32 %v1216, %v189
    %v1246 = vmul.f32 %v1244, %v22
    %v1247 = vmul.f32 %v1245, %v23
    %v1248 = vmul.f32 %v1246, 1.442695
    %v1249 = vpow.pop %v1248
    %v1250 = vmul.f32 %v1247, 1.442695
    %v1251 = vpow.pop %v1250
    %v1252 = vadd.f32 %v1173, %v1249
    %v1253 = vadd.f32 %v1174, %v1251
    %1255 = vset.pattern.permute.xlu0 1
    %1256 = vperm.xlu0 %1255, %v1252
    %v1257 = vpop.permute.xlu0 %1256
    %v1259 = vlaneseq
    %v1260 = vshrl.u32 %v1259, 7
    %v1261 = vsub.s32 0, %v1260
    %v1262 = vrot.slane %v1257, %v1261
    %1264 = vset.pattern.permute.xlu0 1
    %1265 = vperm.xlu0 %1264, %v1253
    %v1266 = vpop.permute.xlu0 %1265
    %v1268 = vlaneseq
    %v1269 = vshrl.u32 %v1268, 7
    %v1270 = vsub.s32 0, %v1269
    %v1271 = vrot.slane %v1266, %v1270
    %v1272 = vsel %vm1239, %v1262, %v1193
    %v1273 = vsel %vm1239, %v1271, %v1194
    %vm1274 = vcmp.eq.f32.partialorder %v30, %v1236
    %vm1275 = vcmp.eq.f32.partialorder %v30, %v1238
    %v1276 = vsel %vm1274, -inf, %v1197
    %v1277 = vsel %vm1275, -inf, %v1198
    %v1278 = vsel %vm171, %v1276, -inf
    %v1279 = vrot.slane %v1278, 4
    %v1280 = vmax.f32 %v1278, %v1279
    %v1281 = vrot.slane %v1280, 2
    %v1282 = vmax.f32 %v1280, %v1281
    %v1283 = vrot.slane %v1282, 1
    %v1284 = vmax.f32 %v1282, %v1283
    %v1285 = vsel %vm171, %v1277, -inf
    %v1286 = vrot.slane %v1285, 4
    %v1287 = vmax.f32 %v1285, %v1286
    %v1288 = vrot.slane %v1287, 2
    %v1289 = vmax.f32 %v1287, %v1288
    %v1290 = vrot.slane %v1289, 1
    %v1291 = vmax.f32 %v1289, %v1290
    %1292 = vmax.xlane.f32.xlu0 %v1284
    %v1293 = vpop.xlane.xlu0 %1292
    %1294 = vmax.xlane.f32.xlu0 %v1291
    %v1295 = vpop.xlane.xlu0 %1294
    %vm1296 = vcmp.eq.f32.partialorder %v1276, %v1293
    %vm1297 = vcmp.eq.f32.partialorder %v1277, %v1295
    %v1298 = vsel %vm1296, %v30, 512.0
    %v1299 = vsel %vm1297, %v30, 512.0
    %v1300 = vsel %vm171, %v1298, inf
    %v1301 = vrot.slane %v1300, 4
    %v1302 = vmin.f32 %v1300, %v1301
    %v1303 = vrot.slane %v1302, 2
    %v1304 = vmin.f32 %v1302, %v1303
    %v1305 = vrot.slane %v1304, 1
    %v1306 = vmin.f32 %v1304, %v1305
    %v1307 = vsel %vm171, %v1299, inf
    %v1308 = vrot.slane %v1307, 4
    %v1309 = vmin.f32 %v1307, %v1308
    %v1310 = vrot.slane %v1309, 2
    %v1311 = vmin.f32 %v1309, %v1310
    %v1312 = vrot.slane %v1311, 1
    %v1313 = vmin.f32 %v1311, %v1312
    %1314 = vmin.xlane.f32.xlu0 %v1306
    %v1315 = vpop.xlane.xlu0 %1314
    %1316 = vmin.xlane.f32.xlu0 %v1313
    %v1317 = vpop.xlane.xlu0 %1316
    %vm1318 = vcmp.eq.s32.totalorder %v27, 14
    %v1319 = vsel %vm1318, %v1293, %v1240
    %v1320 = vsel %vm1318, %v1295, %v1241
    %v1321 = vsel %vm1318, %v1315, %v1242
    %v1322 = vsel %vm1318, %v1317, %v1243
    %v1323 = vsub.f32 %v1293, %v187
    %v1324 = vsub.f32 %v1295, %v189
    %v1325 = vmul.f32 %v1323, %v22
    %v1326 = vmul.f32 %v1324, %v23
    %v1327 = vmul.f32 %v1325, 1.442695
    %v1328 = vpow.pop %v1327
    %v1329 = vmul.f32 %v1326, 1.442695
    %v1330 = vpow.pop %v1329
    %v1331 = vadd.f32 %v1252, %v1328
    %v1332 = vadd.f32 %v1253, %v1330
    %1334 = vset.pattern.permute.xlu0 1
    %1335 = vperm.xlu0 %1334, %v1331
    %v1336 = vpop.permute.xlu0 %1335
    %v1338 = vlaneseq
    %v1339 = vshrl.u32 %v1338, 7
    %v1340 = vsub.s32 0, %v1339
    %v1341 = vrot.slane %v1336, %v1340
    %1343 = vset.pattern.permute.xlu0 1
    %1344 = vperm.xlu0 %1343, %v1332
    %v1345 = vpop.permute.xlu0 %1344
    %v1347 = vlaneseq
    %v1348 = vshrl.u32 %v1347, 7
    %v1349 = vsub.s32 0, %v1348
    %v1350 = vrot.slane %v1345, %v1349
    %v1351 = vsel %vm1318, %v1341, %v1272
    %v1352 = vsel %vm1318, %v1350, %v1273
    %vm1353 = vcmp.eq.f32.partialorder %v30, %v1315
    %vm1354 = vcmp.eq.f32.partialorder %v30, %v1317
    %v1355 = vsel %vm1353, -inf, %v1276
    %v1356 = vsel %vm1354, -inf, %v1277
    %v1357 = vsel %vm171, %v1355, -inf
    %v1358 = vrot.slane %v1357, 4
    %v1359 = vmax.f32 %v1357, %v1358
    %v1360 = vrot.slane %v1359, 2
    %v1361 = vmax.f32 %v1359, %v1360
    %v1362 = vrot.slane %v1361, 1
    %v1363 = vmax.f32 %v1361, %v1362
    %v1364 = vsel %vm171, %v1356, -inf
    %v1365 = vrot.slane %v1364, 4
    %v1366 = vmax.f32 %v1364, %v1365
    %v1367 = vrot.slane %v1366, 2
    %v1368 = vmax.f32 %v1366, %v1367
    %v1369 = vrot.slane %v1368, 1
    %v1370 = vmax.f32 %v1368, %v1369
    %1371 = vmax.xlane.f32.xlu0 %v1363
    %v1372 = vpop.xlane.xlu0 %1371
    %1373 = vmax.xlane.f32.xlu0 %v1370
    %v1374 = vpop.xlane.xlu0 %1373
    %vm1375 = vcmp.eq.f32.partialorder %v1355, %v1372
    %vm1376 = vcmp.eq.f32.partialorder %v1356, %v1374
    %v1377 = vsel %vm1375, %v30, 512.0
    %v1378 = vsel %vm1376, %v30, 512.0
    %v1379 = vsel %vm171, %v1377, inf
    %v1380 = vrot.slane %v1379, 4
    %v1381 = vmin.f32 %v1379, %v1380
    %v1382 = vrot.slane %v1381, 2
    %v1383 = vmin.f32 %v1381, %v1382
    %v1384 = vrot.slane %v1383, 1
    %v1385 = vmin.f32 %v1383, %v1384
    %v1386 = vsel %vm171, %v1378, inf
    %v1387 = vrot.slane %v1386, 4
    %v1388 = vmin.f32 %v1386, %v1387
    %v1389 = vrot.slane %v1388, 2
    %v1390 = vmin.f32 %v1388, %v1389
    %v1391 = vrot.slane %v1390, 1
    %v1392 = vmin.f32 %v1390, %v1391
    %1393 = vmin.xlane.f32.xlu0 %v1385
    %v1394 = vpop.xlane.xlu0 %1393
    %1395 = vmin.xlane.f32.xlu0 %v1392
    %v1396 = vpop.xlane.xlu0 %1395
    %vm1397 = vcmp.eq.s32.totalorder %v27, 15
    %v1398 = vsel %vm1397, %v1372, %v1319
    %v1399 = vsel %vm1397, %v1374, %v1320
    %v1400 = vsel %vm1397, %v1394, %v1321
    %v1401 = vsel %vm1397, %v1396, %v1322
    %v1402 = vsub.f32 %v1372, %v187
    %v1403 = vsub.f32 %v1374, %v189
    %v1404 = vmul.f32 %v1402, %v22
    %v1405 = vmul.f32 %v1403, %v23
    %v1406 = vmul.f32 %v1404, 1.442695
    %v1407 = vpow.pop %v1406
    %v1408 = vmul.f32 %v1405, 1.442695
    %v1409 = vpow.pop %v1408
    %v1410 = vadd.f32 %v1331, %v1407
    %v1411 = vadd.f32 %v1332, %v1409
    %1413 = vset.pattern.permute.xlu0 1
    %1414 = vperm.xlu0 %1413, %v1410
    %v1415 = vpop.permute.xlu0 %1414
    %v1417 = vlaneseq
    %v1418 = vshrl.u32 %v1417, 7
    %v1419 = vsub.s32 0, %v1418
    %v1420 = vrot.slane %v1415, %v1419
    %1422 = vset.pattern.permute.xlu0 1
    %1423 = vperm.xlu0 %1422, %v1411
    %v1424 = vpop.permute.xlu0 %1423
    %v1426 = vlaneseq
    %v1427 = vshrl.u32 %v1426, 7
    %v1428 = vsub.s32 0, %v1427
    %v1429 = vrot.slane %v1424, %v1428
    %v1430 = vsel %vm1397, %v1420, %v1351
    %v1431 = vsel %vm1397, %v1429, %v1352
    %vm1432 = vcmp.eq.f32.partialorder %v30, %v1394
    %vm1433 = vcmp.eq.f32.partialorder %v30, %v1396
    %v1434 = vsel %vm1432, -inf, %v1355
    %v1435 = vsel %vm1433, -inf, %v1356
    %v1436 = vsel %vm171, %v1434, -inf
    %v1437 = vrot.slane %v1436, 4
    %v1438 = vmax.f32 %v1436, %v1437
    %v1439 = vrot.slane %v1438, 2
    %v1440 = vmax.f32 %v1438, %v1439
    %v1441 = vrot.slane %v1440, 1
    %v1442 = vmax.f32 %v1440, %v1441
    %v1443 = vsel %vm171, %v1435, -inf
    %v1444 = vrot.slane %v1443, 4
    %v1445 = vmax.f32 %v1443, %v1444
    %v1446 = vrot.slane %v1445, 2
    %v1447 = vmax.f32 %v1445, %v1446
    %v1448 = vrot.slane %v1447, 1
    %v1449 = vmax.f32 %v1447, %v1448
    %1450 = vmax.xlane.f32.xlu0 %v1442
    %v1451 = vpop.xlane.xlu0 %1450
    %1452 = vmax.xlane.f32.xlu0 %v1449
    %v1453 = vpop.xlane.xlu0 %1452
    %vm1454 = vcmp.eq.f32.partialorder %v1434, %v1451
    %vm1455 = vcmp.eq.f32.partialorder %v1435, %v1453
    %v1456 = vsel %vm1454, %v30, 512.0
    %v1457 = vsel %vm1455, %v30, 512.0
    %v1458 = vsel %vm171, %v1456, inf
    %v1459 = vrot.slane %v1458, 4
    %v1460 = vmin.f32 %v1458, %v1459
    %v1461 = vrot.slane %v1460, 2
    %v1462 = vmin.f32 %v1460, %v1461
    %v1463 = vrot.slane %v1462, 1
    %v1464 = vmin.f32 %v1462, %v1463
    %v1465 = vsel %vm171, %v1457, inf
    %v1466 = vrot.slane %v1465, 4
    %v1467 = vmin.f32 %v1465, %v1466
    %v1468 = vrot.slane %v1467, 2
    %v1469 = vmin.f32 %v1467, %v1468
    %v1470 = vrot.slane %v1469, 1
    %v1471 = vmin.f32 %v1469, %v1470
    %1472 = vmin.xlane.f32.xlu0 %v1464
    %v1473 = vpop.xlane.xlu0 %1472
    %1474 = vmin.xlane.f32.xlu0 %v1471
    %v1475 = vpop.xlane.xlu0 %1474
    %vm1476 = vcmp.eq.s32.totalorder %v27, 16
    %v1477 = vsel %vm1476, %v1451, %v1398
    %v1478 = vsel %vm1476, %v1453, %v1399
    %v1479 = vsel %vm1476, %v1473, %v1400
    %v1480 = vsel %vm1476, %v1475, %v1401
    %v1481 = vsub.f32 %v1451, %v187
    %v1482 = vsub.f32 %v1453, %v189
    %v1483 = vmul.f32 %v1481, %v22
    %v1484 = vmul.f32 %v1482, %v23
    %v1485 = vmul.f32 %v1483, 1.442695
    %v1486 = vpow.pop %v1485
    %v1487 = vmul.f32 %v1484, 1.442695
    %v1488 = vpow.pop %v1487
    %v1489 = vadd.f32 %v1410, %v1486
    %v1490 = vadd.f32 %v1411, %v1488
    %1492 = vset.pattern.permute.xlu0 1
    %1493 = vperm.xlu0 %1492, %v1489
    %v1494 = vpop.permute.xlu0 %1493
    %v1496 = vlaneseq
    %v1497 = vshrl.u32 %v1496, 7
    %v1498 = vsub.s32 0, %v1497
    %v1499 = vrot.slane %v1494, %v1498
    %1501 = vset.pattern.permute.xlu0 1
    %1502 = vperm.xlu0 %1501, %v1490
    %v1503 = vpop.permute.xlu0 %1502
    %v1505 = vlaneseq
    %v1506 = vshrl.u32 %v1505, 7
    %v1507 = vsub.s32 0, %v1506
    %v1508 = vrot.slane %v1503, %v1507
    %v1509 = vsel %vm1476, %v1499, %v1430
    %v1510 = vsel %vm1476, %v1508, %v1431
    %vm1511 = vcmp.eq.f32.partialorder %v30, %v1473
    %vm1512 = vcmp.eq.f32.partialorder %v30, %v1475
    %v1513 = vsel %vm1511, -inf, %v1434
    %v1514 = vsel %vm1512, -inf, %v1435
    %v1515 = vsel %vm171, %v1513, -inf
    %v1516 = vrot.slane %v1515, 4
    %v1517 = vmax.f32 %v1515, %v1516
    %v1518 = vrot.slane %v1517, 2
    %v1519 = vmax.f32 %v1517, %v1518
    %v1520 = vrot.slane %v1519, 1
    %v1521 = vmax.f32 %v1519, %v1520
    %v1522 = vsel %vm171, %v1514, -inf
    %v1523 = vrot.slane %v1522, 4
    %v1524 = vmax.f32 %v1522, %v1523
    %v1525 = vrot.slane %v1524, 2
    %v1526 = vmax.f32 %v1524, %v1525
    %v1527 = vrot.slane %v1526, 1
    %v1528 = vmax.f32 %v1526, %v1527
    %1529 = vmax.xlane.f32.xlu0 %v1521
    %v1530 = vpop.xlane.xlu0 %1529
    %1531 = vmax.xlane.f32.xlu0 %v1528
    %v1532 = vpop.xlane.xlu0 %1531
    %vm1533 = vcmp.eq.f32.partialorder %v1513, %v1530
    %vm1534 = vcmp.eq.f32.partialorder %v1514, %v1532
    %v1535 = vsel %vm1533, %v30, 512.0
    %v1536 = vsel %vm1534, %v30, 512.0
    %v1537 = vsel %vm171, %v1535, inf
    %v1538 = vrot.slane %v1537, 4
    %v1539 = vmin.f32 %v1537, %v1538
    %v1540 = vrot.slane %v1539, 2
    %v1541 = vmin.f32 %v1539, %v1540
    %v1542 = vrot.slane %v1541, 1
    %v1543 = vmin.f32 %v1541, %v1542
    %v1544 = vsel %vm171, %v1536, inf
    %v1545 = vrot.slane %v1544, 4
    %v1546 = vmin.f32 %v1544, %v1545
    %v1547 = vrot.slane %v1546, 2
    %v1548 = vmin.f32 %v1546, %v1547
    %v1549 = vrot.slane %v1548, 1
    %v1550 = vmin.f32 %v1548, %v1549
    %1551 = vmin.xlane.f32.xlu0 %v1543
    %v1552 = vpop.xlane.xlu0 %1551
    %1553 = vmin.xlane.f32.xlu0 %v1550
    %v1554 = vpop.xlane.xlu0 %1553
    %vm1555 = vcmp.eq.s32.totalorder %v27, 17
    %v1556 = vsel %vm1555, %v1530, %v1477
    %v1557 = vsel %vm1555, %v1532, %v1478
    %v1558 = vsel %vm1555, %v1552, %v1479
    %v1559 = vsel %vm1555, %v1554, %v1480
    %v1560 = vsub.f32 %v1530, %v187
    %v1561 = vsub.f32 %v1532, %v189
    %v1562 = vmul.f32 %v1560, %v22
    %v1563 = vmul.f32 %v1561, %v23
    %v1564 = vmul.f32 %v1562, 1.442695
    %v1565 = vpow.pop %v1564
    %v1566 = vmul.f32 %v1563, 1.442695
    %v1567 = vpow.pop %v1566
    %v1568 = vadd.f32 %v1489, %v1565
    %v1569 = vadd.f32 %v1490, %v1567
    %1571 = vset.pattern.permute.xlu0 1
    %1572 = vperm.xlu0 %1571, %v1568
    %v1573 = vpop.permute.xlu0 %1572
    %v1575 = vlaneseq
    %v1576 = vshrl.u32 %v1575, 7
    %v1577 = vsub.s32 0, %v1576
    %v1578 = vrot.slane %v1573, %v1577
    %1580 = vset.pattern.permute.xlu0 1
    %1581 = vperm.xlu0 %1580, %v1569
    %v1582 = vpop.permute.xlu0 %1581
    %v1584 = vlaneseq
    %v1585 = vshrl.u32 %v1584, 7
    %v1586 = vsub.s32 0, %v1585
    %v1587 = vrot.slane %v1582, %v1586
    %v1588 = vsel %vm1555, %v1578, %v1509
    %v1589 = vsel %vm1555, %v1587, %v1510
    %vm1590 = vcmp.eq.f32.partialorder %v30, %v1552
    %vm1591 = vcmp.eq.f32.partialorder %v30, %v1554
    %v1592 = vsel %vm1590, -inf, %v1513
    %v1593 = vsel %vm1591, -inf, %v1514
    %v1594 = vsel %vm171, %v1592, -inf
    %v1595 = vrot.slane %v1594, 4
    %v1596 = vmax.f32 %v1594, %v1595
    %v1597 = vrot.slane %v1596, 2
    %v1598 = vmax.f32 %v1596, %v1597
    %v1599 = vrot.slane %v1598, 1
    %v1600 = vmax.f32 %v1598, %v1599
    %v1601 = vsel %vm171, %v1593, -inf
    %v1602 = vrot.slane %v1601, 4
    %v1603 = vmax.f32 %v1601, %v1602
    %v1604 = vrot.slane %v1603, 2
    %v1605 = vmax.f32 %v1603, %v1604
    %v1606 = vrot.slane %v1605, 1
    %v1607 = vmax.f32 %v1605, %v1606
    %1608 = vmax.xlane.f32.xlu0 %v1600
    %v1609 = vpop.xlane.xlu0 %1608
    %1610 = vmax.xlane.f32.xlu0 %v1607
    %v1611 = vpop.xlane.xlu0 %1610
    %vm1612 = vcmp.eq.f32.partialorder %v1592, %v1609
    %vm1613 = vcmp.eq.f32.partialorder %v1593, %v1611
    %v1614 = vsel %vm1612, %v30, 512.0
    %v1615 = vsel %vm1613, %v30, 512.0
    %v1616 = vsel %vm171, %v1614, inf
    %v1617 = vrot.slane %v1616, 4
    %v1618 = vmin.f32 %v1616, %v1617
    %v1619 = vrot.slane %v1618, 2
    %v1620 = vmin.f32 %v1618, %v1619
    %v1621 = vrot.slane %v1620, 1
    %v1622 = vmin.f32 %v1620, %v1621
    %v1623 = vsel %vm171, %v1615, inf
    %v1624 = vrot.slane %v1623, 4
    %v1625 = vmin.f32 %v1623, %v1624
    %v1626 = vrot.slane %v1625, 2
    %v1627 = vmin.f32 %v1625, %v1626
    %v1628 = vrot.slane %v1627, 1
    %v1629 = vmin.f32 %v1627, %v1628
    %1630 = vmin.xlane.f32.xlu0 %v1622
    %v1631 = vpop.xlane.xlu0 %1630
    %1632 = vmin.xlane.f32.xlu0 %v1629
    %v1633 = vpop.xlane.xlu0 %1632
    %vm1634 = vcmp.eq.s32.totalorder %v27, 18
    %v1635 = vsel %vm1634, %v1609, %v1556
    %v1636 = vsel %vm1634, %v1611, %v1557
    %v1637 = vsel %vm1634, %v1631, %v1558
    %v1638 = vsel %vm1634, %v1633, %v1559
    %v1639 = vsub.f32 %v1609, %v187
    %v1640 = vsub.f32 %v1611, %v189
    %v1641 = vmul.f32 %v1639, %v22
    %v1642 = vmul.f32 %v1640, %v23
    %v1643 = vmul.f32 %v1641, 1.442695
    %v1644 = vpow.pop %v1643
    %v1645 = vmul.f32 %v1642, 1.442695
    %v1646 = vpow.pop %v1645
    %v1647 = vadd.f32 %v1568, %v1644
    %v1648 = vadd.f32 %v1569, %v1646
    %1650 = vset.pattern.permute.xlu0 1
    %1651 = vperm.xlu0 %1650, %v1647
    %v1652 = vpop.permute.xlu0 %1651
    %v1654 = vlaneseq
    %v1655 = vshrl.u32 %v1654, 7
    %v1656 = vsub.s32 0, %v1655
    %v1657 = vrot.slane %v1652, %v1656
    %1659 = vset.pattern.permute.xlu0 1
    %1660 = vperm.xlu0 %1659, %v1648
    %v1661 = vpop.permute.xlu0 %1660
    %v1663 = vlaneseq
    %v1664 = vshrl.u32 %v1663, 7
    %v1665 = vsub.s32 0, %v1664
    %v1666 = vrot.slane %v1661, %v1665
    %v1667 = vsel %vm1634, %v1657, %v1588
    %v1668 = vsel %vm1634, %v1666, %v1589
    %vm1669 = vcmp.eq.f32.partialorder %v30, %v1631
    %vm1670 = vcmp.eq.f32.partialorder %v30, %v1633
    %v1671 = vsel %vm1669, -inf, %v1592
    %v1672 = vsel %vm1670, -inf, %v1593
    %v1673 = vsel %vm171, %v1671, -inf
    %v1674 = vrot.slane %v1673, 4
    %v1675 = vmax.f32 %v1673, %v1674
    %v1676 = vrot.slane %v1675, 2
    %v1677 = vmax.f32 %v1675, %v1676
    %v1678 = vrot.slane %v1677, 1
    %v1679 = vmax.f32 %v1677, %v1678
    %v1680 = vsel %vm171, %v1672, -inf
    %v1681 = vrot.slane %v1680, 4
    %v1682 = vmax.f32 %v1680, %v1681
    %v1683 = vrot.slane %v1682, 2
    %v1684 = vmax.f32 %v1682, %v1683
    %v1685 = vrot.slane %v1684, 1
    %v1686 = vmax.f32 %v1684, %v1685
    %1687 = vmax.xlane.f32.xlu0 %v1679
    %v1688 = vpop.xlane.xlu0 %1687
    %1689 = vmax.xlane.f32.xlu0 %v1686
    %v1690 = vpop.xlane.xlu0 %1689
    %vm1691 = vcmp.eq.f32.partialorder %v1671, %v1688
    %vm1692 = vcmp.eq.f32.partialorder %v1672, %v1690
    %v1693 = vsel %vm1691, %v30, 512.0
    %v1694 = vsel %vm1692, %v30, 512.0
    %v1695 = vsel %vm171, %v1693, inf
    %v1696 = vrot.slane %v1695, 4
    %v1697 = vmin.f32 %v1695, %v1696
    %v1698 = vrot.slane %v1697, 2
    %v1699 = vmin.f32 %v1697, %v1698
    %v1700 = vrot.slane %v1699, 1
    %v1701 = vmin.f32 %v1699, %v1700
    %v1702 = vsel %vm171, %v1694, inf
    %v1703 = vrot.slane %v1702, 4
    %v1704 = vmin.f32 %v1702, %v1703
    %v1705 = vrot.slane %v1704, 2
    %v1706 = vmin.f32 %v1704, %v1705
    %v1707 = vrot.slane %v1706, 1
    %v1708 = vmin.f32 %v1706, %v1707
    %1709 = vmin.xlane.f32.xlu0 %v1701
    %v1710 = vpop.xlane.xlu0 %1709
    %1711 = vmin.xlane.f32.xlu0 %v1708
    %v1712 = vpop.xlane.xlu0 %1711
    %vm1713 = vcmp.eq.s32.totalorder %v27, 19
    %v1714 = vsel %vm1713, %v1688, %v1635
    %v1715 = vsel %vm1713, %v1690, %v1636
    %v1716 = vsel %vm1713, %v1710, %v1637
    %v1717 = vsel %vm1713, %v1712, %v1638
    %v1718 = vsub.f32 %v1688, %v187
    %v1719 = vsub.f32 %v1690, %v189
    %v1720 = vmul.f32 %v1718, %v22
    %v1721 = vmul.f32 %v1719, %v23
    %v1722 = vmul.f32 %v1720, 1.442695
    %v1723 = vpow.pop %v1722
    %v1724 = vmul.f32 %v1721, 1.442695
    %v1725 = vpow.pop %v1724
    %v1726 = vadd.f32 %v1647, %v1723
    %v1727 = vadd.f32 %v1648, %v1725
    %1729 = vset.pattern.permute.xlu0 1
    %1730 = vperm.xlu0 %1729, %v1726
    %v1731 = vpop.permute.xlu0 %1730
    %v1733 = vlaneseq
    %v1734 = vshrl.u32 %v1733, 7
    %v1735 = vsub.s32 0, %v1734
    %v1736 = vrot.slane %v1731, %v1735
    %1738 = vset.pattern.permute.xlu0 1
    %1739 = vperm.xlu0 %1738, %v1727
    %v1740 = vpop.permute.xlu0 %1739
    %v1742 = vlaneseq
    %v1743 = vshrl.u32 %v1742, 7
    %v1744 = vsub.s32 0, %v1743
    %v1745 = vrot.slane %v1740, %v1744
    %v1746 = vsel %vm1713, %v1736, %v1667
    %v1747 = vsel %vm1713, %v1745, %v1668
    %vm1748 = vcmp.eq.f32.partialorder %v30, %v1710
    %vm1749 = vcmp.eq.f32.partialorder %v30, %v1712
    %v1750 = vsel %vm1748, -inf, %v1671
    %v1751 = vsel %vm1749, -inf, %v1672
    %v1752 = vsel %vm171, %v1750, -inf
    %v1753 = vrot.slane %v1752, 4
    %v1754 = vmax.f32 %v1752, %v1753
    %v1755 = vrot.slane %v1754, 2
    %v1756 = vmax.f32 %v1754, %v1755
    %v1757 = vrot.slane %v1756, 1
    %v1758 = vmax.f32 %v1756, %v1757
    %v1759 = vsel %vm171, %v1751, -inf
    %v1760 = vrot.slane %v1759, 4
    %v1761 = vmax.f32 %v1759, %v1760
    %v1762 = vrot.slane %v1761, 2
    %v1763 = vmax.f32 %v1761, %v1762
    %v1764 = vrot.slane %v1763, 1
    %v1765 = vmax.f32 %v1763, %v1764
    %1766 = vmax.xlane.f32.xlu0 %v1758
    %v1767 = vpop.xlane.xlu0 %1766
    %1768 = vmax.xlane.f32.xlu0 %v1765
    %v1769 = vpop.xlane.xlu0 %1768
    %vm1770 = vcmp.eq.f32.partialorder %v1750, %v1767
    %vm1771 = vcmp.eq.f32.partialorder %v1751, %v1769
    %v1772 = vsel %vm1770, %v30, 512.0
    %v1773 = vsel %vm1771, %v30, 512.0
    %v1774 = vsel %vm171, %v1772, inf
    %v1775 = vrot.slane %v1774, 4
    %v1776 = vmin.f32 %v1774, %v1775
    %v1777 = vrot.slane %v1776, 2
    %v1778 = vmin.f32 %v1776, %v1777
    %v1779 = vrot.slane %v1778, 1
    %v1780 = vmin.f32 %v1778, %v1779
    %v1781 = vsel %vm171, %v1773, inf
    %v1782 = vrot.slane %v1781, 4
    %v1783 = vmin.f32 %v1781, %v1782
    %v1784 = vrot.slane %v1783, 2
    %v1785 = vmin.f32 %v1783, %v1784
    %v1786 = vrot.slane %v1785, 1
    %v1787 = vmin.f32 %v1785, %v1786
    %1788 = vmin.xlane.f32.xlu0 %v1780
    %v1789 = vpop.xlane.xlu0 %1788
    %1790 = vmin.xlane.f32.xlu0 %v1787
    %v1791 = vpop.xlane.xlu0 %1790
    %vm1792 = vcmp.eq.s32.totalorder %v27, 20
    %v1793 = vsel %vm1792, %v1767, %v1714
    %v1794 = vsel %vm1792, %v1769, %v1715
    %v1795 = vsel %vm1792, %v1789, %v1716
    %v1796 = vsel %vm1792, %v1791, %v1717
    %v1797 = vsub.f32 %v1767, %v187
    %v1798 = vsub.f32 %v1769, %v189
    %v1799 = vmul.f32 %v1797, %v22
    %v1800 = vmul.f32 %v1798, %v23
    %v1801 = vmul.f32 %v1799, 1.442695
    %v1802 = vpow.pop %v1801
    %v1803 = vmul.f32 %v1800, 1.442695
    %v1804 = vpow.pop %v1803
    %v1805 = vadd.f32 %v1726, %v1802
    %v1806 = vadd.f32 %v1727, %v1804
    %1808 = vset.pattern.permute.xlu0 1
    %1809 = vperm.xlu0 %1808, %v1805
    %v1810 = vpop.permute.xlu0 %1809
    %v1812 = vlaneseq
    %v1813 = vshrl.u32 %v1812, 7
    %v1814 = vsub.s32 0, %v1813
    %v1815 = vrot.slane %v1810, %v1814
    %1817 = vset.pattern.permute.xlu0 1
    %1818 = vperm.xlu0 %1817, %v1806
    %v1819 = vpop.permute.xlu0 %1818
    %v1821 = vlaneseq
    %v1822 = vshrl.u32 %v1821, 7
    %v1823 = vsub.s32 0, %v1822
    %v1824 = vrot.slane %v1819, %v1823
    %v1825 = vsel %vm1792, %v1815, %v1746
    %v1826 = vsel %vm1792, %v1824, %v1747
    %vm1827 = vcmp.eq.f32.partialorder %v30, %v1789
    %vm1828 = vcmp.eq.f32.partialorder %v30, %v1791
    %v1829 = vsel %vm1827, -inf, %v1750
    %v1830 = vsel %vm1828, -inf, %v1751
    %v1831 = vsel %vm171, %v1829, -inf
    %v1832 = vrot.slane %v1831, 4
    %v1833 = vmax.f32 %v1831, %v1832
    %v1834 = vrot.slane %v1833, 2
    %v1835 = vmax.f32 %v1833, %v1834
    %v1836 = vrot.slane %v1835, 1
    %v1837 = vmax.f32 %v1835, %v1836
    %v1838 = vsel %vm171, %v1830, -inf
    %v1839 = vrot.slane %v1838, 4
    %v1840 = vmax.f32 %v1838, %v1839
    %v1841 = vrot.slane %v1840, 2
    %v1842 = vmax.f32 %v1840, %v1841
    %v1843 = vrot.slane %v1842, 1
    %v1844 = vmax.f32 %v1842, %v1843
    %1845 = vmax.xlane.f32.xlu0 %v1837
    %v1846 = vpop.xlane.xlu0 %1845
    %1847 = vmax.xlane.f32.xlu0 %v1844
    %v1848 = vpop.xlane.xlu0 %1847
    %vm1849 = vcmp.eq.f32.partialorder %v1829, %v1846
    %vm1850 = vcmp.eq.f32.partialorder %v1830, %v1848
    %v1851 = vsel %vm1849, %v30, 512.0
    %v1852 = vsel %vm1850, %v30, 512.0
    %v1853 = vsel %vm171, %v1851, inf
    %v1854 = vrot.slane %v1853, 4
    %v1855 = vmin.f32 %v1853, %v1854
    %v1856 = vrot.slane %v1855, 2
    %v1857 = vmin.f32 %v1855, %v1856
    %v1858 = vrot.slane %v1857, 1
    %v1859 = vmin.f32 %v1857, %v1858
    %v1860 = vsel %vm171, %v1852, inf
    %v1861 = vrot.slane %v1860, 4
    %v1862 = vmin.f32 %v1860, %v1861
    %v1863 = vrot.slane %v1862, 2
    %v1864 = vmin.f32 %v1862, %v1863
    %v1865 = vrot.slane %v1864, 1
    %v1866 = vmin.f32 %v1864, %v1865
    %1867 = vmin.xlane.f32.xlu0 %v1859
    %v1868 = vpop.xlane.xlu0 %1867
    %1869 = vmin.xlane.f32.xlu0 %v1866
    %v1870 = vpop.xlane.xlu0 %1869
    %vm1871 = vcmp.eq.s32.totalorder %v27, 21
    %v1872 = vsel %vm1871, %v1846, %v1793
    %v1873 = vsel %vm1871, %v1848, %v1794
    %v1874 = vsel %vm1871, %v1868, %v1795
    %v1875 = vsel %vm1871, %v1870, %v1796
    %v1876 = vsub.f32 %v1846, %v187
    %v1877 = vsub.f32 %v1848, %v189
    %v1878 = vmul.f32 %v1876, %v22
    %v1879 = vmul.f32 %v1877, %v23
    %v1880 = vmul.f32 %v1878, 1.442695
    %v1881 = vpow.pop %v1880
    %v1882 = vmul.f32 %v1879, 1.442695
    %v1883 = vpow.pop %v1882
    %v1884 = vadd.f32 %v1805, %v1881
    %v1885 = vadd.f32 %v1806, %v1883
    %1887 = vset.pattern.permute.xlu0 1
    %1888 = vperm.xlu0 %1887, %v1884
    %v1889 = vpop.permute.xlu0 %1888
    %v1891 = vlaneseq
    %v1892 = vshrl.u32 %v1891, 7
    %v1893 = vsub.s32 0, %v1892
    %v1894 = vrot.slane %v1889, %v1893
    %1896 = vset.pattern.permute.xlu0 1
    %1897 = vperm.xlu0 %1896, %v1885
    %v1898 = vpop.permute.xlu0 %1897
    %v1900 = vlaneseq
    %v1901 = vshrl.u32 %v1900, 7
    %v1902 = vsub.s32 0, %v1901
    %v1903 = vrot.slane %v1898, %v1902
    %v1904 = vsel %vm1871, %v1894, %v1825
    %v1905 = vsel %vm1871, %v1903, %v1826
    %vm1906 = vcmp.eq.f32.partialorder %v30, %v1868
    %vm1907 = vcmp.eq.f32.partialorder %v30, %v1870
    %v1908 = vsel %vm1906, -inf, %v1829
    %v1909 = vsel %vm1907, -inf, %v1830
    %v1910 = vsel %vm171, %v1908, -inf
    %v1911 = vrot.slane %v1910, 4
    %v1912 = vmax.f32 %v1910, %v1911
    %v1913 = vrot.slane %v1912, 2
    %v1914 = vmax.f32 %v1912, %v1913
    %v1915 = vrot.slane %v1914, 1
    %v1916 = vmax.f32 %v1914, %v1915
    %v1917 = vsel %vm171, %v1909, -inf
    %v1918 = vrot.slane %v1917, 4
    %v1919 = vmax.f32 %v1917, %v1918
    %v1920 = vrot.slane %v1919, 2
    %v1921 = vmax.f32 %v1919, %v1920
    %v1922 = vrot.slane %v1921, 1
    %v1923 = vmax.f32 %v1921, %v1922
    %1924 = vmax.xlane.f32.xlu0 %v1916
    %v1925 = vpop.xlane.xlu0 %1924
    %1926 = vmax.xlane.f32.xlu0 %v1923
    %v1927 = vpop.xlane.xlu0 %1926
    %vm1928 = vcmp.eq.f32.partialorder %v1908, %v1925
    %vm1929 = vcmp.eq.f32.partialorder %v1909, %v1927
    %v1930 = vsel %vm1928, %v30, 512.0
    %v1931 = vsel %vm1929, %v30, 512.0
    %v1932 = vsel %vm171, %v1930, inf
    %v1933 = vrot.slane %v1932, 4
    %v1934 = vmin.f32 %v1932, %v1933
    %v1935 = vrot.slane %v1934, 2
    %v1936 = vmin.f32 %v1934, %v1935
    %v1937 = vrot.slane %v1936, 1
    %v1938 = vmin.f32 %v1936, %v1937
    %v1939 = vsel %vm171, %v1931, inf
    %v1940 = vrot.slane %v1939, 4
    %v1941 = vmin.f32 %v1939, %v1940
    %v1942 = vrot.slane %v1941, 2
    %v1943 = vmin.f32 %v1941, %v1942
    %v1944 = vrot.slane %v1943, 1
    %v1945 = vmin.f32 %v1943, %v1944
    %1946 = vmin.xlane.f32.xlu0 %v1938
    %v1947 = vpop.xlane.xlu0 %1946
    %1948 = vmin.xlane.f32.xlu0 %v1945
    %v1949 = vpop.xlane.xlu0 %1948
    %vm1950 = vcmp.eq.s32.totalorder %v27, 22
    %v1951 = vsel %vm1950, %v1925, %v1872
    %v1952 = vsel %vm1950, %v1927, %v1873
    %v1953 = vsel %vm1950, %v1947, %v1874
    %v1954 = vsel %vm1950, %v1949, %v1875
    %v1955 = vsub.f32 %v1925, %v187
    %v1956 = vsub.f32 %v1927, %v189
    %v1957 = vmul.f32 %v1955, %v22
    %v1958 = vmul.f32 %v1956, %v23
    %v1959 = vmul.f32 %v1957, 1.442695
    %v1960 = vpow.pop %v1959
    %v1961 = vmul.f32 %v1958, 1.442695
    %v1962 = vpow.pop %v1961
    %v1963 = vadd.f32 %v1884, %v1960
    %v1964 = vadd.f32 %v1885, %v1962
    %1966 = vset.pattern.permute.xlu0 1
    %1967 = vperm.xlu0 %1966, %v1963
    %v1968 = vpop.permute.xlu0 %1967
    %v1970 = vlaneseq
    %v1971 = vshrl.u32 %v1970, 7
    %v1972 = vsub.s32 0, %v1971
    %v1973 = vrot.slane %v1968, %v1972
    %1975 = vset.pattern.permute.xlu0 1
    %1976 = vperm.xlu0 %1975, %v1964
    %v1977 = vpop.permute.xlu0 %1976
    %v1979 = vlaneseq
    %v1980 = vshrl.u32 %v1979, 7
    %v1981 = vsub.s32 0, %v1980
    %v1982 = vrot.slane %v1977, %v1981
    %v1983 = vsel %vm1950, %v1973, %v1904
    %v1984 = vsel %vm1950, %v1982, %v1905
    %vm1985 = vcmp.eq.f32.partialorder %v30, %v1947
    %vm1986 = vcmp.eq.f32.partialorder %v30, %v1949
    %v1987 = vsel %vm1985, -inf, %v1908
    %v1988 = vsel %vm1986, -inf, %v1909
    %v1989 = vsel %vm171, %v1987, -inf
    %v1990 = vrot.slane %v1989, 4
    %v1991 = vmax.f32 %v1989, %v1990
    %v1992 = vrot.slane %v1991, 2
    %v1993 = vmax.f32 %v1991, %v1992
    %v1994 = vrot.slane %v1993, 1
    %v1995 = vmax.f32 %v1993, %v1994
    %v1996 = vsel %vm171, %v1988, -inf
    %v1997 = vrot.slane %v1996, 4
    %v1998 = vmax.f32 %v1996, %v1997
    %v1999 = vrot.slane %v1998, 2
    %v2000 = vmax.f32 %v1998, %v1999
    %v2001 = vrot.slane %v2000, 1
    %v2002 = vmax.f32 %v2000, %v2001
    %2003 = vmax.xlane.f32.xlu0 %v1995
    %v2004 = vpop.xlane.xlu0 %2003
    %2005 = vmax.xlane.f32.xlu0 %v2002
    %v2006 = vpop.xlane.xlu0 %2005
    %vm2007 = vcmp.eq.f32.partialorder %v1987, %v2004
    %vm2008 = vcmp.eq.f32.partialorder %v1988, %v2006
    %v2009 = vsel %vm2007, %v30, 512.0
    %v2010 = vsel %vm2008, %v30, 512.0
    %v2011 = vsel %vm171, %v2009, inf
    %v2012 = vrot.slane %v2011, 4
    %v2013 = vmin.f32 %v2011, %v2012
    %v2014 = vrot.slane %v2013, 2
    %v2015 = vmin.f32 %v2013, %v2014
    %v2016 = vrot.slane %v2015, 1
    %v2017 = vmin.f32 %v2015, %v2016
    %v2018 = vsel %vm171, %v2010, inf
    %v2019 = vrot.slane %v2018, 4
    %v2020 = vmin.f32 %v2018, %v2019
    %v2021 = vrot.slane %v2020, 2
    %v2022 = vmin.f32 %v2020, %v2021
    %v2023 = vrot.slane %v2022, 1
    %v2024 = vmin.f32 %v2022, %v2023
    %2025 = vmin.xlane.f32.xlu0 %v2017
    %v2026 = vpop.xlane.xlu0 %2025
    %2027 = vmin.xlane.f32.xlu0 %v2024
    %v2028 = vpop.xlane.xlu0 %2027
    %vm2029 = vcmp.eq.s32.totalorder %v27, 23
    %v2030 = vsel %vm2029, %v2004, %v1951
    %v2031 = vsel %vm2029, %v2006, %v1952
    %v2032 = vsel %vm2029, %v2026, %v1953
    %v2033 = vsel %vm2029, %v2028, %v1954
    %v2034 = vsub.f32 %v2004, %v187
    %v2035 = vsub.f32 %v2006, %v189
    %v2036 = vmul.f32 %v2034, %v22
    %v2037 = vmul.f32 %v2035, %v23
    %v2038 = vmul.f32 %v2036, 1.442695
    %v2039 = vpow.pop %v2038
    %v2040 = vmul.f32 %v2037, 1.442695
    %v2041 = vpow.pop %v2040
    %v2042 = vadd.f32 %v1963, %v2039
    %v2043 = vadd.f32 %v1964, %v2041
    %2045 = vset.pattern.permute.xlu0 1
    %2046 = vperm.xlu0 %2045, %v2042
    %v2047 = vpop.permute.xlu0 %2046
    %v2049 = vlaneseq
    %v2050 = vshrl.u32 %v2049, 7
    %v2051 = vsub.s32 0, %v2050
    %v2052 = vrot.slane %v2047, %v2051
    %2054 = vset.pattern.permute.xlu0 1
    %2055 = vperm.xlu0 %2054, %v2043
    %v2056 = vpop.permute.xlu0 %2055
    %v2058 = vlaneseq
    %v2059 = vshrl.u32 %v2058, 7
    %v2060 = vsub.s32 0, %v2059
    %v2061 = vrot.slane %v2056, %v2060
    %v2062 = vsel %vm2029, %v2052, %v1983
    %v2063 = vsel %vm2029, %v2061, %v1984
    %vm2064 = vcmp.eq.f32.partialorder %v30, %v2026
    %vm2065 = vcmp.eq.f32.partialorder %v30, %v2028
    %v2066 = vsel %vm2064, -inf, %v1987
    %v2067 = vsel %vm2065, -inf, %v1988
    %v2068 = vsel %vm171, %v2066, -inf
    %v2069 = vrot.slane %v2068, 4
    %v2070 = vmax.f32 %v2068, %v2069
    %v2071 = vrot.slane %v2070, 2
    %v2072 = vmax.f32 %v2070, %v2071
    %v2073 = vrot.slane %v2072, 1
    %v2074 = vmax.f32 %v2072, %v2073
    %v2075 = vsel %vm171, %v2067, -inf
    %v2076 = vrot.slane %v2075, 4
    %v2077 = vmax.f32 %v2075, %v2076
    %v2078 = vrot.slane %v2077, 2
    %v2079 = vmax.f32 %v2077, %v2078
    %v2080 = vrot.slane %v2079, 1
    %v2081 = vmax.f32 %v2079, %v2080
    %2082 = vmax.xlane.f32.xlu0 %v2074
    %v2083 = vpop.xlane.xlu0 %2082
    %2084 = vmax.xlane.f32.xlu0 %v2081
    %v2085 = vpop.xlane.xlu0 %2084
    %vm2086 = vcmp.eq.f32.partialorder %v2066, %v2083
    %vm2087 = vcmp.eq.f32.partialorder %v2067, %v2085
    %v2088 = vsel %vm2086, %v30, 512.0
    %v2089 = vsel %vm2087, %v30, 512.0
    %v2090 = vsel %vm171, %v2088, inf
    %v2091 = vrot.slane %v2090, 4
    %v2092 = vmin.f32 %v2090, %v2091
    %v2093 = vrot.slane %v2092, 2
    %v2094 = vmin.f32 %v2092, %v2093
    %v2095 = vrot.slane %v2094, 1
    %v2096 = vmin.f32 %v2094, %v2095
    %v2097 = vsel %vm171, %v2089, inf
    %v2098 = vrot.slane %v2097, 4
    %v2099 = vmin.f32 %v2097, %v2098
    %v2100 = vrot.slane %v2099, 2
    %v2101 = vmin.f32 %v2099, %v2100
    %v2102 = vrot.slane %v2101, 1
    %v2103 = vmin.f32 %v2101, %v2102
    %2104 = vmin.xlane.f32.xlu0 %v2096
    %v2105 = vpop.xlane.xlu0 %2104
    %2106 = vmin.xlane.f32.xlu0 %v2103
    %v2107 = vpop.xlane.xlu0 %2106
    %vm2108 = vcmp.eq.s32.totalorder %v27, 24
    %v2109 = vsel %vm2108, %v2083, %v2030
    %v2110 = vsel %vm2108, %v2085, %v2031
    %v2111 = vsel %vm2108, %v2105, %v2032
    %v2112 = vsel %vm2108, %v2107, %v2033
    %v2113 = vsub.f32 %v2083, %v187
    %v2114 = vsub.f32 %v2085, %v189
    %v2115 = vmul.f32 %v2113, %v22
    %v2116 = vmul.f32 %v2114, %v23
    %v2117 = vmul.f32 %v2115, 1.442695
    %v2118 = vpow.pop %v2117
    %v2119 = vmul.f32 %v2116, 1.442695
    %v2120 = vpow.pop %v2119
    %v2121 = vadd.f32 %v2042, %v2118
    %v2122 = vadd.f32 %v2043, %v2120
    %2124 = vset.pattern.permute.xlu0 1
    %2125 = vperm.xlu0 %2124, %v2121
    %v2126 = vpop.permute.xlu0 %2125
    %v2128 = vlaneseq
    %v2129 = vshrl.u32 %v2128, 7
    %v2130 = vsub.s32 0, %v2129
    %v2131 = vrot.slane %v2126, %v2130
    %2133 = vset.pattern.permute.xlu0 1
    %2134 = vperm.xlu0 %2133, %v2122
    %v2135 = vpop.permute.xlu0 %2134
    %v2137 = vlaneseq
    %v2138 = vshrl.u32 %v2137, 7
    %v2139 = vsub.s32 0, %v2138
    %v2140 = vrot.slane %v2135, %v2139
    %v2141 = vsel %vm2108, %v2131, %v2062
    %v2142 = vsel %vm2108, %v2140, %v2063
    %vm2143 = vcmp.eq.f32.partialorder %v30, %v2105
    %vm2144 = vcmp.eq.f32.partialorder %v30, %v2107
    %v2145 = vsel %vm2143, -inf, %v2066
    %v2146 = vsel %vm2144, -inf, %v2067
    %v2147 = vsel %vm171, %v2145, -inf
    %v2148 = vrot.slane %v2147, 4
    %v2149 = vmax.f32 %v2147, %v2148
    %v2150 = vrot.slane %v2149, 2
    %v2151 = vmax.f32 %v2149, %v2150
    %v2152 = vrot.slane %v2151, 1
    %v2153 = vmax.f32 %v2151, %v2152
    %v2154 = vsel %vm171, %v2146, -inf
    %v2155 = vrot.slane %v2154, 4
    %v2156 = vmax.f32 %v2154, %v2155
    %v2157 = vrot.slane %v2156, 2
    %v2158 = vmax.f32 %v2156, %v2157
    %v2159 = vrot.slane %v2158, 1
    %v2160 = vmax.f32 %v2158, %v2159
    %2161 = vmax.xlane.f32.xlu0 %v2153
    %v2162 = vpop.xlane.xlu0 %2161
    %2163 = vmax.xlane.f32.xlu0 %v2160
    %v2164 = vpop.xlane.xlu0 %2163
    %vm2165 = vcmp.eq.f32.partialorder %v2145, %v2162
    %vm2166 = vcmp.eq.f32.partialorder %v2146, %v2164
    %v2167 = vsel %vm2165, %v30, 512.0
    %v2168 = vsel %vm2166, %v30, 512.0
    %v2169 = vsel %vm171, %v2167, inf
    %v2170 = vrot.slane %v2169, 4
    %v2171 = vmin.f32 %v2169, %v2170
    %v2172 = vrot.slane %v2171, 2
    %v2173 = vmin.f32 %v2171, %v2172
    %v2174 = vrot.slane %v2173, 1
    %v2175 = vmin.f32 %v2173, %v2174
    %v2176 = vsel %vm171, %v2168, inf
    %v2177 = vrot.slane %v2176, 4
    %v2178 = vmin.f32 %v2176, %v2177
    %v2179 = vrot.slane %v2178, 2
    %v2180 = vmin.f32 %v2178, %v2179
    %v2181 = vrot.slane %v2180, 1
    %v2182 = vmin.f32 %v2180, %v2181
    %2183 = vmin.xlane.f32.xlu0 %v2175
    %v2184 = vpop.xlane.xlu0 %2183
    %2185 = vmin.xlane.f32.xlu0 %v2182
    %v2186 = vpop.xlane.xlu0 %2185
    %vm2187 = vcmp.eq.s32.totalorder %v27, 25
    %v2188 = vsel %vm2187, %v2162, %v2109
    %v2189 = vsel %vm2187, %v2164, %v2110
    %v2190 = vsel %vm2187, %v2184, %v2111
    %v2191 = vsel %vm2187, %v2186, %v2112
    %v2192 = vsub.f32 %v2162, %v187
    %v2193 = vsub.f32 %v2164, %v189
    %v2194 = vmul.f32 %v2192, %v22
    %v2195 = vmul.f32 %v2193, %v23
    %v2196 = vmul.f32 %v2194, 1.442695
    %v2197 = vpow.pop %v2196
    %v2198 = vmul.f32 %v2195, 1.442695
    %v2199 = vpow.pop %v2198
    %v2200 = vadd.f32 %v2121, %v2197
    %v2201 = vadd.f32 %v2122, %v2199
    %2203 = vset.pattern.permute.xlu0 1
    %2204 = vperm.xlu0 %2203, %v2200
    %v2205 = vpop.permute.xlu0 %2204
    %v2207 = vlaneseq
    %v2208 = vshrl.u32 %v2207, 7
    %v2209 = vsub.s32 0, %v2208
    %v2210 = vrot.slane %v2205, %v2209
    %2212 = vset.pattern.permute.xlu0 1
    %2213 = vperm.xlu0 %2212, %v2201
    %v2214 = vpop.permute.xlu0 %2213
    %v2216 = vlaneseq
    %v2217 = vshrl.u32 %v2216, 7
    %v2218 = vsub.s32 0, %v2217
    %v2219 = vrot.slane %v2214, %v2218
    %v2220 = vsel %vm2187, %v2210, %v2141
    %v2221 = vsel %vm2187, %v2219, %v2142
    %vm2222 = vcmp.eq.f32.partialorder %v30, %v2184
    %vm2223 = vcmp.eq.f32.partialorder %v30, %v2186
    %v2224 = vsel %vm2222, -inf, %v2145
    %v2225 = vsel %vm2223, -inf, %v2146
    %v2226 = vsel %vm171, %v2224, -inf
    %v2227 = vrot.slane %v2226, 4
    %v2228 = vmax.f32 %v2226, %v2227
    %v2229 = vrot.slane %v2228, 2
    %v2230 = vmax.f32 %v2228, %v2229
    %v2231 = vrot.slane %v2230, 1
    %v2232 = vmax.f32 %v2230, %v2231
    %v2233 = vsel %vm171, %v2225, -inf
    %v2234 = vrot.slane %v2233, 4
    %v2235 = vmax.f32 %v2233, %v2234
    %v2236 = vrot.slane %v2235, 2
    %v2237 = vmax.f32 %v2235, %v2236
    %v2238 = vrot.slane %v2237, 1
    %v2239 = vmax.f32 %v2237, %v2238
    %2240 = vmax.xlane.f32.xlu0 %v2232
    %v2241 = vpop.xlane.xlu0 %2240
    %2242 = vmax.xlane.f32.xlu0 %v2239
    %v2243 = vpop.xlane.xlu0 %2242
    %vm2244 = vcmp.eq.f32.partialorder %v2224, %v2241
    %vm2245 = vcmp.eq.f32.partialorder %v2225, %v2243
    %v2246 = vsel %vm2244, %v30, 512.0
    %v2247 = vsel %vm2245, %v30, 512.0
    %v2248 = vsel %vm171, %v2246, inf
    %v2249 = vrot.slane %v2248, 4
    %v2250 = vmin.f32 %v2248, %v2249
    %v2251 = vrot.slane %v2250, 2
    %v2252 = vmin.f32 %v2250, %v2251
    %v2253 = vrot.slane %v2252, 1
    %v2254 = vmin.f32 %v2252, %v2253
    %v2255 = vsel %vm171, %v2247, inf
    %v2256 = vrot.slane %v2255, 4
    %v2257 = vmin.f32 %v2255, %v2256
    %v2258 = vrot.slane %v2257, 2
    %v2259 = vmin.f32 %v2257, %v2258
    %v2260 = vrot.slane %v2259, 1
    %v2261 = vmin.f32 %v2259, %v2260
    %2262 = vmin.xlane.f32.xlu0 %v2254
    %v2263 = vpop.xlane.xlu0 %2262
    %2264 = vmin.xlane.f32.xlu0 %v2261
    %v2265 = vpop.xlane.xlu0 %2264
    %vm2266 = vcmp.eq.s32.totalorder %v27, 26
    %v2267 = vsel %vm2266, %v2241, %v2188
    %v2268 = vsel %vm2266, %v2243, %v2189
    %v2269 = vsel %vm2266, %v2263, %v2190
    %v2270 = vsel %vm2266, %v2265, %v2191
    %v2271 = vsub.f32 %v2241, %v187
    %v2272 = vsub.f32 %v2243, %v189
    %v2273 = vmul.f32 %v2271, %v22
    %v2274 = vmul.f32 %v2272, %v23
    %v2275 = vmul.f32 %v2273, 1.442695
    %v2276 = vpow.pop %v2275
    %v2277 = vmul.f32 %v2274, 1.442695
    %v2278 = vpow.pop %v2277
    %v2279 = vadd.f32 %v2200, %v2276
    %v2280 = vadd.f32 %v2201, %v2278
    %2282 = vset.pattern.permute.xlu0 1
    %2283 = vperm.xlu0 %2282, %v2279
    %v2284 = vpop.permute.xlu0 %2283
    %v2286 = vlaneseq
    %v2287 = vshrl.u32 %v2286, 7
    %v2288 = vsub.s32 0, %v2287
    %v2289 = vrot.slane %v2284, %v2288
    %2291 = vset.pattern.permute.xlu0 1
    %2292 = vperm.xlu0 %2291, %v2280
    %v2293 = vpop.permute.xlu0 %2292
    %v2295 = vlaneseq
    %v2296 = vshrl.u32 %v2295, 7
    %v2297 = vsub.s32 0, %v2296
    %v2298 = vrot.slane %v2293, %v2297
    %v2299 = vsel %vm2266, %v2289, %v2220
    %v2300 = vsel %vm2266, %v2298, %v2221
    %vm2301 = vcmp.eq.f32.partialorder %v30, %v2263
    %vm2302 = vcmp.eq.f32.partialorder %v30, %v2265
    %v2303 = vsel %vm2301, -inf, %v2224
    %v2304 = vsel %vm2302, -inf, %v2225
    %v2305 = vsel %vm171, %v2303, -inf
    %v2306 = vrot.slane %v2305, 4
    %v2307 = vmax.f32 %v2305, %v2306
    %v2308 = vrot.slane %v2307, 2
    %v2309 = vmax.f32 %v2307, %v2308
    %v2310 = vrot.slane %v2309, 1
    %v2311 = vmax.f32 %v2309, %v2310
    %v2312 = vsel %vm171, %v2304, -inf
    %v2313 = vrot.slane %v2312, 4
    %v2314 = vmax.f32 %v2312, %v2313
    %v2315 = vrot.slane %v2314, 2
    %v2316 = vmax.f32 %v2314, %v2315
    %v2317 = vrot.slane %v2316, 1
    %v2318 = vmax.f32 %v2316, %v2317
    %2319 = vmax.xlane.f32.xlu0 %v2311
    %v2320 = vpop.xlane.xlu0 %2319
    %2321 = vmax.xlane.f32.xlu0 %v2318
    %v2322 = vpop.xlane.xlu0 %2321
    %vm2323 = vcmp.eq.f32.partialorder %v2303, %v2320
    %vm2324 = vcmp.eq.f32.partialorder %v2304, %v2322
    %v2325 = vsel %vm2323, %v30, 512.0
    %v2326 = vsel %vm2324, %v30, 512.0
    %v2327 = vsel %vm171, %v2325, inf
    %v2328 = vrot.slane %v2327, 4
    %v2329 = vmin.f32 %v2327, %v2328
    %v2330 = vrot.slane %v2329, 2
    %v2331 = vmin.f32 %v2329, %v2330
    %v2332 = vrot.slane %v2331, 1
    %v2333 = vmin.f32 %v2331, %v2332
    %v2334 = vsel %vm171, %v2326, inf
    %v2335 = vrot.slane %v2334, 4
    %v2336 = vmin.f32 %v2334, %v2335
    %v2337 = vrot.slane %v2336, 2
    %v2338 = vmin.f32 %v2336, %v2337
    %v2339 = vrot.slane %v2338, 1
    %v2340 = vmin.f32 %v2338, %v2339
    %2341 = vmin.xlane.f32.xlu0 %v2333
    %v2342 = vpop.xlane.xlu0 %2341
    %2343 = vmin.xlane.f32.xlu0 %v2340
    %v2344 = vpop.xlane.xlu0 %2343
    %vm2345 = vcmp.eq.s32.totalorder %v27, 27
    %v2346 = vsel %vm2345, %v2320, %v2267
    %v2347 = vsel %vm2345, %v2322, %v2268
    %v2348 = vsel %vm2345, %v2342, %v2269
    %v2349 = vsel %vm2345, %v2344, %v2270
    %v2350 = vsub.f32 %v2320, %v187
    %v2351 = vsub.f32 %v2322, %v189
    %v2352 = vmul.f32 %v2350, %v22
    %v2353 = vmul.f32 %v2351, %v23
    %v2354 = vmul.f32 %v2352, 1.442695
    %v2355 = vpow.pop %v2354
    %v2356 = vmul.f32 %v2353, 1.442695
    %v2357 = vpow.pop %v2356
    %v2358 = vadd.f32 %v2279, %v2355
    %v2359 = vadd.f32 %v2280, %v2357
    %2361 = vset.pattern.permute.xlu0 1
    %2362 = vperm.xlu0 %2361, %v2358
    %v2363 = vpop.permute.xlu0 %2362
    %v2365 = vlaneseq
    %v2366 = vshrl.u32 %v2365, 7
    %v2367 = vsub.s32 0, %v2366
    %v2368 = vrot.slane %v2363, %v2367
    %2370 = vset.pattern.permute.xlu0 1
    %2371 = vperm.xlu0 %2370, %v2359
    %v2372 = vpop.permute.xlu0 %2371
    %v2374 = vlaneseq
    %v2375 = vshrl.u32 %v2374, 7
    %v2376 = vsub.s32 0, %v2375
    %v2377 = vrot.slane %v2372, %v2376
    %v2378 = vsel %vm2345, %v2368, %v2299
    %v2379 = vsel %vm2345, %v2377, %v2300
    %vm2380 = vcmp.eq.f32.partialorder %v30, %v2342
    %vm2381 = vcmp.eq.f32.partialorder %v30, %v2344
    %v2382 = vsel %vm2380, -inf, %v2303
    %v2383 = vsel %vm2381, -inf, %v2304
    %v2384 = vsel %vm171, %v2382, -inf
    %v2385 = vrot.slane %v2384, 4
    %v2386 = vmax.f32 %v2384, %v2385
    %v2387 = vrot.slane %v2386, 2
    %v2388 = vmax.f32 %v2386, %v2387
    %v2389 = vrot.slane %v2388, 1
    %v2390 = vmax.f32 %v2388, %v2389
    %v2391 = vsel %vm171, %v2383, -inf
    %v2392 = vrot.slane %v2391, 4
    %v2393 = vmax.f32 %v2391, %v2392
    %v2394 = vrot.slane %v2393, 2
    %v2395 = vmax.f32 %v2393, %v2394
    %v2396 = vrot.slane %v2395, 1
    %v2397 = vmax.f32 %v2395, %v2396
    %2398 = vmax.xlane.f32.xlu0 %v2390
    %v2399 = vpop.xlane.xlu0 %2398
    %2400 = vmax.xlane.f32.xlu0 %v2397
    %v2401 = vpop.xlane.xlu0 %2400
    %vm2402 = vcmp.eq.f32.partialorder %v2382, %v2399
    %vm2403 = vcmp.eq.f32.partialorder %v2383, %v2401
    %v2404 = vsel %vm2402, %v30, 512.0
    %v2405 = vsel %vm2403, %v30, 512.0
    %v2406 = vsel %vm171, %v2404, inf
    %v2407 = vrot.slane %v2406, 4
    %v2408 = vmin.f32 %v2406, %v2407
    %v2409 = vrot.slane %v2408, 2
    %v2410 = vmin.f32 %v2408, %v2409
    %v2411 = vrot.slane %v2410, 1
    %v2412 = vmin.f32 %v2410, %v2411
    %v2413 = vsel %vm171, %v2405, inf
    %v2414 = vrot.slane %v2413, 4
    %v2415 = vmin.f32 %v2413, %v2414
    %v2416 = vrot.slane %v2415, 2
    %v2417 = vmin.f32 %v2415, %v2416
    %v2418 = vrot.slane %v2417, 1
    %v2419 = vmin.f32 %v2417, %v2418
    %2420 = vmin.xlane.f32.xlu0 %v2412
    %v2421 = vpop.xlane.xlu0 %2420
    %2422 = vmin.xlane.f32.xlu0 %v2419
    %v2423 = vpop.xlane.xlu0 %2422
    %vm2424 = vcmp.eq.s32.totalorder %v27, 28
    %v2425 = vsel %vm2424, %v2399, %v2346
    %v2426 = vsel %vm2424, %v2401, %v2347
    %v2427 = vsel %vm2424, %v2421, %v2348
    %v2428 = vsel %vm2424, %v2423, %v2349
    %v2429 = vsub.f32 %v2399, %v187
    %v2430 = vsub.f32 %v2401, %v189
    %v2431 = vmul.f32 %v2429, %v22
    %v2432 = vmul.f32 %v2430, %v23
    %v2433 = vmul.f32 %v2431, 1.442695
    %v2434 = vpow.pop %v2433
    %v2435 = vmul.f32 %v2432, 1.442695
    %v2436 = vpow.pop %v2435
    %v2437 = vadd.f32 %v2358, %v2434
    %v2438 = vadd.f32 %v2359, %v2436
    %2440 = vset.pattern.permute.xlu0 1
    %2441 = vperm.xlu0 %2440, %v2437
    %v2442 = vpop.permute.xlu0 %2441
    %v2444 = vlaneseq
    %v2445 = vshrl.u32 %v2444, 7
    %v2446 = vsub.s32 0, %v2445
    %v2447 = vrot.slane %v2442, %v2446
    %2449 = vset.pattern.permute.xlu0 1
    %2450 = vperm.xlu0 %2449, %v2438
    %v2451 = vpop.permute.xlu0 %2450
    %v2453 = vlaneseq
    %v2454 = vshrl.u32 %v2453, 7
    %v2455 = vsub.s32 0, %v2454
    %v2456 = vrot.slane %v2451, %v2455
    %v2457 = vsel %vm2424, %v2447, %v2378
    %v2458 = vsel %vm2424, %v2456, %v2379
    %vm2459 = vcmp.eq.f32.partialorder %v30, %v2421
    %vm2460 = vcmp.eq.f32.partialorder %v30, %v2423
    %v2461 = vsel %vm2459, -inf, %v2382
    %v2462 = vsel %vm2460, -inf, %v2383
    %v2463 = vsel %vm171, %v2461, -inf
    %v2464 = vrot.slane %v2463, 4
    %v2465 = vmax.f32 %v2463, %v2464
    %v2466 = vrot.slane %v2465, 2
    %v2467 = vmax.f32 %v2465, %v2466
    %v2468 = vrot.slane %v2467, 1
    %v2469 = vmax.f32 %v2467, %v2468
    %v2470 = vsel %vm171, %v2462, -inf
    %v2471 = vrot.slane %v2470, 4
    %v2472 = vmax.f32 %v2470, %v2471
    %v2473 = vrot.slane %v2472, 2
    %v2474 = vmax.f32 %v2472, %v2473
    %v2475 = vrot.slane %v2474, 1
    %v2476 = vmax.f32 %v2474, %v2475
    %2477 = vmax.xlane.f32.xlu0 %v2469
    %v2478 = vpop.xlane.xlu0 %2477
    %2479 = vmax.xlane.f32.xlu0 %v2476
    %v2480 = vpop.xlane.xlu0 %2479
    %vm2481 = vcmp.eq.f32.partialorder %v2461, %v2478
    %vm2482 = vcmp.eq.f32.partialorder %v2462, %v2480
    %v2483 = vsel %vm2481, %v30, 512.0
    %v2484 = vsel %vm2482, %v30, 512.0
    %v2485 = vsel %vm171, %v2483, inf
    %v2486 = vrot.slane %v2485, 4
    %v2487 = vmin.f32 %v2485, %v2486
    %v2488 = vrot.slane %v2487, 2
    %v2489 = vmin.f32 %v2487, %v2488
    %v2490 = vrot.slane %v2489, 1
    %v2491 = vmin.f32 %v2489, %v2490
    %v2492 = vsel %vm171, %v2484, inf
    %v2493 = vrot.slane %v2492, 4
    %v2494 = vmin.f32 %v2492, %v2493
    %v2495 = vrot.slane %v2494, 2
    %v2496 = vmin.f32 %v2494, %v2495
    %v2497 = vrot.slane %v2496, 1
    %v2498 = vmin.f32 %v2496, %v2497
    %2499 = vmin.xlane.f32.xlu0 %v2491
    %v2500 = vpop.xlane.xlu0 %2499
    %2501 = vmin.xlane.f32.xlu0 %v2498
    %v2502 = vpop.xlane.xlu0 %2501
    %vm2503 = vcmp.eq.s32.totalorder %v27, 29
    %v2504 = vsel %vm2503, %v2478, %v2425
    %v2505 = vsel %vm2503, %v2480, %v2426
    %v2506 = vsel %vm2503, %v2500, %v2427
    %v2507 = vsel %vm2503, %v2502, %v2428
    %v2508 = vsub.f32 %v2478, %v187
    %v2509 = vsub.f32 %v2480, %v189
    %v2510 = vmul.f32 %v2508, %v22
    %v2511 = vmul.f32 %v2509, %v23
    %v2512 = vmul.f32 %v2510, 1.442695
    %v2513 = vpow.pop %v2512
    %v2514 = vmul.f32 %v2511, 1.442695
    %v2515 = vpow.pop %v2514
    %v2516 = vadd.f32 %v2437, %v2513
    %v2517 = vadd.f32 %v2438, %v2515
    %2519 = vset.pattern.permute.xlu0 1
    %2520 = vperm.xlu0 %2519, %v2516
    %v2521 = vpop.permute.xlu0 %2520
    %v2523 = vlaneseq
    %v2524 = vshrl.u32 %v2523, 7
    %v2525 = vsub.s32 0, %v2524
    %v2526 = vrot.slane %v2521, %v2525
    %2528 = vset.pattern.permute.xlu0 1
    %2529 = vperm.xlu0 %2528, %v2517
    %v2530 = vpop.permute.xlu0 %2529
    %v2532 = vlaneseq
    %v2533 = vshrl.u32 %v2532, 7
    %v2534 = vsub.s32 0, %v2533
    %v2535 = vrot.slane %v2530, %v2534
    %v2536 = vsel %vm2503, %v2526, %v2457
    %v2537 = vsel %vm2503, %v2535, %v2458
    %vm2538 = vcmp.eq.f32.partialorder %v30, %v2500
    %vm2539 = vcmp.eq.f32.partialorder %v30, %v2502
    %v2540 = vsel %vm2538, -inf, %v2461
    %v2541 = vsel %vm2539, -inf, %v2462
    %v2542 = vsel %vm171, %v2540, -inf
    %v2543 = vrot.slane %v2542, 4
    %v2544 = vmax.f32 %v2542, %v2543
    %v2545 = vrot.slane %v2544, 2
    %v2546 = vmax.f32 %v2544, %v2545
    %v2547 = vrot.slane %v2546, 1
    %v2548 = vmax.f32 %v2546, %v2547
    %v2549 = vsel %vm171, %v2541, -inf
    %v2550 = vrot.slane %v2549, 4
    %v2551 = vmax.f32 %v2549, %v2550
    %v2552 = vrot.slane %v2551, 2
    %v2553 = vmax.f32 %v2551, %v2552
    %v2554 = vrot.slane %v2553, 1
    %v2555 = vmax.f32 %v2553, %v2554
    %2556 = vmax.xlane.f32.xlu0 %v2548
    %v2557 = vpop.xlane.xlu0 %2556
    %2558 = vmax.xlane.f32.xlu0 %v2555
    %v2559 = vpop.xlane.xlu0 %2558
    %vm2560 = vcmp.eq.f32.partialorder %v2540, %v2557
    %vm2561 = vcmp.eq.f32.partialorder %v2541, %v2559
    %v2562 = vsel %vm2560, %v30, 512.0
    %v2563 = vsel %vm2561, %v30, 512.0
    %v2564 = vsel %vm171, %v2562, inf
    %v2565 = vrot.slane %v2564, 4
    %v2566 = vmin.f32 %v2564, %v2565
    %v2567 = vrot.slane %v2566, 2
    %v2568 = vmin.f32 %v2566, %v2567
    %v2569 = vrot.slane %v2568, 1
    %v2570 = vmin.f32 %v2568, %v2569
    %v2571 = vsel %vm171, %v2563, inf
    %v2572 = vrot.slane %v2571, 4
    %v2573 = vmin.f32 %v2571, %v2572
    %v2574 = vrot.slane %v2573, 2
    %v2575 = vmin.f32 %v2573, %v2574
    %v2576 = vrot.slane %v2575, 1
    %v2577 = vmin.f32 %v2575, %v2576
    %2578 = vmin.xlane.f32.xlu0 %v2570
    %v2579 = vpop.xlane.xlu0 %2578
    %2580 = vmin.xlane.f32.xlu0 %v2577
    %v2581 = vpop.xlane.xlu0 %2580
    %vm2582 = vcmp.eq.s32.totalorder %v27, 30
    %v2583 = vsel %vm2582, %v2557, %v2504
    %v2584 = vsel %vm2582, %v2559, %v2505
    %v2585 = vsel %vm2582, %v2579, %v2506
    %v2586 = vsel %vm2582, %v2581, %v2507
    %v2587 = vsub.f32 %v2557, %v187
    %v2588 = vsub.f32 %v2559, %v189
    %v2589 = vmul.f32 %v2587, %v22
    %v2590 = vmul.f32 %v2588, %v23
    %v2591 = vmul.f32 %v2589, 1.442695
    %v2592 = vpow.pop %v2591
    %v2593 = vmul.f32 %v2590, 1.442695
    %v2594 = vpow.pop %v2593
    %v2595 = vadd.f32 %v2516, %v2592
    %v2596 = vadd.f32 %v2517, %v2594
    %2598 = vset.pattern.permute.xlu0 1
    %2599 = vperm.xlu0 %2598, %v2595
    %v2600 = vpop.permute.xlu0 %2599
    %v2602 = vlaneseq
    %v2603 = vshrl.u32 %v2602, 7
    %v2604 = vsub.s32 0, %v2603
    %v2605 = vrot.slane %v2600, %v2604
    %2607 = vset.pattern.permute.xlu0 1
    %2608 = vperm.xlu0 %2607, %v2596
    %v2609 = vpop.permute.xlu0 %2608
    %v2611 = vlaneseq
    %v2612 = vshrl.u32 %v2611, 7
    %v2613 = vsub.s32 0, %v2612
    %v2614 = vrot.slane %v2609, %v2613
    %v2615 = vsel %vm2582, %v2605, %v2536
    %v2616 = vsel %vm2582, %v2614, %v2537
    %vm2617 = vcmp.eq.f32.partialorder %v30, %v2579
    %vm2618 = vcmp.eq.f32.partialorder %v30, %v2581
    %v2619 = vsel %vm2617, -inf, %v2540
    %v2620 = vsel %vm2618, -inf, %v2541
    %v2621 = vsel %vm171, %v2619, -inf
    %v2622 = vrot.slane %v2621, 4
    %v2623 = vmax.f32 %v2621, %v2622
    %v2624 = vrot.slane %v2623, 2
    %v2625 = vmax.f32 %v2623, %v2624
    %v2626 = vrot.slane %v2625, 1
    %v2627 = vmax.f32 %v2625, %v2626
    %v2628 = vsel %vm171, %v2620, -inf
    %v2629 = vrot.slane %v2628, 4
    %v2630 = vmax.f32 %v2628, %v2629
    %v2631 = vrot.slane %v2630, 2
    %v2632 = vmax.f32 %v2630, %v2631
    %v2633 = vrot.slane %v2632, 1
    %v2634 = vmax.f32 %v2632, %v2633
    %2635 = vmax.xlane.f32.xlu0 %v2627
    %v2636 = vpop.xlane.xlu0 %2635
    %2637 = vmax.xlane.f32.xlu0 %v2634
    %v2638 = vpop.xlane.xlu0 %2637
    %vm2639 = vcmp.eq.f32.partialorder %v2619, %v2636
    %vm2640 = vcmp.eq.f32.partialorder %v2620, %v2638
    %v2641 = vsel %vm2639, %v30, 512.0
    %v2642 = vsel %vm2640, %v30, 512.0
    %v2643 = vsel %vm171, %v2641, inf
    %v2644 = vrot.slane %v2643, 4
    %v2645 = vmin.f32 %v2643, %v2644
    %v2646 = vrot.slane %v2645, 2
    %v2647 = vmin.f32 %v2645, %v2646
    %v2648 = vrot.slane %v2647, 1
    %v2649 = vmin.f32 %v2647, %v2648
    %v2650 = vsel %vm171, %v2642, inf
    %v2651 = vrot.slane %v2650, 4
    %v2652 = vmin.f32 %v2650, %v2651
    %v2653 = vrot.slane %v2652, 2
    %v2654 = vmin.f32 %v2652, %v2653
    %v2655 = vrot.slane %v2654, 1
    %v2656 = vmin.f32 %v2654, %v2655
    %2657 = vmin.xlane.f32.xlu0 %v2649
    %v2658 = vpop.xlane.xlu0 %2657
    %2659 = vmin.xlane.f32.xlu0 %v2656
    %v2660 = vpop.xlane.xlu0 %2659
    %vm2661 = vcmp.eq.s32.totalorder %v27, 31
    %v2662 = vsel %vm2661, %v2636, %v2583
    %v2663 = vsel %vm2661, %v2638, %v2584
    %v2664 = vsel %vm2661, %v2658, %v2585
    %v2665 = vsel %vm2661, %v2660, %v2586
    %v2666 = vsub.f32 %v2636, %v187
    %v2667 = vsub.f32 %v2638, %v189
    %v2668 = vmul.f32 %v2666, %v22
    %v2669 = vmul.f32 %v2667, %v23
    %v2670 = vmul.f32 %v2668, 1.442695
    %v2671 = vpow.pop %v2670
    %v2672 = vmul.f32 %v2669, 1.442695
    %v2673 = vpow.pop %v2672
    %v2674 = vadd.f32 %v2595, %v2671
    %v2675 = vadd.f32 %v2596, %v2673
    %2677 = vset.pattern.permute.xlu0 1
    %2678 = vperm.xlu0 %2677, %v2674
    %v2679 = vpop.permute.xlu0 %2678
    %v2681 = vlaneseq
    %v2682 = vshrl.u32 %v2681, 7
    %v2683 = vsub.s32 0, %v2682
    %v2684 = vrot.slane %v2679, %v2683
    %2686 = vset.pattern.permute.xlu0 1
    %2687 = vperm.xlu0 %2686, %v2675
    %v2688 = vpop.permute.xlu0 %2687
    %v2690 = vlaneseq
    %v2691 = vshrl.u32 %v2690, 7
    %v2692 = vsub.s32 0, %v2691
    %v2693 = vrot.slane %v2688, %v2692
    %v2694 = vsel %vm2661, %v2684, %v2615
    %v2695 = vsel %vm2661, %v2693, %v2616
    %vm2696 = vcmp.eq.f32.partialorder %v30, %v2658
    %vm2697 = vcmp.eq.f32.partialorder %v30, %v2660
    %v2698 = vsel %vm2696, -inf, %v2619
    %v2699 = vsel %vm2697, -inf, %v2620
    %v2700 = vsel %vm171, %v2698, -inf
    %v2701 = vrot.slane %v2700, 4
    %v2702 = vmax.f32 %v2700, %v2701
    %v2703 = vrot.slane %v2702, 2
    %v2704 = vmax.f32 %v2702, %v2703
    %v2705 = vrot.slane %v2704, 1
    %v2706 = vmax.f32 %v2704, %v2705
    %v2707 = vsel %vm171, %v2699, -inf
    %v2708 = vrot.slane %v2707, 4
    %v2709 = vmax.f32 %v2707, %v2708
    %v2710 = vrot.slane %v2709, 2
    %v2711 = vmax.f32 %v2709, %v2710
    %v2712 = vrot.slane %v2711, 1
    %v2713 = vmax.f32 %v2711, %v2712
    %2714 = vmax.xlane.f32.xlu0 %v2706
    %v2715 = vpop.xlane.xlu0 %2714
    %2716 = vmax.xlane.f32.xlu0 %v2713
    %v2717 = vpop.xlane.xlu0 %2716
    %vm2718 = vcmp.eq.f32.partialorder %v2698, %v2715
    %vm2719 = vcmp.eq.f32.partialorder %v2699, %v2717
    %v2720 = vsel %vm2718, %v30, 512.0
    %v2721 = vsel %vm2719, %v30, 512.0
    %v2722 = vsel %vm171, %v2720, inf
    %v2723 = vrot.slane %v2722, 4
    %v2724 = vmin.f32 %v2722, %v2723
    %v2725 = vrot.slane %v2724, 2
    %v2726 = vmin.f32 %v2724, %v2725
    %v2727 = vrot.slane %v2726, 1
    %v2728 = vmin.f32 %v2726, %v2727
    %v2729 = vsel %vm171, %v2721, inf
    %v2730 = vrot.slane %v2729, 4
    %v2731 = vmin.f32 %v2729, %v2730
    %v2732 = vrot.slane %v2731, 2
    %v2733 = vmin.f32 %v2731, %v2732
    %v2734 = vrot.slane %v2733, 1
    %v2735 = vmin.f32 %v2733, %v2734
    %2736 = vmin.xlane.f32.xlu0 %v2728
    %v2737 = vpop.xlane.xlu0 %2736
    %2738 = vmin.xlane.f32.xlu0 %v2735
    %v2739 = vpop.xlane.xlu0 %2738
    %vm2740 = vcmp.eq.s32.totalorder %v27, 32
    %v2741 = vsel %vm2740, %v2715, %v2662
    %v2742 = vsel %vm2740, %v2717, %v2663
    %v2743 = vsel %vm2740, %v2737, %v2664
    %v2744 = vsel %vm2740, %v2739, %v2665
    %v2745 = vsub.f32 %v2715, %v187
    %v2746 = vsub.f32 %v2717, %v189
    %v2747 = vmul.f32 %v2745, %v22
    %v2748 = vmul.f32 %v2746, %v23
    %v2749 = vmul.f32 %v2747, 1.442695
    %v2750 = vpow.pop %v2749
    %v2751 = vmul.f32 %v2748, 1.442695
    %v2752 = vpow.pop %v2751
    %v2753 = vadd.f32 %v2674, %v2750
    %v2754 = vadd.f32 %v2675, %v2752
    %2756 = vset.pattern.permute.xlu0 1
    %2757 = vperm.xlu0 %2756, %v2753
    %v2758 = vpop.permute.xlu0 %2757
    %v2760 = vlaneseq
    %v2761 = vshrl.u32 %v2760, 7
    %v2762 = vsub.s32 0, %v2761
    %v2763 = vrot.slane %v2758, %v2762
    %2765 = vset.pattern.permute.xlu0 1
    %2766 = vperm.xlu0 %2765, %v2754
    %v2767 = vpop.permute.xlu0 %2766
    %v2769 = vlaneseq
    %v2770 = vshrl.u32 %v2769, 7
    %v2771 = vsub.s32 0, %v2770
    %v2772 = vrot.slane %v2767, %v2771
    %v2773 = vsel %vm2740, %v2763, %v2694
    %v2774 = vsel %vm2740, %v2772, %v2695
    %vm2775 = vcmp.eq.f32.partialorder %v30, %v2737
    %vm2776 = vcmp.eq.f32.partialorder %v30, %v2739
    %v2777 = vsel %vm2775, -inf, %v2698
    %v2778 = vsel %vm2776, -inf, %v2699
    %v2779 = vsel %vm171, %v2777, -inf
    %v2780 = vrot.slane %v2779, 4
    %v2781 = vmax.f32 %v2779, %v2780
    %v2782 = vrot.slane %v2781, 2
    %v2783 = vmax.f32 %v2781, %v2782
    %v2784 = vrot.slane %v2783, 1
    %v2785 = vmax.f32 %v2783, %v2784
    %v2786 = vsel %vm171, %v2778, -inf
    %v2787 = vrot.slane %v2786, 4
    %v2788 = vmax.f32 %v2786, %v2787
    %v2789 = vrot.slane %v2788, 2
    %v2790 = vmax.f32 %v2788, %v2789
    %v2791 = vrot.slane %v2790, 1
    %v2792 = vmax.f32 %v2790, %v2791
    %2793 = vmax.xlane.f32.xlu0 %v2785
    %v2794 = vpop.xlane.xlu0 %2793
    %2795 = vmax.xlane.f32.xlu0 %v2792
    %v2796 = vpop.xlane.xlu0 %2795
    %vm2797 = vcmp.eq.f32.partialorder %v2777, %v2794
    %vm2798 = vcmp.eq.f32.partialorder %v2778, %v2796
    %v2799 = vsel %vm2797, %v30, 512.0
    %v2800 = vsel %vm2798, %v30, 512.0
    %v2801 = vsel %vm171, %v2799, inf
    %v2802 = vrot.slane %v2801, 4
    %v2803 = vmin.f32 %v2801, %v2802
    %v2804 = vrot.slane %v2803, 2
    %v2805 = vmin.f32 %v2803, %v2804
    %v2806 = vrot.slane %v2805, 1
    %v2807 = vmin.f32 %v2805, %v2806
    %v2808 = vsel %vm171, %v2800, inf
    %v2809 = vrot.slane %v2808, 4
    %v2810 = vmin.f32 %v2808, %v2809
    %v2811 = vrot.slane %v2810, 2
    %v2812 = vmin.f32 %v2810, %v2811
    %v2813 = vrot.slane %v2812, 1
    %v2814 = vmin.f32 %v2812, %v2813
    %2815 = vmin.xlane.f32.xlu0 %v2807
    %v2816 = vpop.xlane.xlu0 %2815
    %2817 = vmin.xlane.f32.xlu0 %v2814
    %v2818 = vpop.xlane.xlu0 %2817
    %vm2819 = vcmp.eq.s32.totalorder %v27, 33
    %v2820 = vsel %vm2819, %v2794, %v2741
    %v2821 = vsel %vm2819, %v2796, %v2742
    %v2822 = vsel %vm2819, %v2816, %v2743
    %v2823 = vsel %vm2819, %v2818, %v2744
    %v2824 = vsub.f32 %v2794, %v187
    %v2825 = vsub.f32 %v2796, %v189
    %v2826 = vmul.f32 %v2824, %v22
    %v2827 = vmul.f32 %v2825, %v23
    %v2828 = vmul.f32 %v2826, 1.442695
    %v2829 = vpow.pop %v2828
    %v2830 = vmul.f32 %v2827, 1.442695
    %v2831 = vpow.pop %v2830
    %v2832 = vadd.f32 %v2753, %v2829
    %v2833 = vadd.f32 %v2754, %v2831
    %2835 = vset.pattern.permute.xlu0 1
    %2836 = vperm.xlu0 %2835, %v2832
    %v2837 = vpop.permute.xlu0 %2836
    %v2839 = vlaneseq
    %v2840 = vshrl.u32 %v2839, 7
    %v2841 = vsub.s32 0, %v2840
    %v2842 = vrot.slane %v2837, %v2841
    %2844 = vset.pattern.permute.xlu0 1
    %2845 = vperm.xlu0 %2844, %v2833
    %v2846 = vpop.permute.xlu0 %2845
    %v2848 = vlaneseq
    %v2849 = vshrl.u32 %v2848, 7
    %v2850 = vsub.s32 0, %v2849
    %v2851 = vrot.slane %v2846, %v2850
    %v2852 = vsel %vm2819, %v2842, %v2773
    %v2853 = vsel %vm2819, %v2851, %v2774
    %vm2854 = vcmp.eq.f32.partialorder %v30, %v2816
    %vm2855 = vcmp.eq.f32.partialorder %v30, %v2818
    %v2856 = vsel %vm2854, -inf, %v2777
    %v2857 = vsel %vm2855, -inf, %v2778
    %v2858 = vsel %vm171, %v2856, -inf
    %v2859 = vrot.slane %v2858, 4
    %v2860 = vmax.f32 %v2858, %v2859
    %v2861 = vrot.slane %v2860, 2
    %v2862 = vmax.f32 %v2860, %v2861
    %v2863 = vrot.slane %v2862, 1
    %v2864 = vmax.f32 %v2862, %v2863
    %v2865 = vsel %vm171, %v2857, -inf
    %v2866 = vrot.slane %v2865, 4
    %v2867 = vmax.f32 %v2865, %v2866
    %v2868 = vrot.slane %v2867, 2
    %v2869 = vmax.f32 %v2867, %v2868
    %v2870 = vrot.slane %v2869, 1
    %v2871 = vmax.f32 %v2869, %v2870
    %2872 = vmax.xlane.f32.xlu0 %v2864
    %v2873 = vpop.xlane.xlu0 %2872
    %2874 = vmax.xlane.f32.xlu0 %v2871
    %v2875 = vpop.xlane.xlu0 %2874
    %vm2876 = vcmp.eq.f32.partialorder %v2856, %v2873
    %vm2877 = vcmp.eq.f32.partialorder %v2857, %v2875
    %v2878 = vsel %vm2876, %v30, 512.0
    %v2879 = vsel %vm2877, %v30, 512.0
    %v2880 = vsel %vm171, %v2878, inf
    %v2881 = vrot.slane %v2880, 4
    %v2882 = vmin.f32 %v2880, %v2881
    %v2883 = vrot.slane %v2882, 2
    %v2884 = vmin.f32 %v2882, %v2883
    %v2885 = vrot.slane %v2884, 1
    %v2886 = vmin.f32 %v2884, %v2885
    %v2887 = vsel %vm171, %v2879, inf
    %v2888 = vrot.slane %v2887, 4
    %v2889 = vmin.f32 %v2887, %v2888
    %v2890 = vrot.slane %v2889, 2
    %v2891 = vmin.f32 %v2889, %v2890
    %v2892 = vrot.slane %v2891, 1
    %v2893 = vmin.f32 %v2891, %v2892
    %2894 = vmin.xlane.f32.xlu0 %v2886
    %v2895 = vpop.xlane.xlu0 %2894
    %2896 = vmin.xlane.f32.xlu0 %v2893
    %v2897 = vpop.xlane.xlu0 %2896
    %vm2898 = vcmp.eq.s32.totalorder %v27, 34
    %v2899 = vsel %vm2898, %v2873, %v2820
    %v2900 = vsel %vm2898, %v2875, %v2821
    %v2901 = vsel %vm2898, %v2895, %v2822
    %v2902 = vsel %vm2898, %v2897, %v2823
    %v2903 = vsub.f32 %v2873, %v187
    %v2904 = vsub.f32 %v2875, %v189
    %v2905 = vmul.f32 %v2903, %v22
    %v2906 = vmul.f32 %v2904, %v23
    %v2907 = vmul.f32 %v2905, 1.442695
    %v2908 = vpow.pop %v2907
    %v2909 = vmul.f32 %v2906, 1.442695
    %v2910 = vpow.pop %v2909
    %v2911 = vadd.f32 %v2832, %v2908
    %v2912 = vadd.f32 %v2833, %v2910
    %2914 = vset.pattern.permute.xlu0 1
    %2915 = vperm.xlu0 %2914, %v2911
    %v2916 = vpop.permute.xlu0 %2915
    %v2918 = vlaneseq
    %v2919 = vshrl.u32 %v2918, 7
    %v2920 = vsub.s32 0, %v2919
    %v2921 = vrot.slane %v2916, %v2920
    %2923 = vset.pattern.permute.xlu0 1
    %2924 = vperm.xlu0 %2923, %v2912
    %v2925 = vpop.permute.xlu0 %2924
    %v2927 = vlaneseq
    %v2928 = vshrl.u32 %v2927, 7
    %v2929 = vsub.s32 0, %v2928
    %v2930 = vrot.slane %v2925, %v2929
    %v2931 = vsel %vm2898, %v2921, %v2852
    %v2932 = vsel %vm2898, %v2930, %v2853
    %vm2933 = vcmp.eq.f32.partialorder %v30, %v2895
    %vm2934 = vcmp.eq.f32.partialorder %v30, %v2897
    %v2935 = vsel %vm2933, -inf, %v2856
    %v2936 = vsel %vm2934, -inf, %v2857
    %v2937 = vsel %vm171, %v2935, -inf
    %v2938 = vrot.slane %v2937, 4
    %v2939 = vmax.f32 %v2937, %v2938
    %v2940 = vrot.slane %v2939, 2
    %v2941 = vmax.f32 %v2939, %v2940
    %v2942 = vrot.slane %v2941, 1
    %v2943 = vmax.f32 %v2941, %v2942
    %v2944 = vsel %vm171, %v2936, -inf
    %v2945 = vrot.slane %v2944, 4
    %v2946 = vmax.f32 %v2944, %v2945
    %v2947 = vrot.slane %v2946, 2
    %v2948 = vmax.f32 %v2946, %v2947
    %v2949 = vrot.slane %v2948, 1
    %v2950 = vmax.f32 %v2948, %v2949
    %2951 = vmax.xlane.f32.xlu0 %v2943
    %v2952 = vpop.xlane.xlu0 %2951
    %2953 = vmax.xlane.f32.xlu0 %v2950
    %v2954 = vpop.xlane.xlu0 %2953
    %vm2955 = vcmp.eq.f32.partialorder %v2935, %v2952
    %vm2956 = vcmp.eq.f32.partialorder %v2936, %v2954
    %v2957 = vsel %vm2955, %v30, 512.0
    %v2958 = vsel %vm2956, %v30, 512.0
    %v2959 = vsel %vm171, %v2957, inf
    %v2960 = vrot.slane %v2959, 4
    %v2961 = vmin.f32 %v2959, %v2960
    %v2962 = vrot.slane %v2961, 2
    %v2963 = vmin.f32 %v2961, %v2962
    %v2964 = vrot.slane %v2963, 1
    %v2965 = vmin.f32 %v2963, %v2964
    %v2966 = vsel %vm171, %v2958, inf
    %v2967 = vrot.slane %v2966, 4
    %v2968 = vmin.f32 %v2966, %v2967
    %v2969 = vrot.slane %v2968, 2
    %v2970 = vmin.f32 %v2968, %v2969
    %v2971 = vrot.slane %v2970, 1
    %v2972 = vmin.f32 %v2970, %v2971
    %2973 = vmin.xlane.f32.xlu0 %v2965
    %v2974 = vpop.xlane.xlu0 %2973
    %2975 = vmin.xlane.f32.xlu0 %v2972
    %v2976 = vpop.xlane.xlu0 %2975
    %vm2977 = vcmp.eq.s32.totalorder %v27, 35
    %v2978 = vsel %vm2977, %v2952, %v2899
    %v2979 = vsel %vm2977, %v2954, %v2900
    %v2980 = vsel %vm2977, %v2974, %v2901
    %v2981 = vsel %vm2977, %v2976, %v2902
    %v2982 = vsub.f32 %v2952, %v187
    %v2983 = vsub.f32 %v2954, %v189
    %v2984 = vmul.f32 %v2982, %v22
    %v2985 = vmul.f32 %v2983, %v23
    %v2986 = vmul.f32 %v2984, 1.442695
    %v2987 = vpow.pop %v2986
    %v2988 = vmul.f32 %v2985, 1.442695
    %v2989 = vpow.pop %v2988
    %v2990 = vadd.f32 %v2911, %v2987
    %v2991 = vadd.f32 %v2912, %v2989
    %2993 = vset.pattern.permute.xlu0 1
    %2994 = vperm.xlu0 %2993, %v2990
    %v2995 = vpop.permute.xlu0 %2994
    %v2997 = vlaneseq
    %v2998 = vshrl.u32 %v2997, 7
    %v2999 = vsub.s32 0, %v2998
    %v3000 = vrot.slane %v2995, %v2999
    %3002 = vset.pattern.permute.xlu0 1
    %3003 = vperm.xlu0 %3002, %v2991
    %v3004 = vpop.permute.xlu0 %3003
    %v3006 = vlaneseq
    %v3007 = vshrl.u32 %v3006, 7
    %v3008 = vsub.s32 0, %v3007
    %v3009 = vrot.slane %v3004, %v3008
    %v3010 = vsel %vm2977, %v3000, %v2931
    %v3011 = vsel %vm2977, %v3009, %v2932
    %vm3012 = vcmp.eq.f32.partialorder %v30, %v2974
    %vm3013 = vcmp.eq.f32.partialorder %v30, %v2976
    %v3014 = vsel %vm3012, -inf, %v2935
    %v3015 = vsel %vm3013, -inf, %v2936
    %v3016 = vsel %vm171, %v3014, -inf
    %v3017 = vrot.slane %v3016, 4
    %v3018 = vmax.f32 %v3016, %v3017
    %v3019 = vrot.slane %v3018, 2
    %v3020 = vmax.f32 %v3018, %v3019
    %v3021 = vrot.slane %v3020, 1
    %v3022 = vmax.f32 %v3020, %v3021
    %v3023 = vsel %vm171, %v3015, -inf
    %v3024 = vrot.slane %v3023, 4
    %v3025 = vmax.f32 %v3023, %v3024
    %v3026 = vrot.slane %v3025, 2
    %v3027 = vmax.f32 %v3025, %v3026
    %v3028 = vrot.slane %v3027, 1
    %v3029 = vmax.f32 %v3027, %v3028
    %3030 = vmax.xlane.f32.xlu0 %v3022
    %v3031 = vpop.xlane.xlu0 %3030
    %3032 = vmax.xlane.f32.xlu0 %v3029
    %v3033 = vpop.xlane.xlu0 %3032
    %vm3034 = vcmp.eq.f32.partialorder %v3014, %v3031
    %vm3035 = vcmp.eq.f32.partialorder %v3015, %v3033
    %v3036 = vsel %vm3034, %v30, 512.0
    %v3037 = vsel %vm3035, %v30, 512.0
    %v3038 = vsel %vm171, %v3036, inf
    %v3039 = vrot.slane %v3038, 4
    %v3040 = vmin.f32 %v3038, %v3039
    %v3041 = vrot.slane %v3040, 2
    %v3042 = vmin.f32 %v3040, %v3041
    %v3043 = vrot.slane %v3042, 1
    %v3044 = vmin.f32 %v3042, %v3043
    %v3045 = vsel %vm171, %v3037, inf
    %v3046 = vrot.slane %v3045, 4
    %v3047 = vmin.f32 %v3045, %v3046
    %v3048 = vrot.slane %v3047, 2
    %v3049 = vmin.f32 %v3047, %v3048
    %v3050 = vrot.slane %v3049, 1
    %v3051 = vmin.f32 %v3049, %v3050
    %3052 = vmin.xlane.f32.xlu0 %v3044
    %v3053 = vpop.xlane.xlu0 %3052
    %3054 = vmin.xlane.f32.xlu0 %v3051
    %v3055 = vpop.xlane.xlu0 %3054
    %vm3056 = vcmp.eq.s32.totalorder %v27, 36
    %v3057 = vsel %vm3056, %v3031, %v2978
    %v3058 = vsel %vm3056, %v3033, %v2979
    %v3059 = vsel %vm3056, %v3053, %v2980
    %v3060 = vsel %vm3056, %v3055, %v2981
    %v3061 = vsub.f32 %v3031, %v187
    %v3062 = vsub.f32 %v3033, %v189
    %v3063 = vmul.f32 %v3061, %v22
    %v3064 = vmul.f32 %v3062, %v23
    %v3065 = vmul.f32 %v3063, 1.442695
    %v3066 = vpow.pop %v3065
    %v3067 = vmul.f32 %v3064, 1.442695
    %v3068 = vpow.pop %v3067
    %v3069 = vadd.f32 %v2990, %v3066
    %v3070 = vadd.f32 %v2991, %v3068
    %3072 = vset.pattern.permute.xlu0 1
    %3073 = vperm.xlu0 %3072, %v3069
    %v3074 = vpop.permute.xlu0 %3073
    %v3076 = vlaneseq
    %v3077 = vshrl.u32 %v3076, 7
    %v3078 = vsub.s32 0, %v3077
    %v3079 = vrot.slane %v3074, %v3078
    %3081 = vset.pattern.permute.xlu0 1
    %3082 = vperm.xlu0 %3081, %v3070
    %v3083 = vpop.permute.xlu0 %3082
    %v3085 = vlaneseq
    %v3086 = vshrl.u32 %v3085, 7
    %v3087 = vsub.s32 0, %v3086
    %v3088 = vrot.slane %v3083, %v3087
    %v3089 = vsel %vm3056, %v3079, %v3010
    %v3090 = vsel %vm3056, %v3088, %v3011
    %vm3091 = vcmp.eq.f32.partialorder %v30, %v3053
    %vm3092 = vcmp.eq.f32.partialorder %v30, %v3055
    %v3093 = vsel %vm3091, -inf, %v3014
    %v3094 = vsel %vm3092, -inf, %v3015
    %v3095 = vsel %vm171, %v3093, -inf
    %v3096 = vrot.slane %v3095, 4
    %v3097 = vmax.f32 %v3095, %v3096
    %v3098 = vrot.slane %v3097, 2
    %v3099 = vmax.f32 %v3097, %v3098
    %v3100 = vrot.slane %v3099, 1
    %v3101 = vmax.f32 %v3099, %v3100
    %v3102 = vsel %vm171, %v3094, -inf
    %v3103 = vrot.slane %v3102, 4
    %v3104 = vmax.f32 %v3102, %v3103
    %v3105 = vrot.slane %v3104, 2
    %v3106 = vmax.f32 %v3104, %v3105
    %v3107 = vrot.slane %v3106, 1
    %v3108 = vmax.f32 %v3106, %v3107
    %3109 = vmax.xlane.f32.xlu0 %v3101
    %v3110 = vpop.xlane.xlu0 %3109
    %3111 = vmax.xlane.f32.xlu0 %v3108
    %v3112 = vpop.xlane.xlu0 %3111
    %vm3113 = vcmp.eq.f32.partialorder %v3093, %v3110
    %vm3114 = vcmp.eq.f32.partialorder %v3094, %v3112
    %v3115 = vsel %vm3113, %v30, 512.0
    %v3116 = vsel %vm3114, %v30, 512.0
    %v3117 = vsel %vm171, %v3115, inf
    %v3118 = vrot.slane %v3117, 4
    %v3119 = vmin.f32 %v3117, %v3118
    %v3120 = vrot.slane %v3119, 2
    %v3121 = vmin.f32 %v3119, %v3120
    %v3122 = vrot.slane %v3121, 1
    %v3123 = vmin.f32 %v3121, %v3122
    %v3124 = vsel %vm171, %v3116, inf
    %v3125 = vrot.slane %v3124, 4
    %v3126 = vmin.f32 %v3124, %v3125
    %v3127 = vrot.slane %v3126, 2
    %v3128 = vmin.f32 %v3126, %v3127
    %v3129 = vrot.slane %v3128, 1
    %v3130 = vmin.f32 %v3128, %v3129
    %3131 = vmin.xlane.f32.xlu0 %v3123
    %v3132 = vpop.xlane.xlu0 %3131
    %3133 = vmin.xlane.f32.xlu0 %v3130
    %v3134 = vpop.xlane.xlu0 %3133
    %vm3135 = vcmp.eq.s32.totalorder %v27, 37
    %v3136 = vsel %vm3135, %v3110, %v3057
    %v3137 = vsel %vm3135, %v3112, %v3058
    %v3138 = vsel %vm3135, %v3132, %v3059
    %v3139 = vsel %vm3135, %v3134, %v3060
    %v3140 = vsub.f32 %v3110, %v187
    %v3141 = vsub.f32 %v3112, %v189
    %v3142 = vmul.f32 %v3140, %v22
    %v3143 = vmul.f32 %v3141, %v23
    %v3144 = vmul.f32 %v3142, 1.442695
    %v3145 = vpow.pop %v3144
    %v3146 = vmul.f32 %v3143, 1.442695
    %v3147 = vpow.pop %v3146
    %v3148 = vadd.f32 %v3069, %v3145
    %v3149 = vadd.f32 %v3070, %v3147
    %3151 = vset.pattern.permute.xlu0 1
    %3152 = vperm.xlu0 %3151, %v3148
    %v3153 = vpop.permute.xlu0 %3152
    %v3155 = vlaneseq
    %v3156 = vshrl.u32 %v3155, 7
    %v3157 = vsub.s32 0, %v3156
    %v3158 = vrot.slane %v3153, %v3157
    %3160 = vset.pattern.permute.xlu0 1
    %3161 = vperm.xlu0 %3160, %v3149
    %v3162 = vpop.permute.xlu0 %3161
    %v3164 = vlaneseq
    %v3165 = vshrl.u32 %v3164, 7
    %v3166 = vsub.s32 0, %v3165
    %v3167 = vrot.slane %v3162, %v3166
    %v3168 = vsel %vm3135, %v3158, %v3089
    %v3169 = vsel %vm3135, %v3167, %v3090
    %vm3170 = vcmp.eq.f32.partialorder %v30, %v3132
    %vm3171 = vcmp.eq.f32.partialorder %v30, %v3134
    %v3172 = vsel %vm3170, -inf, %v3093
    %v3173 = vsel %vm3171, -inf, %v3094
    %v3174 = vsel %vm171, %v3172, -inf
    %v3175 = vrot.slane %v3174, 4
    %v3176 = vmax.f32 %v3174, %v3175
    %v3177 = vrot.slane %v3176, 2
    %v3178 = vmax.f32 %v3176, %v3177
    %v3179 = vrot.slane %v3178, 1
    %v3180 = vmax.f32 %v3178, %v3179
    %v3181 = vsel %vm171, %v3173, -inf
    %v3182 = vrot.slane %v3181, 4
    %v3183 = vmax.f32 %v3181, %v3182
    %v3184 = vrot.slane %v3183, 2
    %v3185 = vmax.f32 %v3183, %v3184
    %v3186 = vrot.slane %v3185, 1
    %v3187 = vmax.f32 %v3185, %v3186
    %3188 = vmax.xlane.f32.xlu0 %v3180
    %v3189 = vpop.xlane.xlu0 %3188
    %3190 = vmax.xlane.f32.xlu0 %v3187
    %v3191 = vpop.xlane.xlu0 %3190
    %vm3192 = vcmp.eq.f32.partialorder %v3172, %v3189
    %vm3193 = vcmp.eq.f32.partialorder %v3173, %v3191
    %v3194 = vsel %vm3192, %v30, 512.0
    %v3195 = vsel %vm3193, %v30, 512.0
    %v3196 = vsel %vm171, %v3194, inf
    %v3197 = vrot.slane %v3196, 4
    %v3198 = vmin.f32 %v3196, %v3197
    %v3199 = vrot.slane %v3198, 2
    %v3200 = vmin.f32 %v3198, %v3199
    %v3201 = vrot.slane %v3200, 1
    %v3202 = vmin.f32 %v3200, %v3201
    %v3203 = vsel %vm171, %v3195, inf
    %v3204 = vrot.slane %v3203, 4
    %v3205 = vmin.f32 %v3203, %v3204
    %v3206 = vrot.slane %v3205, 2
    %v3207 = vmin.f32 %v3205, %v3206
    %v3208 = vrot.slane %v3207, 1
    %v3209 = vmin.f32 %v3207, %v3208
    %3210 = vmin.xlane.f32.xlu0 %v3202
    %v3211 = vpop.xlane.xlu0 %3210
    %3212 = vmin.xlane.f32.xlu0 %v3209
    %v3213 = vpop.xlane.xlu0 %3212
    %vm3214 = vcmp.eq.s32.totalorder %v27, 38
    %v3215 = vsel %vm3214, %v3189, %v3136
    %v3216 = vsel %vm3214, %v3191, %v3137
    %v3217 = vsel %vm3214, %v3211, %v3138
    %v3218 = vsel %vm3214, %v3213, %v3139
    %v3219 = vsub.f32 %v3189, %v187
    %v3220 = vsub.f32 %v3191, %v189
    %v3221 = vmul.f32 %v3219, %v22
    %v3222 = vmul.f32 %v3220, %v23
    %v3223 = vmul.f32 %v3221, 1.442695
    %v3224 = vpow.pop %v3223
    %v3225 = vmul.f32 %v3222, 1.442695
    %v3226 = vpow.pop %v3225
    %v3227 = vadd.f32 %v3148, %v3224
    %v3228 = vadd.f32 %v3149, %v3226
    %3230 = vset.pattern.permute.xlu0 1
    %3231 = vperm.xlu0 %3230, %v3227
    %v3232 = vpop.permute.xlu0 %3231
    %v3234 = vlaneseq
    %v3235 = vshrl.u32 %v3234, 7
    %v3236 = vsub.s32 0, %v3235
    %v3237 = vrot.slane %v3232, %v3236
    %3239 = vset.pattern.permute.xlu0 1
    %3240 = vperm.xlu0 %3239, %v3228
    %v3241 = vpop.permute.xlu0 %3240
    %v3243 = vlaneseq
    %v3244 = vshrl.u32 %v3243, 7
    %v3245 = vsub.s32 0, %v3244
    %v3246 = vrot.slane %v3241, %v3245
    %v3247 = vsel %vm3214, %v3237, %v3168
    %v3248 = vsel %vm3214, %v3246, %v3169
    %vm3249 = vcmp.eq.f32.partialorder %v30, %v3211
    %vm3250 = vcmp.eq.f32.partialorder %v30, %v3213
    %v3251 = vsel %vm3249, -inf, %v3172
    %v3252 = vsel %vm3250, -inf, %v3173
    %v3253 = vsel %vm171, %v3251, -inf
    %v3254 = vrot.slane %v3253, 4
    %v3255 = vmax.f32 %v3253, %v3254
    %v3256 = vrot.slane %v3255, 2
    %v3257 = vmax.f32 %v3255, %v3256
    %v3258 = vrot.slane %v3257, 1
    %v3259 = vmax.f32 %v3257, %v3258
    %v3260 = vsel %vm171, %v3252, -inf
    %v3261 = vrot.slane %v3260, 4
    %v3262 = vmax.f32 %v3260, %v3261
    %v3263 = vrot.slane %v3262, 2
    %v3264 = vmax.f32 %v3262, %v3263
    %v3265 = vrot.slane %v3264, 1
    %v3266 = vmax.f32 %v3264, %v3265
    %3267 = vmax.xlane.f32.xlu0 %v3259
    %v3268 = vpop.xlane.xlu0 %3267
    %3269 = vmax.xlane.f32.xlu0 %v3266
    %v3270 = vpop.xlane.xlu0 %3269
    %vm3271 = vcmp.eq.f32.partialorder %v3251, %v3268
    %vm3272 = vcmp.eq.f32.partialorder %v3252, %v3270
    %v3273 = vsel %vm3271, %v30, 512.0
    %v3274 = vsel %vm3272, %v30, 512.0
    %v3275 = vsel %vm171, %v3273, inf
    %v3276 = vrot.slane %v3275, 4
    %v3277 = vmin.f32 %v3275, %v3276
    %v3278 = vrot.slane %v3277, 2
    %v3279 = vmin.f32 %v3277, %v3278
    %v3280 = vrot.slane %v3279, 1
    %v3281 = vmin.f32 %v3279, %v3280
    %v3282 = vsel %vm171, %v3274, inf
    %v3283 = vrot.slane %v3282, 4
    %v3284 = vmin.f32 %v3282, %v3283
    %v3285 = vrot.slane %v3284, 2
    %v3286 = vmin.f32 %v3284, %v3285
    %v3287 = vrot.slane %v3286, 1
    %v3288 = vmin.f32 %v3286, %v3287
    %3289 = vmin.xlane.f32.xlu0 %v3281
    %v3290 = vpop.xlane.xlu0 %3289
    %3291 = vmin.xlane.f32.xlu0 %v3288
    %v3292 = vpop.xlane.xlu0 %3291
    %vm3293 = vcmp.eq.s32.totalorder %v27, 39
    %v3294 = vsel %vm3293, %v3268, %v3215
    %v3295 = vsel %vm3293, %v3270, %v3216
    %v3296 = vsel %vm3293, %v3290, %v3217
    %v3297 = vsel %vm3293, %v3292, %v3218
    %v3298 = vsub.f32 %v3268, %v187
    %v3299 = vsub.f32 %v3270, %v189
    %v3300 = vmul.f32 %v3298, %v22
    %v3301 = vmul.f32 %v3299, %v23
    %v3302 = vmul.f32 %v3300, 1.442695
    %v3303 = vpow.pop %v3302
    %v3304 = vmul.f32 %v3301, 1.442695
    %v3305 = vpow.pop %v3304
    %v3306 = vadd.f32 %v3227, %v3303
    %v3307 = vadd.f32 %v3228, %v3305
    %3309 = vset.pattern.permute.xlu0 1
    %3310 = vperm.xlu0 %3309, %v3306
    %v3311 = vpop.permute.xlu0 %3310
    %v3313 = vlaneseq
    %v3314 = vshrl.u32 %v3313, 7
    %v3315 = vsub.s32 0, %v3314
    %v3316 = vrot.slane %v3311, %v3315
    %3318 = vset.pattern.permute.xlu0 1
    %3319 = vperm.xlu0 %3318, %v3307
    %v3320 = vpop.permute.xlu0 %3319
    %v3322 = vlaneseq
    %v3323 = vshrl.u32 %v3322, 7
    %v3324 = vsub.s32 0, %v3323
    %v3325 = vrot.slane %v3320, %v3324
    %v3326 = vsel %vm3293, %v3316, %v3247
    %v3327 = vsel %vm3293, %v3325, %v3248
    %vm3328 = vcmp.eq.f32.partialorder %v30, %v3290
    %vm3329 = vcmp.eq.f32.partialorder %v30, %v3292
    %v3330 = vsel %vm3328, -inf, %v3251
    %v3331 = vsel %vm3329, -inf, %v3252
    %v3332 = vsel %vm171, %v3330, -inf
    %v3333 = vrot.slane %v3332, 4
    %v3334 = vmax.f32 %v3332, %v3333
    %v3335 = vrot.slane %v3334, 2
    %v3336 = vmax.f32 %v3334, %v3335
    %v3337 = vrot.slane %v3336, 1
    %v3338 = vmax.f32 %v3336, %v3337
    %v3339 = vsel %vm171, %v3331, -inf
    %v3340 = vrot.slane %v3339, 4
    %v3341 = vmax.f32 %v3339, %v3340
    %v3342 = vrot.slane %v3341, 2
    %v3343 = vmax.f32 %v3341, %v3342
    %v3344 = vrot.slane %v3343, 1
    %v3345 = vmax.f32 %v3343, %v3344
    %3346 = vmax.xlane.f32.xlu0 %v3338
    %v3347 = vpop.xlane.xlu0 %3346
    %3348 = vmax.xlane.f32.xlu0 %v3345
    %v3349 = vpop.xlane.xlu0 %3348
    %vm3350 = vcmp.eq.f32.partialorder %v3330, %v3347
    %vm3351 = vcmp.eq.f32.partialorder %v3331, %v3349
    %v3352 = vsel %vm3350, %v30, 512.0
    %v3353 = vsel %vm3351, %v30, 512.0
    %v3354 = vsel %vm171, %v3352, inf
    %v3355 = vrot.slane %v3354, 4
    %v3356 = vmin.f32 %v3354, %v3355
    %v3357 = vrot.slane %v3356, 2
    %v3358 = vmin.f32 %v3356, %v3357
    %v3359 = vrot.slane %v3358, 1
    %v3360 = vmin.f32 %v3358, %v3359
    %v3361 = vsel %vm171, %v3353, inf
    %v3362 = vrot.slane %v3361, 4
    %v3363 = vmin.f32 %v3361, %v3362
    %v3364 = vrot.slane %v3363, 2
    %v3365 = vmin.f32 %v3363, %v3364
    %v3366 = vrot.slane %v3365, 1
    %v3367 = vmin.f32 %v3365, %v3366
    %3368 = vmin.xlane.f32.xlu0 %v3360
    %v3369 = vpop.xlane.xlu0 %3368
    %3370 = vmin.xlane.f32.xlu0 %v3367
    %v3371 = vpop.xlane.xlu0 %3370
    %vm3372 = vcmp.eq.s32.totalorder %v27, 40
    %v3373 = vsel %vm3372, %v3347, %v3294
    %v3374 = vsel %vm3372, %v3349, %v3295
    %v3375 = vsel %vm3372, %v3369, %v3296
    %v3376 = vsel %vm3372, %v3371, %v3297
    %v3377 = vsub.f32 %v3347, %v187
    %v3378 = vsub.f32 %v3349, %v189
    %v3379 = vmul.f32 %v3377, %v22
    %v3380 = vmul.f32 %v3378, %v23
    %v3381 = vmul.f32 %v3379, 1.442695
    %v3382 = vpow.pop %v3381
    %v3383 = vmul.f32 %v3380, 1.442695
    %v3384 = vpow.pop %v3383
    %v3385 = vadd.f32 %v3306, %v3382
    %v3386 = vadd.f32 %v3307, %v3384
    %3388 = vset.pattern.permute.xlu0 1
    %3389 = vperm.xlu0 %3388, %v3385
    %v3390 = vpop.permute.xlu0 %3389
    %v3392 = vlaneseq
    %v3393 = vshrl.u32 %v3392, 7
    %v3394 = vsub.s32 0, %v3393
    %v3395 = vrot.slane %v3390, %v3394
    %3397 = vset.pattern.permute.xlu0 1
    %3398 = vperm.xlu0 %3397, %v3386
    %v3399 = vpop.permute.xlu0 %3398
    %v3401 = vlaneseq
    %v3402 = vshrl.u32 %v3401, 7
    %v3403 = vsub.s32 0, %v3402
    %v3404 = vrot.slane %v3399, %v3403
    %v3405 = vsel %vm3372, %v3395, %v3326
    %v3406 = vsel %vm3372, %v3404, %v3327
    %vm3407 = vcmp.eq.f32.partialorder %v30, %v3369
    %vm3408 = vcmp.eq.f32.partialorder %v30, %v3371
    %v3409 = vsel %vm3407, -inf, %v3330
    %v3410 = vsel %vm3408, -inf, %v3331
    %v3411 = vsel %vm171, %v3409, -inf
    %v3412 = vrot.slane %v3411, 4
    %v3413 = vmax.f32 %v3411, %v3412
    %v3414 = vrot.slane %v3413, 2
    %v3415 = vmax.f32 %v3413, %v3414
    %v3416 = vrot.slane %v3415, 1
    %v3417 = vmax.f32 %v3415, %v3416
    %v3418 = vsel %vm171, %v3410, -inf
    %v3419 = vrot.slane %v3418, 4
    %v3420 = vmax.f32 %v3418, %v3419
    %v3421 = vrot.slane %v3420, 2
    %v3422 = vmax.f32 %v3420, %v3421
    %v3423 = vrot.slane %v3422, 1
    %v3424 = vmax.f32 %v3422, %v3423
    %3425 = vmax.xlane.f32.xlu0 %v3417
    %v3426 = vpop.xlane.xlu0 %3425
    %3427 = vmax.xlane.f32.xlu0 %v3424
    %v3428 = vpop.xlane.xlu0 %3427
    %vm3429 = vcmp.eq.f32.partialorder %v3409, %v3426
    %vm3430 = vcmp.eq.f32.partialorder %v3410, %v3428
    %v3431 = vsel %vm3429, %v30, 512.0
    %v3432 = vsel %vm3430, %v30, 512.0
    %v3433 = vsel %vm171, %v3431, inf
    %v3434 = vrot.slane %v3433, 4
    %v3435 = vmin.f32 %v3433, %v3434
    %v3436 = vrot.slane %v3435, 2
    %v3437 = vmin.f32 %v3435, %v3436
    %v3438 = vrot.slane %v3437, 1
    %v3439 = vmin.f32 %v3437, %v3438
    %v3440 = vsel %vm171, %v3432, inf
    %v3441 = vrot.slane %v3440, 4
    %v3442 = vmin.f32 %v3440, %v3441
    %v3443 = vrot.slane %v3442, 2
    %v3444 = vmin.f32 %v3442, %v3443
    %v3445 = vrot.slane %v3444, 1
    %v3446 = vmin.f32 %v3444, %v3445
    %3447 = vmin.xlane.f32.xlu0 %v3439
    %v3448 = vpop.xlane.xlu0 %3447
    %3449 = vmin.xlane.f32.xlu0 %v3446
    %v3450 = vpop.xlane.xlu0 %3449
    %vm3451 = vcmp.eq.s32.totalorder %v27, 41
    %v3452 = vsel %vm3451, %v3426, %v3373
    %v3453 = vsel %vm3451, %v3428, %v3374
    %v3454 = vsel %vm3451, %v3448, %v3375
    %v3455 = vsel %vm3451, %v3450, %v3376
    %v3456 = vsub.f32 %v3426, %v187
    %v3457 = vsub.f32 %v3428, %v189
    %v3458 = vmul.f32 %v3456, %v22
    %v3459 = vmul.f32 %v3457, %v23
    %v3460 = vmul.f32 %v3458, 1.442695
    %v3461 = vpow.pop %v3460
    %v3462 = vmul.f32 %v3459, 1.442695
    %v3463 = vpow.pop %v3462
    %v3464 = vadd.f32 %v3385, %v3461
    %v3465 = vadd.f32 %v3386, %v3463
    %3467 = vset.pattern.permute.xlu0 1
    %3468 = vperm.xlu0 %3467, %v3464
    %v3469 = vpop.permute.xlu0 %3468
    %v3471 = vlaneseq
    %v3472 = vshrl.u32 %v3471, 7
    %v3473 = vsub.s32 0, %v3472
    %v3474 = vrot.slane %v3469, %v3473
    %3476 = vset.pattern.permute.xlu0 1
    %3477 = vperm.xlu0 %3476, %v3465
    %v3478 = vpop.permute.xlu0 %3477
    %v3480 = vlaneseq
    %v3481 = vshrl.u32 %v3480, 7
    %v3482 = vsub.s32 0, %v3481
    %v3483 = vrot.slane %v3478, %v3482
    %v3484 = vsel %vm3451, %v3474, %v3405
    %v3485 = vsel %vm3451, %v3483, %v3406
    %vm3486 = vcmp.eq.f32.partialorder %v30, %v3448
    %vm3487 = vcmp.eq.f32.partialorder %v30, %v3450
    %v3488 = vsel %vm3486, -inf, %v3409
    %v3489 = vsel %vm3487, -inf, %v3410
    %v3490 = vsel %vm171, %v3488, -inf
    %v3491 = vrot.slane %v3490, 4
    %v3492 = vmax.f32 %v3490, %v3491
    %v3493 = vrot.slane %v3492, 2
    %v3494 = vmax.f32 %v3492, %v3493
    %v3495 = vrot.slane %v3494, 1
    %v3496 = vmax.f32 %v3494, %v3495
    %v3497 = vsel %vm171, %v3489, -inf
    %v3498 = vrot.slane %v3497, 4
    %v3499 = vmax.f32 %v3497, %v3498
    %v3500 = vrot.slane %v3499, 2
    %v3501 = vmax.f32 %v3499, %v3500
    %v3502 = vrot.slane %v3501, 1
    %v3503 = vmax.f32 %v3501, %v3502
    %3504 = vmax.xlane.f32.xlu0 %v3496
    %v3505 = vpop.xlane.xlu0 %3504
    %3506 = vmax.xlane.f32.xlu0 %v3503
    %v3507 = vpop.xlane.xlu0 %3506
    %vm3508 = vcmp.eq.f32.partialorder %v3488, %v3505
    %vm3509 = vcmp.eq.f32.partialorder %v3489, %v3507
    %v3510 = vsel %vm3508, %v30, 512.0
    %v3511 = vsel %vm3509, %v30, 512.0
    %v3512 = vsel %vm171, %v3510, inf
    %v3513 = vrot.slane %v3512, 4
    %v3514 = vmin.f32 %v3512, %v3513
    %v3515 = vrot.slane %v3514, 2
    %v3516 = vmin.f32 %v3514, %v3515
    %v3517 = vrot.slane %v3516, 1
    %v3518 = vmin.f32 %v3516, %v3517
    %v3519 = vsel %vm171, %v3511, inf
    %v3520 = vrot.slane %v3519, 4
    %v3521 = vmin.f32 %v3519, %v3520
    %v3522 = vrot.slane %v3521, 2
    %v3523 = vmin.f32 %v3521, %v3522
    %v3524 = vrot.slane %v3523, 1
    %v3525 = vmin.f32 %v3523, %v3524
    %3526 = vmin.xlane.f32.xlu0 %v3518
    %v3527 = vpop.xlane.xlu0 %3526
    %3528 = vmin.xlane.f32.xlu0 %v3525
    %v3529 = vpop.xlane.xlu0 %3528
    %vm3530 = vcmp.eq.s32.totalorder %v27, 42
    %v3531 = vsel %vm3530, %v3505, %v3452
    %v3532 = vsel %vm3530, %v3507, %v3453
    %v3533 = vsel %vm3530, %v3527, %v3454
    %v3534 = vsel %vm3530, %v3529, %v3455
    %v3535 = vsub.f32 %v3505, %v187
    %v3536 = vsub.f32 %v3507, %v189
    %v3537 = vmul.f32 %v3535, %v22
    %v3538 = vmul.f32 %v3536, %v23
    %v3539 = vmul.f32 %v3537, 1.442695
    %v3540 = vpow.pop %v3539
    %v3541 = vmul.f32 %v3538, 1.442695
    %v3542 = vpow.pop %v3541
    %v3543 = vadd.f32 %v3464, %v3540
    %v3544 = vadd.f32 %v3465, %v3542
    %3546 = vset.pattern.permute.xlu0 1
    %3547 = vperm.xlu0 %3546, %v3543
    %v3548 = vpop.permute.xlu0 %3547
    %v3550 = vlaneseq
    %v3551 = vshrl.u32 %v3550, 7
    %v3552 = vsub.s32 0, %v3551
    %v3553 = vrot.slane %v3548, %v3552
    %3555 = vset.pattern.permute.xlu0 1
    %3556 = vperm.xlu0 %3555, %v3544
    %v3557 = vpop.permute.xlu0 %3556
    %v3559 = vlaneseq
    %v3560 = vshrl.u32 %v3559, 7
    %v3561 = vsub.s32 0, %v3560
    %v3562 = vrot.slane %v3557, %v3561
    %v3563 = vsel %vm3530, %v3553, %v3484
    %v3564 = vsel %vm3530, %v3562, %v3485
    %vm3565 = vcmp.eq.f32.partialorder %v30, %v3527
    %vm3566 = vcmp.eq.f32.partialorder %v30, %v3529
    %v3567 = vsel %vm3565, -inf, %v3488
    %v3568 = vsel %vm3566, -inf, %v3489
    %v3569 = vsel %vm171, %v3567, -inf
    %v3570 = vrot.slane %v3569, 4
    %v3571 = vmax.f32 %v3569, %v3570
    %v3572 = vrot.slane %v3571, 2
    %v3573 = vmax.f32 %v3571, %v3572
    %v3574 = vrot.slane %v3573, 1
    %v3575 = vmax.f32 %v3573, %v3574
    %v3576 = vsel %vm171, %v3568, -inf
    %v3577 = vrot.slane %v3576, 4
    %v3578 = vmax.f32 %v3576, %v3577
    %v3579 = vrot.slane %v3578, 2
    %v3580 = vmax.f32 %v3578, %v3579
    %v3581 = vrot.slane %v3580, 1
    %v3582 = vmax.f32 %v3580, %v3581
    %3583 = vmax.xlane.f32.xlu0 %v3575
    %v3584 = vpop.xlane.xlu0 %3583
    %3585 = vmax.xlane.f32.xlu0 %v3582
    %v3586 = vpop.xlane.xlu0 %3585
    %vm3587 = vcmp.eq.f32.partialorder %v3567, %v3584
    %vm3588 = vcmp.eq.f32.partialorder %v3568, %v3586
    %v3589 = vsel %vm3587, %v30, 512.0
    %v3590 = vsel %vm3588, %v30, 512.0
    %v3591 = vsel %vm171, %v3589, inf
    %v3592 = vrot.slane %v3591, 4
    %v3593 = vmin.f32 %v3591, %v3592
    %v3594 = vrot.slane %v3593, 2
    %v3595 = vmin.f32 %v3593, %v3594
    %v3596 = vrot.slane %v3595, 1
    %v3597 = vmin.f32 %v3595, %v3596
    %v3598 = vsel %vm171, %v3590, inf
    %v3599 = vrot.slane %v3598, 4
    %v3600 = vmin.f32 %v3598, %v3599
    %v3601 = vrot.slane %v3600, 2
    %v3602 = vmin.f32 %v3600, %v3601
    %v3603 = vrot.slane %v3602, 1
    %v3604 = vmin.f32 %v3602, %v3603
    %3605 = vmin.xlane.f32.xlu0 %v3597
    %v3606 = vpop.xlane.xlu0 %3605
    %3607 = vmin.xlane.f32.xlu0 %v3604
    %v3608 = vpop.xlane.xlu0 %3607
    %vm3609 = vcmp.eq.s32.totalorder %v27, 43
    %v3610 = vsel %vm3609, %v3584, %v3531
    %v3611 = vsel %vm3609, %v3586, %v3532
    %v3612 = vsel %vm3609, %v3606, %v3533
    %v3613 = vsel %vm3609, %v3608, %v3534
    %v3614 = vsub.f32 %v3584, %v187
    %v3615 = vsub.f32 %v3586, %v189
    %v3616 = vmul.f32 %v3614, %v22
    %v3617 = vmul.f32 %v3615, %v23
    %v3618 = vmul.f32 %v3616, 1.442695
    %v3619 = vpow.pop %v3618
    %v3620 = vmul.f32 %v3617, 1.442695
    %v3621 = vpow.pop %v3620
    %v3622 = vadd.f32 %v3543, %v3619
    %v3623 = vadd.f32 %v3544, %v3621
    %3625 = vset.pattern.permute.xlu0 1
    %3626 = vperm.xlu0 %3625, %v3622
    %v3627 = vpop.permute.xlu0 %3626
    %v3629 = vlaneseq
    %v3630 = vshrl.u32 %v3629, 7
    %v3631 = vsub.s32 0, %v3630
    %v3632 = vrot.slane %v3627, %v3631
    %3634 = vset.pattern.permute.xlu0 1
    %3635 = vperm.xlu0 %3634, %v3623
    %v3636 = vpop.permute.xlu0 %3635
    %v3638 = vlaneseq
    %v3639 = vshrl.u32 %v3638, 7
    %v3640 = vsub.s32 0, %v3639
    %v3641 = vrot.slane %v3636, %v3640
    %v3642 = vsel %vm3609, %v3632, %v3563
    %v3643 = vsel %vm3609, %v3641, %v3564
    %vm3644 = vcmp.eq.f32.partialorder %v30, %v3606
    %vm3645 = vcmp.eq.f32.partialorder %v30, %v3608
    %v3646 = vsel %vm3644, -inf, %v3567
    %v3647 = vsel %vm3645, -inf, %v3568
    %v3648 = vsel %vm171, %v3646, -inf
    %v3649 = vrot.slane %v3648, 4
    %v3650 = vmax.f32 %v3648, %v3649
    %v3651 = vrot.slane %v3650, 2
    %v3652 = vmax.f32 %v3650, %v3651
    %v3653 = vrot.slane %v3652, 1
    %v3654 = vmax.f32 %v3652, %v3653
    %v3655 = vsel %vm171, %v3647, -inf
    %v3656 = vrot.slane %v3655, 4
    %v3657 = vmax.f32 %v3655, %v3656
    %v3658 = vrot.slane %v3657, 2
    %v3659 = vmax.f32 %v3657, %v3658
    %v3660 = vrot.slane %v3659, 1
    %v3661 = vmax.f32 %v3659, %v3660
    %3662 = vmax.xlane.f32.xlu0 %v3654
    %v3663 = vpop.xlane.xlu0 %3662
    %3664 = vmax.xlane.f32.xlu0 %v3661
    %v3665 = vpop.xlane.xlu0 %3664
    %vm3666 = vcmp.eq.f32.partialorder %v3646, %v3663
    %vm3667 = vcmp.eq.f32.partialorder %v3647, %v3665
    %v3668 = vsel %vm3666, %v30, 512.0
    %v3669 = vsel %vm3667, %v30, 512.0
    %v3670 = vsel %vm171, %v3668, inf
    %v3671 = vrot.slane %v3670, 4
    %v3672 = vmin.f32 %v3670, %v3671
    %v3673 = vrot.slane %v3672, 2
    %v3674 = vmin.f32 %v3672, %v3673
    %v3675 = vrot.slane %v3674, 1
    %v3676 = vmin.f32 %v3674, %v3675
    %v3677 = vsel %vm171, %v3669, inf
    %v3678 = vrot.slane %v3677, 4
    %v3679 = vmin.f32 %v3677, %v3678
    %v3680 = vrot.slane %v3679, 2
    %v3681 = vmin.f32 %v3679, %v3680
    %v3682 = vrot.slane %v3681, 1
    %v3683 = vmin.f32 %v3681, %v3682
    %3684 = vmin.xlane.f32.xlu0 %v3676
    %v3685 = vpop.xlane.xlu0 %3684
    %3686 = vmin.xlane.f32.xlu0 %v3683
    %v3687 = vpop.xlane.xlu0 %3686
    %vm3688 = vcmp.eq.s32.totalorder %v27, 44
    %v3689 = vsel %vm3688, %v3663, %v3610
    %v3690 = vsel %vm3688, %v3665, %v3611
    %v3691 = vsel %vm3688, %v3685, %v3612
    %v3692 = vsel %vm3688, %v3687, %v3613
    %v3693 = vsub.f32 %v3663, %v187
    %v3694 = vsub.f32 %v3665, %v189
    %v3695 = vmul.f32 %v3693, %v22
    %v3696 = vmul.f32 %v3694, %v23
    %v3697 = vmul.f32 %v3695, 1.442695
    %v3698 = vpow.pop %v3697
    %v3699 = vmul.f32 %v3696, 1.442695
    %v3700 = vpow.pop %v3699
    %v3701 = vadd.f32 %v3622, %v3698
    %v3702 = vadd.f32 %v3623, %v3700
    %3704 = vset.pattern.permute.xlu0 1
    %3705 = vperm.xlu0 %3704, %v3701
    %v3706 = vpop.permute.xlu0 %3705
    %v3708 = vlaneseq
    %v3709 = vshrl.u32 %v3708, 7
    %v3710 = vsub.s32 0, %v3709
    %v3711 = vrot.slane %v3706, %v3710
    %3713 = vset.pattern.permute.xlu0 1
    %3714 = vperm.xlu0 %3713, %v3702
    %v3715 = vpop.permute.xlu0 %3714
    %v3717 = vlaneseq
    %v3718 = vshrl.u32 %v3717, 7
    %v3719 = vsub.s32 0, %v3718
    %v3720 = vrot.slane %v3715, %v3719
    %v3721 = vsel %vm3688, %v3711, %v3642
    %v3722 = vsel %vm3688, %v3720, %v3643
    %vm3723 = vcmp.eq.f32.partialorder %v30, %v3685
    %vm3724 = vcmp.eq.f32.partialorder %v30, %v3687
    %v3725 = vsel %vm3723, -inf, %v3646
    %v3726 = vsel %vm3724, -inf, %v3647
    %v3727 = vsel %vm171, %v3725, -inf
    %v3728 = vrot.slane %v3727, 4
    %v3729 = vmax.f32 %v3727, %v3728
    %v3730 = vrot.slane %v3729, 2
    %v3731 = vmax.f32 %v3729, %v3730
    %v3732 = vrot.slane %v3731, 1
    %v3733 = vmax.f32 %v3731, %v3732
    %v3734 = vsel %vm171, %v3726, -inf
    %v3735 = vrot.slane %v3734, 4
    %v3736 = vmax.f32 %v3734, %v3735
    %v3737 = vrot.slane %v3736, 2
    %v3738 = vmax.f32 %v3736, %v3737
    %v3739 = vrot.slane %v3738, 1
    %v3740 = vmax.f32 %v3738, %v3739
    %3741 = vmax.xlane.f32.xlu0 %v3733
    %v3742 = vpop.xlane.xlu0 %3741
    %3743 = vmax.xlane.f32.xlu0 %v3740
    %v3744 = vpop.xlane.xlu0 %3743
    %vm3745 = vcmp.eq.f32.partialorder %v3725, %v3742
    %vm3746 = vcmp.eq.f32.partialorder %v3726, %v3744
    %v3747 = vsel %vm3745, %v30, 512.0
    %v3748 = vsel %vm3746, %v30, 512.0
    %v3749 = vsel %vm171, %v3747, inf
    %v3750 = vrot.slane %v3749, 4
    %v3751 = vmin.f32 %v3749, %v3750
    %v3752 = vrot.slane %v3751, 2
    %v3753 = vmin.f32 %v3751, %v3752
    %v3754 = vrot.slane %v3753, 1
    %v3755 = vmin.f32 %v3753, %v3754
    %v3756 = vsel %vm171, %v3748, inf
    %v3757 = vrot.slane %v3756, 4
    %v3758 = vmin.f32 %v3756, %v3757
    %v3759 = vrot.slane %v3758, 2
    %v3760 = vmin.f32 %v3758, %v3759
    %v3761 = vrot.slane %v3760, 1
    %v3762 = vmin.f32 %v3760, %v3761
    %3763 = vmin.xlane.f32.xlu0 %v3755
    %v3764 = vpop.xlane.xlu0 %3763
    %3765 = vmin.xlane.f32.xlu0 %v3762
    %v3766 = vpop.xlane.xlu0 %3765
    %vm3767 = vcmp.eq.s32.totalorder %v27, 45
    %v3768 = vsel %vm3767, %v3742, %v3689
    %v3769 = vsel %vm3767, %v3744, %v3690
    %v3770 = vsel %vm3767, %v3764, %v3691
    %v3771 = vsel %vm3767, %v3766, %v3692
    %v3772 = vsub.f32 %v3742, %v187
    %v3773 = vsub.f32 %v3744, %v189
    %v3774 = vmul.f32 %v3772, %v22
    %v3775 = vmul.f32 %v3773, %v23
    %v3776 = vmul.f32 %v3774, 1.442695
    %v3777 = vpow.pop %v3776
    %v3778 = vmul.f32 %v3775, 1.442695
    %v3779 = vpow.pop %v3778
    %v3780 = vadd.f32 %v3701, %v3777
    %v3781 = vadd.f32 %v3702, %v3779
    %3783 = vset.pattern.permute.xlu0 1
    %3784 = vperm.xlu0 %3783, %v3780
    %v3785 = vpop.permute.xlu0 %3784
    %v3787 = vlaneseq
    %v3788 = vshrl.u32 %v3787, 7
    %v3789 = vsub.s32 0, %v3788
    %v3790 = vrot.slane %v3785, %v3789
    %3792 = vset.pattern.permute.xlu0 1
    %3793 = vperm.xlu0 %3792, %v3781
    %v3794 = vpop.permute.xlu0 %3793
    %v3796 = vlaneseq
    %v3797 = vshrl.u32 %v3796, 7
    %v3798 = vsub.s32 0, %v3797
    %v3799 = vrot.slane %v3794, %v3798
    %v3800 = vsel %vm3767, %v3790, %v3721
    %v3801 = vsel %vm3767, %v3799, %v3722
    %vm3802 = vcmp.eq.f32.partialorder %v30, %v3764
    %vm3803 = vcmp.eq.f32.partialorder %v30, %v3766
    %v3804 = vsel %vm3802, -inf, %v3725
    %v3805 = vsel %vm3803, -inf, %v3726
    %v3806 = vsel %vm171, %v3804, -inf
    %v3807 = vrot.slane %v3806, 4
    %v3808 = vmax.f32 %v3806, %v3807
    %v3809 = vrot.slane %v3808, 2
    %v3810 = vmax.f32 %v3808, %v3809
    %v3811 = vrot.slane %v3810, 1
    %v3812 = vmax.f32 %v3810, %v3811
    %v3813 = vsel %vm171, %v3805, -inf
    %v3814 = vrot.slane %v3813, 4
    %v3815 = vmax.f32 %v3813, %v3814
    %v3816 = vrot.slane %v3815, 2
    %v3817 = vmax.f32 %v3815, %v3816
    %v3818 = vrot.slane %v3817, 1
    %v3819 = vmax.f32 %v3817, %v3818
    %3820 = vmax.xlane.f32.xlu0 %v3812
    %v3821 = vpop.xlane.xlu0 %3820
    %3822 = vmax.xlane.f32.xlu0 %v3819
    %v3823 = vpop.xlane.xlu0 %3822
    %vm3824 = vcmp.eq.f32.partialorder %v3804, %v3821
    %vm3825 = vcmp.eq.f32.partialorder %v3805, %v3823
    %v3826 = vsel %vm3824, %v30, 512.0
    %v3827 = vsel %vm3825, %v30, 512.0
    %v3828 = vsel %vm171, %v3826, inf
    %v3829 = vrot.slane %v3828, 4
    %v3830 = vmin.f32 %v3828, %v3829
    %v3831 = vrot.slane %v3830, 2
    %v3832 = vmin.f32 %v3830, %v3831
    %v3833 = vrot.slane %v3832, 1
    %v3834 = vmin.f32 %v3832, %v3833
    %v3835 = vsel %vm171, %v3827, inf
    %v3836 = vrot.slane %v3835, 4
    %v3837 = vmin.f32 %v3835, %v3836
    %v3838 = vrot.slane %v3837, 2
    %v3839 = vmin.f32 %v3837, %v3838
    %v3840 = vrot.slane %v3839, 1
    %v3841 = vmin.f32 %v3839, %v3840
    %3842 = vmin.xlane.f32.xlu0 %v3834
    %v3843 = vpop.xlane.xlu0 %3842
    %3844 = vmin.xlane.f32.xlu0 %v3841
    %v3845 = vpop.xlane.xlu0 %3844
    %vm3846 = vcmp.eq.s32.totalorder %v27, 46
    %v3847 = vsel %vm3846, %v3821, %v3768
    %v3848 = vsel %vm3846, %v3823, %v3769
    %v3849 = vsel %vm3846, %v3843, %v3770
    %v3850 = vsel %vm3846, %v3845, %v3771
    %v3851 = vsub.f32 %v3821, %v187
    %v3852 = vsub.f32 %v3823, %v189
    %v3853 = vmul.f32 %v3851, %v22
    %v3854 = vmul.f32 %v3852, %v23
    %v3855 = vmul.f32 %v3853, 1.442695
    %v3856 = vpow.pop %v3855
    %v3857 = vmul.f32 %v3854, 1.442695
    %v3858 = vpow.pop %v3857
    %v3859 = vadd.f32 %v3780, %v3856
    %v3860 = vadd.f32 %v3781, %v3858
    %3862 = vset.pattern.permute.xlu0 1
    %3863 = vperm.xlu0 %3862, %v3859
    %v3864 = vpop.permute.xlu0 %3863
    %v3866 = vlaneseq
    %v3867 = vshrl.u32 %v3866, 7
    %v3868 = vsub.s32 0, %v3867
    %v3869 = vrot.slane %v3864, %v3868
    %3871 = vset.pattern.permute.xlu0 1
    %3872 = vperm.xlu0 %3871, %v3860
    %v3873 = vpop.permute.xlu0 %3872
    %v3875 = vlaneseq
    %v3876 = vshrl.u32 %v3875, 7
    %v3877 = vsub.s32 0, %v3876
    %v3878 = vrot.slane %v3873, %v3877
    %v3879 = vsel %vm3846, %v3869, %v3800
    %v3880 = vsel %vm3846, %v3878, %v3801
    %vm3881 = vcmp.eq.f32.partialorder %v30, %v3843
    %vm3882 = vcmp.eq.f32.partialorder %v30, %v3845
    %v3883 = vsel %vm3881, -inf, %v3804
    %v3884 = vsel %vm3882, -inf, %v3805
    %v3885 = vsel %vm171, %v3883, -inf
    %v3886 = vrot.slane %v3885, 4
    %v3887 = vmax.f32 %v3885, %v3886
    %v3888 = vrot.slane %v3887, 2
    %v3889 = vmax.f32 %v3887, %v3888
    %v3890 = vrot.slane %v3889, 1
    %v3891 = vmax.f32 %v3889, %v3890
    %v3892 = vsel %vm171, %v3884, -inf
    %v3893 = vrot.slane %v3892, 4
    %v3894 = vmax.f32 %v3892, %v3893
    %v3895 = vrot.slane %v3894, 2
    %v3896 = vmax.f32 %v3894, %v3895
    %v3897 = vrot.slane %v3896, 1
    %v3898 = vmax.f32 %v3896, %v3897
    %3899 = vmax.xlane.f32.xlu0 %v3891
    %v3900 = vpop.xlane.xlu0 %3899
    %3901 = vmax.xlane.f32.xlu0 %v3898
    %v3902 = vpop.xlane.xlu0 %3901
    %vm3903 = vcmp.eq.f32.partialorder %v3883, %v3900
    %vm3904 = vcmp.eq.f32.partialorder %v3884, %v3902
    %v3905 = vsel %vm3903, %v30, 512.0
    %v3906 = vsel %vm3904, %v30, 512.0
    %v3907 = vsel %vm171, %v3905, inf
    %v3908 = vrot.slane %v3907, 4
    %v3909 = vmin.f32 %v3907, %v3908
    %v3910 = vrot.slane %v3909, 2
    %v3911 = vmin.f32 %v3909, %v3910
    %v3912 = vrot.slane %v3911, 1
    %v3913 = vmin.f32 %v3911, %v3912
    %v3914 = vsel %vm171, %v3906, inf
    %v3915 = vrot.slane %v3914, 4
    %v3916 = vmin.f32 %v3914, %v3915
    %v3917 = vrot.slane %v3916, 2
    %v3918 = vmin.f32 %v3916, %v3917
    %v3919 = vrot.slane %v3918, 1
    %v3920 = vmin.f32 %v3918, %v3919
    %3921 = vmin.xlane.f32.xlu0 %v3913
    %v3922 = vpop.xlane.xlu0 %3921
    %3923 = vmin.xlane.f32.xlu0 %v3920
    %v3924 = vpop.xlane.xlu0 %3923
    %vm3925 = vcmp.eq.s32.totalorder %v27, 47
    %v3926 = vsel %vm3925, %v3900, %v3847
    %v3927 = vsel %vm3925, %v3902, %v3848
    %v3928 = vsel %vm3925, %v3922, %v3849
    %v3929 = vsel %vm3925, %v3924, %v3850
    %v3930 = vsub.f32 %v3900, %v187
    %v3931 = vsub.f32 %v3902, %v189
    %v3932 = vmul.f32 %v3930, %v22
    %v3933 = vmul.f32 %v3931, %v23
    %v3934 = vmul.f32 %v3932, 1.442695
    %v3935 = vpow.pop %v3934
    %v3936 = vmul.f32 %v3933, 1.442695
    %v3937 = vpow.pop %v3936
    %v3938 = vadd.f32 %v3859, %v3935
    %v3939 = vadd.f32 %v3860, %v3937
    %3941 = vset.pattern.permute.xlu0 1
    %3942 = vperm.xlu0 %3941, %v3938
    %v3943 = vpop.permute.xlu0 %3942
    %v3945 = vlaneseq
    %v3946 = vshrl.u32 %v3945, 7
    %v3947 = vsub.s32 0, %v3946
    %v3948 = vrot.slane %v3943, %v3947
    %3950 = vset.pattern.permute.xlu0 1
    %3951 = vperm.xlu0 %3950, %v3939
    %v3952 = vpop.permute.xlu0 %3951
    %v3954 = vlaneseq
    %v3955 = vshrl.u32 %v3954, 7
    %v3956 = vsub.s32 0, %v3955
    %v3957 = vrot.slane %v3952, %v3956
    %v3958 = vsel %vm3925, %v3948, %v3879
    %v3959 = vsel %vm3925, %v3957, %v3880
    %vm3960 = vcmp.eq.f32.partialorder %v30, %v3922
    %vm3961 = vcmp.eq.f32.partialorder %v30, %v3924
    %v3962 = vsel %vm3960, -inf, %v3883
    %v3963 = vsel %vm3961, -inf, %v3884
    %v3964 = vsel %vm171, %v3962, -inf
    %v3965 = vrot.slane %v3964, 4
    %v3966 = vmax.f32 %v3964, %v3965
    %v3967 = vrot.slane %v3966, 2
    %v3968 = vmax.f32 %v3966, %v3967
    %v3969 = vrot.slane %v3968, 1
    %v3970 = vmax.f32 %v3968, %v3969
    %v3971 = vsel %vm171, %v3963, -inf
    %v3972 = vrot.slane %v3971, 4
    %v3973 = vmax.f32 %v3971, %v3972
    %v3974 = vrot.slane %v3973, 2
    %v3975 = vmax.f32 %v3973, %v3974
    %v3976 = vrot.slane %v3975, 1
    %v3977 = vmax.f32 %v3975, %v3976
    %3978 = vmax.xlane.f32.xlu0 %v3970
    %v3979 = vpop.xlane.xlu0 %3978
    %3980 = vmax.xlane.f32.xlu0 %v3977
    %v3981 = vpop.xlane.xlu0 %3980
    %vm3982 = vcmp.eq.f32.partialorder %v3962, %v3979
    %vm3983 = vcmp.eq.f32.partialorder %v3963, %v3981
    %v3984 = vsel %vm3982, %v30, 512.0
    %v3985 = vsel %vm3983, %v30, 512.0
    %v3986 = vsel %vm171, %v3984, inf
    %v3987 = vrot.slane %v3986, 4
    %v3988 = vmin.f32 %v3986, %v3987
    %v3989 = vrot.slane %v3988, 2
    %v3990 = vmin.f32 %v3988, %v3989
    %v3991 = vrot.slane %v3990, 1
    %v3992 = vmin.f32 %v3990, %v3991
    %v3993 = vsel %vm171, %v3985, inf
    %v3994 = vrot.slane %v3993, 4
    %v3995 = vmin.f32 %v3993, %v3994
    %v3996 = vrot.slane %v3995, 2
    %v3997 = vmin.f32 %v3995, %v3996
    %v3998 = vrot.slane %v3997, 1
    %v3999 = vmin.f32 %v3997, %v3998
    %4000 = vmin.xlane.f32.xlu0 %v3992
    %v4001 = vpop.xlane.xlu0 %4000
    %4002 = vmin.xlane.f32.xlu0 %v3999
    %v4003 = vpop.xlane.xlu0 %4002
    %vm4004 = vcmp.eq.s32.totalorder %v27, 48
    %v4005 = vsel %vm4004, %v3979, %v3926
    %v4006 = vsel %vm4004, %v3981, %v3927
    %v4007 = vsel %vm4004, %v4001, %v3928
    %v4008 = vsel %vm4004, %v4003, %v3929
    %v4009 = vsub.f32 %v3979, %v187
    %v4010 = vsub.f32 %v3981, %v189
    %v4011 = vmul.f32 %v4009, %v22
    %v4012 = vmul.f32 %v4010, %v23
    %v4013 = vmul.f32 %v4011, 1.442695
    %v4014 = vpow.pop %v4013
    %v4015 = vmul.f32 %v4012, 1.442695
    %v4016 = vpow.pop %v4015
    %v4017 = vadd.f32 %v3938, %v4014
    %v4018 = vadd.f32 %v3939, %v4016
    %4020 = vset.pattern.permute.xlu0 1
    %4021 = vperm.xlu0 %4020, %v4017
    %v4022 = vpop.permute.xlu0 %4021
    %v4024 = vlaneseq
    %v4025 = vshrl.u32 %v4024, 7
    %v4026 = vsub.s32 0, %v4025
    %v4027 = vrot.slane %v4022, %v4026
    %4029 = vset.pattern.permute.xlu0 1
    %4030 = vperm.xlu0 %4029, %v4018
    %v4031 = vpop.permute.xlu0 %4030
    %v4033 = vlaneseq
    %v4034 = vshrl.u32 %v4033, 7
    %v4035 = vsub.s32 0, %v4034
    %v4036 = vrot.slane %v4031, %v4035
    %v4037 = vsel %vm4004, %v4027, %v3958
    %v4038 = vsel %vm4004, %v4036, %v3959
    %vm4039 = vcmp.eq.f32.partialorder %v30, %v4001
    %vm4040 = vcmp.eq.f32.partialorder %v30, %v4003
    %v4041 = vsel %vm4039, -inf, %v3962
    %v4042 = vsel %vm4040, -inf, %v3963
    %v4043 = vsel %vm171, %v4041, -inf
    %v4044 = vrot.slane %v4043, 4
    %v4045 = vmax.f32 %v4043, %v4044
    %v4046 = vrot.slane %v4045, 2
    %v4047 = vmax.f32 %v4045, %v4046
    %v4048 = vrot.slane %v4047, 1
    %v4049 = vmax.f32 %v4047, %v4048
    %v4050 = vsel %vm171, %v4042, -inf
    %v4051 = vrot.slane %v4050, 4
    %v4052 = vmax.f32 %v4050, %v4051
    %v4053 = vrot.slane %v4052, 2
    %v4054 = vmax.f32 %v4052, %v4053
    %v4055 = vrot.slane %v4054, 1
    %v4056 = vmax.f32 %v4054, %v4055
    %4057 = vmax.xlane.f32.xlu0 %v4049
    %v4058 = vpop.xlane.xlu0 %4057
    %4059 = vmax.xlane.f32.xlu0 %v4056
    %v4060 = vpop.xlane.xlu0 %4059
    %vm4061 = vcmp.eq.f32.partialorder %v4041, %v4058
    %vm4062 = vcmp.eq.f32.partialorder %v4042, %v4060
    %v4063 = vsel %vm4061, %v30, 512.0
    %v4064 = vsel %vm4062, %v30, 512.0
    %v4065 = vsel %vm171, %v4063, inf
    %v4066 = vrot.slane %v4065, 4
    %v4067 = vmin.f32 %v4065, %v4066
    %v4068 = vrot.slane %v4067, 2
    %v4069 = vmin.f32 %v4067, %v4068
    %v4070 = vrot.slane %v4069, 1
    %v4071 = vmin.f32 %v4069, %v4070
    %v4072 = vsel %vm171, %v4064, inf
    %v4073 = vrot.slane %v4072, 4
    %v4074 = vmin.f32 %v4072, %v4073
    %v4075 = vrot.slane %v4074, 2
    %v4076 = vmin.f32 %v4074, %v4075
    %v4077 = vrot.slane %v4076, 1
    %v4078 = vmin.f32 %v4076, %v4077
    %4079 = vmin.xlane.f32.xlu0 %v4071
    %v4080 = vpop.xlane.xlu0 %4079
    %4081 = vmin.xlane.f32.xlu0 %v4078
    %v4082 = vpop.xlane.xlu0 %4081
    %vm4083 = vcmp.eq.s32.totalorder %v27, 49
    %v4084 = vsel %vm4083, %v4058, %v4005
    %v4085 = vsel %vm4083, %v4060, %v4006
    %v4086 = vsel %vm4083, %v4080, %v4007
    %v4087 = vsel %vm4083, %v4082, %v4008
    %v4088 = vsub.f32 %v4058, %v187
    %v4089 = vsub.f32 %v4060, %v189
    %v4090 = vmul.f32 %v4088, %v22
    %v4091 = vmul.f32 %v4089, %v23
    %v4092 = vmul.f32 %v4090, 1.442695
    %v4093 = vpow.pop %v4092
    %v4094 = vmul.f32 %v4091, 1.442695
    %v4095 = vpow.pop %v4094
    %v4096 = vadd.f32 %v4017, %v4093
    %v4097 = vadd.f32 %v4018, %v4095
    %4099 = vset.pattern.permute.xlu0 1
    %4100 = vperm.xlu0 %4099, %v4096
    %v4101 = vpop.permute.xlu0 %4100
    %v4103 = vlaneseq
    %v4104 = vshrl.u32 %v4103, 7
    %v4105 = vsub.s32 0, %v4104
    %v4106 = vrot.slane %v4101, %v4105
    %4108 = vset.pattern.permute.xlu0 1
    %4109 = vperm.xlu0 %4108, %v4097
    %v4110 = vpop.permute.xlu0 %4109
    %v4112 = vlaneseq
    %v4113 = vshrl.u32 %v4112, 7
    %v4114 = vsub.s32 0, %v4113
    %v4115 = vrot.slane %v4110, %v4114
    %v4116 = vsel %vm4083, %v4106, %v4037
    %v4117 = vsel %vm4083, %v4115, %v4038
    %4118 = vset.pattern.permute.xlu0 1
    %4119 = vperm.xlu0 %4118, %v22
    %v4120 = vpop.permute.xlu0 %4119
    %v4122 = vlaneseq
    %v4123 = vshrl.u32 %v4122, 7
    %v4124 = vsub.s32 0, %v4123
    %v4125 = vrot.slane %v4120, %v4124
    %4126 = vset.pattern.permute.xlu0 1
    %4127 = vperm.xlu0 %4126, %v23
    %v4128 = vpop.permute.xlu0 %4127
    %v4130 = vlaneseq
    %v4131 = vshrl.u32 %v4130, 7
    %v4132 = vsub.s32 0, %v4131
    %v4133 = vrot.slane %v4128, %v4132
    %v4134 = vmul.f32 %v4084, %v4125
    %v4135 = vmul.f32 %v4085, %v4133
    %4136 = vrot.lane.b32.xlu0 %v4096, 127
    %v4137 = vpop.permute.xlu0 %4136
    %4138 = vrot.lane.b32.xlu0 %v4097, 127
    %v4139 = vpop.permute.xlu0 %4138
    %v4142 = vmul.f32 %v22, %v4137
    %v4143 = vmul.f32 %v23, %v4139
    %4145 = vset.pattern.permute.xlu0 0
    %4146 = vperm.xlu0 %4145, %v4142
    %v4147 = vpop.permute.xlu0 %4146
    %v4149 = vlaneseq
    %v4150 = vshrl.u32 %v4149, 7
    %v4151 = vsub.s32 0, %v4150
    %v4152 = vrot.slane %v4147, %v4151
    %4154 = vset.pattern.permute.xlu0 0
    %4155 = vperm.xlu0 %4154, %v4143
    %v4156 = vpop.permute.xlu0 %4155
    %v4158 = vlaneseq
    %v4159 = vshrl.u32 %v4158, 7
    %v4160 = vsub.s32 0, %v4159
    %v4161 = vrot.slane %v4156, %v4160
    %vm4162 = vcmp.lt.f32.partialorder %v4116, %v4152
    %vm4163 = vcmp.lt.f32.partialorder %v4117, %v4161
    %vm4164 = vcmp.lt.s32.totalorder %v27, 5
    %vm4165 = vmor %vm4162, %vm4164
    %vm4166 = vmor %vm4163, %vm4164
    %vm4167 = vcmp.lt.s32.totalorder %v27, 50
    %v4168 = vsel %vm4165, %v4134, -1000.0
    %v4169 = vsel %vm4166, %v4135, -1000.0
    %v4170 = vsel %vm4167, %v4168, -inf
    %v4171 = vsel %vm4167, %v4169, -inf
    %4172 = vmax.xlane.f32.xlu0 %v4170
    %v4173 = vpop.xlane.xlu0 %4172
    %4174 = vmax.xlane.f32.xlu0 %v4171
    %v4175 = vpop.xlane.xlu0 %4174
    %v4176 = vsub.f32 %v4170, %v4173
    %v4177 = vsub.f32 %v4171, %v4175
    %v4178 = vmul.f32 %v4176, 1.442695
    %v4179 = vpow.pop %v4178
    %v4180 = vmul.f32 %v4177, 1.442695
    %v4181 = vpow.pop %v4180
    %4182 = vadd.xlane.f32.xlu0 %v4179
    %v4183 = vpop.xlane.xlu0 %4182
    %4184 = vadd.xlane.f32.xlu0 %v4181
    %v4185 = vpop.xlane.xlu0 %4184
    %v4186 = vrcp.pop %v4183
    %v4187 = vmul.f32 %v4179, %v4186
    %v4188 = vrcp.pop %v4185
    %v4189 = vmul.f32 %v4181, %v4188
    %4190 = vst [vmem:[#allocation2] sm:$0x1] %v4187
    %4191 = vst [vmem:[#allocation2 + $0x1] sm:$0x1] %v4189
    %v4192 = vcvt.f32.s32.to.zero.pseudo %v4086
    %v4193 = vcvt.f32.s32.to.zero.pseudo %v4087
    %4194 = vst [vmem:[#allocation4] sm:$0x1] %v4192
    %4195 = vst [vmem:[#allocation4 + $0x1] sm:$0x1] %v4193
    // Predicated region
    $region14: #{penalty_sample_head.1} parent=1 // pred_check
      _
    $region15: #{penalty_sample_head.1} parent=1 // pred_check_branch
      %4197 = sbr.rel (0) target = $region17
    $region16: #{penalty_sample_head.1} parent=1 // pred_region
      %s4199 = ssub.s32 32, 32
      %4200 = vsyncadd [#allocation3], %s4199
      %s4201 = sshll.u32 [#allocation2], 4
      %s4202 = int_to_ptr.vmem [resolvable:$true] %s4201
      %4207 = dma.vmem_to_hbm [thread:$0]  %s4202, 32, %s3, [#allocation3], 16, 16, 1
    $region17: #{penalty_sample_head.1} parent=1 // pred_fallthru
      _
    // Predicated region
    $region18: #{penalty_sample_head.1} parent=1 // pred_check
      _
    $region19: #{penalty_sample_head.1} parent=1 // pred_check_branch
      %4209 = sbr.rel (0) target = $region21
    $region20: #{penalty_sample_head.1} parent=1 // pred_region
      %s4211 = ssub.s32 32, 32
      %4212 = vsyncadd [#allocation5], %s4211
      %s4213 = sshll.u32 [#allocation4], 4
      %s4214 = int_to_ptr.vmem [resolvable:$true] %s4213
      %4219 = dma.vmem_to_hbm [thread:$0]  %s4214, 32, %s4, [#allocation5], 16, 16, 1
    $region21: #{penalty_sample_head.1} parent=1 // pred_fallthru
      _
    // Predicated region
    $region22: #{penalty_sample_head.1} parent=1 // pred_check
      _
    $region23: #{penalty_sample_head.1} parent=1 // pred_check_branch
      %4221 = sbr.rel (0) target = $region25
    $region24: #{penalty_sample_head.1} parent=1 // pred_region
      %4222 = dma.done [#allocation3], 32
    $region25: #{penalty_sample_head.1} parent=1 // pred_fallthru
      _
    // Predicated region
    $region26: #{penalty_sample_head.1} parent=1 // pred_check
      _
    $region27: #{penalty_sample_head.1} parent=1 // pred_check_branch
      %4224 = sbr.rel (0) target = $region29
    $region28: #{penalty_sample_head.1} parent=1 // pred_region
      %4225 = dma.done [#allocation5], 32
    $region29: #{penalty_sample_head.1} parent=1 // pred_fallthru
      _
    %4226 = vsyncpa [#allocation3], 1
    %4227 = vsyncpa [#allocation5], 1

</llo_original>
